<compile_context>
chip_gen: v7x
topology: tpu7x:2x2x1
jax: 0.10.0
libtpu: 0.0.40
codegen_flags: <defaults>
</compile_context>

<pallas_src>
import functools

import numpy as np
import jax
import jax.numpy as jnp
from jax.experimental import pallas as pl
from jax.experimental.pallas import tpu as pltpu


# ----------------------------------------------------------------------------
# Host-side constant tables / helpers
# ----------------------------------------------------------------------------
def _round_up(x, m):
    return (x + m - 1) // m * m


def _default_compute_dtype():
    """bf16 element-wise/matmul path on v6e/v7x (bf16 VPU+MXU); f32 elsewhere."""
    try:
        kind = jax.devices()[0].device_kind.lower()
    except Exception:
        return jnp.float32
    if any(tag in kind for tag in ("v6", "v7", "7x")):
        return jnp.bfloat16
    return jnp.float32


def _build_tap_masks(H, W):
    """Non-trivial 0/1 validity masks for the 9 conv taps (padding=1).

    Returns (masks[NM, H*W] float32, mask_rows: tuple of 9 ints, -1 == all-ones mask
    that can be skipped).  A tap is only marked skippable when it is the center tap
    (shift==0), so skipping never exposes a roll wrap-around position.
    """
    hh, ww = np.meshgrid(np.arange(H), np.arange(W), indexing="ij")
    hh = hh.reshape(-1)
    ww = ww.reshape(-1)
    rows, mask_rows = [], []
    for dy in (-1, 0, 1):
        for dx in (-1, 0, 1):
            valid = ((hh + dy >= 0) & (hh + dy < H) &
                     (ww + dx >= 0) & (ww + dx < W)).astype(np.float32)
            if valid.all() and dy == 0 and dx == 0:
                mask_rows.append(-1)          # trivially all-ones -> skip multiply
            else:
                mask_rows.append(len(rows))
                rows.append(valid)
    if not rows:                              # degenerate guard; never hit for H,W>=2
        rows.append(np.ones(H * W, np.float32))
    return np.stack(rows, axis=0), tuple(mask_rows)


def _build_pool_select(H, W):
    """(H*W, Ho*Wo) float32 0/1 matrix selecting the even-(h,w) pool anchors."""
    Ho, Wo = H // 2, W // 2
    S = np.zeros((H * W, Ho * Wo), np.float32)
    for q in range(Ho * Wo):
        ho, wo = q // Wo, q % Wo
        S[(2 * ho) * W + 2 * wo, q] = 1.0
    return S


# ----------------------------------------------------------------------------
# Fused kernel: batch_block images per grid step, 3 convs + pool fully in VMEM.
# ----------------------------------------------------------------------------
def fused_encoder_kernel(masks_ref, sel_ref, x_ref,
                         w1_ref, b1_ref, w2_ref, b2_ref, w3_ref, b3_ref,
                         conv_ref, pool_ref, *,
                         H, W, batch_block, mask_rows, compute_dtype):
    cdt = compute_dtype
    taps = tuple((dy, dx) for dy in (-1, 0, 1) for dx in (-1, 0, 1))

    def conv3x3_relu(a_c, w_ref, b_ref):
        # a_c: (C, H*W) in compute dtype.  Per-tap accumulation: 9 small
        # K=C dots into an f32 accumulator; padding=1 handled by the 0/1 masks
        # (the circular roll wrap positions are exactly the masked-out ones).
        C = a_c.shape[0]
        acc = None
        for t, (dy, dx) in enumerate(taps):
            shift = dy * W + dx
            s = a_c if shift == 0 else jnp.roll(a_c, -shift, axis=1)
            m = mask_rows[t]
            if m >= 0:                              # skip all-ones (center) mask
                s = s * masks_ref[m][:C, :]
            c = jnp.dot(w_ref[t], s, preferred_element_type=jnp.float32)
            acc = c if acc is None else acc + c
        return jnp.maximum(acc + b_ref[...], 0.0)    # f32 (Cout, H*W)

    sel = sel_ref[...]                               # (H*W, Ho*Wo) f32 0/1

    # Static unroll over the images folded into this grid step (amortizes the
    # fixed per-grid-step overhead; each image's lane axis stays 256 = lane-dense).
    for b in range(batch_block):
        a = x_ref[b].astype(cdt)                     # (Cin_p, H*W)
        a = conv3x3_relu(a, w1_ref, b1_ref).astype(cdt)
        a = conv3x3_relu(a, w2_ref, b2_ref).astype(cdt)
        a_f32 = conv3x3_relu(a, w3_ref, b3_ref)      # keep f32 for the outputs
        conv_ref[b] = a_f32.astype(conv_ref.dtype)   # lane-dense (Cout_p, 256) store

        # Fused 2x2 stride-2 max pool on the f32 activations (exact max of the
        # stored conv values): two pairwise roll-maxes, then a 0/1 selection
        # matmul gathering the even-(h,w) anchors.
        # TODO(synk): replace the dense selection matmul / make pool lane-dense
        #             before scaling H/W (see header note).
        mval = jnp.maximum(a_f32, jnp.roll(a_f32, -1, axis=1))
        mval = jnp.maximum(mval, jnp.roll(mval, -W, axis=1))
        pool_ref[b] = jnp.dot(mval, sel,
                              preferred_element_type=jnp.float32).astype(pool_ref.dtype)


# ----------------------------------------------------------------------------
# Wrapper: NCHW in, NCHW out.
# ----------------------------------------------------------------------------
def bnm_encoder_forward(params, x_nchw, pooling=True, compute_dtype=None,
                        batch_block=None):
    if compute_dtype is None:
        compute_dtype = _default_compute_dtype()

    N, Cin, H, W = x_nchw.shape
    assert H >= 2 and W >= 2 and H % 2 == 0 and W % 2 == 0, \
        "2x2/2 max-pool expects even H, W"

    w1, b1 = params["conv_1"]
    w2, b2 = params["conv_2"]
    w3, b3 = params["conv_3"]
    Cout = w1.shape[0]

    Cin_p = _round_up(Cin, 8)          # sublane-align every (C, H*W) chunk
    Cout_p = _round_up(Cout, 8)
    Cmax = max(Cin_p, Cout_p)
    HW = H * W
    Ho, Wo = H // 2, W // 2
    HoWo = Ho * Wo

    if batch_block is None:
        # Fold 2 images per grid step when possible (amortize ~0.35us/step).
        # NOTE(v7x): with 2 TCs keep the grid length >= 2 for large N; here
        # N//batch_block grows naturally with N.
        batch_block = 2 if (N >= 2 and N % 2 == 0) else 1
    assert N % batch_block == 0, (N, batch_block)

    # Free (contiguous) reshape NCHW -> (N, C, H*W); zero-pad channels to Cin_p.
    x_flat = x_nchw.reshape(N, Cin, HW)
    if Cin_p > Cin:
        x_flat = jnp.pad(x_flat, ((0, 0), (0, Cin_p - Cin), (0, 0)))

    masks_np, mask_rows = _build_tap_masks(H, W)
    NM = masks_np.shape[0]
    # Pre-broadcast masks over channels so the kernel does no per-tap broadcast.
    masks = jnp.asarray(np.repeat(masks_np[:, None, :], Cmax, axis=1),
                        dtype=compute_dtype)                      # (NM, Cmax, HW)
    sel = jnp.asarray(_build_pool_select(H, W))                    # (HW, HoWo) f32

    def to_tap_major(w, cin_pad):
        # OIHW (Cout, Cin, 3, 3) -> (9, Cout_p, cin_pad), tap-major, zero-padded.
        co, ci, kh, kw = w.shape
        wt = jnp.transpose(w, (2, 3, 0, 1)).reshape(kh * kw, co, ci)
        wt = jnp.pad(wt, ((0, 0), (0, Cout_p - co), (0, cin_pad - ci)))
        return wt.astype(compute_dtype)

    def pad_bias(b):
        return jnp.pad(b, (0, Cout_p - b.shape[0])).reshape(-1, 1).astype(jnp.float32)

    w1t, w2t, w3t = to_tap_major(w1, Cin_p), to_tap_major(w2, Cout_p), to_tap_major(w3, Cout_p)
    b1c, b2c, b3c = pad_bias(b1), pad_bias(b2), pad_bias(b3)

    kernel = functools.partial(fused_encoder_kernel, H=H, W=W,
                               batch_block=batch_block, mask_rows=mask_rows,
                               compute_dtype=compute_dtype)

    conv_flat, pool_flat = pl.pallas_call(
        kernel,
        out_shape=(
            jax.ShapeDtypeStruct((N, Cout_p, HW), x_nchw.dtype),
            jax.ShapeDtypeStruct((N, Cout_p, HoWo), x_nchw.dtype),
        ),
        grid_spec=pltpu.PrefetchScalarGridSpec(
            num_scalar_prefetch=0,
            grid=(N // batch_block,),
            in_specs=[
                pl.BlockSpec((NM, Cmax, HW), lambda g: (0, 0, 0)),        # tap masks
                pl.BlockSpec((HW, HoWo), lambda g: (0, 0)),               # pool select
                pl.BlockSpec((batch_block, Cin_p, HW), lambda g: (g, 0, 0)),   # x
                pl.BlockSpec((9, Cout_p, Cin_p), lambda g: (0, 0, 0)),    # w1 (tap-major)
                pl.BlockSpec((Cout_p, 1), lambda g: (0, 0)),              # b1
                pl.BlockSpec((9, Cout_p, Cout_p), lambda g: (0, 0, 0)),   # w2
                pl.BlockSpec((Cout_p, 1), lambda g: (0, 0)),              # b2
                pl.BlockSpec((9, Cout_p, Cout_p), lambda g: (0, 0, 0)),   # w3
                pl.BlockSpec((Cout_p, 1), lambda g: (0, 0)),              # b3
            ],
            out_specs=(
                pl.BlockSpec((batch_block, Cout_p, HW), lambda g: (g, 0, 0)),
                pl.BlockSpec((batch_block, Cout_p, HoWo), lambda g: (g, 0, 0)),
            ),
        ),
        compiler_params=pltpu.CompilerParams(
            dimension_semantics=("parallel",)),
    )(masks, sel, x_flat, w1t, b1c, w2t, b2c, w3t, b3c)

    conv = conv_flat[:, :Cout, :].reshape(N, Cout, H, W)
    if pooling:
        pool = pool_flat[:, :Cout, :].reshape(N, Cout, Ho, Wo)
        return conv, pool
    return conv


# ----------------------------------------------------------------------------
# Params (PyTorch OIHW layout) + pure-JAX reference for correctness check.
# ----------------------------------------------------------------------------
def init_bnm_encoder_params(key, input_channels, output_channels, dtype=jnp.float32):
    ks = jax.random.split(key, 6)

    def conv_params(kw, kb, cin, cout):
        w = 0.1 * jax.random.normal(kw, (cout, cin, 3, 3), dtype)   # OIHW
        b = 0.05 * jax.random.normal(kb, (cout,), dtype)
        return w, b

    return {
        "conv_1": conv_params(ks[0], ks[1], input_channels, output_channels),
        "conv_2": conv_params(ks[2], ks[3], output_channels, output_channels),
        "conv_3": conv_params(ks[4], ks[5], output_channels, output_channels),
    }


def reference_forward(params, x):
    def conv(x, w, b):
        y = jax.lax.conv_general_dilated(
            x, w, window_strides=(1, 1), padding=((1, 1), (1, 1)),
            dimension_numbers=("NCHW", "OIHW", "NCHW"))
        return jax.nn.relu(y + b.reshape(1, -1, 1, 1))

    y = conv(x, *params["conv_1"])
    y = conv(y, *params["conv_2"])
    y = conv(y, *params["conv_3"])
    pool = jax.lax.reduce_window(y, -jnp.inf, jax.lax.max,
                                 (1, 1, 2, 2), (1, 1, 2, 2), "VALID")
    return y, pool


if __name__ == "__main__":
    key = jax.random.PRNGKey(0)
    k_x, k_p = jax.random.split(key)

    N, Cin, H, W = 2, 4, 16, 16
    Cout = 8

    x = jax.random.normal(k_x, (N, Cin, H, W), jnp.float32)   # NCHW like PyTorch
    params = init_bnm_encoder_params(k_p, Cin, Cout)
    ref_conv, ref_pool = reference_forward(params, x)

    # f32 compute path: bit-tight check against the XLA reference.
    conv, pool = bnm_encoder_forward(params, x, pooling=True,
                                     compute_dtype=jnp.float32)
    jax.block_until_ready((conv, pool))
    assert conv.shape == (N, Cout, H, W), conv.shape
    assert pool.shape == (N, Cout, H // 2, W // 2), pool.shape
    assert jnp.allclose(conv, ref_conv, atol=1e-4, rtol=1e-4), \
        float(jnp.max(jnp.abs(conv - ref_conv)))
    assert jnp.allclose(pool, ref_pool, atol=1e-4, rtol=1e-4), \
        float(jnp.max(jnp.abs(pool - ref_pool)))

    # Generation-aware bf16 operand path (v6e/v7x only): loose numeric check.
    if _default_compute_dtype() == jnp.bfloat16:
        conv_b, pool_b = bnm_encoder_forward(params, x, pooling=True,
                                             compute_dtype=jnp.bfloat16)
        jax.block_until_ready((conv_b, pool_b))
        assert jnp.allclose(conv_b, ref_conv, atol=5e-2, rtol=5e-2), \
            float(jnp.max(jnp.abs(conv_b - ref_conv)))
        assert jnp.allclose(pool_b, ref_pool, atol=5e-2, rtol=5e-2), \
            float(jnp.max(jnp.abs(pool_b - ref_pool)))

    print("KERNEL_OK")
</pallas_src>

<mosaic_0001>
module attributes {stable_mosaic.version = 11 : i64} {
  func.func @fused_encoder_kernel(%arg0: i32, %arg1: memref<8x8x256xf32, #tpu.memory_space<vmem>>, %arg2: memref<256x64xf32, #tpu.memory_space<vmem>>, %arg3: memref<2x8x256xf32, #tpu.memory_space<vmem>>, %arg4: memref<9x8x8xf32, #tpu.memory_space<vmem>>, %arg5: memref<8x1xf32, #tpu.memory_space<vmem>>, %arg6: memref<9x8x8xf32, #tpu.memory_space<vmem>>, %arg7: memref<8x1xf32, #tpu.memory_space<vmem>>, %arg8: memref<9x8x8xf32, #tpu.memory_space<vmem>>, %arg9: memref<8x1xf32, #tpu.memory_space<vmem>>, %arg10: memref<2x8x256xf32, #tpu.memory_space<vmem>>, %arg11: memref<2x8x64xf32, #tpu.memory_space<vmem>>) attributes {dimension_semantics = [#tpu.dimension_semantics<parallel>], iteration_bounds = array<i64: 1>, scalar_prefetch = 0 : i64, scratch_operands = 0 : i64, tpu.core_type = #tpu.core_type<tc>, window_params = [{pipeline_mode = #tpu.pipeline_mode<synchronous>, transform_indices = @transform_0, window_bounds = array<i64: 8, 8, 256>}, {pipeline_mode = #tpu.pipeline_mode<synchronous>, transform_indices = @transform_1, window_bounds = array<i64: 256, 64>}, {transform_indices = @transform_2, window_bounds = array<i64: 2, 8, 256>}, {pipeline_mode = #tpu.pipeline_mode<synchronous>, transform_indices = @transform_3, window_bounds = array<i64: 9, 8, 8>}, {pipeline_mode = #tpu.pipeline_mode<synchronous>, transform_indices = @transform_4, window_bounds = array<i64: 8, 1>}, {pipeline_mode = #tpu.pipeline_mode<synchronous>, transform_indices = @transform_5, window_bounds = array<i64: 9, 8, 8>}, {pipeline_mode = #tpu.pipeline_mode<synchronous>, transform_indices = @transform_6, window_bounds = array<i64: 8, 1>}, {pipeline_mode = #tpu.pipeline_mode<synchronous>, transform_indices = @transform_7, window_bounds = array<i64: 9, 8, 8>}, {pipeline_mode = #tpu.pipeline_mode<synchronous>, transform_indices = @transform_8, window_bounds = array<i64: 8, 1>}, {transform_indices = @transform_9, window_bounds = array<i64: 2, 8, 256>}, {transform_indices = @transform_10, window_bounds = array<i64: 2, 8, 64>}]} {
    %c0 = arith.constant 0 : index
    %c0_0 = arith.constant 0 : index
    %0 = vector.load %arg2[%c0, %c0_0] : memref<256x64xf32, #tpu.memory_space<vmem>>, vector<256x64xf32>
    %c0_1 = arith.constant 0 : index
    %c0_2 = arith.constant 0 : index
    %c0_3 = arith.constant 0 : index
    %1 = vector.load %arg3[%c0_1, %c0_2, %c0_3] : memref<2x8x256xf32, #tpu.memory_space<vmem>>, vector<1x8x256xf32>
    %2 = vector.shape_cast %1 : vector<1x8x256xf32> to vector<8x256xf32>
    %3 = vector.extract_strided_slice %2 {offsets = [0, 239], sizes = [8, 17], strides = [1, 1]} : vector<8x256xf32> to vector<8x17xf32>
    %4 = vector.extract_strided_slice %2 {offsets = [0, 0], sizes = [8, 239], strides = [1, 1]} : vector<8x256xf32> to vector<8x239xf32>
    %5 = tpu.concatenate %3, %4 in 1 : vector<8x17xf32>, vector<8x239xf32> -> vector<8x256xf32>
    %c0_4 = arith.constant 0 : index
    %c0_5 = arith.constant 0 : index
    %c0_6 = arith.constant 0 : index
    %6 = vector.load %arg1[%c0_4, %c0_5, %c0_6] : memref<8x8x256xf32, #tpu.memory_space<vmem>>, vector<1x8x256xf32>
    %7 = vector.shape_cast %6 : vector<1x8x256xf32> to vector<8x256xf32>
    %8 = arith.mulf %5, %7 : vector<8x256xf32>
    %c0_7 = arith.constant 0 : index
    %c0_8 = arith.constant 0 : index
    %c0_9 = arith.constant 0 : index
    %9 = vector.load %arg4[%c0_7, %c0_8, %c0_9] : memref<9x8x8xf32, #tpu.memory_space<vmem>>, vector<1x8x8xf32>
    %10 = vector.shape_cast %9 : vector<1x8x8xf32> to vector<8x8xf32>
    %cst = arith.constant dense<0.000000e+00> : vector<8x256xf32>
    %11 = tpu.matmul %10, %8, %cst {dimension_numbers = #tpu.dot_dimension_numbers<[1], [0], [0], [1], [0, 0, 1, 1], [], []>} : vector<8x8xf32>, vector<8x256xf32>, vector<8x256xf32> -> vector<8x256xf32>
    %12 = vector.extract_strided_slice %2 {offsets = [0, 240], sizes = [8, 16], strides = [1, 1]} : vector<8x256xf32> to vector<8x16xf32>
    %13 = vector.extract_strided_slice %2 {offsets = [0, 0], sizes = [8, 240], strides = [1, 1]} : vector<8x256xf32> to vector<8x240xf32>
    %14 = tpu.concatenate %12, %13 in 1 : vector<8x16xf32>, vector<8x240xf32> -> vector<8x256xf32>
    %c1 = arith.constant 1 : index
    %c0_10 = arith.constant 0 : index
    %c0_11 = arith.constant 0 : index
    %15 = vector.load %arg1[%c1, %c0_10, %c0_11] : memref<8x8x256xf32, #tpu.memory_space<vmem>>, vector<1x8x256xf32>
    %16 = vector.shape_cast %15 : vector<1x8x256xf32> to vector<8x256xf32>
    %17 = arith.mulf %14, %16 : vector<8x256xf32>
    %c1_12 = arith.constant 1 : index
    %c0_13 = arith.constant 0 : index
    %c0_14 = arith.constant 0 : index
    %18 = vector.load %arg4[%c1_12, %c0_13, %c0_14] : memref<9x8x8xf32, #tpu.memory_space<vmem>>, vector<1x8x8xf32>
    %19 = vector.shape_cast %18 : vector<1x8x8xf32> to vector<8x8xf32>
    %cst_15 = arith.constant dense<0.000000e+00> : vector<8x256xf32>
    %20 = tpu.matmul %19, %17, %cst_15 {dimension_numbers = #tpu.dot_dimension_numbers<[1], [0], [0], [1], [0, 0, 1, 1], [], []>} : vector<8x8xf32>, vector<8x256xf32>, vector<8x256xf32> -> vector<8x256xf32>
    %21 = arith.addf %11, %20 : vector<8x256xf32>
    %22 = vector.extract_strided_slice %2 {offsets = [0, 241], sizes = [8, 15], strides = [1, 1]} : vector<8x256xf32> to vector<8x15xf32>
    %23 = vector.extract_strided_slice %2 {offsets = [0, 0], sizes = [8, 241], strides = [1, 1]} : vector<8x256xf32> to vector<8x241xf32>
    %24 = tpu.concatenate %22, %23 in 1 : vector<8x15xf32>, vector<8x241xf32> -> vector<8x256xf32>
    %c2 = arith.constant 2 : index
    %c0_16 = arith.constant 0 : index
    %c0_17 = arith.constant 0 : index
    %25 = vector.load %arg1[%c2, %c0_16, %c0_17] : memref<8x8x256xf32, #tpu.memory_space<vmem>>, vector<1x8x256xf32>
    %26 = vector.shape_cast %25 : vector<1x8x256xf32> to vector<8x256xf32>
    %27 = arith.mulf %24, %26 : vector<8x256xf32>
    %c2_18 = arith.constant 2 : index
    %c0_19 = arith.constant 0 : index
    %c0_20 = arith.constant 0 : index
    %28 = vector.load %arg4[%c2_18, %c0_19, %c0_20] : memref<9x8x8xf32, #tpu.memory_space<vmem>>, vector<1x8x8xf32>
    %29 = vector.shape_cast %28 : vector<1x8x8xf32> to vector<8x8xf32>
    %cst_21 = arith.constant dense<0.000000e+00> : vector<8x256xf32>
    %30 = tpu.matmul %29, %27, %cst_21 {dimension_numbers = #tpu.dot_dimension_numbers<[1], [0], [0], [1], [0, 0, 1, 1], [], []>} : vector<8x8xf32>, vector<8x256xf32>, vector<8x256xf32> -> vector<8x256xf32>
    %31 = arith.addf %21, %30 : vector<8x256xf32>
    %32 = vector.extract_strided_slice %2 {offsets = [0, 255], sizes = [8, 1], strides = [1, 1]} : vector<8x256xf32> to vector<8x1xf32>
    %33 = vector.extract_strided_slice %2 {offsets = [0, 0], sizes = [8, 255], strides = [1, 1]} : vector<8x256xf32> to vector<8x255xf32>
    %34 = tpu.concatenate %32, %33 in 1 : vector<8x1xf32>, vector<8x255xf32> -> vector<8x256xf32>
    %c3 = arith.constant 3 : index
    %c0_22 = arith.constant 0 : index
    %c0_23 = arith.constant 0 : index
    %35 = vector.load %arg1[%c3, %c0_22, %c0_23] : memref<8x8x256xf32, #tpu.memory_space<vmem>>, vector<1x8x256xf32>
    %36 = vector.shape_cast %35 : vector<1x8x256xf32> to vector<8x256xf32>
    %37 = arith.mulf %34, %36 : vector<8x256xf32>
    %c3_24 = arith.constant 3 : index
    %c0_25 = arith.constant 0 : index
    %c0_26 = arith.constant 0 : index
    %38 = vector.load %arg4[%c3_24, %c0_25, %c0_26] : memref<9x8x8xf32, #tpu.memory_space<vmem>>, vector<1x8x8xf32>
    %39 = vector.shape_cast %38 : vector<1x8x8xf32> to vector<8x8xf32>
    %cst_27 = arith.constant dense<0.000000e+00> : vector<8x256xf32>
    %40 = tpu.matmul %39, %37, %cst_27 {dimension_numbers = #tpu.dot_dimension_numbers<[1], [0], [0], [1], [0, 0, 1, 1], [], []>} : vector<8x8xf32>, vector<8x256xf32>, vector<8x256xf32> -> vector<8x256xf32>
    %41 = arith.addf %31, %40 : vector<8x256xf32>
    %c4 = arith.constant 4 : index
    %c0_28 = arith.constant 0 : index
    %c0_29 = arith.constant 0 : index
    %42 = vector.load %arg4[%c4, %c0_28, %c0_29] : memref<9x8x8xf32, #tpu.memory_space<vmem>>, vector<1x8x8xf32>
    %43 = vector.shape_cast %42 : vector<1x8x8xf32> to vector<8x8xf32>
    %cst_30 = arith.constant dense<0.000000e+00> : vector<8x256xf32>
    %44 = tpu.matmul %43, %2, %cst_30 {dimension_numbers = #tpu.dot_dimension_numbers<[1], [0], [0], [1], [0, 0, 1, 1], [], []>} : vector<8x8xf32>, vector<8x256xf32>, vector<8x256xf32> -> vector<8x256xf32>
    %45 = arith.addf %41, %44 : vector<8x256xf32>
    %46 = vector.extract_strided_slice %2 {offsets = [0, 1], sizes = [8, 255], strides = [1, 1]} : vector<8x256xf32> to vector<8x255xf32>
    %47 = vector.extract_strided_slice %2 {offsets = [0, 0], sizes = [8, 1], strides = [1, 1]} : vector<8x256xf32> to vector<8x1xf32>
    %48 = tpu.concatenate %46, %47 in 1 : vector<8x255xf32>, vector<8x1xf32> -> vector<8x256xf32>
    %c4_31 = arith.constant 4 : index
    %c0_32 = arith.constant 0 : index
    %c0_33 = arith.constant 0 : index
    %49 = vector.load %arg1[%c4_31, %c0_32, %c0_33] : memref<8x8x256xf32, #tpu.memory_space<vmem>>, vector<1x8x256xf32>
    %50 = vector.shape_cast %49 : vector<1x8x256xf32> to vector<8x256xf32>
    %51 = arith.mulf %48, %50 : vector<8x256xf32>
    %c5 = arith.constant 5 : index
    %c0_34 = arith.constant 0 : index
    %c0_35 = arith.constant 0 : index
    %52 = vector.load %arg4[%c5, %c0_34, %c0_35] : memref<9x8x8xf32, #tpu.memory_space<vmem>>, vector<1x8x8xf32>
    %53 = vector.shape_cast %52 : vector<1x8x8xf32> to vector<8x8xf32>
    %cst_36 = arith.constant dense<0.000000e+00> : vector<8x256xf32>
    %54 = tpu.matmul %53, %51, %cst_36 {dimension_numbers = #tpu.dot_dimension_numbers<[1], [0], [0], [1], [0, 0, 1, 1], [], []>} : vector<8x8xf32>, vector<8x256xf32>, vector<8x256xf32> -> vector<8x256xf32>
    %55 = arith.addf %45, %54 : vector<8x256xf32>
    %56 = vector.extract_strided_slice %2 {offsets = [0, 15], sizes = [8, 241], strides = [1, 1]} : vector<8x256xf32> to vector<8x241xf32>
    %57 = vector.extract_strided_slice %2 {offsets = [0, 0], sizes = [8, 15], strides = [1, 1]} : vector<8x256xf32> to vector<8x15xf32>
    %58 = tpu.concatenate %56, %57 in 1 : vector<8x241xf32>, vector<8x15xf32> -> vector<8x256xf32>
    %c5_37 = arith.constant 5 : index
    %c0_38 = arith.constant 0 : index
    %c0_39 = arith.constant 0 : index
    %59 = vector.load %arg1[%c5_37, %c0_38, %c0_39] : memref<8x8x256xf32, #tpu.memory_space<vmem>>, vector<1x8x256xf32>
    %60 = vector.shape_cast %59 : vector<1x8x256xf32> to vector<8x256xf32>
    %61 = arith.mulf %58, %60 : vector<8x256xf32>
    %c6 = arith.constant 6 : index
    %c0_40 = arith.constant 0 : index
    %c0_41 = arith.constant 0 : index
    %62 = vector.load %arg4[%c6, %c0_40, %c0_41] : memref<9x8x8xf32, #tpu.memory_space<vmem>>, vector<1x8x8xf32>
    %63 = vector.shape_cast %62 : vector<1x8x8xf32> to vector<8x8xf32>
    %cst_42 = arith.constant dense<0.000000e+00> : vector<8x256xf32>
    %64 = tpu.matmul %63, %61, %cst_42 {dimension_numbers = #tpu.dot_dimension_numbers<[1], [0], [0], [1], [0, 0, 1, 1], [], []>} : vector<8x8xf32>, vector<8x256xf32>, vector<8x256xf32> -> vector<8x256xf32>
    %65 = arith.addf %55, %64 : vector<8x256xf32>
    %66 = vector.extract_strided_slice %2 {offsets = [0, 16], sizes = [8, 240], strides = [1, 1]} : vector<8x256xf32> to vector<8x240xf32>
    %67 = vector.extract_strided_slice %2 {offsets = [0, 0], sizes = [8, 16], strides = [1, 1]} : vector<8x256xf32> to vector<8x16xf32>
    %68 = tpu.concatenate %66, %67 in 1 : vector<8x240xf32>, vector<8x16xf32> -> vector<8x256xf32>
    %c6_43 = arith.constant 6 : index
    %c0_44 = arith.constant 0 : index
    %c0_45 = arith.constant 0 : index
    %69 = vector.load %arg1[%c6_43, %c0_44, %c0_45] : memref<8x8x256xf32, #tpu.memory_space<vmem>>, vector<1x8x256xf32>
    %70 = vector.shape_cast %69 : vector<1x8x256xf32> to vector<8x256xf32>
    %71 = arith.mulf %68, %70 : vector<8x256xf32>
    %c7 = arith.constant 7 : index
    %c0_46 = arith.constant 0 : index
    %c0_47 = arith.constant 0 : index
    %72 = vector.load %arg4[%c7, %c0_46, %c0_47] : memref<9x8x8xf32, #tpu.memory_space<vmem>>, vector<1x8x8xf32>
    %73 = vector.shape_cast %72 : vector<1x8x8xf32> to vector<8x8xf32>
    %cst_48 = arith.constant dense<0.000000e+00> : vector<8x256xf32>
    %74 = tpu.matmul %73, %71, %cst_48 {dimension_numbers = #tpu.dot_dimension_numbers<[1], [0], [0], [1], [0, 0, 1, 1], [], []>} : vector<8x8xf32>, vector<8x256xf32>, vector<8x256xf32> -> vector<8x256xf32>
    %75 = arith.addf %65, %74 : vector<8x256xf32>
    %76 = vector.extract_strided_slice %2 {offsets = [0, 17], sizes = [8, 239], strides = [1, 1]} : vector<8x256xf32> to vector<8x239xf32>
    %77 = vector.extract_strided_slice %2 {offsets = [0, 0], sizes = [8, 17], strides = [1, 1]} : vector<8x256xf32> to vector<8x17xf32>
    %78 = tpu.concatenate %76, %77 in 1 : vector<8x239xf32>, vector<8x17xf32> -> vector<8x256xf32>
    %c7_49 = arith.constant 7 : index
    %c0_50 = arith.constant 0 : index
    %c0_51 = arith.constant 0 : index
    %79 = vector.load %arg1[%c7_49, %c0_50, %c0_51] : memref<8x8x256xf32, #tpu.memory_space<vmem>>, vector<1x8x256xf32>
    %80 = vector.shape_cast %79 : vector<1x8x256xf32> to vector<8x256xf32>
    %81 = arith.mulf %78, %80 : vector<8x256xf32>
    %c8 = arith.constant 8 : index
    %c0_52 = arith.constant 0 : index
    %c0_53 = arith.constant 0 : index
    %82 = vector.load %arg4[%c8, %c0_52, %c0_53] : memref<9x8x8xf32, #tpu.memory_space<vmem>>, vector<1x8x8xf32>
    %83 = vector.shape_cast %82 : vector<1x8x8xf32> to vector<8x8xf32>
    %cst_54 = arith.constant dense<0.000000e+00> : vector<8x256xf32>
    %84 = tpu.matmul %83, %81, %cst_54 {dimension_numbers = #tpu.dot_dimension_numbers<[1], [0], [0], [1], [0, 0, 1, 1], [], []>} : vector<8x8xf32>, vector<8x256xf32>, vector<8x256xf32> -> vector<8x256xf32>
    %85 = arith.addf %75, %84 : vector<8x256xf32>
    %c0_55 = arith.constant 0 : index
    %c0_56 = arith.constant 0 : index
    %86 = vector.load %arg5[%c0_55, %c0_56] : memref<8x1xf32, #tpu.memory_space<vmem>>, vector<8x1xf32>
    %87 = vector.broadcast %86 : vector<8x1xf32> to vector<8x256xf32>
    %88 = arith.addf %85, %87 : vector<8x256xf32>
    %cst_57 = arith.constant 0.000000e+00 : f32
    %89 = vector.broadcast %cst_57 : f32 to vector<8x256xf32>
    %90 = arith.maximumf %88, %89 : vector<8x256xf32>
    %91 = vector.extract_strided_slice %90 {offsets = [0, 239], sizes = [8, 17], strides = [1, 1]} : vector<8x256xf32> to vector<8x17xf32>
    %92 = vector.extract_strided_slice %90 {offsets = [0, 0], sizes = [8, 239], strides = [1, 1]} : vector<8x256xf32> to vector<8x239xf32>
    %93 = tpu.concatenate %91, %92 in 1 : vector<8x17xf32>, vector<8x239xf32> -> vector<8x256xf32>
    %c0_58 = arith.constant 0 : index
    %c0_59 = arith.constant 0 : index
    %c0_60 = arith.constant 0 : index
    %94 = vector.load %arg1[%c0_58, %c0_59, %c0_60] : memref<8x8x256xf32, #tpu.memory_space<vmem>>, vector<1x8x256xf32>
    %95 = vector.shape_cast %94 : vector<1x8x256xf32> to vector<8x256xf32>
    %96 = arith.mulf %93, %95 : vector<8x256xf32>
    %c0_61 = arith.constant 0 : index
    %c0_62 = arith.constant 0 : index
    %c0_63 = arith.constant 0 : index
    %97 = vector.load %arg6[%c0_61, %c0_62, %c0_63] : memref<9x8x8xf32, #tpu.memory_space<vmem>>, vector<1x8x8xf32>
    %98 = vector.shape_cast %97 : vector<1x8x8xf32> to vector<8x8xf32>
    %cst_64 = arith.constant dense<0.000000e+00> : vector<8x256xf32>
    %99 = tpu.matmul %98, %96, %cst_64 {dimension_numbers = #tpu.dot_dimension_numbers<[1], [0], [0], [1], [0, 0, 1, 1], [], []>} : vector<8x8xf32>, vector<8x256xf32>, vector<8x256xf32> -> vector<8x256xf32>
    %100 = vector.extract_strided_slice %90 {offsets = [0, 240], sizes = [8, 16], strides = [1, 1]} : vector<8x256xf32> to vector<8x16xf32>
    %101 = vector.extract_strided_slice %90 {offsets = [0, 0], sizes = [8, 240], strides = [1, 1]} : vector<8x256xf32> to vector<8x240xf32>
    %102 = tpu.concatenate %100, %101 in 1 : vector<8x16xf32>, vector<8x240xf32> -> vector<8x256xf32>
    %c1_65 = arith.constant 1 : index
    %c0_66 = arith.constant 0 : index
    %c0_67 = arith.constant 0 : index
    %103 = vector.load %arg1[%c1_65, %c0_66, %c0_67] : memref<8x8x256xf32, #tpu.memory_space<vmem>>, vector<1x8x256xf32>
    %104 = vector.shape_cast %103 : vector<1x8x256xf32> to vector<8x256xf32>
    %105 = arith.mulf %102, %104 : vector<8x256xf32>
    %c1_68 = arith.constant 1 : index
    %c0_69 = arith.constant 0 : index
    %c0_70 = arith.constant 0 : index
    %106 = vector.load %arg6[%c1_68, %c0_69, %c0_70] : memref<9x8x8xf32, #tpu.memory_space<vmem>>, vector<1x8x8xf32>
    %107 = vector.shape_cast %106 : vector<1x8x8xf32> to vector<8x8xf32>
    %cst_71 = arith.constant dense<0.000000e+00> : vector<8x256xf32>
    %108 = tpu.matmul %107, %105, %cst_71 {dimension_numbers = #tpu.dot_dimension_numbers<[1], [0], [0], [1], [0, 0, 1, 1], [], []>} : vector<8x8xf32>, vector<8x256xf32>, vector<8x256xf32> -> vector<8x256xf32>
    %109 = arith.addf %99, %108 : vector<8x256xf32>
    %110 = vector.extract_strided_slice %90 {offsets = [0, 241], sizes = [8, 15], strides = [1, 1]} : vector<8x256xf32> to vector<8x15xf32>
    %111 = vector.extract_strided_slice %90 {offsets = [0, 0], sizes = [8, 241], strides = [1, 1]} : vector<8x256xf32> to vector<8x241xf32>
    %112 = tpu.concatenate %110, %111 in 1 : vector<8x15xf32>, vector<8x241xf32> -> vector<8x256xf32>
    %c2_72 = arith.constant 2 : index
    %c0_73 = arith.constant 0 : index
    %c0_74 = arith.constant 0 : index
    %113 = vector.load %arg1[%c2_72, %c0_73, %c0_74] : memref<8x8x256xf32, #tpu.memory_space<vmem>>, vector<1x8x256xf32>
    %114 = vector.shape_cast %113 : vector<1x8x256xf32> to vector<8x256xf32>
    %115 = arith.mulf %112, %114 : vector<8x256xf32>
    %c2_75 = arith.constant 2 : index
    %c0_76 = arith.constant 0 : index
    %c0_77 = arith.constant 0 : index
    %116 = vector.load %arg6[%c2_75, %c0_76, %c0_77] : memref<9x8x8xf32, #tpu.memory_space<vmem>>, vector<1x8x8xf32>
    %117 = vector.shape_cast %116 : vector<1x8x8xf32> to vector<8x8xf32>
    %cst_78 = arith.constant dense<0.000000e+00> : vector<8x256xf32>
    %118 = tpu.matmul %117, %115, %cst_78 {dimension_numbers = #tpu.dot_dimension_numbers<[1], [0], [0], [1], [0, 0, 1, 1], [], []>} : vector<8x8xf32>, vector<8x256xf32>, vector<8x256xf32> -> vector<8x256xf32>
    %119 = arith.addf %109, %118 : vector<8x256xf32>
    %120 = vector.extract_strided_slice %90 {offsets = [0, 255], sizes = [8, 1], strides = [1, 1]} : vector<8x256xf32> to vector<8x1xf32>
    %121 = vector.extract_strided_slice %90 {offsets = [0, 0], sizes = [8, 255], strides = [1, 1]} : vector<8x256xf32> to vector<8x255xf32>
    %122 = tpu.concatenate %120, %121 in 1 : vector<8x1xf32>, vector<8x255xf32> -> vector<8x256xf32>
    %c3_79 = arith.constant 3 : index
    %c0_80 = arith.constant 0 : index
    %c0_81 = arith.constant 0 : index
    %123 = vector.load %arg1[%c3_79, %c0_80, %c0_81] : memref<8x8x256xf32, #tpu.memory_space<vmem>>, vector<1x8x256xf32>
    %124 = vector.shape_cast %123 : vector<1x8x256xf32> to vector<8x256xf32>
    %125 = arith.mulf %122, %124 : vector<8x256xf32>
    %c3_82 = arith.constant 3 : index
    %c0_83 = arith.constant 0 : index
    %c0_84 = arith.constant 0 : index
    %126 = vector.load %arg6[%c3_82, %c0_83, %c0_84] : memref<9x8x8xf32, #tpu.memory_space<vmem>>, vector<1x8x8xf32>
    %127 = vector.shape_cast %126 : vector<1x8x8xf32> to vector<8x8xf32>
    %cst_85 = arith.constant dense<0.000000e+00> : vector<8x256xf32>
    %128 = tpu.matmul %127, %125, %cst_85 {dimension_numbers = #tpu.dot_dimension_numbers<[1], [0], [0], [1], [0, 0, 1, 1], [], []>} : vector<8x8xf32>, vector<8x256xf32>, vector<8x256xf32> -> vector<8x256xf32>
    %129 = arith.addf %119, %128 : vector<8x256xf32>
    %c4_86 = arith.constant 4 : index
    %c0_87 = arith.constant 0 : index
    %c0_88 = arith.constant 0 : index
    %130 = vector.load %arg6[%c4_86, %c0_87, %c0_88] : memref<9x8x8xf32, #tpu.memory_space<vmem>>, vector<1x8x8xf32>
    %131 = vector.shape_cast %130 : vector<1x8x8xf32> to vector<8x8xf32>
    %cst_89 = arith.constant dense<0.000000e+00> : vector<8x256xf32>
    %132 = tpu.matmul %131, %90, %cst_89 {dimension_numbers = #tpu.dot_dimension_numbers<[1], [0], [0], [1], [0, 0, 1, 1], [], []>} : vector<8x8xf32>, vector<8x256xf32>, vector<8x256xf32> -> vector<8x256xf32>
    %133 = arith.addf %129, %132 : vector<8x256xf32>
    %134 = vector.extract_strided_slice %90 {offsets = [0, 1], sizes = [8, 255], strides = [1, 1]} : vector<8x256xf32> to vector<8x255xf32>
    %135 = vector.extract_strided_slice %90 {offsets = [0, 0], sizes = [8, 1], strides = [1, 1]} : vector<8x256xf32> to vector<8x1xf32>
    %136 = tpu.concatenate %134, %135 in 1 : vector<8x255xf32>, vector<8x1xf32> -> vector<8x256xf32>
    %c4_90 = arith.constant 4 : index
    %c0_91 = arith.constant 0 : index
    %c0_92 = arith.constant 0 : index
    %137 = vector.load %arg1[%c4_90, %c0_91, %c0_92] : memref<8x8x256xf32, #tpu.memory_space<vmem>>, vector<1x8x256xf32>
    %138 = vector.shape_cast %137 : vector<1x8x256xf32> to vector<8x256xf32>
    %139 = arith.mulf %136, %138 : vector<8x256xf32>
    %c5_93 = arith.constant 5 : index
    %c0_94 = arith.constant 0 : index
    %c0_95 = arith.constant 0 : index
    %140 = vector.load %arg6[%c5_93, %c0_94, %c0_95] : memref<9x8x8xf32, #tpu.memory_space<vmem>>, vector<1x8x8xf32>
    %141 = vector.shape_cast %140 : vector<1x8x8xf32> to vector<8x8xf32>
    %cst_96 = arith.constant dense<0.000000e+00> : vector<8x256xf32>
    %142 = tpu.matmul %141, %139, %cst_96 {dimension_numbers = #tpu.dot_dimension_numbers<[1], [0], [0], [1], [0, 0, 1, 1], [], []>} : vector<8x8xf32>, vector<8x256xf32>, vector<8x256xf32> -> vector<8x256xf32>
    %143 = arith.addf %133, %142 : vector<8x256xf32>
    %144 = vector.extract_strided_slice %90 {offsets = [0, 15], sizes = [8, 241], strides = [1, 1]} : vector<8x256xf32> to vector<8x241xf32>
    %145 = vector.extract_strided_slice %90 {offsets = [0, 0], sizes = [8, 15], strides = [1, 1]} : vector<8x256xf32> to vector<8x15xf32>
    %146 = tpu.concatenate %144, %145 in 1 : vector<8x241xf32>, vector<8x15xf32> -> vector<8x256xf32>
    %c5_97 = arith.constant 5 : index
    %c0_98 = arith.constant 0 : index
    %c0_99 = arith.constant 0 : index
    %147 = vector.load %arg1[%c5_97, %c0_98, %c0_99] : memref<8x8x256xf32, #tpu.memory_space<vmem>>, vector<1x8x256xf32>
    %148 = vector.shape_cast %147 : vector<1x8x256xf32> to vector<8x256xf32>
    %149 = arith.mulf %146, %148 : vector<8x256xf32>
    %c6_100 = arith.constant 6 : index
    %c0_101 = arith.constant 0 : index
    %c0_102 = arith.constant 0 : index
    %150 = vector.load %arg6[%c6_100, %c0_101, %c0_102] : memref<9x8x8xf32, #tpu.memory_space<vmem>>, vector<1x8x8xf32>
    %151 = vector.shape_cast %150 : vector<1x8x8xf32> to vector<8x8xf32>
    %cst_103 = arith.constant dense<0.000000e+00> : vector<8x256xf32>
    %152 = tpu.matmul %151, %149, %cst_103 {dimension_numbers = #tpu.dot_dimension_numbers<[1], [0], [0], [1], [0, 0, 1, 1], [], []>} : vector<8x8xf32>, vector<8x256xf32>, vector<8x256xf32> -> vector<8x256xf32>
    %153 = arith.addf %143, %152 : vector<8x256xf32>
    %154 = vector.extract_strided_slice %90 {offsets = [0, 16], sizes = [8, 240], strides = [1, 1]} : vector<8x256xf32> to vector<8x240xf32>
    %155 = vector.extract_strided_slice %90 {offsets = [0, 0], sizes = [8, 16], strides = [1, 1]} : vector<8x256xf32> to vector<8x16xf32>
    %156 = tpu.concatenate %154, %155 in 1 : vector<8x240xf32>, vector<8x16xf32> -> vector<8x256xf32>
    %c6_104 = arith.constant 6 : index
    %c0_105 = arith.constant 0 : index
    %c0_106 = arith.constant 0 : index
    %157 = vector.load %arg1[%c6_104, %c0_105, %c0_106] : memref<8x8x256xf32, #tpu.memory_space<vmem>>, vector<1x8x256xf32>
    %158 = vector.shape_cast %157 : vector<1x8x256xf32> to vector<8x256xf32>
    %159 = arith.mulf %156, %158 : vector<8x256xf32>
    %c7_107 = arith.constant 7 : index
    %c0_108 = arith.constant 0 : index
    %c0_109 = arith.constant 0 : index
    %160 = vector.load %arg6[%c7_107, %c0_108, %c0_109] : memref<9x8x8xf32, #tpu.memory_space<vmem>>, vector<1x8x8xf32>
    %161 = vector.shape_cast %160 : vector<1x8x8xf32> to vector<8x8xf32>
    %cst_110 = arith.constant dense<0.000000e+00> : vector<8x256xf32>
    %162 = tpu.matmul %161, %159, %cst_110 {dimension_numbers = #tpu.dot_dimension_numbers<[1], [0], [0], [1], [0, 0, 1, 1], [], []>} : vector<8x8xf32>, vector<8x256xf32>, vector<8x256xf32> -> vector<8x256xf32>
    %163 = arith.addf %153, %162 : vector<8x256xf32>
    %164 = vector.extract_strided_slice %90 {offsets = [0, 17], sizes = [8, 239], strides = [1, 1]} : vector<8x256xf32> to vector<8x239xf32>
    %165 = vector.extract_strided_slice %90 {offsets = [0, 0], sizes = [8, 17], strides = [1, 1]} : vector<8x256xf32> to vector<8x17xf32>
    %166 = tpu.concatenate %164, %165 in 1 : vector<8x239xf32>, vector<8x17xf32> -> vector<8x256xf32>
    %c7_111 = arith.constant 7 : index
    %c0_112 = arith.constant 0 : index
    %c0_113 = arith.constant 0 : index
    %167 = vector.load %arg1[%c7_111, %c0_112, %c0_113] : memref<8x8x256xf32, #tpu.memory_space<vmem>>, vector<1x8x256xf32>
    %168 = vector.shape_cast %167 : vector<1x8x256xf32> to vector<8x256xf32>
    %169 = arith.mulf %166, %168 : vector<8x256xf32>
    %c8_114 = arith.constant 8 : index
    %c0_115 = arith.constant 0 : index
    %c0_116 = arith.constant 0 : index
    %170 = vector.load %arg6[%c8_114, %c0_115, %c0_116] : memref<9x8x8xf32, #tpu.memory_space<vmem>>, vector<1x8x8xf32>
    %171 = vector.shape_cast %170 : vector<1x8x8xf32> to vector<8x8xf32>
    %cst_117 = arith.constant dense<0.000000e+00> : vector<8x256xf32>
    %172 = tpu.matmul %171, %169, %cst_117 {dimension_numbers = #tpu.dot_dimension_numbers<[1], [0], [0], [1], [0, 0, 1, 1], [], []>} : vector<8x8xf32>, vector<8x256xf32>, vector<8x256xf32> -> vector<8x256xf32>
    %173 = arith.addf %163, %172 : vector<8x256xf32>
    %c0_118 = arith.constant 0 : index
    %c0_119 = arith.constant 0 : index
    %174 = vector.load %arg7[%c0_118, %c0_119] : memref<8x1xf32, #tpu.memory_space<vmem>>, vector<8x1xf32>
    %175 = vector.broadcast %174 : vector<8x1xf32> to vector<8x256xf32>
    %176 = arith.addf %173, %175 : vector<8x256xf32>
    %cst_120 = arith.constant 0.000000e+00 : f32
    %177 = vector.broadcast %cst_120 : f32 to vector<8x256xf32>
    %178 = arith.maximumf %176, %177 : vector<8x256xf32>
    %179 = vector.extract_strided_slice %178 {offsets = [0, 239], sizes = [8, 17], strides = [1, 1]} : vector<8x256xf32> to vector<8x17xf32>
    %180 = vector.extract_strided_slice %178 {offsets = [0, 0], sizes = [8, 239], strides = [1, 1]} : vector<8x256xf32> to vector<8x239xf32>
    %181 = tpu.concatenate %179, %180 in 1 : vector<8x17xf32>, vector<8x239xf32> -> vector<8x256xf32>
    %c0_121 = arith.constant 0 : index
    %c0_122 = arith.constant 0 : index
    %c0_123 = arith.constant 0 : index
    %182 = vector.load %arg1[%c0_121, %c0_122, %c0_123] : memref<8x8x256xf32, #tpu.memory_space<vmem>>, vector<1x8x256xf32>
    %183 = vector.shape_cast %182 : vector<1x8x256xf32> to vector<8x256xf32>
    %184 = arith.mulf %181, %183 : vector<8x256xf32>
    %c0_124 = arith.constant 0 : index
    %c0_125 = arith.constant 0 : index
    %c0_126 = arith.constant 0 : index
    %185 = vector.load %arg8[%c0_124, %c0_125, %c0_126] : memref<9x8x8xf32, #tpu.memory_space<vmem>>, vector<1x8x8xf32>
    %186 = vector.shape_cast %185 : vector<1x8x8xf32> to vector<8x8xf32>
    %cst_127 = arith.constant dense<0.000000e+00> : vector<8x256xf32>
    %187 = tpu.matmul %186, %184, %cst_127 {dimension_numbers = #tpu.dot_dimension_numbers<[1], [0], [0], [1], [0, 0, 1, 1], [], []>} : vector<8x8xf32>, vector<8x256xf32>, vector<8x256xf32> -> vector<8x256xf32>
    %188 = vector.extract_strided_slice %178 {offsets = [0, 240], sizes = [8, 16], strides = [1, 1]} : vector<8x256xf32> to vector<8x16xf32>
    %189 = vector.extract_strided_slice %178 {offsets = [0, 0], sizes = [8, 240], strides = [1, 1]} : vector<8x256xf32> to vector<8x240xf32>
    %190 = tpu.concatenate %188, %189 in 1 : vector<8x16xf32>, vector<8x240xf32> -> vector<8x256xf32>
    %c1_128 = arith.constant 1 : index
    %c0_129 = arith.constant 0 : index
    %c0_130 = arith.constant 0 : index
    %191 = vector.load %arg1[%c1_128, %c0_129, %c0_130] : memref<8x8x256xf32, #tpu.memory_space<vmem>>, vector<1x8x256xf32>
    %192 = vector.shape_cast %191 : vector<1x8x256xf32> to vector<8x256xf32>
    %193 = arith.mulf %190, %192 : vector<8x256xf32>
    %c1_131 = arith.constant 1 : index
    %c0_132 = arith.constant 0 : index
    %c0_133 = arith.constant 0 : index
    %194 = vector.load %arg8[%c1_131, %c0_132, %c0_133] : memref<9x8x8xf32, #tpu.memory_space<vmem>>, vector<1x8x8xf32>
    %195 = vector.shape_cast %194 : vector<1x8x8xf32> to vector<8x8xf32>
    %cst_134 = arith.constant dense<0.000000e+00> : vector<8x256xf32>
    %196 = tpu.matmul %195, %193, %cst_134 {dimension_numbers = #tpu.dot_dimension_numbers<[1], [0], [0], [1], [0, 0, 1, 1], [], []>} : vector<8x8xf32>, vector<8x256xf32>, vector<8x256xf32> -> vector<8x256xf32>
    %197 = arith.addf %187, %196 : vector<8x256xf32>
    %198 = vector.extract_strided_slice %178 {offsets = [0, 241], sizes = [8, 15], strides = [1, 1]} : vector<8x256xf32> to vector<8x15xf32>
    %199 = vector.extract_strided_slice %178 {offsets = [0, 0], sizes = [8, 241], strides = [1, 1]} : vector<8x256xf32> to vector<8x241xf32>
    %200 = tpu.concatenate %198, %199 in 1 : vector<8x15xf32>, vector<8x241xf32> -> vector<8x256xf32>
    %c2_135 = arith.constant 2 : index
    %c0_136 = arith.constant 0 : index
    %c0_137 = arith.constant 0 : index
    %201 = vector.load %arg1[%c2_135, %c0_136, %c0_137] : memref<8x8x256xf32, #tpu.memory_space<vmem>>, vector<1x8x256xf32>
    %202 = vector.shape_cast %201 : vector<1x8x256xf32> to vector<8x256xf32>
    %203 = arith.mulf %200, %202 : vector<8x256xf32>
    %c2_138 = arith.constant 2 : index
    %c0_139 = arith.constant 0 : index
    %c0_140 = arith.constant 0 : index
    %204 = vector.load %arg8[%c2_138, %c0_139, %c0_140] : memref<9x8x8xf32, #tpu.memory_space<vmem>>, vector<1x8x8xf32>
    %205 = vector.shape_cast %204 : vector<1x8x8xf32> to vector<8x8xf32>
    %cst_141 = arith.constant dense<0.000000e+00> : vector<8x256xf32>
    %206 = tpu.matmul %205, %203, %cst_141 {dimension_numbers = #tpu.dot_dimension_numbers<[1], [0], [0], [1], [0, 0, 1, 1], [], []>} : vector<8x8xf32>, vector<8x256xf32>, vector<8x256xf32> -> vector<8x256xf32>
    %207 = arith.addf %197, %206 : vector<8x256xf32>
    %208 = vector.extract_strided_slice %178 {offsets = [0, 255], sizes = [8, 1], strides = [1, 1]} : vector<8x256xf32> to vector<8x1xf32>
    %209 = vector.extract_strided_slice %178 {offsets = [0, 0], sizes = [8, 255], strides = [1, 1]} : vector<8x256xf32> to vector<8x255xf32>
    %210 = tpu.concatenate %208, %209 in 1 : vector<8x1xf32>, vector<8x255xf32> -> vector<8x256xf32>
    %c3_142 = arith.constant 3 : index
    %c0_143 = arith.constant 0 : index
    %c0_144 = arith.constant 0 : index
    %211 = vector.load %arg1[%c3_142, %c0_143, %c0_144] : memref<8x8x256xf32, #tpu.memory_space<vmem>>, vector<1x8x256xf32>
    %212 = vector.shape_cast %211 : vector<1x8x256xf32> to vector<8x256xf32>
    %213 = arith.mulf %210, %212 : vector<8x256xf32>
    %c3_145 = arith.constant 3 : index
    %c0_146 = arith.constant 0 : index
    %c0_147 = arith.constant 0 : index
    %214 = vector.load %arg8[%c3_145, %c0_146, %c0_147] : memref<9x8x8xf32, #tpu.memory_space<vmem>>, vector<1x8x8xf32>
    %215 = vector.shape_cast %214 : vector<1x8x8xf32> to vector<8x8xf32>
    %cst_148 = arith.constant dense<0.000000e+00> : vector<8x256xf32>
    %216 = tpu.matmul %215, %213, %cst_148 {dimension_numbers = #tpu.dot_dimension_numbers<[1], [0], [0], [1], [0, 0, 1, 1], [], []>} : vector<8x8xf32>, vector<8x256xf32>, vector<8x256xf32> -> vector<8x256xf32>
    %217 = arith.addf %207, %216 : vector<8x256xf32>
    %c4_149 = arith.constant 4 : index
    %c0_150 = arith.constant 0 : index
    %c0_151 = arith.constant 0 : index
    %218 = vector.load %arg8[%c4_149, %c0_150, %c0_151] : memref<9x8x8xf32, #tpu.memory_space<vmem>>, vector<1x8x8xf32>
    %219 = vector.shape_cast %218 : vector<1x8x8xf32> to vector<8x8xf32>
    %cst_152 = arith.constant dense<0.000000e+00> : vector<8x256xf32>
    %220 = tpu.matmul %219, %178, %cst_152 {dimension_numbers = #tpu.dot_dimension_numbers<[1], [0], [0], [1], [0, 0, 1, 1], [], []>} : vector<8x8xf32>, vector<8x256xf32>, vector<8x256xf32> -> vector<8x256xf32>
    %221 = arith.addf %217, %220 : vector<8x256xf32>
    %222 = vector.extract_strided_slice %178 {offsets = [0, 1], sizes = [8, 255], strides = [1, 1]} : vector<8x256xf32> to vector<8x255xf32>
    %223 = vector.extract_strided_slice %178 {offsets = [0, 0], sizes = [8, 1], strides = [1, 1]} : vector<8x256xf32> to vector<8x1xf32>
    %224 = tpu.concatenate %222, %223 in 1 : vector<8x255xf32>, vector<8x1xf32> -> vector<8x256xf32>
    %c4_153 = arith.constant 4 : index
    %c0_154 = arith.constant 0 : index
    %c0_155 = arith.constant 0 : index
    %225 = vector.load %arg1[%c4_153, %c0_154, %c0_155] : memref<8x8x256xf32, #tpu.memory_space<vmem>>, vector<1x8x256xf32>
    %226 = vector.shape_cast %225 : vector<1x8x256xf32> to vector<8x256xf32>
    %227 = arith.mulf %224, %226 : vector<8x256xf32>
    %c5_156 = arith.constant 5 : index
    %c0_157 = arith.constant 0 : index
    %c0_158 = arith.constant 0 : index
    %228 = vector.load %arg8[%c5_156, %c0_157, %c0_158] : memref<9x8x8xf32, #tpu.memory_space<vmem>>, vector<1x8x8xf32>
    %229 = vector.shape_cast %228 : vector<1x8x8xf32> to vector<8x8xf32>
    %cst_159 = arith.constant dense<0.000000e+00> : vector<8x256xf32>
    %230 = tpu.matmul %229, %227, %cst_159 {dimension_numbers = #tpu.dot_dimension_numbers<[1], [0], [0], [1], [0, 0, 1, 1], [], []>} : vector<8x8xf32>, vector<8x256xf32>, vector<8x256xf32> -> vector<8x256xf32>
    %231 = arith.addf %221, %230 : vector<8x256xf32>
    %232 = vector.extract_strided_slice %178 {offsets = [0, 15], sizes = [8, 241], strides = [1, 1]} : vector<8x256xf32> to vector<8x241xf32>
    %233 = vector.extract_strided_slice %178 {offsets = [0, 0], sizes = [8, 15], strides = [1, 1]} : vector<8x256xf32> to vector<8x15xf32>
    %234 = tpu.concatenate %232, %233 in 1 : vector<8x241xf32>, vector<8x15xf32> -> vector<8x256xf32>
    %c5_160 = arith.constant 5 : index
    %c0_161 = arith.constant 0 : index
    %c0_162 = arith.constant 0 : index
    %235 = vector.load %arg1[%c5_160, %c0_161, %c0_162] : memref<8x8x256xf32, #tpu.memory_space<vmem>>, vector<1x8x256xf32>
    %236 = vector.shape_cast %235 : vector<1x8x256xf32> to vector<8x256xf32>
    %237 = arith.mulf %234, %236 : vector<8x256xf32>
    %c6_163 = arith.constant 6 : index
    %c0_164 = arith.constant 0 : index
    %c0_165 = arith.constant 0 : index
    %238 = vector.load %arg8[%c6_163, %c0_164, %c0_165] : memref<9x8x8xf32, #tpu.memory_space<vmem>>, vector<1x8x8xf32>
    %239 = vector.shape_cast %238 : vector<1x8x8xf32> to vector<8x8xf32>
    %cst_166 = arith.constant dense<0.000000e+00> : vector<8x256xf32>
    %240 = tpu.matmul %239, %237, %cst_166 {dimension_numbers = #tpu.dot_dimension_numbers<[1], [0], [0], [1], [0, 0, 1, 1], [], []>} : vector<8x8xf32>, vector<8x256xf32>, vector<8x256xf32> -> vector<8x256xf32>
    %241 = arith.addf %231, %240 : vector<8x256xf32>
    %242 = vector.extract_strided_slice %178 {offsets = [0, 16], sizes = [8, 240], strides = [1, 1]} : vector<8x256xf32> to vector<8x240xf32>
    %243 = vector.extract_strided_slice %178 {offsets = [0, 0], sizes = [8, 16], strides = [1, 1]} : vector<8x256xf32> to vector<8x16xf32>
    %244 = tpu.concatenate %242, %243 in 1 : vector<8x240xf32>, vector<8x16xf32> -> vector<8x256xf32>
    %c6_167 = arith.constant 6 : index
    %c0_168 = arith.constant 0 : index
    %c0_169 = arith.constant 0 : index
    %245 = vector.load %arg1[%c6_167, %c0_168, %c0_169] : memref<8x8x256xf32, #tpu.memory_space<vmem>>, vector<1x8x256xf32>
    %246 = vector.shape_cast %245 : vector<1x8x256xf32> to vector<8x256xf32>
    %247 = arith.mulf %244, %246 : vector<8x256xf32>
    %c7_170 = arith.constant 7 : index
    %c0_171 = arith.constant 0 : index
    %c0_172 = arith.constant 0 : index
    %248 = vector.load %arg8[%c7_170, %c0_171, %c0_172] : memref<9x8x8xf32, #tpu.memory_space<vmem>>, vector<1x8x8xf32>
    %249 = vector.shape_cast %248 : vector<1x8x8xf32> to vector<8x8xf32>
    %cst_173 = arith.constant dense<0.000000e+00> : vector<8x256xf32>
    %250 = tpu.matmul %249, %247, %cst_173 {dimension_numbers = #tpu.dot_dimension_numbers<[1], [0], [0], [1], [0, 0, 1, 1], [], []>} : vector<8x8xf32>, vector<8x256xf32>, vector<8x256xf32> -> vector<8x256xf32>
    %251 = arith.addf %241, %250 : vector<8x256xf32>
    %252 = vector.extract_strided_slice %178 {offsets = [0, 17], sizes = [8, 239], strides = [1, 1]} : vector<8x256xf32> to vector<8x239xf32>
    %253 = vector.extract_strided_slice %178 {offsets = [0, 0], sizes = [8, 17], strides = [1, 1]} : vector<8x256xf32> to vector<8x17xf32>
    %254 = tpu.concatenate %252, %253 in 1 : vector<8x239xf32>, vector<8x17xf32> -> vector<8x256xf32>
    %c7_174 = arith.constant 7 : index
    %c0_175 = arith.constant 0 : index
    %c0_176 = arith.constant 0 : index
    %255 = vector.load %arg1[%c7_174, %c0_175, %c0_176] : memref<8x8x256xf32, #tpu.memory_space<vmem>>, vector<1x8x256xf32>
    %256 = vector.shape_cast %255 : vector<1x8x256xf32> to vector<8x256xf32>
    %257 = arith.mulf %254, %256 : vector<8x256xf32>
    %c8_177 = arith.constant 8 : index
    %c0_178 = arith.constant 0 : index
    %c0_179 = arith.constant 0 : index
    %258 = vector.load %arg8[%c8_177, %c0_178, %c0_179] : memref<9x8x8xf32, #tpu.memory_space<vmem>>, vector<1x8x8xf32>
    %259 = vector.shape_cast %258 : vector<1x8x8xf32> to vector<8x8xf32>
    %cst_180 = arith.constant dense<0.000000e+00> : vector<8x256xf32>
    %260 = tpu.matmul %259, %257, %cst_180 {dimension_numbers = #tpu.dot_dimension_numbers<[1], [0], [0], [1], [0, 0, 1, 1], [], []>} : vector<8x8xf32>, vector<8x256xf32>, vector<8x256xf32> -> vector<8x256xf32>
    %261 = arith.addf %251, %260 : vector<8x256xf32>
    %c0_181 = arith.constant 0 : index
    %c0_182 = arith.constant 0 : index
    %262 = vector.load %arg9[%c0_181, %c0_182] : memref<8x1xf32, #tpu.memory_space<vmem>>, vector<8x1xf32>
    %263 = vector.broadcast %262 : vector<8x1xf32> to vector<8x256xf32>
    %264 = arith.addf %261, %263 : vector<8x256xf32>
    %cst_183 = arith.constant 0.000000e+00 : f32
    %265 = vector.broadcast %cst_183 : f32 to vector<8x256xf32>
    %266 = arith.maximumf %264, %265 : vector<8x256xf32>
    %c0_184 = arith.constant 0 : index
    %c0_185 = arith.constant 0 : index
    %c0_186 = arith.constant 0 : index
    %267 = vector.load %arg10[%c0_184, %c0_185, %c0_186] : memref<2x8x256xf32, #tpu.memory_space<vmem>>, vector<1x8x256xf32>
    %268 = vector.shape_cast %267 : vector<1x8x256xf32> to vector<8x256xf32>
    %269 = vector.shape_cast %266 : vector<8x256xf32> to vector<1x8x256xf32>
    tpu.vector_store %arg10[%c0_184, %c0_185, %c0_186], %269 {strides = array<i32>} : memref<2x8x256xf32, #tpu.memory_space<vmem>>, vector<1x8x256xf32>,
    %270 = vector.extract_strided_slice %266 {offsets = [0, 1], sizes = [8, 255], strides = [1, 1]} : vector<8x256xf32> to vector<8x255xf32>
    %271 = vector.extract_strided_slice %266 {offsets = [0, 0], sizes = [8, 1], strides = [1, 1]} : vector<8x256xf32> to vector<8x1xf32>
    %272 = tpu.concatenate %270, %271 in 1 : vector<8x255xf32>, vector<8x1xf32> -> vector<8x256xf32>
    %273 = arith.maximumf %266, %272 : vector<8x256xf32>
    %274 = vector.extract_strided_slice %273 {offsets = [0, 16], sizes = [8, 240], strides = [1, 1]} : vector<8x256xf32> to vector<8x240xf32>
    %275 = vector.extract_strided_slice %273 {offsets = [0, 0], sizes = [8, 16], strides = [1, 1]} : vector<8x256xf32> to vector<8x16xf32>
    %276 = tpu.concatenate %274, %275 in 1 : vector<8x240xf32>, vector<8x16xf32> -> vector<8x256xf32>
    %277 = arith.maximumf %273, %276 : vector<8x256xf32>
    %cst_187 = arith.constant dense<0.000000e+00> : vector<8x64xf32>
    %278 = tpu.matmul %277, %0, %cst_187 {dimension_numbers = #tpu.dot_dimension_numbers<[1], [0], [0], [1], [0, 0, 1, 1], [], []>} : vector<8x256xf32>, vector<256x64xf32>, vector<8x64xf32> -> vector<8x64xf32>
    %c0_188 = arith.constant 0 : index
    %c0_189 = arith.constant 0 : index
    %c0_190 = arith.constant 0 : index
    %279 = vector.load %arg11[%c0_188, %c0_189, %c0_190] : memref<2x8x64xf32, #tpu.memory_space<vmem>>, vector<1x8x64xf32>
    %280 = vector.shape_cast %279 : vector<1x8x64xf32> to vector<8x64xf32>
    %281 = vector.shape_cast %278 : vector<8x64xf32> to vector<1x8x64xf32>
    tpu.vector_store %arg11[%c0_188, %c0_189, %c0_190], %281 {strides = array<i32>} : memref<2x8x64xf32, #tpu.memory_space<vmem>>, vector<1x8x64xf32>,
    %c1_191 = arith.constant 1 : index
    %c0_192 = arith.constant 0 : index
    %c0_193 = arith.constant 0 : index
    %282 = vector.load %arg3[%c1_191, %c0_192, %c0_193] : memref<2x8x256xf32, #tpu.memory_space<vmem>>, vector<1x8x256xf32>
    %283 = vector.shape_cast %282 : vector<1x8x256xf32> to vector<8x256xf32>
    %284 = vector.extract_strided_slice %283 {offsets = [0, 239], sizes = [8, 17], strides = [1, 1]} : vector<8x256xf32> to vector<8x17xf32>
    %285 = vector.extract_strided_slice %283 {offsets = [0, 0], sizes = [8, 239], strides = [1, 1]} : vector<8x256xf32> to vector<8x239xf32>
    %286 = tpu.concatenate %284, %285 in 1 : vector<8x17xf32>, vector<8x239xf32> -> vector<8x256xf32>
    %c0_194 = arith.constant 0 : index
    %c0_195 = arith.constant 0 : index
    %c0_196 = arith.constant 0 : index
    %287 = vector.load %arg1[%c0_194, %c0_195, %c0_196] : memref<8x8x256xf32, #tpu.memory_space<vmem>>, vector<1x8x256xf32>
    %288 = vector.shape_cast %287 : vector<1x8x256xf32> to vector<8x256xf32>
    %289 = arith.mulf %286, %288 : vector<8x256xf32>
    %c0_197 = arith.constant 0 : index
    %c0_198 = arith.constant 0 : index
    %c0_199 = arith.constant 0 : index
    %290 = vector.load %arg4[%c0_197, %c0_198, %c0_199] : memref<9x8x8xf32, #tpu.memory_space<vmem>>, vector<1x8x8xf32>
    %291 = vector.shape_cast %290 : vector<1x8x8xf32> to vector<8x8xf32>
    %cst_200 = arith.constant dense<0.000000e+00> : vector<8x256xf32>
    %292 = tpu.matmul %291, %289, %cst_200 {dimension_numbers = #tpu.dot_dimension_numbers<[1], [0], [0], [1], [0, 0, 1, 1], [], []>} : vector<8x8xf32>, vector<8x256xf32>, vector<8x256xf32> -> vector<8x256xf32>
    %293 = vector.extract_strided_slice %283 {offsets = [0, 240], sizes = [8, 16], strides = [1, 1]} : vector<8x256xf32> to vector<8x16xf32>
    %294 = vector.extract_strided_slice %283 {offsets = [0, 0], sizes = [8, 240], strides = [1, 1]} : vector<8x256xf32> to vector<8x240xf32>
    %295 = tpu.concatenate %293, %294 in 1 : vector<8x16xf32>, vector<8x240xf32> -> vector<8x256xf32>
    %c1_201 = arith.constant 1 : index
    %c0_202 = arith.constant 0 : index
    %c0_203 = arith.constant 0 : index
    %296 = vector.load %arg1[%c1_201, %c0_202, %c0_203] : memref<8x8x256xf32, #tpu.memory_space<vmem>>, vector<1x8x256xf32>
    %297 = vector.shape_cast %296 : vector<1x8x256xf32> to vector<8x256xf32>
    %298 = arith.mulf %295, %297 : vector<8x256xf32>
    %c1_204 = arith.constant 1 : index
    %c0_205 = arith.constant 0 : index
    %c0_206 = arith.constant 0 : index
    %299 = vector.load %arg4[%c1_204, %c0_205, %c0_206] : memref<9x8x8xf32, #tpu.memory_space<vmem>>, vector<1x8x8xf32>
    %300 = vector.shape_cast %299 : vector<1x8x8xf32> to vector<8x8xf32>
    %cst_207 = arith.constant dense<0.000000e+00> : vector<8x256xf32>
    %301 = tpu.matmul %300, %298, %cst_207 {dimension_numbers = #tpu.dot_dimension_numbers<[1], [0], [0], [1], [0, 0, 1, 1], [], []>} : vector<8x8xf32>, vector<8x256xf32>, vector<8x256xf32> -> vector<8x256xf32>
    %302 = arith.addf %292, %301 : vector<8x256xf32>
    %303 = vector.extract_strided_slice %283 {offsets = [0, 241], sizes = [8, 15], strides = [1, 1]} : vector<8x256xf32> to vector<8x15xf32>
    %304 = vector.extract_strided_slice %283 {offsets = [0, 0], sizes = [8, 241], strides = [1, 1]} : vector<8x256xf32> to vector<8x241xf32>
    %305 = tpu.concatenate %303, %304 in 1 : vector<8x15xf32>, vector<8x241xf32> -> vector<8x256xf32>
    %c2_208 = arith.constant 2 : index
    %c0_209 = arith.constant 0 : index
    %c0_210 = arith.constant 0 : index
    %306 = vector.load %arg1[%c2_208, %c0_209, %c0_210] : memref<8x8x256xf32, #tpu.memory_space<vmem>>, vector<1x8x256xf32>
    %307 = vector.shape_cast %306 : vector<1x8x256xf32> to vector<8x256xf32>
    %308 = arith.mulf %305, %307 : vector<8x256xf32>
    %c2_211 = arith.constant 2 : index
    %c0_212 = arith.constant 0 : index
    %c0_213 = arith.constant 0 : index
    %309 = vector.load %arg4[%c2_211, %c0_212, %c0_213] : memref<9x8x8xf32, #tpu.memory_space<vmem>>, vector<1x8x8xf32>
    %310 = vector.shape_cast %309 : vector<1x8x8xf32> to vector<8x8xf32>
    %cst_214 = arith.constant dense<0.000000e+00> : vector<8x256xf32>
    %311 = tpu.matmul %310, %308, %cst_214 {dimension_numbers = #tpu.dot_dimension_numbers<[1], [0], [0], [1], [0, 0, 1, 1], [], []>} : vector<8x8xf32>, vector<8x256xf32>, vector<8x256xf32> -> vector<8x256xf32>
    %312 = arith.addf %302, %311 : vector<8x256xf32>
    %313 = vector.extract_strided_slice %283 {offsets = [0, 255], sizes = [8, 1], strides = [1, 1]} : vector<8x256xf32> to vector<8x1xf32>
    %314 = vector.extract_strided_slice %283 {offsets = [0, 0], sizes = [8, 255], strides = [1, 1]} : vector<8x256xf32> to vector<8x255xf32>
    %315 = tpu.concatenate %313, %314 in 1 : vector<8x1xf32>, vector<8x255xf32> -> vector<8x256xf32>
    %c3_215 = arith.constant 3 : index
    %c0_216 = arith.constant 0 : index
    %c0_217 = arith.constant 0 : index
    %316 = vector.load %arg1[%c3_215, %c0_216, %c0_217] : memref<8x8x256xf32, #tpu.memory_space<vmem>>, vector<1x8x256xf32>
    %317 = vector.shape_cast %316 : vector<1x8x256xf32> to vector<8x256xf32>
    %318 = arith.mulf %315, %317 : vector<8x256xf32>
    %c3_218 = arith.constant 3 : index
    %c0_219 = arith.constant 0 : index
    %c0_220 = arith.constant 0 : index
    %319 = vector.load %arg4[%c3_218, %c0_219, %c0_220] : memref<9x8x8xf32, #tpu.memory_space<vmem>>, vector<1x8x8xf32>
    %320 = vector.shape_cast %319 : vector<1x8x8xf32> to vector<8x8xf32>
    %cst_221 = arith.constant dense<0.000000e+00> : vector<8x256xf32>
    %321 = tpu.matmul %320, %318, %cst_221 {dimension_numbers = #tpu.dot_dimension_numbers<[1], [0], [0], [1], [0, 0, 1, 1], [], []>} : vector<8x8xf32>, vector<8x256xf32>, vector<8x256xf32> -> vector<8x256xf32>
    %322 = arith.addf %312, %321 : vector<8x256xf32>
    %c4_222 = arith.constant 4 : index
    %c0_223 = arith.constant 0 : index
    %c0_224 = arith.constant 0 : index
    %323 = vector.load %arg4[%c4_222, %c0_223, %c0_224] : memref<9x8x8xf32, #tpu.memory_space<vmem>>, vector<1x8x8xf32>
    %324 = vector.shape_cast %323 : vector<1x8x8xf32> to vector<8x8xf32>
    %cst_225 = arith.constant dense<0.000000e+00> : vector<8x256xf32>
    %325 = tpu.matmul %324, %283, %cst_225 {dimension_numbers = #tpu.dot_dimension_numbers<[1], [0], [0], [1], [0, 0, 1, 1], [], []>} : vector<8x8xf32>, vector<8x256xf32>, vector<8x256xf32> -> vector<8x256xf32>
    %326 = arith.addf %322, %325 : vector<8x256xf32>
    %327 = vector.extract_strided_slice %283 {offsets = [0, 1], sizes = [8, 255], strides = [1, 1]} : vector<8x256xf32> to vector<8x255xf32>
    %328 = vector.extract_strided_slice %283 {offsets = [0, 0], sizes = [8, 1], strides = [1, 1]} : vector<8x256xf32> to vector<8x1xf32>
    %329 = tpu.concatenate %327, %328 in 1 : vector<8x255xf32>, vector<8x1xf32> -> vector<8x256xf32>
    %c4_226 = arith.constant 4 : index
    %c0_227 = arith.constant 0 : index
    %c0_228 = arith.constant 0 : index
    %330 = vector.load %arg1[%c4_226, %c0_227, %c0_228] : memref<8x8x256xf32, #tpu.memory_space<vmem>>, vector<1x8x256xf32>
    %331 = vector.shape_cast %330 : vector<1x8x256xf32> to vector<8x256xf32>
    %332 = arith.mulf %329, %331 : vector<8x256xf32>
    %c5_229 = arith.constant 5 : index
    %c0_230 = arith.constant 0 : index
    %c0_231 = arith.constant 0 : index
    %333 = vector.load %arg4[%c5_229, %c0_230, %c0_231] : memref<9x8x8xf32, #tpu.memory_space<vmem>>, vector<1x8x8xf32>
    %334 = vector.shape_cast %333 : vector<1x8x8xf32> to vector<8x8xf32>
    %cst_232 = arith.constant dense<0.000000e+00> : vector<8x256xf32>
    %335 = tpu.matmul %334, %332, %cst_232 {dimension_numbers = #tpu.dot_dimension_numbers<[1], [0], [0], [1], [0, 0, 1, 1], [], []>} : vector<8x8xf32>, vector<8x256xf32>, vector<8x256xf32> -> vector<8x256xf32>
    %336 = arith.addf %326, %335 : vector<8x256xf32>
    %337 = vector.extract_strided_slice %283 {offsets = [0, 15], sizes = [8, 241], strides = [1, 1]} : vector<8x256xf32> to vector<8x241xf32>
    %338 = vector.extract_strided_slice %283 {offsets = [0, 0], sizes = [8, 15], strides = [1, 1]} : vector<8x256xf32> to vector<8x15xf32>
    %339 = tpu.concatenate %337, %338 in 1 : vector<8x241xf32>, vector<8x15xf32> -> vector<8x256xf32>
    %c5_233 = arith.constant 5 : index
    %c0_234 = arith.constant 0 : index
    %c0_235 = arith.constant 0 : index
    %340 = vector.load %arg1[%c5_233, %c0_234, %c0_235] : memref<8x8x256xf32, #tpu.memory_space<vmem>>, vector<1x8x256xf32>
    %341 = vector.shape_cast %340 : vector<1x8x256xf32> to vector<8x256xf32>
    %342 = arith.mulf %339, %341 : vector<8x256xf32>
    %c6_236 = arith.constant 6 : index
    %c0_237 = arith.constant 0 : index
    %c0_238 = arith.constant 0 : index
    %343 = vector.load %arg4[%c6_236, %c0_237, %c0_238] : memref<9x8x8xf32, #tpu.memory_space<vmem>>, vector<1x8x8xf32>
    %344 = vector.shape_cast %343 : vector<1x8x8xf32> to vector<8x8xf32>
    %cst_239 = arith.constant dense<0.000000e+00> : vector<8x256xf32>
    %345 = tpu.matmul %344, %342, %cst_239 {dimension_numbers = #tpu.dot_dimension_numbers<[1], [0], [0], [1], [0, 0, 1, 1], [], []>} : vector<8x8xf32>, vector<8x256xf32>, vector<8x256xf32> -> vector<8x256xf32>
    %346 = arith.addf %336, %345 : vector<8x256xf32>
    %347 = vector.extract_strided_slice %283 {offsets = [0, 16], sizes = [8, 240], strides = [1, 1]} : vector<8x256xf32> to vector<8x240xf32>
    %348 = vector.extract_strided_slice %283 {offsets = [0, 0], sizes = [8, 16], strides = [1, 1]} : vector<8x256xf32> to vector<8x16xf32>
    %349 = tpu.concatenate %347, %348 in 1 : vector<8x240xf32>, vector<8x16xf32> -> vector<8x256xf32>
    %c6_240 = arith.constant 6 : index
    %c0_241 = arith.constant 0 : index
    %c0_242 = arith.constant 0 : index
    %350 = vector.load %arg1[%c6_240, %c0_241, %c0_242] : memref<8x8x256xf32, #tpu.memory_space<vmem>>, vector<1x8x256xf32>
    %351 = vector.shape_cast %350 : vector<1x8x256xf32> to vector<8x256xf32>
    %352 = arith.mulf %349, %351 : vector<8x256xf32>
    %c7_243 = arith.constant 7 : index
    %c0_244 = arith.constant 0 : index
    %c0_245 = arith.constant 0 : index
    %353 = vector.load %arg4[%c7_243, %c0_244, %c0_245] : memref<9x8x8xf32, #tpu.memory_space<vmem>>, vector<1x8x8xf32>
    %354 = vector.shape_cast %353 : vector<1x8x8xf32> to vector<8x8xf32>
    %cst_246 = arith.constant dense<0.000000e+00> : vector<8x256xf32>
    %355 = tpu.matmul %354, %352, %cst_246 {dimension_numbers = #tpu.dot_dimension_numbers<[1], [0], [0], [1], [0, 0, 1, 1], [], []>} : vector<8x8xf32>, vector<8x256xf32>, vector<8x256xf32> -> vector<8x256xf32>
    %356 = arith.addf %346, %355 : vector<8x256xf32>
    %357 = vector.extract_strided_slice %283 {offsets = [0, 17], sizes = [8, 239], strides = [1, 1]} : vector<8x256xf32> to vector<8x239xf32>
    %358 = vector.extract_strided_slice %283 {offsets = [0, 0], sizes = [8, 17], strides = [1, 1]} : vector<8x256xf32> to vector<8x17xf32>
    %359 = tpu.concatenate %357, %358 in 1 : vector<8x239xf32>, vector<8x17xf32> -> vector<8x256xf32>
    %c7_247 = arith.constant 7 : index
    %c0_248 = arith.constant 0 : index
    %c0_249 = arith.constant 0 : index
    %360 = vector.load %arg1[%c7_247, %c0_248, %c0_249] : memref<8x8x256xf32, #tpu.memory_space<vmem>>, vector<1x8x256xf32>
    %361 = vector.shape_cast %360 : vector<1x8x256xf32> to vector<8x256xf32>
    %362 = arith.mulf %359, %361 : vector<8x256xf32>
    %c8_250 = arith.constant 8 : index
    %c0_251 = arith.constant 0 : index
    %c0_252 = arith.constant 0 : index
    %363 = vector.load %arg4[%c8_250, %c0_251, %c0_252] : memref<9x8x8xf32, #tpu.memory_space<vmem>>, vector<1x8x8xf32>
    %364 = vector.shape_cast %363 : vector<1x8x8xf32> to vector<8x8xf32>
    %cst_253 = arith.constant dense<0.000000e+00> : vector<8x256xf32>
    %365 = tpu.matmul %364, %362, %cst_253 {dimension_numbers = #tpu.dot_dimension_numbers<[1], [0], [0], [1], [0, 0, 1, 1], [], []>} : vector<8x8xf32>, vector<8x256xf32>, vector<8x256xf32> -> vector<8x256xf32>
    %366 = arith.addf %356, %365 : vector<8x256xf32>
    %c0_254 = arith.constant 0 : index
    %c0_255 = arith.constant 0 : index
    %367 = vector.load %arg5[%c0_254, %c0_255] : memref<8x1xf32, #tpu.memory_space<vmem>>, vector<8x1xf32>
    %368 = vector.broadcast %367 : vector<8x1xf32> to vector<8x256xf32>
    %369 = arith.addf %366, %368 : vector<8x256xf32>
    %cst_256 = arith.constant 0.000000e+00 : f32
    %370 = vector.broadcast %cst_256 : f32 to vector<8x256xf32>
    %371 = arith.maximumf %369, %370 : vector<8x256xf32>
    %372 = vector.extract_strided_slice %371 {offsets = [0, 239], sizes = [8, 17], strides = [1, 1]} : vector<8x256xf32> to vector<8x17xf32>
    %373 = vector.extract_strided_slice %371 {offsets = [0, 0], sizes = [8, 239], strides = [1, 1]} : vector<8x256xf32> to vector<8x239xf32>
    %374 = tpu.concatenate %372, %373 in 1 : vector<8x17xf32>, vector<8x239xf32> -> vector<8x256xf32>
    %c0_257 = arith.constant 0 : index
    %c0_258 = arith.constant 0 : index
    %c0_259 = arith.constant 0 : index
    %375 = vector.load %arg1[%c0_257, %c0_258, %c0_259] : memref<8x8x256xf32, #tpu.memory_space<vmem>>, vector<1x8x256xf32>
    %376 = vector.shape_cast %375 : vector<1x8x256xf32> to vector<8x256xf32>
    %377 = arith.mulf %374, %376 : vector<8x256xf32>
    %c0_260 = arith.constant 0 : index
    %c0_261 = arith.constant 0 : index
    %c0_262 = arith.constant 0 : index
    %378 = vector.load %arg6[%c0_260, %c0_261, %c0_262] : memref<9x8x8xf32, #tpu.memory_space<vmem>>, vector<1x8x8xf32>
    %379 = vector.shape_cast %378 : vector<1x8x8xf32> to vector<8x8xf32>
    %cst_263 = arith.constant dense<0.000000e+00> : vector<8x256xf32>
    %380 = tpu.matmul %379, %377, %cst_263 {dimension_numbers = #tpu.dot_dimension_numbers<[1], [0], [0], [1], [0, 0, 1, 1], [], []>} : vector<8x8xf32>, vector<8x256xf32>, vector<8x256xf32> -> vector<8x256xf32>
    %381 = vector.extract_strided_slice %371 {offsets = [0, 240], sizes = [8, 16], strides = [1, 1]} : vector<8x256xf32> to vector<8x16xf32>
    %382 = vector.extract_strided_slice %371 {offsets = [0, 0], sizes = [8, 240], strides = [1, 1]} : vector<8x256xf32> to vector<8x240xf32>
    %383 = tpu.concatenate %381, %382 in 1 : vector<8x16xf32>, vector<8x240xf32> -> vector<8x256xf32>
    %c1_264 = arith.constant 1 : index
    %c0_265 = arith.constant 0 : index
    %c0_266 = arith.constant 0 : index
    %384 = vector.load %arg1[%c1_264, %c0_265, %c0_266] : memref<8x8x256xf32, #tpu.memory_space<vmem>>, vector<1x8x256xf32>
    %385 = vector.shape_cast %384 : vector<1x8x256xf32> to vector<8x256xf32>
    %386 = arith.mulf %383, %385 : vector<8x256xf32>
    %c1_267 = arith.constant 1 : index
    %c0_268 = arith.constant 0 : index
    %c0_269 = arith.constant 0 : index
    %387 = vector.load %arg6[%c1_267, %c0_268, %c0_269] : memref<9x8x8xf32, #tpu.memory_space<vmem>>, vector<1x8x8xf32>
    %388 = vector.shape_cast %387 : vector<1x8x8xf32> to vector<8x8xf32>
    %cst_270 = arith.constant dense<0.000000e+00> : vector<8x256xf32>
    %389 = tpu.matmul %388, %386, %cst_270 {dimension_numbers = #tpu.dot_dimension_numbers<[1], [0], [0], [1], [0, 0, 1, 1], [], []>} : vector<8x8xf32>, vector<8x256xf32>, vector<8x256xf32> -> vector<8x256xf32>
    %390 = arith.addf %380, %389 : vector<8x256xf32>
    %391 = vector.extract_strided_slice %371 {offsets = [0, 241], sizes = [8, 15], strides = [1, 1]} : vector<8x256xf32> to vector<8x15xf32>
    %392 = vector.extract_strided_slice %371 {offsets = [0, 0], sizes = [8, 241], strides = [1, 1]} : vector<8x256xf32> to vector<8x241xf32>
    %393 = tpu.concatenate %391, %392 in 1 : vector<8x15xf32>, vector<8x241xf32> -> vector<8x256xf32>
    %c2_271 = arith.constant 2 : index
    %c0_272 = arith.constant 0 : index
    %c0_273 = arith.constant 0 : index
    %394 = vector.load %arg1[%c2_271, %c0_272, %c0_273] : memref<8x8x256xf32, #tpu.memory_space<vmem>>, vector<1x8x256xf32>
    %395 = vector.shape_cast %394 : vector<1x8x256xf32> to vector<8x256xf32>
    %396 = arith.mulf %393, %395 : vector<8x256xf32>
    %c2_274 = arith.constant 2 : index
    %c0_275 = arith.constant 0 : index
    %c0_276 = arith.constant 0 : index
    %397 = vector.load %arg6[%c2_274, %c0_275, %c0_276] : memref<9x8x8xf32, #tpu.memory_space<vmem>>, vector<1x8x8xf32>
    %398 = vector.shape_cast %397 : vector<1x8x8xf32> to vector<8x8xf32>
    %cst_277 = arith.constant dense<0.000000e+00> : vector<8x256xf32>
    %399 = tpu.matmul %398, %396, %cst_277 {dimension_numbers = #tpu.dot_dimension_numbers<[1], [0], [0], [1], [0, 0, 1, 1], [], []>} : vector<8x8xf32>, vector<8x256xf32>, vector<8x256xf32> -> vector<8x256xf32>
    %400 = arith.addf %390, %399 : vector<8x256xf32>
    %401 = vector.extract_strided_slice %371 {offsets = [0, 255], sizes = [8, 1], strides = [1, 1]} : vector<8x256xf32> to vector<8x1xf32>
    %402 = vector.extract_strided_slice %371 {offsets = [0, 0], sizes = [8, 255], strides = [1, 1]} : vector<8x256xf32> to vector<8x255xf32>
    %403 = tpu.concatenate %401, %402 in 1 : vector<8x1xf32>, vector<8x255xf32> -> vector<8x256xf32>
    %c3_278 = arith.constant 3 : index
    %c0_279 = arith.constant 0 : index
    %c0_280 = arith.constant 0 : index
    %404 = vector.load %arg1[%c3_278, %c0_279, %c0_280] : memref<8x8x256xf32, #tpu.memory_space<vmem>>, vector<1x8x256xf32>
    %405 = vector.shape_cast %404 : vector<1x8x256xf32> to vector<8x256xf32>
    %406 = arith.mulf %403, %405 : vector<8x256xf32>
    %c3_281 = arith.constant 3 : index
    %c0_282 = arith.constant 0 : index
    %c0_283 = arith.constant 0 : index
    %407 = vector.load %arg6[%c3_281, %c0_282, %c0_283] : memref<9x8x8xf32, #tpu.memory_space<vmem>>, vector<1x8x8xf32>
    %408 = vector.shape_cast %407 : vector<1x8x8xf32> to vector<8x8xf32>
    %cst_284 = arith.constant dense<0.000000e+00> : vector<8x256xf32>
    %409 = tpu.matmul %408, %406, %cst_284 {dimension_numbers = #tpu.dot_dimension_numbers<[1], [0], [0], [1], [0, 0, 1, 1], [], []>} : vector<8x8xf32>, vector<8x256xf32>, vector<8x256xf32> -> vector<8x256xf32>
    %410 = arith.addf %400, %409 : vector<8x256xf32>
    %c4_285 = arith.constant 4 : index
    %c0_286 = arith.constant 0 : index
    %c0_287 = arith.constant 0 : index
    %411 = vector.load %arg6[%c4_285, %c0_286, %c0_287] : memref<9x8x8xf32, #tpu.memory_space<vmem>>, vector<1x8x8xf32>
    %412 = vector.shape_cast %411 : vector<1x8x8xf32> to vector<8x8xf32>
    %cst_288 = arith.constant dense<0.000000e+00> : vector<8x256xf32>
    %413 = tpu.matmul %412, %371, %cst_288 {dimension_numbers = #tpu.dot_dimension_numbers<[1], [0], [0], [1], [0, 0, 1, 1], [], []>} : vector<8x8xf32>, vector<8x256xf32>, vector<8x256xf32> -> vector<8x256xf32>
    %414 = arith.addf %410, %413 : vector<8x256xf32>
    %415 = vector.extract_strided_slice %371 {offsets = [0, 1], sizes = [8, 255], strides = [1, 1]} : vector<8x256xf32> to vector<8x255xf32>
    %416 = vector.extract_strided_slice %371 {offsets = [0, 0], sizes = [8, 1], strides = [1, 1]} : vector<8x256xf32> to vector<8x1xf32>
    %417 = tpu.concatenate %415, %416 in 1 : vector<8x255xf32>, vector<8x1xf32> -> vector<8x256xf32>
    %c4_289 = arith.constant 4 : index
    %c0_290 = arith.constant 0 : index
    %c0_291 = arith.constant 0 : index
    %418 = vector.load %arg1[%c4_289, %c0_290, %c0_291] : memref<8x8x256xf32, #tpu.memory_space<vmem>>, vector<1x8x256xf32>
    %419 = vector.shape_cast %418 : vector<1x8x256xf32> to vector<8x256xf32>
    %420 = arith.mulf %417, %419 : vector<8x256xf32>
    %c5_292 = arith.constant 5 : index
    %c0_293 = arith.constant 0 : index
    %c0_294 = arith.constant 0 : index
    %421 = vector.load %arg6[%c5_292, %c0_293, %c0_294] : memref<9x8x8xf32, #tpu.memory_space<vmem>>, vector<1x8x8xf32>
    %422 = vector.shape_cast %421 : vector<1x8x8xf32> to vector<8x8xf32>
    %cst_295 = arith.constant dense<0.000000e+00> : vector<8x256xf32>
    %423 = tpu.matmul %422, %420, %cst_295 {dimension_numbers = #tpu.dot_dimension_numbers<[1], [0], [0], [1], [0, 0, 1, 1], [], []>} : vector<8x8xf32>, vector<8x256xf32>, vector<8x256xf32> -> vector<8x256xf32>
    %424 = arith.addf %414, %423 : vector<8x256xf32>
    %425 = vector.extract_strided_slice %371 {offsets = [0, 15], sizes = [8, 241], strides = [1, 1]} : vector<8x256xf32> to vector<8x241xf32>
    %426 = vector.extract_strided_slice %371 {offsets = [0, 0], sizes = [8, 15], strides = [1, 1]} : vector<8x256xf32> to vector<8x15xf32>
    %427 = tpu.concatenate %425, %426 in 1 : vector<8x241xf32>, vector<8x15xf32> -> vector<8x256xf32>
    %c5_296 = arith.constant 5 : index
    %c0_297 = arith.constant 0 : index
    %c0_298 = arith.constant 0 : index
    %428 = vector.load %arg1[%c5_296, %c0_297, %c0_298] : memref<8x8x256xf32, #tpu.memory_space<vmem>>, vector<1x8x256xf32>
    %429 = vector.shape_cast %428 : vector<1x8x256xf32> to vector<8x256xf32>
    %430 = arith.mulf %427, %429 : vector<8x256xf32>
    %c6_299 = arith.constant 6 : index
    %c0_300 = arith.constant 0 : index
    %c0_301 = arith.constant 0 : index
    %431 = vector.load %arg6[%c6_299, %c0_300, %c0_301] : memref<9x8x8xf32, #tpu.memory_space<vmem>>, vector<1x8x8xf32>
    %432 = vector.shape_cast %431 : vector<1x8x8xf32> to vector<8x8xf32>
    %cst_302 = arith.constant dense<0.000000e+00> : vector<8x256xf32>
    %433 = tpu.matmul %432, %430, %cst_302 {dimension_numbers = #tpu.dot_dimension_numbers<[1], [0], [0], [1], [0, 0, 1, 1], [], []>} : vector<8x8xf32>, vector<8x256xf32>, vector<8x256xf32> -> vector<8x256xf32>
    %434 = arith.addf %424, %433 : vector<8x256xf32>
    %435 = vector.extract_strided_slice %371 {offsets = [0, 16], sizes = [8, 240], strides = [1, 1]} : vector<8x256xf32> to vector<8x240xf32>
    %436 = vector.extract_strided_slice %371 {offsets = [0, 0], sizes = [8, 16], strides = [1, 1]} : vector<8x256xf32> to vector<8x16xf32>
    %437 = tpu.concatenate %435, %436 in 1 : vector<8x240xf32>, vector<8x16xf32> -> vector<8x256xf32>
    %c6_303 = arith.constant 6 : index
    %c0_304 = arith.constant 0 : index
    %c0_305 = arith.constant 0 : index
    %438 = vector.load %arg1[%c6_303, %c0_304, %c0_305] : memref<8x8x256xf32, #tpu.memory_space<vmem>>, vector<1x8x256xf32>
    %439 = vector.shape_cast %438 : vector<1x8x256xf32> to vector<8x256xf32>
    %440 = arith.mulf %437, %439 : vector<8x256xf32>
    %c7_306 = arith.constant 7 : index
    %c0_307 = arith.constant 0 : index
    %c0_308 = arith.constant 0 : index
    %441 = vector.load %arg6[%c7_306, %c0_307, %c0_308] : memref<9x8x8xf32, #tpu.memory_space<vmem>>, vector<1x8x8xf32>
    %442 = vector.shape_cast %441 : vector<1x8x8xf32> to vector<8x8xf32>
    %cst_309 = arith.constant dense<0.000000e+00> : vector<8x256xf32>
    %443 = tpu.matmul %442, %440, %cst_309 {dimension_numbers = #tpu.dot_dimension_numbers<[1], [0], [0], [1], [0, 0, 1, 1], [], []>} : vector<8x8xf32>, vector<8x256xf32>, vector<8x256xf32> -> vector<8x256xf32>
    %444 = arith.addf %434, %443 : vector<8x256xf32>
    %445 = vector.extract_strided_slice %371 {offsets = [0, 17], sizes = [8, 239], strides = [1, 1]} : vector<8x256xf32> to vector<8x239xf32>
    %446 = vector.extract_strided_slice %371 {offsets = [0, 0], sizes = [8, 17], strides = [1, 1]} : vector<8x256xf32> to vector<8x17xf32>
    %447 = tpu.concatenate %445, %446 in 1 : vector<8x239xf32>, vector<8x17xf32> -> vector<8x256xf32>
    %c7_310 = arith.constant 7 : index
    %c0_311 = arith.constant 0 : index
    %c0_312 = arith.constant 0 : index
    %448 = vector.load %arg1[%c7_310, %c0_311, %c0_312] : memref<8x8x256xf32, #tpu.memory_space<vmem>>, vector<1x8x256xf32>
    %449 = vector.shape_cast %448 : vector<1x8x256xf32> to vector<8x256xf32>
    %450 = arith.mulf %447, %449 : vector<8x256xf32>
    %c8_313 = arith.constant 8 : index
    %c0_314 = arith.constant 0 : index
    %c0_315 = arith.constant 0 : index
    %451 = vector.load %arg6[%c8_313, %c0_314, %c0_315] : memref<9x8x8xf32, #tpu.memory_space<vmem>>, vector<1x8x8xf32>
    %452 = vector.shape_cast %451 : vector<1x8x8xf32> to vector<8x8xf32>
    %cst_316 = arith.constant dense<0.000000e+00> : vector<8x256xf32>
    %453 = tpu.matmul %452, %450, %cst_316 {dimension_numbers = #tpu.dot_dimension_numbers<[1], [0], [0], [1], [0, 0, 1, 1], [], []>} : vector<8x8xf32>, vector<8x256xf32>, vector<8x256xf32> -> vector<8x256xf32>
    %454 = arith.addf %444, %453 : vector<8x256xf32>
    %c0_317 = arith.constant 0 : index
    %c0_318 = arith.constant 0 : index
    %455 = vector.load %arg7[%c0_317, %c0_318] : memref<8x1xf32, #tpu.memory_space<vmem>>, vector<8x1xf32>
    %456 = vector.broadcast %455 : vector<8x1xf32> to vector<8x256xf32>
    %457 = arith.addf %454, %456 : vector<8x256xf32>
    %cst_319 = arith.constant 0.000000e+00 : f32
    %458 = vector.broadcast %cst_319 : f32 to vector<8x256xf32>
    %459 = arith.maximumf %457, %458 : vector<8x256xf32>
    %460 = vector.extract_strided_slice %459 {offsets = [0, 239], sizes = [8, 17], strides = [1, 1]} : vector<8x256xf32> to vector<8x17xf32>
    %461 = vector.extract_strided_slice %459 {offsets = [0, 0], sizes = [8, 239], strides = [1, 1]} : vector<8x256xf32> to vector<8x239xf32>
    %462 = tpu.concatenate %460, %461 in 1 : vector<8x17xf32>, vector<8x239xf32> -> vector<8x256xf32>
    %c0_320 = arith.constant 0 : index
    %c0_321 = arith.constant 0 : index
    %c0_322 = arith.constant 0 : index
    %463 = vector.load %arg1[%c0_320, %c0_321, %c0_322] : memref<8x8x256xf32, #tpu.memory_space<vmem>>, vector<1x8x256xf32>
    %464 = vector.shape_cast %463 : vector<1x8x256xf32> to vector<8x256xf32>
    %465 = arith.mulf %462, %464 : vector<8x256xf32>
    %c0_323 = arith.constant 0 : index
    %c0_324 = arith.constant 0 : index
    %c0_325 = arith.constant 0 : index
    %466 = vector.load %arg8[%c0_323, %c0_324, %c0_325] : memref<9x8x8xf32, #tpu.memory_space<vmem>>, vector<1x8x8xf32>
    %467 = vector.shape_cast %466 : vector<1x8x8xf32> to vector<8x8xf32>
    %cst_326 = arith.constant dense<0.000000e+00> : vector<8x256xf32>
    %468 = tpu.matmul %467, %465, %cst_326 {dimension_numbers = #tpu.dot_dimension_numbers<[1], [0], [0], [1], [0, 0, 1, 1], [], []>} : vector<8x8xf32>, vector<8x256xf32>, vector<8x256xf32> -> vector<8x256xf32>
    %469 = vector.extract_strided_slice %459 {offsets = [0, 240], sizes = [8, 16], strides = [1, 1]} : vector<8x256xf32> to vector<8x16xf32>
    %470 = vector.extract_strided_slice %459 {offsets = [0, 0], sizes = [8, 240], strides = [1, 1]} : vector<8x256xf32> to vector<8x240xf32>
    %471 = tpu.concatenate %469, %470 in 1 : vector<8x16xf32>, vector<8x240xf32> -> vector<8x256xf32>
    %c1_327 = arith.constant 1 : index
    %c0_328 = arith.constant 0 : index
    %c0_329 = arith.constant 0 : index
    %472 = vector.load %arg1[%c1_327, %c0_328, %c0_329] : memref<8x8x256xf32, #tpu.memory_space<vmem>>, vector<1x8x256xf32>
    %473 = vector.shape_cast %472 : vector<1x8x256xf32> to vector<8x256xf32>
    %474 = arith.mulf %471, %473 : vector<8x256xf32>
    %c1_330 = arith.constant 1 : index
    %c0_331 = arith.constant 0 : index
    %c0_332 = arith.constant 0 : index
    %475 = vector.load %arg8[%c1_330, %c0_331, %c0_332] : memref<9x8x8xf32, #tpu.memory_space<vmem>>, vector<1x8x8xf32>
    %476 = vector.shape_cast %475 : vector<1x8x8xf32> to vector<8x8xf32>
    %cst_333 = arith.constant dense<0.000000e+00> : vector<8x256xf32>
    %477 = tpu.matmul %476, %474, %cst_333 {dimension_numbers = #tpu.dot_dimension_numbers<[1], [0], [0], [1], [0, 0, 1, 1], [], []>} : vector<8x8xf32>, vector<8x256xf32>, vector<8x256xf32> -> vector<8x256xf32>
    %478 = arith.addf %468, %477 : vector<8x256xf32>
    %479 = vector.extract_strided_slice %459 {offsets = [0, 241], sizes = [8, 15], strides = [1, 1]} : vector<8x256xf32> to vector<8x15xf32>
    %480 = vector.extract_strided_slice %459 {offsets = [0, 0], sizes = [8, 241], strides = [1, 1]} : vector<8x256xf32> to vector<8x241xf32>
    %481 = tpu.concatenate %479, %480 in 1 : vector<8x15xf32>, vector<8x241xf32> -> vector<8x256xf32>
    %c2_334 = arith.constant 2 : index
    %c0_335 = arith.constant 0 : index
    %c0_336 = arith.constant 0 : index
    %482 = vector.load %arg1[%c2_334, %c0_335, %c0_336] : memref<8x8x256xf32, #tpu.memory_space<vmem>>, vector<1x8x256xf32>
    %483 = vector.shape_cast %482 : vector<1x8x256xf32> to vector<8x256xf32>
    %484 = arith.mulf %481, %483 : vector<8x256xf32>
    %c2_337 = arith.constant 2 : index
    %c0_338 = arith.constant 0 : index
    %c0_339 = arith.constant 0 : index
    %485 = vector.load %arg8[%c2_337, %c0_338, %c0_339] : memref<9x8x8xf32, #tpu.memory_space<vmem>>, vector<1x8x8xf32>
    %486 = vector.shape_cast %485 : vector<1x8x8xf32> to vector<8x8xf32>
    %cst_340 = arith.constant dense<0.000000e+00> : vector<8x256xf32>
    %487 = tpu.matmul %486, %484, %cst_340 {dimension_numbers = #tpu.dot_dimension_numbers<[1], [0], [0], [1], [0, 0, 1, 1], [], []>} : vector<8x8xf32>, vector<8x256xf32>, vector<8x256xf32> -> vector<8x256xf32>
    %488 = arith.addf %478, %487 : vector<8x256xf32>
    %489 = vector.extract_strided_slice %459 {offsets = [0, 255], sizes = [8, 1], strides = [1, 1]} : vector<8x256xf32> to vector<8x1xf32>
    %490 = vector.extract_strided_slice %459 {offsets = [0, 0], sizes = [8, 255], strides = [1, 1]} : vector<8x256xf32> to vector<8x255xf32>
    %491 = tpu.concatenate %489, %490 in 1 : vector<8x1xf32>, vector<8x255xf32> -> vector<8x256xf32>
    %c3_341 = arith.constant 3 : index
    %c0_342 = arith.constant 0 : index
    %c0_343 = arith.constant 0 : index
    %492 = vector.load %arg1[%c3_341, %c0_342, %c0_343] : memref<8x8x256xf32, #tpu.memory_space<vmem>>, vector<1x8x256xf32>
    %493 = vector.shape_cast %492 : vector<1x8x256xf32> to vector<8x256xf32>
    %494 = arith.mulf %491, %493 : vector<8x256xf32>
    %c3_344 = arith.constant 3 : index
    %c0_345 = arith.constant 0 : index
    %c0_346 = arith.constant 0 : index
    %495 = vector.load %arg8[%c3_344, %c0_345, %c0_346] : memref<9x8x8xf32, #tpu.memory_space<vmem>>, vector<1x8x8xf32>
    %496 = vector.shape_cast %495 : vector<1x8x8xf32> to vector<8x8xf32>
    %cst_347 = arith.constant dense<0.000000e+00> : vector<8x256xf32>
    %497 = tpu.matmul %496, %494, %cst_347 {dimension_numbers = #tpu.dot_dimension_numbers<[1], [0], [0], [1], [0, 0, 1, 1], [], []>} : vector<8x8xf32>, vector<8x256xf32>, vector<8x256xf32> -> vector<8x256xf32>
    %498 = arith.addf %488, %497 : vector<8x256xf32>
    %c4_348 = arith.constant 4 : index
    %c0_349 = arith.constant 0 : index
    %c0_350 = arith.constant 0 : index
    %499 = vector.load %arg8[%c4_348, %c0_349, %c0_350] : memref<9x8x8xf32, #tpu.memory_space<vmem>>, vector<1x8x8xf32>
    %500 = vector.shape_cast %499 : vector<1x8x8xf32> to vector<8x8xf32>
    %cst_351 = arith.constant dense<0.000000e+00> : vector<8x256xf32>
    %501 = tpu.matmul %500, %459, %cst_351 {dimension_numbers = #tpu.dot_dimension_numbers<[1], [0], [0], [1], [0, 0, 1, 1], [], []>} : vector<8x8xf32>, vector<8x256xf32>, vector<8x256xf32> -> vector<8x256xf32>
    %502 = arith.addf %498, %501 : vector<8x256xf32>
    %503 = vector.extract_strided_slice %459 {offsets = [0, 1], sizes = [8, 255], strides = [1, 1]} : vector<8x256xf32> to vector<8x255xf32>
    %504 = vector.extract_strided_slice %459 {offsets = [0, 0], sizes = [8, 1], strides = [1, 1]} : vector<8x256xf32> to vector<8x1xf32>
    %505 = tpu.concatenate %503, %504 in 1 : vector<8x255xf32>, vector<8x1xf32> -> vector<8x256xf32>
    %c4_352 = arith.constant 4 : index
    %c0_353 = arith.constant 0 : index
    %c0_354 = arith.constant 0 : index
    %506 = vector.load %arg1[%c4_352, %c0_353, %c0_354] : memref<8x8x256xf32, #tpu.memory_space<vmem>>, vector<1x8x256xf32>
    %507 = vector.shape_cast %506 : vector<1x8x256xf32> to vector<8x256xf32>
    %508 = arith.mulf %505, %507 : vector<8x256xf32>
    %c5_355 = arith.constant 5 : index
    %c0_356 = arith.constant 0 : index
    %c0_357 = arith.constant 0 : index
    %509 = vector.load %arg8[%c5_355, %c0_356, %c0_357] : memref<9x8x8xf32, #tpu.memory_space<vmem>>, vector<1x8x8xf32>
    %510 = vector.shape_cast %509 : vector<1x8x8xf32> to vector<8x8xf32>
    %cst_358 = arith.constant dense<0.000000e+00> : vector<8x256xf32>
    %511 = tpu.matmul %510, %508, %cst_358 {dimension_numbers = #tpu.dot_dimension_numbers<[1], [0], [0], [1], [0, 0, 1, 1], [], []>} : vector<8x8xf32>, vector<8x256xf32>, vector<8x256xf32> -> vector<8x256xf32>
    %512 = arith.addf %502, %511 : vector<8x256xf32>
    %513 = vector.extract_strided_slice %459 {offsets = [0, 15], sizes = [8, 241], strides = [1, 1]} : vector<8x256xf32> to vector<8x241xf32>
    %514 = vector.extract_strided_slice %459 {offsets = [0, 0], sizes = [8, 15], strides = [1, 1]} : vector<8x256xf32> to vector<8x15xf32>
    %515 = tpu.concatenate %513, %514 in 1 : vector<8x241xf32>, vector<8x15xf32> -> vector<8x256xf32>
    %c5_359 = arith.constant 5 : index
    %c0_360 = arith.constant 0 : index
    %c0_361 = arith.constant 0 : index
    %516 = vector.load %arg1[%c5_359, %c0_360, %c0_361] : memref<8x8x256xf32, #tpu.memory_space<vmem>>, vector<1x8x256xf32>
    %517 = vector.shape_cast %516 : vector<1x8x256xf32> to vector<8x256xf32>
    %518 = arith.mulf %515, %517 : vector<8x256xf32>
    %c6_362 = arith.constant 6 : index
    %c0_363 = arith.constant 0 : index
    %c0_364 = arith.constant 0 : index
    %519 = vector.load %arg8[%c6_362, %c0_363, %c0_364] : memref<9x8x8xf32, #tpu.memory_space<vmem>>, vector<1x8x8xf32>
    %520 = vector.shape_cast %519 : vector<1x8x8xf32> to vector<8x8xf32>
    %cst_365 = arith.constant dense<0.000000e+00> : vector<8x256xf32>
    %521 = tpu.matmul %520, %518, %cst_365 {dimension_numbers = #tpu.dot_dimension_numbers<[1], [0], [0], [1], [0, 0, 1, 1], [], []>} : vector<8x8xf32>, vector<8x256xf32>, vector<8x256xf32> -> vector<8x256xf32>
    %522 = arith.addf %512, %521 : vector<8x256xf32>
    %523 = vector.extract_strided_slice %459 {offsets = [0, 16], sizes = [8, 240], strides = [1, 1]} : vector<8x256xf32> to vector<8x240xf32>
    %524 = vector.extract_strided_slice %459 {offsets = [0, 0], sizes = [8, 16], strides = [1, 1]} : vector<8x256xf32> to vector<8x16xf32>
    %525 = tpu.concatenate %523, %524 in 1 : vector<8x240xf32>, vector<8x16xf32> -> vector<8x256xf32>
    %c6_366 = arith.constant 6 : index
    %c0_367 = arith.constant 0 : index
    %c0_368 = arith.constant 0 : index
    %526 = vector.load %arg1[%c6_366, %c0_367, %c0_368] : memref<8x8x256xf32, #tpu.memory_space<vmem>>, vector<1x8x256xf32>
    %527 = vector.shape_cast %526 : vector<1x8x256xf32> to vector<8x256xf32>
    %528 = arith.mulf %525, %527 : vector<8x256xf32>
    %c7_369 = arith.constant 7 : index
    %c0_370 = arith.constant 0 : index
    %c0_371 = arith.constant 0 : index
    %529 = vector.load %arg8[%c7_369, %c0_370, %c0_371] : memref<9x8x8xf32, #tpu.memory_space<vmem>>, vector<1x8x8xf32>
    %530 = vector.shape_cast %529 : vector<1x8x8xf32> to vector<8x8xf32>
    %cst_372 = arith.constant dense<0.000000e+00> : vector<8x256xf32>
    %531 = tpu.matmul %530, %528, %cst_372 {dimension_numbers = #tpu.dot_dimension_numbers<[1], [0], [0], [1], [0, 0, 1, 1], [], []>} : vector<8x8xf32>, vector<8x256xf32>, vector<8x256xf32> -> vector<8x256xf32>
    %532 = arith.addf %522, %531 : vector<8x256xf32>
    %533 = vector.extract_strided_slice %459 {offsets = [0, 17], sizes = [8, 239], strides = [1, 1]} : vector<8x256xf32> to vector<8x239xf32>
    %534 = vector.extract_strided_slice %459 {offsets = [0, 0], sizes = [8, 17], strides = [1, 1]} : vector<8x256xf32> to vector<8x17xf32>
    %535 = tpu.concatenate %533, %534 in 1 : vector<8x239xf32>, vector<8x17xf32> -> vector<8x256xf32>
    %c7_373 = arith.constant 7 : index
    %c0_374 = arith.constant 0 : index
    %c0_375 = arith.constant 0 : index
    %536 = vector.load %arg1[%c7_373, %c0_374, %c0_375] : memref<8x8x256xf32, #tpu.memory_space<vmem>>, vector<1x8x256xf32>
    %537 = vector.shape_cast %536 : vector<1x8x256xf32> to vector<8x256xf32>
    %538 = arith.mulf %535, %537 : vector<8x256xf32>
    %c8_376 = arith.constant 8 : index
    %c0_377 = arith.constant 0 : index
    %c0_378 = arith.constant 0 : index
    %539 = vector.load %arg8[%c8_376, %c0_377, %c0_378] : memref<9x8x8xf32, #tpu.memory_space<vmem>>, vector<1x8x8xf32>
    %540 = vector.shape_cast %539 : vector<1x8x8xf32> to vector<8x8xf32>
    %cst_379 = arith.constant dense<0.000000e+00> : vector<8x256xf32>
    %541 = tpu.matmul %540, %538, %cst_379 {dimension_numbers = #tpu.dot_dimension_numbers<[1], [0], [0], [1], [0, 0, 1, 1], [], []>} : vector<8x8xf32>, vector<8x256xf32>, vector<8x256xf32> -> vector<8x256xf32>
    %542 = arith.addf %532, %541 : vector<8x256xf32>
    %c0_380 = arith.constant 0 : index
    %c0_381 = arith.constant 0 : index
    %543 = vector.load %arg9[%c0_380, %c0_381] : memref<8x1xf32, #tpu.memory_space<vmem>>, vector<8x1xf32>
    %544 = vector.broadcast %543 : vector<8x1xf32> to vector<8x256xf32>
    %545 = arith.addf %542, %544 : vector<8x256xf32>
    %cst_382 = arith.constant 0.000000e+00 : f32
    %546 = vector.broadcast %cst_382 : f32 to vector<8x256xf32>
    %547 = arith.maximumf %545, %546 : vector<8x256xf32>
    %c1_383 = arith.constant 1 : index
    %c0_384 = arith.constant 0 : index
    %c0_385 = arith.constant 0 : index
    %548 = vector.load %arg10[%c1_383, %c0_384, %c0_385] : memref<2x8x256xf32, #tpu.memory_space<vmem>>, vector<1x8x256xf32>
    %549 = vector.shape_cast %548 : vector<1x8x256xf32> to vector<8x256xf32>
    %550 = vector.shape_cast %547 : vector<8x256xf32> to vector<1x8x256xf32>
    tpu.vector_store %arg10[%c1_383, %c0_384, %c0_385], %550 {strides = array<i32>} : memref<2x8x256xf32, #tpu.memory_space<vmem>>, vector<1x8x256xf32>,
    %551 = vector.extract_strided_slice %547 {offsets = [0, 1], sizes = [8, 255], strides = [1, 1]} : vector<8x256xf32> to vector<8x255xf32>
    %552 = vector.extract_strided_slice %547 {offsets = [0, 0], sizes = [8, 1], strides = [1, 1]} : vector<8x256xf32> to vector<8x1xf32>
    %553 = tpu.concatenate %551, %552 in 1 : vector<8x255xf32>, vector<8x1xf32> -> vector<8x256xf32>
    %554 = arith.maximumf %547, %553 : vector<8x256xf32>
    %555 = vector.extract_strided_slice %554 {offsets = [0, 16], sizes = [8, 240], strides = [1, 1]} : vector<8x256xf32> to vector<8x240xf32>
    %556 = vector.extract_strided_slice %554 {offsets = [0, 0], sizes = [8, 16], strides = [1, 1]} : vector<8x256xf32> to vector<8x16xf32>
    %557 = tpu.concatenate %555, %556 in 1 : vector<8x240xf32>, vector<8x16xf32> -> vector<8x256xf32>
    %558 = arith.maximumf %554, %557 : vector<8x256xf32>
    %cst_386 = arith.constant dense<0.000000e+00> : vector<8x64xf32>
    %559 = tpu.matmul %558, %0, %cst_386 {dimension_numbers = #tpu.dot_dimension_numbers<[1], [0], [0], [1], [0, 0, 1, 1], [], []>} : vector<8x256xf32>, vector<256x64xf32>, vector<8x64xf32> -> vector<8x64xf32>
    %c1_387 = arith.constant 1 : index
    %c0_388 = arith.constant 0 : index
    %c0_389 = arith.constant 0 : index
    %560 = vector.load %arg11[%c1_387, %c0_388, %c0_389] : memref<2x8x64xf32, #tpu.memory_space<vmem>>, vector<1x8x64xf32>
    %561 = vector.shape_cast %560 : vector<1x8x64xf32> to vector<8x64xf32>
    %562 = vector.shape_cast %559 : vector<8x64xf32> to vector<1x8x64xf32>
    tpu.vector_store %arg11[%c1_387, %c0_388, %c0_389], %562 {strides = array<i32>} : memref<2x8x64xf32, #tpu.memory_space<vmem>>, vector<1x8x64xf32>,
    return
  }
  func.func @transform_0(%arg0: i32) -> (i32, i32, i32) {
    %c0_i32 = arith.constant 0 : i32
    %c0_i32_0 = arith.constant 0 : i32
    %c0_i32_1 = arith.constant 0 : i32
    %c0_i32_2 = arith.constant 0 : i32
    return %c0_i32, %c0_i32_0, %c0_i32_1 : i32, i32, i32
  }
  func.func @transform_1(%arg0: i32) -> (i32, i32) {
    %c0_i32 = arith.constant 0 : i32
    %c0_i32_0 = arith.constant 0 : i32
    %c0_i32_1 = arith.constant 0 : i32
    return %c0_i32, %c0_i32_0 : i32, i32
  }
  func.func @transform_2(%arg0: i32) -> (i32, i32, i32) {
    %c0_i32 = arith.constant 0 : i32
    %c0_i32_0 = arith.constant 0 : i32
    %c0_i32_1 = arith.constant 0 : i32
    return %arg0, %c0_i32, %c0_i32_0 : i32, i32, i32
  }
  func.func @transform_3(%arg0: i32) -> (i32, i32, i32) {
    %c0_i32 = arith.constant 0 : i32
    %c0_i32_0 = arith.constant 0 : i32
    %c0_i32_1 = arith.constant 0 : i32
    %c0_i32_2 = arith.constant 0 : i32
    return %c0_i32, %c0_i32_0, %c0_i32_1 : i32, i32, i32
  }
  func.func @transform_4(%arg0: i32) -> (i32, i32) {
    %c0_i32 = arith.constant 0 : i32
    %c0_i32_0 = arith.constant 0 : i32
    %c0_i32_1 = arith.constant 0 : i32
    return %c0_i32, %c0_i32_0 : i32, i32
  }
  func.func @transform_5(%arg0: i32) -> (i32, i32, i32) {
    %c0_i32 = arith.constant 0 : i32
    %c0_i32_0 = arith.constant 0 : i32
    %c0_i32_1 = arith.constant 0 : i32
    %c0_i32_2 = arith.constant 0 : i32
    return %c0_i32, %c0_i32_0, %c0_i32_1 : i32, i32, i32
  }
  func.func @transform_6(%arg0: i32) -> (i32, i32) {
    %c0_i32 = arith.constant 0 : i32
    %c0_i32_0 = arith.constant 0 : i32
    %c0_i32_1 = arith.constant 0 : i32
    return %c0_i32, %c0_i32_0 : i32, i32
  }
  func.func @transform_7(%arg0: i32) -> (i32, i32, i32) {
    %c0_i32 = arith.constant 0 : i32
    %c0_i32_0 = arith.constant 0 : i32
    %c0_i32_1 = arith.constant 0 : i32
    %c0_i32_2 = arith.constant 0 : i32
    return %c0_i32, %c0_i32_0, %c0_i32_1 : i32, i32, i32
  }
  func.func @transform_8(%arg0: i32) -> (i32, i32) {
    %c0_i32 = arith.constant 0 : i32
    %c0_i32_0 = arith.constant 0 : i32
    %c0_i32_1 = arith.constant 0 : i32
    return %c0_i32, %c0_i32_0 : i32, i32
  }
  func.func @transform_9(%arg0: i32) -> (i32, i32, i32) {
    %c0_i32 = arith.constant 0 : i32
    %c0_i32_0 = arith.constant 0 : i32
    %c0_i32_1 = arith.constant 0 : i32
    return %arg0, %c0_i32, %c0_i32_0 : i32, i32, i32
  }
  func.func @transform_10(%arg0: i32) -> (i32, i32, i32) {
    %c0_i32 = arith.constant 0 : i32
    %c0_i32_0 = arith.constant 0 : i32
    %c0_i32_1 = arith.constant 0 : i32
    return %arg0, %c0_i32, %c0_i32_0 : i32, i32, i32
  }
}

</mosaic_0001>

<llo_original>
// kernel: tpu_custom_call.1
$region0: #{tpu_custom_call.1}
  #allocation0 [shape = 'u32[]', space=smem, size = 0x4, offset = 0x4, fixed_abs, tag = 'smem constant byte address 0x4 - core index']
  #allocation1 [shape = 'u32[144,128]{1,0:T(1,128)}', space=vmem, size = 0x12000, scoped, tag = 'internal scratch']
  %s0 = inlined_call_operand.vmem [shape: f32[8,8,256], index: 0, kind: input, shape index: {}]
  %s1 = inlined_call_operand.vmem [shape: f32[256,64], index: 1, kind: input, shape index: {}]
  %s2 = inlined_call_operand.vmem [shape: f32[2,8,256], index: 2, kind: input, shape index: {}]
  %s3 = inlined_call_operand.vmem [shape: f32[9,8,8], index: 3, kind: input, shape index: {}]
  %s4 = inlined_call_operand.vmem [shape: f32[8,1], index: 4, kind: input, shape index: {}]
  %s5 = inlined_call_operand.vmem [shape: f32[9,8,8], index: 5, kind: input, shape index: {}]
  %s6 = inlined_call_operand.vmem [shape: f32[8,1], index: 6, kind: input, shape index: {}]
  %s7 = inlined_call_operand.vmem [shape: f32[9,8,8], index: 7, kind: input, shape index: {}]
  %s8 = inlined_call_operand.vmem [shape: f32[8,1], index: 8, kind: input, shape index: {}]
  %s9 = inlined_call_operand.hbm [shape: f32[2,8,256], index: 9, kind: output, shape index: {0}]
  %s10 = inlined_call_operand.hbm [shape: f32[2,8,64], index: 10, kind: output, shape index: {1}]
  %11 = xla_tuple %s9, %s10
  %s12 = sld [smem:[#allocation0]]
  $region54: #{tpu_custom_call.1} parent=0
    _
  %s14 = ssub.s32 1, %s12
  %s15 = scalar_select 0, %s14, %s12
  $region1: #{tpu_custom_call.1} parent=0
    #allocation2 [shape = 'u8[16384]{0}', space=vmem, size = 0x4000, scoped, tag = 'output window, operand 0, single buffered']
    #allocation3 [shape = 's32[1]{0}', space=sflag, size = 0x4, scoped, tag = 'scoped memory for tpu_custom_call.1']
    #allocation4 [shape = 'u8[8192]{0}', space=vmem, size = 0x2000, scoped, tag = 'output window, operand 1, single buffered']
    #allocation5 [shape = 's32[1]{0}', space=sflag, size = 0x4, scoped, tag = 'scoped memory for tpu_custom_call.1']
    %16 = vsyncpa [#allocation3], 0
    %17 = vsyncpa [#allocation5], 0
    // Predicated region
    $region2: #{tpu_custom_call.1} parent=1 // pred_check
      _
    $region3: #{tpu_custom_call.1} parent=1 // pred_check_branch
      %19 = sbr.rel (0) target = $region5
    $region4: #{tpu_custom_call.1} parent=1 // pred_region
      _
    $region5: #{tpu_custom_call.1} parent=1 // pred_fallthru
      _
    // Predicated region
    $region6: #{tpu_custom_call.1} parent=1 // pred_check
      _
    $region7: #{tpu_custom_call.1} parent=1 // pred_check_branch
      %21 = sbr.rel (0) target = $region9
    $region8: #{tpu_custom_call.1} parent=1 // pred_region
      _
    $region9: #{tpu_custom_call.1} parent=1 // pred_fallthru
      _
    // Predicated region
    $region10: #{tpu_custom_call.1} parent=1 // pred_check
      _
    $region11: #{tpu_custom_call.1} parent=1 // pred_check_branch
      %23 = sbr.rel (0) target = $region13
    $region12: #{tpu_custom_call.1} parent=1 // pred_region
      _
    $region13: #{tpu_custom_call.1} parent=1 // pred_fallthru
      _
    // Predicated region
    $region14: #{tpu_custom_call.1} parent=1 // pred_check
      _
    $region15: #{tpu_custom_call.1} parent=1 // pred_check_branch
      %25 = sbr.rel (0) target = $region17
    $region16: #{tpu_custom_call.1} parent=1 // pred_region
      _
    $region17: #{tpu_custom_call.1} parent=1 // pred_fallthru
      _
    // Predicated region
    $region18: #{tpu_custom_call.1} parent=1 // pred_check
      _
    $region19: #{tpu_custom_call.1} parent=1 // pred_check_branch
      %27 = sbr.rel (0) target = $region21
    $region20: #{tpu_custom_call.1} parent=1 // pred_region
      _
    $region21: #{tpu_custom_call.1} parent=1 // pred_fallthru
      _
    // Predicated region
    $region22: #{tpu_custom_call.1} parent=1 // pred_check
      _
    $region23: #{tpu_custom_call.1} parent=1 // pred_check_branch
      %29 = sbr.rel (0) target = $region25
    $region24: #{tpu_custom_call.1} parent=1 // pred_region
      _
    $region25: #{tpu_custom_call.1} parent=1 // pred_fallthru
      _
    // Predicated region
    $region26: #{tpu_custom_call.1} parent=1 // pred_check
      _
    $region27: #{tpu_custom_call.1} parent=1 // pred_check_branch
      %31 = sbr.rel (0) target = $region29
    $region28: #{tpu_custom_call.1} parent=1 // pred_region
      _
    $region29: #{tpu_custom_call.1} parent=1 // pred_fallthru
      _
    // Predicated region
    $region30: #{tpu_custom_call.1} parent=1 // pred_check
      _
    $region31: #{tpu_custom_call.1} parent=1 // pred_check_branch
      %33 = sbr.rel (0) target = $region33
    $region32: #{tpu_custom_call.1} parent=1 // pred_region
      _
    $region33: #{tpu_custom_call.1} parent=1 // pred_fallthru
      _
    // Predicated region
    $region34: #{tpu_custom_call.1} parent=1 // pred_check
      _
    $region35: #{tpu_custom_call.1} parent=1 // pred_check_branch
      %35 = sbr.rel (0) target = $region37
    $region36: #{tpu_custom_call.1} parent=1 // pred_region
      _
    $region37: #{tpu_custom_call.1} parent=1 // pred_fallthru
      _
    %v36 = vld [vmem:[%s1] sm:$0xff]
    %v37 = vld [vmem:[%s1 + $0x8] sm:$0xff]
    %v38 = vld [vmem:[%s1 + $0x10] sm:$0xff]
    %v39 = vld [vmem:[%s1 + $0x18] sm:$0xff]
    %v40 = vld [vmem:[%s1 + $0x20] sm:$0xff]
    %v41 = vld [vmem:[%s1 + $0x28] sm:$0xff]
    %v42 = vld [vmem:[%s1 + $0x30] sm:$0xff]
    %v43 = vld [vmem:[%s1 + $0x38] sm:$0xff]
    %v44 = vld [vmem:[%s1 + $0x40] sm:$0xff]
    %v45 = vld [vmem:[%s1 + $0x48] sm:$0xff]
    %v46 = vld [vmem:[%s1 + $0x50] sm:$0xff]
    %v47 = vld [vmem:[%s1 + $0x58] sm:$0xff]
    %v48 = vld [vmem:[%s1 + $0x60] sm:$0xff]
    %v49 = vld [vmem:[%s1 + $0x68] sm:$0xff]
    %v50 = vld [vmem:[%s1 + $0x70] sm:$0xff]
    %v51 = vld [vmem:[%s1 + $0x78] sm:$0xff]
    %v52 = vld [vmem:[%s1 + $0x80] sm:$0xff]
    %v53 = vld [vmem:[%s1 + $0x88] sm:$0xff]
    %v54 = vld [vmem:[%s1 + $0x90] sm:$0xff]
    %v55 = vld [vmem:[%s1 + $0x98] sm:$0xff]
    %v56 = vld [vmem:[%s1 + $0xa0] sm:$0xff]
    %v57 = vld [vmem:[%s1 + $0xa8] sm:$0xff]
    %v58 = vld [vmem:[%s1 + $0xb0] sm:$0xff]
    %v59 = vld [vmem:[%s1 + $0xb8] sm:$0xff]
    %v60 = vld [vmem:[%s1 + $0xc0] sm:$0xff]
    %v61 = vld [vmem:[%s1 + $0xc8] sm:$0xff]
    %v62 = vld [vmem:[%s1 + $0xd0] sm:$0xff]
    %v63 = vld [vmem:[%s1 + $0xd8] sm:$0xff]
    %v64 = vld [vmem:[%s1 + $0xe0] sm:$0xff]
    %v65 = vld [vmem:[%s1 + $0xe8] sm:$0xff]
    %v66 = vld [vmem:[%s1 + $0xf0] sm:$0xff]
    %v67 = vld [vmem:[%s1 + $0xf8] sm:$0xff]
    %v68 = vld [vmem:[%s2] sm:$0xff]
    %v69 = vld [vmem:[%s2 + $0x8] sm:$0xff]
    %71 = vrot.lane.b32.xlu0 %v69, 17
    %v72 = vpop.permute.xlu0 %71
    %75 = vrot.lane.b32.xlu0 %v68, 17
    %v76 = vpop.permute.xlu0 %75
    %vm77 = vcmask 138240
    %v78 = vsel %vm77, %v76, %v72
    %v81 = vsel %vm77, %v72, %v76
    %v82 = vld [vmem:[%s0] sm:$0xff]
    %v83 = vld [vmem:[%s0 + $0x8] sm:$0xff]
    %v84 = vmul.f32 %v81, %v82
    %v85 = vmul.f32 %v78, %v83
    %v86 = vld [vmem:[%s3] sm:$0xff]
    %87 = vrot.lane.b32.xlu0 %v69, 16
    %v88 = vpop.permute.xlu0 %87
    %90 = vrot.lane.b32.xlu0 %v68, 16
    %v91 = vpop.permute.xlu0 %90
    %vm92 = vcmask 130048
    %v93 = vsel %vm92, %v91, %v88
    %v96 = vsel %vm92, %v88, %v91
    %s97 = scalar_lea.vmem %s0, 16
    %v98 = vld [vmem:[%s97] sm:$0xff]
    %v99 = vld [vmem:[%s97 + $0x8] sm:$0xff]
    %v100 = vmul.f32 %v96, %v98
    %v101 = vmul.f32 %v93, %v99
    %s102 = scalar_lea.vmem %s3, 8
    %v103 = vld [vmem:[%s102] sm:$0xff]
    %vm104 = vcmask 64512
    %v106 = vsel %vm104, %v103, 0
    %108 = vmatprep.subr.mxu0 %v101
    %109 = vmatpush1.msra.mxu0 %v100
    %110 = vmatprep.subr.mxu0 0.0
    %111 = vmatpush1.msra.mxu0 0.0
    %112 = vmatprep.subr.mxu0 0.0
    %113 = vmatpush1.msra.mxu0 0.0
    %114 = vmatprep.subr.mxu0 0.0
    %115 = vmatpush1.msra.mxu0 0.0
    %116 = vmatprep.subr.mxu0 0.0
    %117 = vmatpush1.msra.mxu0 0.0
    %118 = vmatprep.subr.mxu0 0.0
    %119 = vmatpush1.msra.mxu0 0.0
    %120 = vmatprep.subr.mxu0 0.0
    %121 = vmatpush1.msra.mxu0 0.0
    %122 = vmatprep.subr.mxu0 0.0
    %123 = vmatpush1.msra.mxu0 0.0
    %124 = vmatprep.subr.mxu0 0.0
    %125 = vmatpush1.msra.mxu0 0.0
    %126 = vmatprep.subr.mxu0 0.0
    %127 = vmatpush1.msra.mxu0 0.0
    %128 = vmatprep.subr.mxu0 0.0
    %129 = vmatpush1.msra.mxu0 0.0
    %130 = vmatprep.subr.mxu0 0.0
    %131 = vmatpush1.msra.mxu0 0.0
    %132 = vmatprep.subr.mxu0 0.0
    %133 = vmatpush1.msra.mxu0 0.0
    %134 = vmatprep.subr.mxu0 0.0
    %135 = vmatpush1.msra.mxu0 0.0
    %136 = vmatprep.subr.mxu0 0.0
    %137 = vmatpush1.msra.mxu0 0.0
    %138 = vmatprep.subr.mxu0 0.0
    %139 = vmatpush1.msra.mxu0 0.0
    %140 = vmatprep.subr.mxu0 0.0
    %141 = vmatpush1.msra.mxu0 0.0
    %142 = vmatprep.subr.mxu0 0.0
    %143 = vmatpush1.msra.mxu0 0.0
    %144 = vmatprep.subr.mxu0 0.0
    %145 = vmatpush1.msra.mxu0 0.0
    %146 = vmatprep.subr.mxu0 0.0
    %147 = vmatpush1.msra.mxu0 0.0
    %148 = vmatprep.subr.mxu0 0.0
    %149 = vmatpush1.msra.mxu0 0.0
    %150 = vmatprep.subr.mxu0 0.0
    %151 = vmatpush1.msra.mxu0 0.0
    %152 = vmatprep.subr.mxu0 0.0
    %153 = vmatpush1.msra.mxu0 0.0
    %154 = vmatprep.subr.mxu0 0.0
    %155 = vmatpush1.msra.mxu0 0.0
    %156 = vmatprep.subr.mxu0 0.0
    %157 = vmatpush1.msra.mxu0 0.0
    %158 = vmatprep.subr.mxu0 0.0
    %159 = vmatpush1.msra.mxu0 0.0
    %160 = vmatprep.subr.mxu0 0.0
    %161 = vmatpush1.msra.mxu0 0.0
    %162 = vmatprep.subr.mxu0 0.0
    %163 = vmatpush1.msra.mxu0 0.0
    %164 = vmatprep.subr.mxu0 0.0
    %165 = vmatpush1.msra.mxu0 0.0
    %166 = vmatprep.subr.mxu0 0.0
    %167 = vmatpush1.msra.mxu0 0.0
    %168 = vmatprep.subr.mxu0 0.0
    %169 = vmatpush1.msra.mxu0 0.0
    %170 = vmatprep.subr.mxu0 0.0
    %171 = vmatpush1.msra.mxu0 0.0
    %172 = vmatprep.mubr.f32.mxu0 0.0
    %173 = vmatmul.mubr.f32.gmra.mrb[0].mxu0 %v106
    %v174 = vpop.f32.mrb[0].mxu0
    %v175 = vadd.f32 0.0, %v174
    %v176 = vpop.f32.mrb[0].mxu0
    %v177 = vadd.f32 0.0, %v176
    %178 = vdwg.mxu0
    %v180 = vsel %vm104, %v86, 0
    %182 = vmatprep.subr.mxu0 %v85
    %183 = vmatpush1.msra.mxu0 %v84
    %184 = vmatprep.subr.mxu0 0.0
    %185 = vmatpush1.msra.mxu0 0.0
    %186 = vmatprep.subr.mxu0 0.0
    %187 = vmatpush1.msra.mxu0 0.0
    %188 = vmatprep.subr.mxu0 0.0
    %189 = vmatpush1.msra.mxu0 0.0
    %190 = vmatprep.subr.mxu0 0.0
    %191 = vmatpush1.msra.mxu0 0.0
    %192 = vmatprep.subr.mxu0 0.0
    %193 = vmatpush1.msra.mxu0 0.0
    %194 = vmatprep.subr.mxu0 0.0
    %195 = vmatpush1.msra.mxu0 0.0
    %196 = vmatprep.subr.mxu0 0.0
    %197 = vmatpush1.msra.mxu0 0.0
    %198 = vmatprep.subr.mxu0 0.0
    %199 = vmatpush1.msra.mxu0 0.0
    %200 = vmatprep.subr.mxu0 0.0
    %201 = vmatpush1.msra.mxu0 0.0
    %202 = vmatprep.subr.mxu0 0.0
    %203 = vmatpush1.msra.mxu0 0.0
    %204 = vmatprep.subr.mxu0 0.0
    %205 = vmatpush1.msra.mxu0 0.0
    %206 = vmatprep.subr.mxu0 0.0
    %207 = vmatpush1.msra.mxu0 0.0
    %208 = vmatprep.subr.mxu0 0.0
    %209 = vmatpush1.msra.mxu0 0.0
    %210 = vmatprep.subr.mxu0 0.0
    %211 = vmatpush1.msra.mxu0 0.0
    %212 = vmatprep.subr.mxu0 0.0
    %213 = vmatpush1.msra.mxu0 0.0
    %214 = vmatprep.subr.mxu0 0.0
    %215 = vmatpush1.msra.mxu0 0.0
    %216 = vmatprep.subr.mxu0 0.0
    %217 = vmatpush1.msra.mxu0 0.0
    %218 = vmatprep.subr.mxu0 0.0
    %219 = vmatpush1.msra.mxu0 0.0
    %220 = vmatprep.subr.mxu0 0.0
    %221 = vmatpush1.msra.mxu0 0.0
    %222 = vmatprep.subr.mxu0 0.0
    %223 = vmatpush1.msra.mxu0 0.0
    %224 = vmatprep.subr.mxu0 0.0
    %225 = vmatpush1.msra.mxu0 0.0
    %226 = vmatprep.subr.mxu0 0.0
    %227 = vmatpush1.msra.mxu0 0.0
    %228 = vmatprep.subr.mxu0 0.0
    %229 = vmatpush1.msra.mxu0 0.0
    %230 = vmatprep.subr.mxu0 0.0
    %231 = vmatpush1.msra.mxu0 0.0
    %232 = vmatprep.subr.mxu0 0.0
    %233 = vmatpush1.msra.mxu0 0.0
    %234 = vmatprep.subr.mxu0 0.0
    %235 = vmatpush1.msra.mxu0 0.0
    %236 = vmatprep.subr.mxu0 0.0
    %237 = vmatpush1.msra.mxu0 0.0
    %238 = vmatprep.subr.mxu0 0.0
    %239 = vmatpush1.msra.mxu0 0.0
    %240 = vmatprep.subr.mxu0 0.0
    %241 = vmatpush1.msra.mxu0 0.0
    %242 = vmatprep.subr.mxu0 0.0
    %243 = vmatpush1.msra.mxu0 0.0
    %244 = vmatprep.subr.mxu0 0.0
    %245 = vmatpush1.msra.mxu0 0.0
    %246 = vmatprep.mubr.f32.mxu0 0.0
    %247 = vmatmul.mubr.f32.gmra.mrb[0].mxu0 %v180
    %v248 = vpop.f32.mrb[0].mxu0
    %v249 = vadd.f32 %v175, %v248
    %v250 = vpop.f32.mrb[0].mxu0
    %v251 = vadd.f32 %v177, %v250
    %252 = vdwg.mxu0
    %253 = vrot.lane.b32.xlu0 %v69, 15
    %v254 = vpop.permute.xlu0 %253
    %256 = vrot.lane.b32.xlu0 %v68, 15
    %v257 = vpop.permute.xlu0 %256
    %vm258 = vcmask 121856
    %v259 = vsel %vm258, %v257, %v254
    %v262 = vsel %vm258, %v254, %v257
    %s263 = scalar_lea.vmem %s0, 32
    %v264 = vld [vmem:[%s263] sm:$0xff]
    %v265 = vld [vmem:[%s263 + $0x8] sm:$0xff]
    %v266 = vmul.f32 %v262, %v264
    %v267 = vmul.f32 %v259, %v265
    %s268 = scalar_lea.vmem %s3, 16
    %v269 = vld [vmem:[%s268] sm:$0xff]
    %v271 = vsel %vm104, %v269, 0
    %273 = vmatprep.subr.mxu0 %v267
    %274 = vmatpush1.msra.mxu0 %v266
    %275 = vmatprep.subr.mxu0 0.0
    %276 = vmatpush1.msra.mxu0 0.0
    %277 = vmatprep.subr.mxu0 0.0
    %278 = vmatpush1.msra.mxu0 0.0
    %279 = vmatprep.subr.mxu0 0.0
    %280 = vmatpush1.msra.mxu0 0.0
    %281 = vmatprep.subr.mxu0 0.0
    %282 = vmatpush1.msra.mxu0 0.0
    %283 = vmatprep.subr.mxu0 0.0
    %284 = vmatpush1.msra.mxu0 0.0
    %285 = vmatprep.subr.mxu0 0.0
    %286 = vmatpush1.msra.mxu0 0.0
    %287 = vmatprep.subr.mxu0 0.0
    %288 = vmatpush1.msra.mxu0 0.0
    %289 = vmatprep.subr.mxu0 0.0
    %290 = vmatpush1.msra.mxu0 0.0
    %291 = vmatprep.subr.mxu0 0.0
    %292 = vmatpush1.msra.mxu0 0.0
    %293 = vmatprep.subr.mxu0 0.0
    %294 = vmatpush1.msra.mxu0 0.0
    %295 = vmatprep.subr.mxu0 0.0
    %296 = vmatpush1.msra.mxu0 0.0
    %297 = vmatprep.subr.mxu0 0.0
    %298 = vmatpush1.msra.mxu0 0.0
    %299 = vmatprep.subr.mxu0 0.0
    %300 = vmatpush1.msra.mxu0 0.0
    %301 = vmatprep.subr.mxu0 0.0
    %302 = vmatpush1.msra.mxu0 0.0
    %303 = vmatprep.subr.mxu0 0.0
    %304 = vmatpush1.msra.mxu0 0.0
    %305 = vmatprep.subr.mxu0 0.0
    %306 = vmatpush1.msra.mxu0 0.0
    %307 = vmatprep.subr.mxu0 0.0
    %308 = vmatpush1.msra.mxu0 0.0
    %309 = vmatprep.subr.mxu0 0.0
    %310 = vmatpush1.msra.mxu0 0.0
    %311 = vmatprep.subr.mxu0 0.0
    %312 = vmatpush1.msra.mxu0 0.0
    %313 = vmatprep.subr.mxu0 0.0
    %314 = vmatpush1.msra.mxu0 0.0
    %315 = vmatprep.subr.mxu0 0.0
    %316 = vmatpush1.msra.mxu0 0.0
    %317 = vmatprep.subr.mxu0 0.0
    %318 = vmatpush1.msra.mxu0 0.0
    %319 = vmatprep.subr.mxu0 0.0
    %320 = vmatpush1.msra.mxu0 0.0
    %321 = vmatprep.subr.mxu0 0.0
    %322 = vmatpush1.msra.mxu0 0.0
    %323 = vmatprep.subr.mxu0 0.0
    %324 = vmatpush1.msra.mxu0 0.0
    %325 = vmatprep.subr.mxu0 0.0
    %326 = vmatpush1.msra.mxu0 0.0
    %327 = vmatprep.subr.mxu0 0.0
    %328 = vmatpush1.msra.mxu0 0.0
    %329 = vmatprep.subr.mxu0 0.0
    %330 = vmatpush1.msra.mxu0 0.0
    %331 = vmatprep.subr.mxu0 0.0
    %332 = vmatpush1.msra.mxu0 0.0
    %333 = vmatprep.subr.mxu0 0.0
    %334 = vmatpush1.msra.mxu0 0.0
    %335 = vmatprep.subr.mxu0 0.0
    %336 = vmatpush1.msra.mxu0 0.0
    %337 = vmatprep.mubr.f32.mxu0 0.0
    %338 = vmatmul.mubr.f32.gmra.mrb[0].mxu0 %v271
    %v339 = vpop.f32.mrb[0].mxu0
    %v340 = vadd.f32 0.0, %v339
    %v341 = vpop.f32.mrb[0].mxu0
    %v342 = vadd.f32 0.0, %v341
    %343 = vdwg.mxu0
    %v344 = vadd.f32 %v249, %v340
    %v345 = vadd.f32 %v251, %v342
    %346 = vrot.lane.b32.xlu0 %v69, 1
    %v347 = vpop.permute.xlu0 %346
    %349 = vrot.lane.b32.xlu0 %v68, 1
    %v350 = vpop.permute.xlu0 %349
    %vm351 = vcmask 7168
    %v352 = vsel %vm351, %v350, %v347
    %v355 = vsel %vm351, %v347, %v350
    %s356 = scalar_lea.vmem %s0, 48
    %v357 = vld [vmem:[%s356] sm:$0xff]
    %v358 = vld [vmem:[%s356 + $0x8] sm:$0xff]
    %v359 = vmul.f32 %v355, %v357
    %v360 = vmul.f32 %v352, %v358
    %s361 = scalar_lea.vmem %s3, 24
    %v362 = vld [vmem:[%s361] sm:$0xff]
    %v364 = vsel %vm104, %v362, 0
    %366 = vmatprep.subr.mxu0 %v360
    %367 = vmatpush1.msra.mxu0 %v359
    %368 = vmatprep.subr.mxu0 0.0
    %369 = vmatpush1.msra.mxu0 0.0
    %370 = vmatprep.subr.mxu0 0.0
    %371 = vmatpush1.msra.mxu0 0.0
    %372 = vmatprep.subr.mxu0 0.0
    %373 = vmatpush1.msra.mxu0 0.0
    %374 = vmatprep.subr.mxu0 0.0
    %375 = vmatpush1.msra.mxu0 0.0
    %376 = vmatprep.subr.mxu0 0.0
    %377 = vmatpush1.msra.mxu0 0.0
    %378 = vmatprep.subr.mxu0 0.0
    %379 = vmatpush1.msra.mxu0 0.0
    %380 = vmatprep.subr.mxu0 0.0
    %381 = vmatpush1.msra.mxu0 0.0
    %382 = vmatprep.subr.mxu0 0.0
    %383 = vmatpush1.msra.mxu0 0.0
    %384 = vmatprep.subr.mxu0 0.0
    %385 = vmatpush1.msra.mxu0 0.0
    %386 = vmatprep.subr.mxu0 0.0
    %387 = vmatpush1.msra.mxu0 0.0
    %388 = vmatprep.subr.mxu0 0.0
    %389 = vmatpush1.msra.mxu0 0.0
    %390 = vmatprep.subr.mxu0 0.0
    %391 = vmatpush1.msra.mxu0 0.0
    %392 = vmatprep.subr.mxu0 0.0
    %393 = vmatpush1.msra.mxu0 0.0
    %394 = vmatprep.subr.mxu0 0.0
    %395 = vmatpush1.msra.mxu0 0.0
    %396 = vmatprep.subr.mxu0 0.0
    %397 = vmatpush1.msra.mxu0 0.0
    %398 = vmatprep.subr.mxu0 0.0
    %399 = vmatpush1.msra.mxu0 0.0
    %400 = vmatprep.subr.mxu0 0.0
    %401 = vmatpush1.msra.mxu0 0.0
    %402 = vmatprep.subr.mxu0 0.0
    %403 = vmatpush1.msra.mxu0 0.0
    %404 = vmatprep.subr.mxu0 0.0
    %405 = vmatpush1.msra.mxu0 0.0
    %406 = vmatprep.subr.mxu0 0.0
    %407 = vmatpush1.msra.mxu0 0.0
    %408 = vmatprep.subr.mxu0 0.0
    %409 = vmatpush1.msra.mxu0 0.0
    %410 = vmatprep.subr.mxu0 0.0
    %411 = vmatpush1.msra.mxu0 0.0
    %412 = vmatprep.subr.mxu0 0.0
    %413 = vmatpush1.msra.mxu0 0.0
    %414 = vmatprep.subr.mxu0 0.0
    %415 = vmatpush1.msra.mxu0 0.0
    %416 = vmatprep.subr.mxu0 0.0
    %417 = vmatpush1.msra.mxu0 0.0
    %418 = vmatprep.subr.mxu0 0.0
    %419 = vmatpush1.msra.mxu0 0.0
    %420 = vmatprep.subr.mxu0 0.0
    %421 = vmatpush1.msra.mxu0 0.0
    %422 = vmatprep.subr.mxu0 0.0
    %423 = vmatpush1.msra.mxu0 0.0
    %424 = vmatprep.subr.mxu0 0.0
    %425 = vmatpush1.msra.mxu0 0.0
    %426 = vmatprep.subr.mxu0 0.0
    %427 = vmatpush1.msra.mxu0 0.0
    %428 = vmatprep.subr.mxu0 0.0
    %429 = vmatpush1.msra.mxu0 0.0
    %430 = vmatprep.mubr.f32.mxu0 0.0
    %431 = vmatmul.mubr.f32.gmra.mrb[0].mxu0 %v364
    %v432 = vpop.f32.mrb[0].mxu0
    %v433 = vadd.f32 0.0, %v432
    %v434 = vpop.f32.mrb[0].mxu0
    %v435 = vadd.f32 0.0, %v434
    %436 = vdwg.mxu0
    %v437 = vadd.f32 %v344, %v433
    %v438 = vadd.f32 %v345, %v435
    %s439 = scalar_lea.vmem %s3, 32
    %v440 = vld [vmem:[%s439] sm:$0xff]
    %v442 = vsel %vm104, %v440, 0
    %444 = vmatprep.subr.mxu0 %v69
    %445 = vmatpush1.msra.mxu0 %v68
    %446 = vmatprep.subr.mxu0 0.0
    %447 = vmatpush1.msra.mxu0 0.0
    %448 = vmatprep.subr.mxu0 0.0
    %449 = vmatpush1.msra.mxu0 0.0
    %450 = vmatprep.subr.mxu0 0.0
    %451 = vmatpush1.msra.mxu0 0.0
    %452 = vmatprep.subr.mxu0 0.0
    %453 = vmatpush1.msra.mxu0 0.0
    %454 = vmatprep.subr.mxu0 0.0
    %455 = vmatpush1.msra.mxu0 0.0
    %456 = vmatprep.subr.mxu0 0.0
    %457 = vmatpush1.msra.mxu0 0.0
    %458 = vmatprep.subr.mxu0 0.0
    %459 = vmatpush1.msra.mxu0 0.0
    %460 = vmatprep.subr.mxu0 0.0
    %461 = vmatpush1.msra.mxu0 0.0
    %462 = vmatprep.subr.mxu0 0.0
    %463 = vmatpush1.msra.mxu0 0.0
    %464 = vmatprep.subr.mxu0 0.0
    %465 = vmatpush1.msra.mxu0 0.0
    %466 = vmatprep.subr.mxu0 0.0
    %467 = vmatpush1.msra.mxu0 0.0
    %468 = vmatprep.subr.mxu0 0.0
    %469 = vmatpush1.msra.mxu0 0.0
    %470 = vmatprep.subr.mxu0 0.0
    %471 = vmatpush1.msra.mxu0 0.0
    %472 = vmatprep.subr.mxu0 0.0
    %473 = vmatpush1.msra.mxu0 0.0
    %474 = vmatprep.subr.mxu0 0.0
    %475 = vmatpush1.msra.mxu0 0.0
    %476 = vmatprep.subr.mxu0 0.0
    %477 = vmatpush1.msra.mxu0 0.0
    %478 = vmatprep.subr.mxu0 0.0
    %479 = vmatpush1.msra.mxu0 0.0
    %480 = vmatprep.subr.mxu0 0.0
    %481 = vmatpush1.msra.mxu0 0.0
    %482 = vmatprep.subr.mxu0 0.0
    %483 = vmatpush1.msra.mxu0 0.0
    %484 = vmatprep.subr.mxu0 0.0
    %485 = vmatpush1.msra.mxu0 0.0
    %486 = vmatprep.subr.mxu0 0.0
    %487 = vmatpush1.msra.mxu0 0.0
    %488 = vmatprep.subr.mxu0 0.0
    %489 = vmatpush1.msra.mxu0 0.0
    %490 = vmatprep.subr.mxu0 0.0
    %491 = vmatpush1.msra.mxu0 0.0
    %492 = vmatprep.subr.mxu0 0.0
    %493 = vmatpush1.msra.mxu0 0.0
    %494 = vmatprep.subr.mxu0 0.0
    %495 = vmatpush1.msra.mxu0 0.0
    %496 = vmatprep.subr.mxu0 0.0
    %497 = vmatpush1.msra.mxu0 0.0
    %498 = vmatprep.subr.mxu0 0.0
    %499 = vmatpush1.msra.mxu0 0.0
    %500 = vmatprep.subr.mxu0 0.0
    %501 = vmatpush1.msra.mxu0 0.0
    %502 = vmatprep.subr.mxu0 0.0
    %503 = vmatpush1.msra.mxu0 0.0
    %504 = vmatprep.subr.mxu0 0.0
    %505 = vmatpush1.msra.mxu0 0.0
    %506 = vmatprep.subr.mxu0 0.0
    %507 = vmatpush1.msra.mxu0 0.0
    %508 = vmatprep.mubr.f32.mxu0 0.0
    %509 = vmatmul.mubr.f32.gmra.mrb[0].mxu0 %v442
    %v510 = vpop.f32.mrb[0].mxu0
    %v511 = vadd.f32 0.0, %v510
    %v512 = vpop.f32.mrb[0].mxu0
    %v513 = vadd.f32 0.0, %v512
    %514 = vdwg.mxu0
    %v515 = vadd.f32 %v437, %v511
    %v516 = vadd.f32 %v438, %v513
    %517 = vrot.lane.b32.xlu0 %v68, 127
    %v518 = vpop.permute.xlu0 %517
    %519 = vrot.lane.b32.xlu0 %v69, 127
    %v520 = vpop.permute.xlu0 %519
    %vm521 = vcmask 1039360
    %v522 = vsel %vm521, %v518, %v520
    %v526 = vsel %vm521, %v520, %v518
    %s527 = scalar_lea.vmem %s0, 64
    %v528 = vld [vmem:[%s527] sm:$0xff]
    %v529 = vld [vmem:[%s527 + $0x8] sm:$0xff]
    %v530 = vmul.f32 %v522, %v528
    %v531 = vmul.f32 %v526, %v529
    %s532 = scalar_lea.vmem %s3, 40
    %v533 = vld [vmem:[%s532] sm:$0xff]
    %v535 = vsel %vm104, %v533, 0
    %537 = vmatprep.subr.mxu0 %v531
    %538 = vmatpush1.msra.mxu0 %v530
    %539 = vmatprep.subr.mxu0 0.0
    %540 = vmatpush1.msra.mxu0 0.0
    %541 = vmatprep.subr.mxu0 0.0
    %542 = vmatpush1.msra.mxu0 0.0
    %543 = vmatprep.subr.mxu0 0.0
    %544 = vmatpush1.msra.mxu0 0.0
    %545 = vmatprep.subr.mxu0 0.0
    %546 = vmatpush1.msra.mxu0 0.0
    %547 = vmatprep.subr.mxu0 0.0
    %548 = vmatpush1.msra.mxu0 0.0
    %549 = vmatprep.subr.mxu0 0.0
    %550 = vmatpush1.msra.mxu0 0.0
    %551 = vmatprep.subr.mxu0 0.0
    %552 = vmatpush1.msra.mxu0 0.0
    %553 = vmatprep.subr.mxu0 0.0
    %554 = vmatpush1.msra.mxu0 0.0
    %555 = vmatprep.subr.mxu0 0.0
    %556 = vmatpush1.msra.mxu0 0.0
    %557 = vmatprep.subr.mxu0 0.0
    %558 = vmatpush1.msra.mxu0 0.0
    %559 = vmatprep.subr.mxu0 0.0
    %560 = vmatpush1.msra.mxu0 0.0
    %561 = vmatprep.subr.mxu0 0.0
    %562 = vmatpush1.msra.mxu0 0.0
    %563 = vmatprep.subr.mxu0 0.0
    %564 = vmatpush1.msra.mxu0 0.0
    %565 = vmatprep.subr.mxu0 0.0
    %566 = vmatpush1.msra.mxu0 0.0
    %567 = vmatprep.subr.mxu0 0.0
    %568 = vmatpush1.msra.mxu0 0.0
    %569 = vmatprep.subr.mxu0 0.0
    %570 = vmatpush1.msra.mxu0 0.0
    %571 = vmatprep.subr.mxu0 0.0
    %572 = vmatpush1.msra.mxu0 0.0
    %573 = vmatprep.subr.mxu0 0.0
    %574 = vmatpush1.msra.mxu0 0.0
    %575 = vmatprep.subr.mxu0 0.0
    %576 = vmatpush1.msra.mxu0 0.0
    %577 = vmatprep.subr.mxu0 0.0
    %578 = vmatpush1.msra.mxu0 0.0
    %579 = vmatprep.subr.mxu0 0.0
    %580 = vmatpush1.msra.mxu0 0.0
    %581 = vmatprep.subr.mxu0 0.0
    %582 = vmatpush1.msra.mxu0 0.0
    %583 = vmatprep.subr.mxu0 0.0
    %584 = vmatpush1.msra.mxu0 0.0
    %585 = vmatprep.subr.mxu0 0.0
    %586 = vmatpush1.msra.mxu0 0.0
    %587 = vmatprep.subr.mxu0 0.0
    %588 = vmatpush1.msra.mxu0 0.0
    %589 = vmatprep.subr.mxu0 0.0
    %590 = vmatpush1.msra.mxu0 0.0
    %591 = vmatprep.subr.mxu0 0.0
    %592 = vmatpush1.msra.mxu0 0.0
    %593 = vmatprep.subr.mxu0 0.0
    %594 = vmatpush1.msra.mxu0 0.0
    %595 = vmatprep.subr.mxu0 0.0
    %596 = vmatpush1.msra.mxu0 0.0
    %597 = vmatprep.subr.mxu0 0.0
    %598 = vmatpush1.msra.mxu0 0.0
    %599 = vmatprep.subr.mxu0 0.0
    %600 = vmatpush1.msra.mxu0 0.0
    %601 = vmatprep.mubr.f32.mxu0 0.0
    %602 = vmatmul.mubr.f32.gmra.mrb[0].mxu0 %v535
    %v603 = vpop.f32.mrb[0].mxu0
    %v604 = vadd.f32 0.0, %v603
    %v605 = vpop.f32.mrb[0].mxu0
    %v606 = vadd.f32 0.0, %v605
    %607 = vdwg.mxu0
    %v608 = vadd.f32 %v515, %v604
    %v609 = vadd.f32 %v516, %v606
    %610 = vrot.lane.b32.xlu0 %v68, 113
    %v611 = vpop.permute.xlu0 %610
    %612 = vrot.lane.b32.xlu0 %v69, 113
    %v613 = vpop.permute.xlu0 %612
    %vm614 = vcmask 924672
    %v615 = vsel %vm614, %v611, %v613
    %v619 = vsel %vm614, %v613, %v611
    %s620 = scalar_lea.vmem %s0, 80
    %v621 = vld [vmem:[%s620] sm:$0xff]
    %v622 = vld [vmem:[%s620 + $0x8] sm:$0xff]
    %v623 = vmul.f32 %v615, %v621
    %v624 = vmul.f32 %v619, %v622
    %s625 = scalar_lea.vmem %s3, 48
    %v626 = vld [vmem:[%s625] sm:$0xff]
    %v628 = vsel %vm104, %v626, 0
    %630 = vmatprep.subr.mxu0 %v624
    %631 = vmatpush1.msra.mxu0 %v623
    %632 = vmatprep.subr.mxu0 0.0
    %633 = vmatpush1.msra.mxu0 0.0
    %634 = vmatprep.subr.mxu0 0.0
    %635 = vmatpush1.msra.mxu0 0.0
    %636 = vmatprep.subr.mxu0 0.0
    %637 = vmatpush1.msra.mxu0 0.0
    %638 = vmatprep.subr.mxu0 0.0
    %639 = vmatpush1.msra.mxu0 0.0
    %640 = vmatprep.subr.mxu0 0.0
    %641 = vmatpush1.msra.mxu0 0.0
    %642 = vmatprep.subr.mxu0 0.0
    %643 = vmatpush1.msra.mxu0 0.0
    %644 = vmatprep.subr.mxu0 0.0
    %645 = vmatpush1.msra.mxu0 0.0
    %646 = vmatprep.subr.mxu0 0.0
    %647 = vmatpush1.msra.mxu0 0.0
    %648 = vmatprep.subr.mxu0 0.0
    %649 = vmatpush1.msra.mxu0 0.0
    %650 = vmatprep.subr.mxu0 0.0
    %651 = vmatpush1.msra.mxu0 0.0
    %652 = vmatprep.subr.mxu0 0.0
    %653 = vmatpush1.msra.mxu0 0.0
    %654 = vmatprep.subr.mxu0 0.0
    %655 = vmatpush1.msra.mxu0 0.0
    %656 = vmatprep.subr.mxu0 0.0
    %657 = vmatpush1.msra.mxu0 0.0
    %658 = vmatprep.subr.mxu0 0.0
    %659 = vmatpush1.msra.mxu0 0.0
    %660 = vmatprep.subr.mxu0 0.0
    %661 = vmatpush1.msra.mxu0 0.0
    %662 = vmatprep.subr.mxu0 0.0
    %663 = vmatpush1.msra.mxu0 0.0
    %664 = vmatprep.subr.mxu0 0.0
    %665 = vmatpush1.msra.mxu0 0.0
    %666 = vmatprep.subr.mxu0 0.0
    %667 = vmatpush1.msra.mxu0 0.0
    %668 = vmatprep.subr.mxu0 0.0
    %669 = vmatpush1.msra.mxu0 0.0
    %670 = vmatprep.subr.mxu0 0.0
    %671 = vmatpush1.msra.mxu0 0.0
    %672 = vmatprep.subr.mxu0 0.0
    %673 = vmatpush1.msra.mxu0 0.0
    %674 = vmatprep.subr.mxu0 0.0
    %675 = vmatpush1.msra.mxu0 0.0
    %676 = vmatprep.subr.mxu0 0.0
    %677 = vmatpush1.msra.mxu0 0.0
    %678 = vmatprep.subr.mxu0 0.0
    %679 = vmatpush1.msra.mxu0 0.0
    %680 = vmatprep.subr.mxu0 0.0
    %681 = vmatpush1.msra.mxu0 0.0
    %682 = vmatprep.subr.mxu0 0.0
    %683 = vmatpush1.msra.mxu0 0.0
    %684 = vmatprep.subr.mxu0 0.0
    %685 = vmatpush1.msra.mxu0 0.0
    %686 = vmatprep.subr.mxu0 0.0
    %687 = vmatpush1.msra.mxu0 0.0
    %688 = vmatprep.subr.mxu0 0.0
    %689 = vmatpush1.msra.mxu0 0.0
    %690 = vmatprep.subr.mxu0 0.0
    %691 = vmatpush1.msra.mxu0 0.0
    %692 = vmatprep.subr.mxu0 0.0
    %693 = vmatpush1.msra.mxu0 0.0
    %694 = vmatprep.mubr.f32.mxu0 0.0
    %695 = vmatmul.mubr.f32.gmra.mrb[0].mxu0 %v628
    %v696 = vpop.f32.mrb[0].mxu0
    %v697 = vadd.f32 0.0, %v696
    %v698 = vpop.f32.mrb[0].mxu0
    %v699 = vadd.f32 0.0, %v698
    %700 = vdwg.mxu0
    %v701 = vadd.f32 %v608, %v697
    %v702 = vadd.f32 %v609, %v699
    %703 = vrot.lane.b32.xlu0 %v68, 112
    %v704 = vpop.permute.xlu0 %703
    %705 = vrot.lane.b32.xlu0 %v69, 112
    %v706 = vpop.permute.xlu0 %705
    %vm707 = vcmask 916480
    %v708 = vsel %vm707, %v704, %v706
    %v712 = vsel %vm707, %v706, %v704
    %s713 = scalar_lea.vmem %s0, 96
    %v714 = vld [vmem:[%s713] sm:$0xff]
    %v715 = vld [vmem:[%s713 + $0x8] sm:$0xff]
    %v716 = vmul.f32 %v708, %v714
    %v717 = vmul.f32 %v712, %v715
    %s718 = scalar_lea.vmem %s3, 56
    %v719 = vld [vmem:[%s718] sm:$0xff]
    %v721 = vsel %vm104, %v719, 0
    %723 = vmatprep.subr.mxu0 %v717
    %724 = vmatpush1.msra.mxu0 %v716
    %725 = vmatprep.subr.mxu0 0.0
    %726 = vmatpush1.msra.mxu0 0.0
    %727 = vmatprep.subr.mxu0 0.0
    %728 = vmatpush1.msra.mxu0 0.0
    %729 = vmatprep.subr.mxu0 0.0
    %730 = vmatpush1.msra.mxu0 0.0
    %731 = vmatprep.subr.mxu0 0.0
    %732 = vmatpush1.msra.mxu0 0.0
    %733 = vmatprep.subr.mxu0 0.0
    %734 = vmatpush1.msra.mxu0 0.0
    %735 = vmatprep.subr.mxu0 0.0
    %736 = vmatpush1.msra.mxu0 0.0
    %737 = vmatprep.subr.mxu0 0.0
    %738 = vmatpush1.msra.mxu0 0.0
    %739 = vmatprep.subr.mxu0 0.0
    %740 = vmatpush1.msra.mxu0 0.0
    %741 = vmatprep.subr.mxu0 0.0
    %742 = vmatpush1.msra.mxu0 0.0
    %743 = vmatprep.subr.mxu0 0.0
    %744 = vmatpush1.msra.mxu0 0.0
    %745 = vmatprep.subr.mxu0 0.0
    %746 = vmatpush1.msra.mxu0 0.0
    %747 = vmatprep.subr.mxu0 0.0
    %748 = vmatpush1.msra.mxu0 0.0
    %749 = vmatprep.subr.mxu0 0.0
    %750 = vmatpush1.msra.mxu0 0.0
    %751 = vmatprep.subr.mxu0 0.0
    %752 = vmatpush1.msra.mxu0 0.0
    %753 = vmatprep.subr.mxu0 0.0
    %754 = vmatpush1.msra.mxu0 0.0
    %755 = vmatprep.subr.mxu0 0.0
    %756 = vmatpush1.msra.mxu0 0.0
    %757 = vmatprep.subr.mxu0 0.0
    %758 = vmatpush1.msra.mxu0 0.0
    %759 = vmatprep.subr.mxu0 0.0
    %760 = vmatpush1.msra.mxu0 0.0
    %761 = vmatprep.subr.mxu0 0.0
    %762 = vmatpush1.msra.mxu0 0.0
    %763 = vmatprep.subr.mxu0 0.0
    %764 = vmatpush1.msra.mxu0 0.0
    %765 = vmatprep.subr.mxu0 0.0
    %766 = vmatpush1.msra.mxu0 0.0
    %767 = vmatprep.subr.mxu0 0.0
    %768 = vmatpush1.msra.mxu0 0.0
    %769 = vmatprep.subr.mxu0 0.0
    %770 = vmatpush1.msra.mxu0 0.0
    %771 = vmatprep.subr.mxu0 0.0
    %772 = vmatpush1.msra.mxu0 0.0
    %773 = vmatprep.subr.mxu0 0.0
    %774 = vmatpush1.msra.mxu0 0.0
    %775 = vmatprep.subr.mxu0 0.0
    %776 = vmatpush1.msra.mxu0 0.0
    %777 = vmatprep.subr.mxu0 0.0
    %778 = vmatpush1.msra.mxu0 0.0
    %779 = vmatprep.subr.mxu0 0.0
    %780 = vmatpush1.msra.mxu0 0.0
    %781 = vmatprep.subr.mxu0 0.0
    %782 = vmatpush1.msra.mxu0 0.0
    %783 = vmatprep.subr.mxu0 0.0
    %784 = vmatpush1.msra.mxu0 0.0
    %785 = vmatprep.subr.mxu0 0.0
    %786 = vmatpush1.msra.mxu0 0.0
    %787 = vmatprep.mubr.f32.mxu0 0.0
    %788 = vmatmul.mubr.f32.gmra.mrb[0].mxu0 %v721
    %v789 = vpop.f32.mrb[0].mxu0
    %v790 = vadd.f32 0.0, %v789
    %v791 = vpop.f32.mrb[0].mxu0
    %v792 = vadd.f32 0.0, %v791
    %793 = vdwg.mxu0
    %v794 = vadd.f32 %v701, %v790
    %v795 = vadd.f32 %v702, %v792
    %796 = vrot.lane.b32.xlu0 %v68, 111
    %v797 = vpop.permute.xlu0 %796
    %798 = vrot.lane.b32.xlu0 %v69, 111
    %v799 = vpop.permute.xlu0 %798
    %vm800 = vcmask 908288
    %v801 = vsel %vm800, %v797, %v799
    %v805 = vsel %vm800, %v799, %v797
    %s806 = scalar_lea.vmem %s0, 112
    %v807 = vld [vmem:[%s806] sm:$0xff]
    %v808 = vld [vmem:[%s806 + $0x8] sm:$0xff]
    %v809 = vmul.f32 %v801, %v807
    %v810 = vmul.f32 %v805, %v808
    %s811 = scalar_lea.vmem %s3, 64
    %v812 = vld [vmem:[%s811] sm:$0xff]
    %v814 = vsel %vm104, %v812, 0
    %816 = vmatprep.subr.mxu0 %v810
    %817 = vmatpush1.msra.mxu0 %v809
    %818 = vmatprep.subr.mxu0 0.0
    %819 = vmatpush1.msra.mxu0 0.0
    %820 = vmatprep.subr.mxu0 0.0
    %821 = vmatpush1.msra.mxu0 0.0
    %822 = vmatprep.subr.mxu0 0.0
    %823 = vmatpush1.msra.mxu0 0.0
    %824 = vmatprep.subr.mxu0 0.0
    %825 = vmatpush1.msra.mxu0 0.0
    %826 = vmatprep.subr.mxu0 0.0
    %827 = vmatpush1.msra.mxu0 0.0
    %828 = vmatprep.subr.mxu0 0.0
    %829 = vmatpush1.msra.mxu0 0.0
    %830 = vmatprep.subr.mxu0 0.0
    %831 = vmatpush1.msra.mxu0 0.0
    %832 = vmatprep.subr.mxu0 0.0
    %833 = vmatpush1.msra.mxu0 0.0
    %834 = vmatprep.subr.mxu0 0.0
    %835 = vmatpush1.msra.mxu0 0.0
    %836 = vmatprep.subr.mxu0 0.0
    %837 = vmatpush1.msra.mxu0 0.0
    %838 = vmatprep.subr.mxu0 0.0
    %839 = vmatpush1.msra.mxu0 0.0
    %840 = vmatprep.subr.mxu0 0.0
    %841 = vmatpush1.msra.mxu0 0.0
    %842 = vmatprep.subr.mxu0 0.0
    %843 = vmatpush1.msra.mxu0 0.0
    %844 = vmatprep.subr.mxu0 0.0
    %845 = vmatpush1.msra.mxu0 0.0
    %846 = vmatprep.subr.mxu0 0.0
    %847 = vmatpush1.msra.mxu0 0.0
    %848 = vmatprep.subr.mxu0 0.0
    %849 = vmatpush1.msra.mxu0 0.0
    %850 = vmatprep.subr.mxu0 0.0
    %851 = vmatpush1.msra.mxu0 0.0
    %852 = vmatprep.subr.mxu0 0.0
    %853 = vmatpush1.msra.mxu0 0.0
    %854 = vmatprep.subr.mxu0 0.0
    %855 = vmatpush1.msra.mxu0 0.0
    %856 = vmatprep.subr.mxu0 0.0
    %857 = vmatpush1.msra.mxu0 0.0
    %858 = vmatprep.subr.mxu0 0.0
    %859 = vmatpush1.msra.mxu0 0.0
    %860 = vmatprep.subr.mxu0 0.0
    %861 = vmatpush1.msra.mxu0 0.0
    %862 = vmatprep.subr.mxu0 0.0
    %863 = vmatpush1.msra.mxu0 0.0
    %864 = vmatprep.subr.mxu0 0.0
    %865 = vmatpush1.msra.mxu0 0.0
    %866 = vmatprep.subr.mxu0 0.0
    %867 = vmatpush1.msra.mxu0 0.0
    %868 = vmatprep.subr.mxu0 0.0
    %869 = vmatpush1.msra.mxu0 0.0
    %870 = vmatprep.subr.mxu0 0.0
    %871 = vmatpush1.msra.mxu0 0.0
    %872 = vmatprep.subr.mxu0 0.0
    %873 = vmatpush1.msra.mxu0 0.0
    %874 = vmatprep.subr.mxu0 0.0
    %875 = vmatpush1.msra.mxu0 0.0
    %876 = vmatprep.subr.mxu0 0.0
    %877 = vmatpush1.msra.mxu0 0.0
    %878 = vmatprep.subr.mxu0 0.0
    %879 = vmatpush1.msra.mxu0 0.0
    %880 = vmatprep.mubr.f32.mxu0 0.0
    %881 = vmatmul.mubr.f32.gmra.mrb[0].mxu0 %v814
    %v882 = vpop.f32.mrb[0].mxu0
    %v883 = vadd.f32 0.0, %v882
    %v884 = vpop.f32.mrb[0].mxu0
    %v885 = vadd.f32 0.0, %v884
    %886 = vdwg.mxu0
    %v887 = vadd.f32 %v794, %v883
    %v888 = vadd.f32 %v795, %v885
    %v889 = vld [vmem:[%s4] sm:$0xff]
    %891 = vset.pattern.permute.xlu0 0
    %892 = vperm.xlu0 %891, %v889
    %v893 = vpop.permute.xlu0 %892
    %v895 = vadd.f32 %v887, %v893
    %v896 = vadd.f32 %v888, %v893
    %v897 = vmax.f32 %v895, 0.0
    %v898 = vmax.f32 %v896, 0.0
    %900 = vrot.lane.b32.xlu0 %v898, 17
    %v901 = vpop.permute.xlu0 %900
    %904 = vrot.lane.b32.xlu0 %v897, 17
    %v905 = vpop.permute.xlu0 %904
    %v906 = vsel %vm77, %v905, %v901
    %v909 = vsel %vm77, %v901, %v905
    %v910 = vmul.f32 %v909, %v82
    %v911 = vmul.f32 %v906, %v83
    %v912 = vld [vmem:[%s5] sm:$0xff]
    %913 = vrot.lane.b32.xlu0 %v898, 16
    %v914 = vpop.permute.xlu0 %913
    %916 = vrot.lane.b32.xlu0 %v897, 16
    %v917 = vpop.permute.xlu0 %916
    %v918 = vsel %vm92, %v917, %v914
    %v921 = vsel %vm92, %v914, %v917
    %v922 = vmul.f32 %v921, %v98
    %v923 = vmul.f32 %v918, %v99
    %s924 = scalar_lea.vmem %s5, 8
    %v925 = vld [vmem:[%s924] sm:$0xff]
    %v927 = vsel %vm104, %v925, 0
    %929 = vmatprep.subr.mxu0 %v923
    %930 = vmatpush1.msra.mxu0 %v922
    %931 = vmatprep.subr.mxu0 0.0
    %932 = vmatpush1.msra.mxu0 0.0
    %933 = vmatprep.subr.mxu0 0.0
    %934 = vmatpush1.msra.mxu0 0.0
    %935 = vmatprep.subr.mxu0 0.0
    %936 = vmatpush1.msra.mxu0 0.0
    %937 = vmatprep.subr.mxu0 0.0
    %938 = vmatpush1.msra.mxu0 0.0
    %939 = vmatprep.subr.mxu0 0.0
    %940 = vmatpush1.msra.mxu0 0.0
    %941 = vmatprep.subr.mxu0 0.0
    %942 = vmatpush1.msra.mxu0 0.0
    %943 = vmatprep.subr.mxu0 0.0
    %944 = vmatpush1.msra.mxu0 0.0
    %945 = vmatprep.subr.mxu0 0.0
    %946 = vmatpush1.msra.mxu0 0.0
    %947 = vmatprep.subr.mxu0 0.0
    %948 = vmatpush1.msra.mxu0 0.0
    %949 = vmatprep.subr.mxu0 0.0
    %950 = vmatpush1.msra.mxu0 0.0
    %951 = vmatprep.subr.mxu0 0.0
    %952 = vmatpush1.msra.mxu0 0.0
    %953 = vmatprep.subr.mxu0 0.0
    %954 = vmatpush1.msra.mxu0 0.0
    %955 = vmatprep.subr.mxu0 0.0
    %956 = vmatpush1.msra.mxu0 0.0
    %957 = vmatprep.subr.mxu0 0.0
    %958 = vmatpush1.msra.mxu0 0.0
    %959 = vmatprep.subr.mxu0 0.0
    %960 = vmatpush1.msra.mxu0 0.0
    %961 = vmatprep.subr.mxu0 0.0
    %962 = vmatpush1.msra.mxu0 0.0
    %963 = vmatprep.subr.mxu0 0.0
    %964 = vmatpush1.msra.mxu0 0.0
    %965 = vmatprep.subr.mxu0 0.0
    %966 = vmatpush1.msra.mxu0 0.0
    %967 = vmatprep.subr.mxu0 0.0
    %968 = vmatpush1.msra.mxu0 0.0
    %969 = vmatprep.subr.mxu0 0.0
    %970 = vmatpush1.msra.mxu0 0.0
    %971 = vmatprep.subr.mxu0 0.0
    %972 = vmatpush1.msra.mxu0 0.0
    %973 = vmatprep.subr.mxu0 0.0
    %974 = vmatpush1.msra.mxu0 0.0
    %975 = vmatprep.subr.mxu0 0.0
    %976 = vmatpush1.msra.mxu0 0.0
    %977 = vmatprep.subr.mxu0 0.0
    %978 = vmatpush1.msra.mxu0 0.0
    %979 = vmatprep.subr.mxu0 0.0
    %980 = vmatpush1.msra.mxu0 0.0
    %981 = vmatprep.subr.mxu0 0.0
    %982 = vmatpush1.msra.mxu0 0.0
    %983 = vmatprep.subr.mxu0 0.0
    %984 = vmatpush1.msra.mxu0 0.0
    %985 = vmatprep.subr.mxu0 0.0
    %986 = vmatpush1.msra.mxu0 0.0
    %987 = vmatprep.subr.mxu0 0.0
    %988 = vmatpush1.msra.mxu0 0.0
    %989 = vmatprep.subr.mxu0 0.0
    %990 = vmatpush1.msra.mxu0 0.0
    %991 = vmatprep.subr.mxu0 0.0
    %992 = vmatpush1.msra.mxu0 0.0
    %993 = vmatprep.mubr.f32.mxu0 0.0
    %994 = vmatmul.mubr.f32.gmra.mrb[0].mxu0 %v927
    %v995 = vpop.f32.mrb[0].mxu0
    %v996 = vadd.f32 0.0, %v995
    %v997 = vpop.f32.mrb[0].mxu0
    %v998 = vadd.f32 0.0, %v997
    %999 = vdwg.mxu0
    %v1001 = vsel %vm104, %v912, 0
    %1003 = vmatprep.subr.mxu0 %v911
    %1004 = vmatpush1.msra.mxu0 %v910
    %1005 = vmatprep.subr.mxu0 0.0
    %1006 = vmatpush1.msra.mxu0 0.0
    %1007 = vmatprep.subr.mxu0 0.0
    %1008 = vmatpush1.msra.mxu0 0.0
    %1009 = vmatprep.subr.mxu0 0.0
    %1010 = vmatpush1.msra.mxu0 0.0
    %1011 = vmatprep.subr.mxu0 0.0
    %1012 = vmatpush1.msra.mxu0 0.0
    %1013 = vmatprep.subr.mxu0 0.0
    %1014 = vmatpush1.msra.mxu0 0.0
    %1015 = vmatprep.subr.mxu0 0.0
    %1016 = vmatpush1.msra.mxu0 0.0
    %1017 = vmatprep.subr.mxu0 0.0
    %1018 = vmatpush1.msra.mxu0 0.0
    %1019 = vmatprep.subr.mxu0 0.0
    %1020 = vmatpush1.msra.mxu0 0.0
    %1021 = vmatprep.subr.mxu0 0.0
    %1022 = vmatpush1.msra.mxu0 0.0
    %1023 = vmatprep.subr.mxu0 0.0
    %1024 = vmatpush1.msra.mxu0 0.0
    %1025 = vmatprep.subr.mxu0 0.0
    %1026 = vmatpush1.msra.mxu0 0.0
    %1027 = vmatprep.subr.mxu0 0.0
    %1028 = vmatpush1.msra.mxu0 0.0
    %1029 = vmatprep.subr.mxu0 0.0
    %1030 = vmatpush1.msra.mxu0 0.0
    %1031 = vmatprep.subr.mxu0 0.0
    %1032 = vmatpush1.msra.mxu0 0.0
    %1033 = vmatprep.subr.mxu0 0.0
    %1034 = vmatpush1.msra.mxu0 0.0
    %1035 = vmatprep.subr.mxu0 0.0
    %1036 = vmatpush1.msra.mxu0 0.0
    %1037 = vmatprep.subr.mxu0 0.0
    %1038 = vmatpush1.msra.mxu0 0.0
    %1039 = vmatprep.subr.mxu0 0.0
    %1040 = vmatpush1.msra.mxu0 0.0
    %1041 = vmatprep.subr.mxu0 0.0
    %1042 = vmatpush1.msra.mxu0 0.0
    %1043 = vmatprep.subr.mxu0 0.0
    %1044 = vmatpush1.msra.mxu0 0.0
    %1045 = vmatprep.subr.mxu0 0.0
    %1046 = vmatpush1.msra.mxu0 0.0
    %1047 = vmatprep.subr.mxu0 0.0
    %1048 = vmatpush1.msra.mxu0 0.0
    %1049 = vmatprep.subr.mxu0 0.0
    %1050 = vmatpush1.msra.mxu0 0.0
    %1051 = vmatprep.subr.mxu0 0.0
    %1052 = vmatpush1.msra.mxu0 0.0
    %1053 = vmatprep.subr.mxu0 0.0
    %1054 = vmatpush1.msra.mxu0 0.0
    %1055 = vmatprep.subr.mxu0 0.0
    %1056 = vmatpush1.msra.mxu0 0.0
    %1057 = vmatprep.subr.mxu0 0.0
    %1058 = vmatpush1.msra.mxu0 0.0
    %1059 = vmatprep.subr.mxu0 0.0
    %1060 = vmatpush1.msra.mxu0 0.0
    %1061 = vmatprep.subr.mxu0 0.0
    %1062 = vmatpush1.msra.mxu0 0.0
    %1063 = vmatprep.subr.mxu0 0.0
    %1064 = vmatpush1.msra.mxu0 0.0
    %1065 = vmatprep.subr.mxu0 0.0
    %1066 = vmatpush1.msra.mxu0 0.0
    %1067 = vmatprep.mubr.f32.mxu0 0.0
    %1068 = vmatmul.mubr.f32.gmra.mrb[0].mxu0 %v1001
    %v1069 = vpop.f32.mrb[0].mxu0
    %v1070 = vadd.f32 %v996, %v1069
    %v1071 = vpop.f32.mrb[0].mxu0
    %v1072 = vadd.f32 %v998, %v1071
    %1073 = vdwg.mxu0
    %1074 = vrot.lane.b32.xlu0 %v898, 15
    %v1075 = vpop.permute.xlu0 %1074
    %1077 = vrot.lane.b32.xlu0 %v897, 15
    %v1078 = vpop.permute.xlu0 %1077
    %v1079 = vsel %vm258, %v1078, %v1075
    %v1082 = vsel %vm258, %v1075, %v1078
    %v1083 = vmul.f32 %v1082, %v264
    %v1084 = vmul.f32 %v1079, %v265
    %s1085 = scalar_lea.vmem %s5, 16
    %v1086 = vld [vmem:[%s1085] sm:$0xff]
    %v1088 = vsel %vm104, %v1086, 0
    %1090 = vmatprep.subr.mxu0 %v1084
    %1091 = vmatpush1.msra.mxu0 %v1083
    %1092 = vmatprep.subr.mxu0 0.0
    %1093 = vmatpush1.msra.mxu0 0.0
    %1094 = vmatprep.subr.mxu0 0.0
    %1095 = vmatpush1.msra.mxu0 0.0
    %1096 = vmatprep.subr.mxu0 0.0
    %1097 = vmatpush1.msra.mxu0 0.0
    %1098 = vmatprep.subr.mxu0 0.0
    %1099 = vmatpush1.msra.mxu0 0.0
    %1100 = vmatprep.subr.mxu0 0.0
    %1101 = vmatpush1.msra.mxu0 0.0
    %1102 = vmatprep.subr.mxu0 0.0
    %1103 = vmatpush1.msra.mxu0 0.0
    %1104 = vmatprep.subr.mxu0 0.0
    %1105 = vmatpush1.msra.mxu0 0.0
    %1106 = vmatprep.subr.mxu0 0.0
    %1107 = vmatpush1.msra.mxu0 0.0
    %1108 = vmatprep.subr.mxu0 0.0
    %1109 = vmatpush1.msra.mxu0 0.0
    %1110 = vmatprep.subr.mxu0 0.0
    %1111 = vmatpush1.msra.mxu0 0.0
    %1112 = vmatprep.subr.mxu0 0.0
    %1113 = vmatpush1.msra.mxu0 0.0
    %1114 = vmatprep.subr.mxu0 0.0
    %1115 = vmatpush1.msra.mxu0 0.0
    %1116 = vmatprep.subr.mxu0 0.0
    %1117 = vmatpush1.msra.mxu0 0.0
    %1118 = vmatprep.subr.mxu0 0.0
    %1119 = vmatpush1.msra.mxu0 0.0
    %1120 = vmatprep.subr.mxu0 0.0
    %1121 = vmatpush1.msra.mxu0 0.0
    %1122 = vmatprep.subr.mxu0 0.0
    %1123 = vmatpush1.msra.mxu0 0.0
    %1124 = vmatprep.subr.mxu0 0.0
    %1125 = vmatpush1.msra.mxu0 0.0
    %1126 = vmatprep.subr.mxu0 0.0
    %1127 = vmatpush1.msra.mxu0 0.0
    %1128 = vmatprep.subr.mxu0 0.0
    %1129 = vmatpush1.msra.mxu0 0.0
    %1130 = vmatprep.subr.mxu0 0.0
    %1131 = vmatpush1.msra.mxu0 0.0
    %1132 = vmatprep.subr.mxu0 0.0
    %1133 = vmatpush1.msra.mxu0 0.0
    %1134 = vmatprep.subr.mxu0 0.0
    %1135 = vmatpush1.msra.mxu0 0.0
    %1136 = vmatprep.subr.mxu0 0.0
    %1137 = vmatpush1.msra.mxu0 0.0
    %1138 = vmatprep.subr.mxu0 0.0
    %1139 = vmatpush1.msra.mxu0 0.0
    %1140 = vmatprep.subr.mxu0 0.0
    %1141 = vmatpush1.msra.mxu0 0.0
    %1142 = vmatprep.subr.mxu0 0.0
    %1143 = vmatpush1.msra.mxu0 0.0
    %1144 = vmatprep.subr.mxu0 0.0
    %1145 = vmatpush1.msra.mxu0 0.0
    %1146 = vmatprep.subr.mxu0 0.0
    %1147 = vmatpush1.msra.mxu0 0.0
    %1148 = vmatprep.subr.mxu0 0.0
    %1149 = vmatpush1.msra.mxu0 0.0
    %1150 = vmatprep.subr.mxu0 0.0
    %1151 = vmatpush1.msra.mxu0 0.0
    %1152 = vmatprep.subr.mxu0 0.0
    %1153 = vmatpush1.msra.mxu0 0.0
    %1154 = vmatprep.mubr.f32.mxu0 0.0
    %1155 = vmatmul.mubr.f32.gmra.mrb[0].mxu0 %v1088
    %v1156 = vpop.f32.mrb[0].mxu0
    %v1157 = vadd.f32 0.0, %v1156
    %v1158 = vpop.f32.mrb[0].mxu0
    %v1159 = vadd.f32 0.0, %v1158
    %1160 = vdwg.mxu0
    %v1161 = vadd.f32 %v1070, %v1157
    %v1162 = vadd.f32 %v1072, %v1159
    %1163 = vrot.lane.b32.xlu0 %v898, 1
    %v1164 = vpop.permute.xlu0 %1163
    %1166 = vrot.lane.b32.xlu0 %v897, 1
    %v1167 = vpop.permute.xlu0 %1166
    %v1168 = vsel %vm351, %v1167, %v1164
    %v1171 = vsel %vm351, %v1164, %v1167
    %v1172 = vmul.f32 %v1171, %v357
    %v1173 = vmul.f32 %v1168, %v358
    %s1174 = scalar_lea.vmem %s5, 24
    %v1175 = vld [vmem:[%s1174] sm:$0xff]
    %v1177 = vsel %vm104, %v1175, 0
    %1179 = vmatprep.subr.mxu0 %v1173
    %1180 = vmatpush1.msra.mxu0 %v1172
    %1181 = vmatprep.subr.mxu0 0.0
    %1182 = vmatpush1.msra.mxu0 0.0
    %1183 = vmatprep.subr.mxu0 0.0
    %1184 = vmatpush1.msra.mxu0 0.0
    %1185 = vmatprep.subr.mxu0 0.0
    %1186 = vmatpush1.msra.mxu0 0.0
    %1187 = vmatprep.subr.mxu0 0.0
    %1188 = vmatpush1.msra.mxu0 0.0
    %1189 = vmatprep.subr.mxu0 0.0
    %1190 = vmatpush1.msra.mxu0 0.0
    %1191 = vmatprep.subr.mxu0 0.0
    %1192 = vmatpush1.msra.mxu0 0.0
    %1193 = vmatprep.subr.mxu0 0.0
    %1194 = vmatpush1.msra.mxu0 0.0
    %1195 = vmatprep.subr.mxu0 0.0
    %1196 = vmatpush1.msra.mxu0 0.0
    %1197 = vmatprep.subr.mxu0 0.0
    %1198 = vmatpush1.msra.mxu0 0.0
    %1199 = vmatprep.subr.mxu0 0.0
    %1200 = vmatpush1.msra.mxu0 0.0
    %1201 = vmatprep.subr.mxu0 0.0
    %1202 = vmatpush1.msra.mxu0 0.0
    %1203 = vmatprep.subr.mxu0 0.0
    %1204 = vmatpush1.msra.mxu0 0.0
    %1205 = vmatprep.subr.mxu0 0.0
    %1206 = vmatpush1.msra.mxu0 0.0
    %1207 = vmatprep.subr.mxu0 0.0
    %1208 = vmatpush1.msra.mxu0 0.0
    %1209 = vmatprep.subr.mxu0 0.0
    %1210 = vmatpush1.msra.mxu0 0.0
    %1211 = vmatprep.subr.mxu0 0.0
    %1212 = vmatpush1.msra.mxu0 0.0
    %1213 = vmatprep.subr.mxu0 0.0
    %1214 = vmatpush1.msra.mxu0 0.0
    %1215 = vmatprep.subr.mxu0 0.0
    %1216 = vmatpush1.msra.mxu0 0.0
    %1217 = vmatprep.subr.mxu0 0.0
    %1218 = vmatpush1.msra.mxu0 0.0
    %1219 = vmatprep.subr.mxu0 0.0
    %1220 = vmatpush1.msra.mxu0 0.0
    %1221 = vmatprep.subr.mxu0 0.0
    %1222 = vmatpush1.msra.mxu0 0.0
    %1223 = vmatprep.subr.mxu0 0.0
    %1224 = vmatpush1.msra.mxu0 0.0
    %1225 = vmatprep.subr.mxu0 0.0
    %1226 = vmatpush1.msra.mxu0 0.0
    %1227 = vmatprep.subr.mxu0 0.0
    %1228 = vmatpush1.msra.mxu0 0.0
    %1229 = vmatprep.subr.mxu0 0.0
    %1230 = vmatpush1.msra.mxu0 0.0
    %1231 = vmatprep.subr.mxu0 0.0
    %1232 = vmatpush1.msra.mxu0 0.0
    %1233 = vmatprep.subr.mxu0 0.0
    %1234 = vmatpush1.msra.mxu0 0.0
    %1235 = vmatprep.subr.mxu0 0.0
    %1236 = vmatpush1.msra.mxu0 0.0
    %1237 = vmatprep.subr.mxu0 0.0
    %1238 = vmatpush1.msra.mxu0 0.0
    %1239 = vmatprep.subr.mxu0 0.0
    %1240 = vmatpush1.msra.mxu0 0.0
    %1241 = vmatprep.subr.mxu0 0.0
    %1242 = vmatpush1.msra.mxu0 0.0
    %1243 = vmatprep.mubr.f32.mxu0 0.0
    %1244 = vmatmul.mubr.f32.gmra.mrb[0].mxu0 %v1177
    %v1245 = vpop.f32.mrb[0].mxu0
    %v1246 = vadd.f32 0.0, %v1245
    %v1247 = vpop.f32.mrb[0].mxu0
    %v1248 = vadd.f32 0.0, %v1247
    %1249 = vdwg.mxu0
    %v1250 = vadd.f32 %v1161, %v1246
    %v1251 = vadd.f32 %v1162, %v1248
    %s1252 = scalar_lea.vmem %s5, 32
    %v1253 = vld [vmem:[%s1252] sm:$0xff]
    %v1255 = vsel %vm104, %v1253, 0
    %1257 = vmatprep.subr.mxu0 %v898
    %1258 = vmatpush1.msra.mxu0 %v897
    %1259 = vmatprep.subr.mxu0 0.0
    %1260 = vmatpush1.msra.mxu0 0.0
    %1261 = vmatprep.subr.mxu0 0.0
    %1262 = vmatpush1.msra.mxu0 0.0
    %1263 = vmatprep.subr.mxu0 0.0
    %1264 = vmatpush1.msra.mxu0 0.0
    %1265 = vmatprep.subr.mxu0 0.0
    %1266 = vmatpush1.msra.mxu0 0.0
    %1267 = vmatprep.subr.mxu0 0.0
    %1268 = vmatpush1.msra.mxu0 0.0
    %1269 = vmatprep.subr.mxu0 0.0
    %1270 = vmatpush1.msra.mxu0 0.0
    %1271 = vmatprep.subr.mxu0 0.0
    %1272 = vmatpush1.msra.mxu0 0.0
    %1273 = vmatprep.subr.mxu0 0.0
    %1274 = vmatpush1.msra.mxu0 0.0
    %1275 = vmatprep.subr.mxu0 0.0
    %1276 = vmatpush1.msra.mxu0 0.0
    %1277 = vmatprep.subr.mxu0 0.0
    %1278 = vmatpush1.msra.mxu0 0.0
    %1279 = vmatprep.subr.mxu0 0.0
    %1280 = vmatpush1.msra.mxu0 0.0
    %1281 = vmatprep.subr.mxu0 0.0
    %1282 = vmatpush1.msra.mxu0 0.0
    %1283 = vmatprep.subr.mxu0 0.0
    %1284 = vmatpush1.msra.mxu0 0.0
    %1285 = vmatprep.subr.mxu0 0.0
    %1286 = vmatpush1.msra.mxu0 0.0
    %1287 = vmatprep.subr.mxu0 0.0
    %1288 = vmatpush1.msra.mxu0 0.0
    %1289 = vmatprep.subr.mxu0 0.0
    %1290 = vmatpush1.msra.mxu0 0.0
    %1291 = vmatprep.subr.mxu0 0.0
    %1292 = vmatpush1.msra.mxu0 0.0
    %1293 = vmatprep.subr.mxu0 0.0
    %1294 = vmatpush1.msra.mxu0 0.0
    %1295 = vmatprep.subr.mxu0 0.0
    %1296 = vmatpush1.msra.mxu0 0.0
    %1297 = vmatprep.subr.mxu0 0.0
    %1298 = vmatpush1.msra.mxu0 0.0
    %1299 = vmatprep.subr.mxu0 0.0
    %1300 = vmatpush1.msra.mxu0 0.0
    %1301 = vmatprep.subr.mxu0 0.0
    %1302 = vmatpush1.msra.mxu0 0.0
    %1303 = vmatprep.subr.mxu0 0.0
    %1304 = vmatpush1.msra.mxu0 0.0
    %1305 = vmatprep.subr.mxu0 0.0
    %1306 = vmatpush1.msra.mxu0 0.0
    %1307 = vmatprep.subr.mxu0 0.0
    %1308 = vmatpush1.msra.mxu0 0.0
    %1309 = vmatprep.subr.mxu0 0.0
    %1310 = vmatpush1.msra.mxu0 0.0
    %1311 = vmatprep.subr.mxu0 0.0
    %1312 = vmatpush1.msra.mxu0 0.0
    %1313 = vmatprep.subr.mxu0 0.0
    %1314 = vmatpush1.msra.mxu0 0.0
    %1315 = vmatprep.subr.mxu0 0.0
    %1316 = vmatpush1.msra.mxu0 0.0
    %1317 = vmatprep.subr.mxu0 0.0
    %1318 = vmatpush1.msra.mxu0 0.0
    %1319 = vmatprep.subr.mxu0 0.0
    %1320 = vmatpush1.msra.mxu0 0.0
    %1321 = vmatprep.mubr.f32.mxu0 0.0
    %1322 = vmatmul.mubr.f32.gmra.mrb[0].mxu0 %v1255
    %v1323 = vpop.f32.mrb[0].mxu0
    %v1324 = vadd.f32 0.0, %v1323
    %v1325 = vpop.f32.mrb[0].mxu0
    %v1326 = vadd.f32 0.0, %v1325
    %1327 = vdwg.mxu0
    %v1328 = vadd.f32 %v1250, %v1324
    %v1329 = vadd.f32 %v1251, %v1326
    %1330 = vrot.lane.b32.xlu0 %v897, 127
    %v1331 = vpop.permute.xlu0 %1330
    %1332 = vrot.lane.b32.xlu0 %v898, 127
    %v1333 = vpop.permute.xlu0 %1332
    %v1334 = vsel %vm521, %v1331, %v1333
    %v1338 = vsel %vm521, %v1333, %v1331
    %v1339 = vmul.f32 %v1334, %v528
    %v1340 = vmul.f32 %v1338, %v529
    %s1341 = scalar_lea.vmem %s5, 40
    %v1342 = vld [vmem:[%s1341] sm:$0xff]
    %v1344 = vsel %vm104, %v1342, 0
    %1346 = vmatprep.subr.mxu0 %v1340
    %1347 = vmatpush1.msra.mxu0 %v1339
    %1348 = vmatprep.subr.mxu0 0.0
    %1349 = vmatpush1.msra.mxu0 0.0
    %1350 = vmatprep.subr.mxu0 0.0
    %1351 = vmatpush1.msra.mxu0 0.0
    %1352 = vmatprep.subr.mxu0 0.0
    %1353 = vmatpush1.msra.mxu0 0.0
    %1354 = vmatprep.subr.mxu0 0.0
    %1355 = vmatpush1.msra.mxu0 0.0
    %1356 = vmatprep.subr.mxu0 0.0
    %1357 = vmatpush1.msra.mxu0 0.0
    %1358 = vmatprep.subr.mxu0 0.0
    %1359 = vmatpush1.msra.mxu0 0.0
    %1360 = vmatprep.subr.mxu0 0.0
    %1361 = vmatpush1.msra.mxu0 0.0
    %1362 = vmatprep.subr.mxu0 0.0
    %1363 = vmatpush1.msra.mxu0 0.0
    %1364 = vmatprep.subr.mxu0 0.0
    %1365 = vmatpush1.msra.mxu0 0.0
    %1366 = vmatprep.subr.mxu0 0.0
    %1367 = vmatpush1.msra.mxu0 0.0
    %1368 = vmatprep.subr.mxu0 0.0
    %1369 = vmatpush1.msra.mxu0 0.0
    %1370 = vmatprep.subr.mxu0 0.0
    %1371 = vmatpush1.msra.mxu0 0.0
    %1372 = vmatprep.subr.mxu0 0.0
    %1373 = vmatpush1.msra.mxu0 0.0
    %1374 = vmatprep.subr.mxu0 0.0
    %1375 = vmatpush1.msra.mxu0 0.0
    %1376 = vmatprep.subr.mxu0 0.0
    %1377 = vmatpush1.msra.mxu0 0.0
    %1378 = vmatprep.subr.mxu0 0.0
    %1379 = vmatpush1.msra.mxu0 0.0
    %1380 = vmatprep.subr.mxu0 0.0
    %1381 = vmatpush1.msra.mxu0 0.0
    %1382 = vmatprep.subr.mxu0 0.0
    %1383 = vmatpush1.msra.mxu0 0.0
    %1384 = vmatprep.subr.mxu0 0.0
    %1385 = vmatpush1.msra.mxu0 0.0
    %1386 = vmatprep.subr.mxu0 0.0
    %1387 = vmatpush1.msra.mxu0 0.0
    %1388 = vmatprep.subr.mxu0 0.0
    %1389 = vmatpush1.msra.mxu0 0.0
    %1390 = vmatprep.subr.mxu0 0.0
    %1391 = vmatpush1.msra.mxu0 0.0
    %1392 = vmatprep.subr.mxu0 0.0
    %1393 = vmatpush1.msra.mxu0 0.0
    %1394 = vmatprep.subr.mxu0 0.0
    %1395 = vmatpush1.msra.mxu0 0.0
    %1396 = vmatprep.subr.mxu0 0.0
    %1397 = vmatpush1.msra.mxu0 0.0
    %1398 = vmatprep.subr.mxu0 0.0
    %1399 = vmatpush1.msra.mxu0 0.0
    %1400 = vmatprep.subr.mxu0 0.0
    %1401 = vmatpush1.msra.mxu0 0.0
    %1402 = vmatprep.subr.mxu0 0.0
    %1403 = vmatpush1.msra.mxu0 0.0
    %1404 = vmatprep.subr.mxu0 0.0
    %1405 = vmatpush1.msra.mxu0 0.0
    %1406 = vmatprep.subr.mxu0 0.0
    %1407 = vmatpush1.msra.mxu0 0.0
    %1408 = vmatprep.subr.mxu0 0.0
    %1409 = vmatpush1.msra.mxu0 0.0
    %1410 = vmatprep.mubr.f32.mxu0 0.0
    %1411 = vmatmul.mubr.f32.gmra.mrb[0].mxu0 %v1344
    %v1412 = vpop.f32.mrb[0].mxu0
    %v1413 = vadd.f32 0.0, %v1412
    %v1414 = vpop.f32.mrb[0].mxu0
    %v1415 = vadd.f32 0.0, %v1414
    %1416 = vdwg.mxu0
    %v1417 = vadd.f32 %v1328, %v1413
    %v1418 = vadd.f32 %v1329, %v1415
    %1419 = vrot.lane.b32.xlu0 %v897, 113
    %v1420 = vpop.permute.xlu0 %1419
    %1421 = vrot.lane.b32.xlu0 %v898, 113
    %v1422 = vpop.permute.xlu0 %1421
    %v1423 = vsel %vm614, %v1420, %v1422
    %v1427 = vsel %vm614, %v1422, %v1420
    %v1428 = vmul.f32 %v1423, %v621
    %v1429 = vmul.f32 %v1427, %v622
    %s1430 = scalar_lea.vmem %s5, 48
    %v1431 = vld [vmem:[%s1430] sm:$0xff]
    %v1433 = vsel %vm104, %v1431, 0
    %1435 = vmatprep.subr.mxu0 %v1429
    %1436 = vmatpush1.msra.mxu0 %v1428
    %1437 = vmatprep.subr.mxu0 0.0
    %1438 = vmatpush1.msra.mxu0 0.0
    %1439 = vmatprep.subr.mxu0 0.0
    %1440 = vmatpush1.msra.mxu0 0.0
    %1441 = vmatprep.subr.mxu0 0.0
    %1442 = vmatpush1.msra.mxu0 0.0
    %1443 = vmatprep.subr.mxu0 0.0
    %1444 = vmatpush1.msra.mxu0 0.0
    %1445 = vmatprep.subr.mxu0 0.0
    %1446 = vmatpush1.msra.mxu0 0.0
    %1447 = vmatprep.subr.mxu0 0.0
    %1448 = vmatpush1.msra.mxu0 0.0
    %1449 = vmatprep.subr.mxu0 0.0
    %1450 = vmatpush1.msra.mxu0 0.0
    %1451 = vmatprep.subr.mxu0 0.0
    %1452 = vmatpush1.msra.mxu0 0.0
    %1453 = vmatprep.subr.mxu0 0.0
    %1454 = vmatpush1.msra.mxu0 0.0
    %1455 = vmatprep.subr.mxu0 0.0
    %1456 = vmatpush1.msra.mxu0 0.0
    %1457 = vmatprep.subr.mxu0 0.0
    %1458 = vmatpush1.msra.mxu0 0.0
    %1459 = vmatprep.subr.mxu0 0.0
    %1460 = vmatpush1.msra.mxu0 0.0
    %1461 = vmatprep.subr.mxu0 0.0
    %1462 = vmatpush1.msra.mxu0 0.0
    %1463 = vmatprep.subr.mxu0 0.0
    %1464 = vmatpush1.msra.mxu0 0.0
    %1465 = vmatprep.subr.mxu0 0.0
    %1466 = vmatpush1.msra.mxu0 0.0
    %1467 = vmatprep.subr.mxu0 0.0
    %1468 = vmatpush1.msra.mxu0 0.0
    %1469 = vmatprep.subr.mxu0 0.0
    %1470 = vmatpush1.msra.mxu0 0.0
    %1471 = vmatprep.subr.mxu0 0.0
    %1472 = vmatpush1.msra.mxu0 0.0
    %1473 = vmatprep.subr.mxu0 0.0
    %1474 = vmatpush1.msra.mxu0 0.0
    %1475 = vmatprep.subr.mxu0 0.0
    %1476 = vmatpush1.msra.mxu0 0.0
    %1477 = vmatprep.subr.mxu0 0.0
    %1478 = vmatpush1.msra.mxu0 0.0
    %1479 = vmatprep.subr.mxu0 0.0
    %1480 = vmatpush1.msra.mxu0 0.0
    %1481 = vmatprep.subr.mxu0 0.0
    %1482 = vmatpush1.msra.mxu0 0.0
    %1483 = vmatprep.subr.mxu0 0.0
    %1484 = vmatpush1.msra.mxu0 0.0
    %1485 = vmatprep.subr.mxu0 0.0
    %1486 = vmatpush1.msra.mxu0 0.0
    %1487 = vmatprep.subr.mxu0 0.0
    %1488 = vmatpush1.msra.mxu0 0.0
    %1489 = vmatprep.subr.mxu0 0.0
    %1490 = vmatpush1.msra.mxu0 0.0
    %1491 = vmatprep.subr.mxu0 0.0
    %1492 = vmatpush1.msra.mxu0 0.0
    %1493 = vmatprep.subr.mxu0 0.0
    %1494 = vmatpush1.msra.mxu0 0.0
    %1495 = vmatprep.subr.mxu0 0.0
    %1496 = vmatpush1.msra.mxu0 0.0
    %1497 = vmatprep.subr.mxu0 0.0
    %1498 = vmatpush1.msra.mxu0 0.0
    %1499 = vmatprep.mubr.f32.mxu0 0.0
    %1500 = vmatmul.mubr.f32.gmra.mrb[0].mxu0 %v1433
    %v1501 = vpop.f32.mrb[0].mxu0
    %v1502 = vadd.f32 0.0, %v1501
    %v1503 = vpop.f32.mrb[0].mxu0
    %v1504 = vadd.f32 0.0, %v1503
    %1505 = vdwg.mxu0
    %v1506 = vadd.f32 %v1417, %v1502
    %v1507 = vadd.f32 %v1418, %v1504
    %1508 = vrot.lane.b32.xlu0 %v897, 112
    %v1509 = vpop.permute.xlu0 %1508
    %1510 = vrot.lane.b32.xlu0 %v898, 112
    %v1511 = vpop.permute.xlu0 %1510
    %v1512 = vsel %vm707, %v1509, %v1511
    %v1516 = vsel %vm707, %v1511, %v1509
    %v1517 = vmul.f32 %v1512, %v714
    %v1518 = vmul.f32 %v1516, %v715
    %s1519 = scalar_lea.vmem %s5, 56
    %v1520 = vld [vmem:[%s1519] sm:$0xff]
    %v1522 = vsel %vm104, %v1520, 0
    %1524 = vmatprep.subr.mxu0 %v1518
    %1525 = vmatpush1.msra.mxu0 %v1517
    %1526 = vmatprep.subr.mxu0 0.0
    %1527 = vmatpush1.msra.mxu0 0.0
    %1528 = vmatprep.subr.mxu0 0.0
    %1529 = vmatpush1.msra.mxu0 0.0
    %1530 = vmatprep.subr.mxu0 0.0
    %1531 = vmatpush1.msra.mxu0 0.0
    %1532 = vmatprep.subr.mxu0 0.0
    %1533 = vmatpush1.msra.mxu0 0.0
    %1534 = vmatprep.subr.mxu0 0.0
    %1535 = vmatpush1.msra.mxu0 0.0
    %1536 = vmatprep.subr.mxu0 0.0
    %1537 = vmatpush1.msra.mxu0 0.0
    %1538 = vmatprep.subr.mxu0 0.0
    %1539 = vmatpush1.msra.mxu0 0.0
    %1540 = vmatprep.subr.mxu0 0.0
    %1541 = vmatpush1.msra.mxu0 0.0
    %1542 = vmatprep.subr.mxu0 0.0
    %1543 = vmatpush1.msra.mxu0 0.0
    %1544 = vmatprep.subr.mxu0 0.0
    %1545 = vmatpush1.msra.mxu0 0.0
    %1546 = vmatprep.subr.mxu0 0.0
    %1547 = vmatpush1.msra.mxu0 0.0
    %1548 = vmatprep.subr.mxu0 0.0
    %1549 = vmatpush1.msra.mxu0 0.0
    %1550 = vmatprep.subr.mxu0 0.0
    %1551 = vmatpush1.msra.mxu0 0.0
    %1552 = vmatprep.subr.mxu0 0.0
    %1553 = vmatpush1.msra.mxu0 0.0
    %1554 = vmatprep.subr.mxu0 0.0
    %1555 = vmatpush1.msra.mxu0 0.0
    %1556 = vmatprep.subr.mxu0 0.0
    %1557 = vmatpush1.msra.mxu0 0.0
    %1558 = vmatprep.subr.mxu0 0.0
    %1559 = vmatpush1.msra.mxu0 0.0
    %1560 = vmatprep.subr.mxu0 0.0
    %1561 = vmatpush1.msra.mxu0 0.0
    %1562 = vmatprep.subr.mxu0 0.0
    %1563 = vmatpush1.msra.mxu0 0.0
    %1564 = vmatprep.subr.mxu0 0.0
    %1565 = vmatpush1.msra.mxu0 0.0
    %1566 = vmatprep.subr.mxu0 0.0
    %1567 = vmatpush1.msra.mxu0 0.0
    %1568 = vmatprep.subr.mxu0 0.0
    %1569 = vmatpush1.msra.mxu0 0.0
    %1570 = vmatprep.subr.mxu0 0.0
    %1571 = vmatpush1.msra.mxu0 0.0
    %1572 = vmatprep.subr.mxu0 0.0
    %1573 = vmatpush1.msra.mxu0 0.0
    %1574 = vmatprep.subr.mxu0 0.0
    %1575 = vmatpush1.msra.mxu0 0.0
    %1576 = vmatprep.subr.mxu0 0.0
    %1577 = vmatpush1.msra.mxu0 0.0
    %1578 = vmatprep.subr.mxu0 0.0
    %1579 = vmatpush1.msra.mxu0 0.0
    %1580 = vmatprep.subr.mxu0 0.0
    %1581 = vmatpush1.msra.mxu0 0.0
    %1582 = vmatprep.subr.mxu0 0.0
    %1583 = vmatpush1.msra.mxu0 0.0
    %1584 = vmatprep.subr.mxu0 0.0
    %1585 = vmatpush1.msra.mxu0 0.0
    %1586 = vmatprep.subr.mxu0 0.0
    %1587 = vmatpush1.msra.mxu0 0.0
    %1588 = vmatprep.mubr.f32.mxu0 0.0
    %1589 = vmatmul.mubr.f32.gmra.mrb[0].mxu0 %v1522
    %v1590 = vpop.f32.mrb[0].mxu0
    %v1591 = vadd.f32 0.0, %v1590
    %v1592 = vpop.f32.mrb[0].mxu0
    %v1593 = vadd.f32 0.0, %v1592
    %1594 = vdwg.mxu0
    %v1595 = vadd.f32 %v1506, %v1591
    %v1596 = vadd.f32 %v1507, %v1593
    %1597 = vrot.lane.b32.xlu0 %v897, 111
    %v1598 = vpop.permute.xlu0 %1597
    %1599 = vrot.lane.b32.xlu0 %v898, 111
    %v1600 = vpop.permute.xlu0 %1599
    %v1601 = vsel %vm800, %v1598, %v1600
    %v1605 = vsel %vm800, %v1600, %v1598
    %v1606 = vmul.f32 %v1601, %v807
    %v1607 = vmul.f32 %v1605, %v808
    %s1608 = scalar_lea.vmem %s5, 64
    %v1609 = vld [vmem:[%s1608] sm:$0xff]
    %v1611 = vsel %vm104, %v1609, 0
    %1613 = vmatprep.subr.mxu0 %v1607
    %1614 = vmatpush1.msra.mxu0 %v1606
    %1615 = vmatprep.subr.mxu0 0.0
    %1616 = vmatpush1.msra.mxu0 0.0
    %1617 = vmatprep.subr.mxu0 0.0
    %1618 = vmatpush1.msra.mxu0 0.0
    %1619 = vmatprep.subr.mxu0 0.0
    %1620 = vmatpush1.msra.mxu0 0.0
    %1621 = vmatprep.subr.mxu0 0.0
    %1622 = vmatpush1.msra.mxu0 0.0
    %1623 = vmatprep.subr.mxu0 0.0
    %1624 = vmatpush1.msra.mxu0 0.0
    %1625 = vmatprep.subr.mxu0 0.0
    %1626 = vmatpush1.msra.mxu0 0.0
    %1627 = vmatprep.subr.mxu0 0.0
    %1628 = vmatpush1.msra.mxu0 0.0
    %1629 = vmatprep.subr.mxu0 0.0
    %1630 = vmatpush1.msra.mxu0 0.0
    %1631 = vmatprep.subr.mxu0 0.0
    %1632 = vmatpush1.msra.mxu0 0.0
    %1633 = vmatprep.subr.mxu0 0.0
    %1634 = vmatpush1.msra.mxu0 0.0
    %1635 = vmatprep.subr.mxu0 0.0
    %1636 = vmatpush1.msra.mxu0 0.0
    %1637 = vmatprep.subr.mxu0 0.0
    %1638 = vmatpush1.msra.mxu0 0.0
    %1639 = vmatprep.subr.mxu0 0.0
    %1640 = vmatpush1.msra.mxu0 0.0
    %1641 = vmatprep.subr.mxu0 0.0
    %1642 = vmatpush1.msra.mxu0 0.0
    %1643 = vmatprep.subr.mxu0 0.0
    %1644 = vmatpush1.msra.mxu0 0.0
    %1645 = vmatprep.subr.mxu0 0.0
    %1646 = vmatpush1.msra.mxu0 0.0
    %1647 = vmatprep.subr.mxu0 0.0
    %1648 = vmatpush1.msra.mxu0 0.0
    %1649 = vmatprep.subr.mxu0 0.0
    %1650 = vmatpush1.msra.mxu0 0.0
    %1651 = vmatprep.subr.mxu0 0.0
    %1652 = vmatpush1.msra.mxu0 0.0
    %1653 = vmatprep.subr.mxu0 0.0
    %1654 = vmatpush1.msra.mxu0 0.0
    %1655 = vmatprep.subr.mxu0 0.0
    %1656 = vmatpush1.msra.mxu0 0.0
    %1657 = vmatprep.subr.mxu0 0.0
    %1658 = vmatpush1.msra.mxu0 0.0
    %1659 = vmatprep.subr.mxu0 0.0
    %1660 = vmatpush1.msra.mxu0 0.0
    %1661 = vmatprep.subr.mxu0 0.0
    %1662 = vmatpush1.msra.mxu0 0.0
    %1663 = vmatprep.subr.mxu0 0.0
    %1664 = vmatpush1.msra.mxu0 0.0
    %1665 = vmatprep.subr.mxu0 0.0
    %1666 = vmatpush1.msra.mxu0 0.0
    %1667 = vmatprep.subr.mxu0 0.0
    %1668 = vmatpush1.msra.mxu0 0.0
    %1669 = vmatprep.subr.mxu0 0.0
    %1670 = vmatpush1.msra.mxu0 0.0
    %1671 = vmatprep.subr.mxu0 0.0
    %1672 = vmatpush1.msra.mxu0 0.0
    %1673 = vmatprep.subr.mxu0 0.0
    %1674 = vmatpush1.msra.mxu0 0.0
    %1675 = vmatprep.subr.mxu0 0.0
    %1676 = vmatpush1.msra.mxu0 0.0
    %1677 = vmatprep.mubr.f32.mxu0 0.0
    %1678 = vmatmul.mubr.f32.gmra.mrb[0].mxu0 %v1611
    %v1679 = vpop.f32.mrb[0].mxu0
    %v1680 = vadd.f32 0.0, %v1679
    %v1681 = vpop.f32.mrb[0].mxu0
    %v1682 = vadd.f32 0.0, %v1681
    %1683 = vdwg.mxu0
    %v1684 = vadd.f32 %v1595, %v1680
    %v1685 = vadd.f32 %v1596, %v1682
    %v1686 = vld [vmem:[%s6] sm:$0xff]
    %1688 = vset.pattern.permute.xlu0 0
    %1689 = vperm.xlu0 %1688, %v1686
    %v1690 = vpop.permute.xlu0 %1689
    %v1692 = vadd.f32 %v1684, %v1690
    %v1693 = vadd.f32 %v1685, %v1690
    %v1694 = vmax.f32 %v1692, 0.0
    %v1695 = vmax.f32 %v1693, 0.0
    %1697 = vrot.lane.b32.xlu0 %v1695, 17
    %v1698 = vpop.permute.xlu0 %1697
    %1701 = vrot.lane.b32.xlu0 %v1694, 17
    %v1702 = vpop.permute.xlu0 %1701
    %v1703 = vsel %vm77, %v1702, %v1698
    %v1706 = vsel %vm77, %v1698, %v1702
    %v1707 = vmul.f32 %v1706, %v82
    %v1708 = vmul.f32 %v1703, %v83
    %v1709 = vld [vmem:[%s7] sm:$0xff]
    %1710 = vrot.lane.b32.xlu0 %v1695, 16
    %v1711 = vpop.permute.xlu0 %1710
    %1713 = vrot.lane.b32.xlu0 %v1694, 16
    %v1714 = vpop.permute.xlu0 %1713
    %v1715 = vsel %vm92, %v1714, %v1711
    %v1718 = vsel %vm92, %v1711, %v1714
    %v1719 = vmul.f32 %v1718, %v98
    %v1720 = vmul.f32 %v1715, %v99
    %s1721 = scalar_lea.vmem %s7, 8
    %v1722 = vld [vmem:[%s1721] sm:$0xff]
    %v1724 = vsel %vm104, %v1722, 0
    %1726 = vmatprep.subr.mxu0 %v1720
    %1727 = vmatpush1.msra.mxu0 %v1719
    %1728 = vmatprep.subr.mxu0 0.0
    %1729 = vmatpush1.msra.mxu0 0.0
    %1730 = vmatprep.subr.mxu0 0.0
    %1731 = vmatpush1.msra.mxu0 0.0
    %1732 = vmatprep.subr.mxu0 0.0
    %1733 = vmatpush1.msra.mxu0 0.0
    %1734 = vmatprep.subr.mxu0 0.0
    %1735 = vmatpush1.msra.mxu0 0.0
    %1736 = vmatprep.subr.mxu0 0.0
    %1737 = vmatpush1.msra.mxu0 0.0
    %1738 = vmatprep.subr.mxu0 0.0
    %1739 = vmatpush1.msra.mxu0 0.0
    %1740 = vmatprep.subr.mxu0 0.0
    %1741 = vmatpush1.msra.mxu0 0.0
    %1742 = vmatprep.subr.mxu0 0.0
    %1743 = vmatpush1.msra.mxu0 0.0
    %1744 = vmatprep.subr.mxu0 0.0
    %1745 = vmatpush1.msra.mxu0 0.0
    %1746 = vmatprep.subr.mxu0 0.0
    %1747 = vmatpush1.msra.mxu0 0.0
    %1748 = vmatprep.subr.mxu0 0.0
    %1749 = vmatpush1.msra.mxu0 0.0
    %1750 = vmatprep.subr.mxu0 0.0
    %1751 = vmatpush1.msra.mxu0 0.0
    %1752 = vmatprep.subr.mxu0 0.0
    %1753 = vmatpush1.msra.mxu0 0.0
    %1754 = vmatprep.subr.mxu0 0.0
    %1755 = vmatpush1.msra.mxu0 0.0
    %1756 = vmatprep.subr.mxu0 0.0
    %1757 = vmatpush1.msra.mxu0 0.0
    %1758 = vmatprep.subr.mxu0 0.0
    %1759 = vmatpush1.msra.mxu0 0.0
    %1760 = vmatprep.subr.mxu0 0.0
    %1761 = vmatpush1.msra.mxu0 0.0
    %1762 = vmatprep.subr.mxu0 0.0
    %1763 = vmatpush1.msra.mxu0 0.0
    %1764 = vmatprep.subr.mxu0 0.0
    %1765 = vmatpush1.msra.mxu0 0.0
    %1766 = vmatprep.subr.mxu0 0.0
    %1767 = vmatpush1.msra.mxu0 0.0
    %1768 = vmatprep.subr.mxu0 0.0
    %1769 = vmatpush1.msra.mxu0 0.0
    %1770 = vmatprep.subr.mxu0 0.0
    %1771 = vmatpush1.msra.mxu0 0.0
    %1772 = vmatprep.subr.mxu0 0.0
    %1773 = vmatpush1.msra.mxu0 0.0
    %1774 = vmatprep.subr.mxu0 0.0
    %1775 = vmatpush1.msra.mxu0 0.0
    %1776 = vmatprep.subr.mxu0 0.0
    %1777 = vmatpush1.msra.mxu0 0.0
    %1778 = vmatprep.subr.mxu0 0.0
    %1779 = vmatpush1.msra.mxu0 0.0
    %1780 = vmatprep.subr.mxu0 0.0
    %1781 = vmatpush1.msra.mxu0 0.0
    %1782 = vmatprep.subr.mxu0 0.0
    %1783 = vmatpush1.msra.mxu0 0.0
    %1784 = vmatprep.subr.mxu0 0.0
    %1785 = vmatpush1.msra.mxu0 0.0
    %1786 = vmatprep.subr.mxu0 0.0
    %1787 = vmatpush1.msra.mxu0 0.0
    %1788 = vmatprep.subr.mxu0 0.0
    %1789 = vmatpush1.msra.mxu0 0.0
    %1790 = vmatprep.mubr.f32.mxu0 0.0
    %1791 = vmatmul.mubr.f32.gmra.mrb[0].mxu0 %v1724
    %v1792 = vpop.f32.mrb[0].mxu0
    %v1793 = vadd.f32 0.0, %v1792
    %v1794 = vpop.f32.mrb[0].mxu0
    %v1795 = vadd.f32 0.0, %v1794
    %1796 = vdwg.mxu0
    %v1798 = vsel %vm104, %v1709, 0
    %1800 = vmatprep.subr.mxu0 %v1708
    %1801 = vmatpush1.msra.mxu0 %v1707
    %1802 = vmatprep.subr.mxu0 0.0
    %1803 = vmatpush1.msra.mxu0 0.0
    %1804 = vmatprep.subr.mxu0 0.0
    %1805 = vmatpush1.msra.mxu0 0.0
    %1806 = vmatprep.subr.mxu0 0.0
    %1807 = vmatpush1.msra.mxu0 0.0
    %1808 = vmatprep.subr.mxu0 0.0
    %1809 = vmatpush1.msra.mxu0 0.0
    %1810 = vmatprep.subr.mxu0 0.0
    %1811 = vmatpush1.msra.mxu0 0.0
    %1812 = vmatprep.subr.mxu0 0.0
    %1813 = vmatpush1.msra.mxu0 0.0
    %1814 = vmatprep.subr.mxu0 0.0
    %1815 = vmatpush1.msra.mxu0 0.0
    %1816 = vmatprep.subr.mxu0 0.0
    %1817 = vmatpush1.msra.mxu0 0.0
    %1818 = vmatprep.subr.mxu0 0.0
    %1819 = vmatpush1.msra.mxu0 0.0
    %1820 = vmatprep.subr.mxu0 0.0
    %1821 = vmatpush1.msra.mxu0 0.0
    %1822 = vmatprep.subr.mxu0 0.0
    %1823 = vmatpush1.msra.mxu0 0.0
    %1824 = vmatprep.subr.mxu0 0.0
    %1825 = vmatpush1.msra.mxu0 0.0
    %1826 = vmatprep.subr.mxu0 0.0
    %1827 = vmatpush1.msra.mxu0 0.0
    %1828 = vmatprep.subr.mxu0 0.0
    %1829 = vmatpush1.msra.mxu0 0.0
    %1830 = vmatprep.subr.mxu0 0.0
    %1831 = vmatpush1.msra.mxu0 0.0
    %1832 = vmatprep.subr.mxu0 0.0
    %1833 = vmatpush1.msra.mxu0 0.0
    %1834 = vmatprep.subr.mxu0 0.0
    %1835 = vmatpush1.msra.mxu0 0.0
    %1836 = vmatprep.subr.mxu0 0.0
    %1837 = vmatpush1.msra.mxu0 0.0
    %1838 = vmatprep.subr.mxu0 0.0
    %1839 = vmatpush1.msra.mxu0 0.0
    %1840 = vmatprep.subr.mxu0 0.0
    %1841 = vmatpush1.msra.mxu0 0.0
    %1842 = vmatprep.subr.mxu0 0.0
    %1843 = vmatpush1.msra.mxu0 0.0
    %1844 = vmatprep.subr.mxu0 0.0
    %1845 = vmatpush1.msra.mxu0 0.0
    %1846 = vmatprep.subr.mxu0 0.0
    %1847 = vmatpush1.msra.mxu0 0.0
    %1848 = vmatprep.subr.mxu0 0.0
    %1849 = vmatpush1.msra.mxu0 0.0
    %1850 = vmatprep.subr.mxu0 0.0
    %1851 = vmatpush1.msra.mxu0 0.0
    %1852 = vmatprep.subr.mxu0 0.0
    %1853 = vmatpush1.msra.mxu0 0.0
    %1854 = vmatprep.subr.mxu0 0.0
    %1855 = vmatpush1.msra.mxu0 0.0
    %1856 = vmatprep.subr.mxu0 0.0
    %1857 = vmatpush1.msra.mxu0 0.0
    %1858 = vmatprep.subr.mxu0 0.0
    %1859 = vmatpush1.msra.mxu0 0.0
    %1860 = vmatprep.subr.mxu0 0.0
    %1861 = vmatpush1.msra.mxu0 0.0
    %1862 = vmatprep.subr.mxu0 0.0
    %1863 = vmatpush1.msra.mxu0 0.0
    %1864 = vmatprep.mubr.f32.mxu0 0.0
    %1865 = vmatmul.mubr.f32.gmra.mrb[0].mxu0 %v1798
    %v1866 = vpop.f32.mrb[0].mxu0
    %v1867 = vadd.f32 %v1793, %v1866
    %v1868 = vpop.f32.mrb[0].mxu0
    %v1869 = vadd.f32 %v1795, %v1868
    %1870 = vdwg.mxu0
    %1871 = vrot.lane.b32.xlu0 %v1695, 15
    %v1872 = vpop.permute.xlu0 %1871
    %1874 = vrot.lane.b32.xlu0 %v1694, 15
    %v1875 = vpop.permute.xlu0 %1874
    %v1876 = vsel %vm258, %v1875, %v1872
    %v1879 = vsel %vm258, %v1872, %v1875
    %v1880 = vmul.f32 %v1879, %v264
    %v1881 = vmul.f32 %v1876, %v265
    %s1882 = scalar_lea.vmem %s7, 16
    %v1883 = vld [vmem:[%s1882] sm:$0xff]
    %v1885 = vsel %vm104, %v1883, 0
    %1887 = vmatprep.subr.mxu0 %v1881
    %1888 = vmatpush1.msra.mxu0 %v1880
    %1889 = vmatprep.subr.mxu0 0.0
    %1890 = vmatpush1.msra.mxu0 0.0
    %1891 = vmatprep.subr.mxu0 0.0
    %1892 = vmatpush1.msra.mxu0 0.0
    %1893 = vmatprep.subr.mxu0 0.0
    %1894 = vmatpush1.msra.mxu0 0.0
    %1895 = vmatprep.subr.mxu0 0.0
    %1896 = vmatpush1.msra.mxu0 0.0
    %1897 = vmatprep.subr.mxu0 0.0
    %1898 = vmatpush1.msra.mxu0 0.0
    %1899 = vmatprep.subr.mxu0 0.0
    %1900 = vmatpush1.msra.mxu0 0.0
    %1901 = vmatprep.subr.mxu0 0.0
    %1902 = vmatpush1.msra.mxu0 0.0
    %1903 = vmatprep.subr.mxu0 0.0
    %1904 = vmatpush1.msra.mxu0 0.0
    %1905 = vmatprep.subr.mxu0 0.0
    %1906 = vmatpush1.msra.mxu0 0.0
    %1907 = vmatprep.subr.mxu0 0.0
    %1908 = vmatpush1.msra.mxu0 0.0
    %1909 = vmatprep.subr.mxu0 0.0
    %1910 = vmatpush1.msra.mxu0 0.0
    %1911 = vmatprep.subr.mxu0 0.0
    %1912 = vmatpush1.msra.mxu0 0.0
    %1913 = vmatprep.subr.mxu0 0.0
    %1914 = vmatpush1.msra.mxu0 0.0
    %1915 = vmatprep.subr.mxu0 0.0
    %1916 = vmatpush1.msra.mxu0 0.0
    %1917 = vmatprep.subr.mxu0 0.0
    %1918 = vmatpush1.msra.mxu0 0.0
    %1919 = vmatprep.subr.mxu0 0.0
    %1920 = vmatpush1.msra.mxu0 0.0
    %1921 = vmatprep.subr.mxu0 0.0
    %1922 = vmatpush1.msra.mxu0 0.0
    %1923 = vmatprep.subr.mxu0 0.0
    %1924 = vmatpush1.msra.mxu0 0.0
    %1925 = vmatprep.subr.mxu0 0.0
    %1926 = vmatpush1.msra.mxu0 0.0
    %1927 = vmatprep.subr.mxu0 0.0
    %1928 = vmatpush1.msra.mxu0 0.0
    %1929 = vmatprep.subr.mxu0 0.0
    %1930 = vmatpush1.msra.mxu0 0.0
    %1931 = vmatprep.subr.mxu0 0.0
    %1932 = vmatpush1.msra.mxu0 0.0
    %1933 = vmatprep.subr.mxu0 0.0
    %1934 = vmatpush1.msra.mxu0 0.0
    %1935 = vmatprep.subr.mxu0 0.0
    %1936 = vmatpush1.msra.mxu0 0.0
    %1937 = vmatprep.subr.mxu0 0.0
    %1938 = vmatpush1.msra.mxu0 0.0
    %1939 = vmatprep.subr.mxu0 0.0
    %1940 = vmatpush1.msra.mxu0 0.0
    %1941 = vmatprep.subr.mxu0 0.0
    %1942 = vmatpush1.msra.mxu0 0.0
    %1943 = vmatprep.subr.mxu0 0.0
    %1944 = vmatpush1.msra.mxu0 0.0
    %1945 = vmatprep.subr.mxu0 0.0
    %1946 = vmatpush1.msra.mxu0 0.0
    %1947 = vmatprep.subr.mxu0 0.0
    %1948 = vmatpush1.msra.mxu0 0.0
    %1949 = vmatprep.subr.mxu0 0.0
    %1950 = vmatpush1.msra.mxu0 0.0
    %1951 = vmatprep.mubr.f32.mxu0 0.0
    %1952 = vmatmul.mubr.f32.gmra.mrb[0].mxu0 %v1885
    %v1953 = vpop.f32.mrb[0].mxu0
    %v1954 = vadd.f32 0.0, %v1953
    %v1955 = vpop.f32.mrb[0].mxu0
    %v1956 = vadd.f32 0.0, %v1955
    %1957 = vdwg.mxu0
    %v1958 = vadd.f32 %v1867, %v1954
    %v1959 = vadd.f32 %v1869, %v1956
    %1960 = vrot.lane.b32.xlu0 %v1695, 1
    %v1961 = vpop.permute.xlu0 %1960
    %1963 = vrot.lane.b32.xlu0 %v1694, 1
    %v1964 = vpop.permute.xlu0 %1963
    %v1965 = vsel %vm351, %v1964, %v1961
    %v1968 = vsel %vm351, %v1961, %v1964
    %v1969 = vmul.f32 %v1968, %v357
    %v1970 = vmul.f32 %v1965, %v358
    %s1971 = scalar_lea.vmem %s7, 24
    %v1972 = vld [vmem:[%s1971] sm:$0xff]
    %v1974 = vsel %vm104, %v1972, 0
    %1976 = vmatprep.subr.mxu0 %v1970
    %1977 = vmatpush1.msra.mxu0 %v1969
    %1978 = vmatprep.subr.mxu0 0.0
    %1979 = vmatpush1.msra.mxu0 0.0
    %1980 = vmatprep.subr.mxu0 0.0
    %1981 = vmatpush1.msra.mxu0 0.0
    %1982 = vmatprep.subr.mxu0 0.0
    %1983 = vmatpush1.msra.mxu0 0.0
    %1984 = vmatprep.subr.mxu0 0.0
    %1985 = vmatpush1.msra.mxu0 0.0
    %1986 = vmatprep.subr.mxu0 0.0
    %1987 = vmatpush1.msra.mxu0 0.0
    %1988 = vmatprep.subr.mxu0 0.0
    %1989 = vmatpush1.msra.mxu0 0.0
    %1990 = vmatprep.subr.mxu0 0.0
    %1991 = vmatpush1.msra.mxu0 0.0
    %1992 = vmatprep.subr.mxu0 0.0
    %1993 = vmatpush1.msra.mxu0 0.0
    %1994 = vmatprep.subr.mxu0 0.0
    %1995 = vmatpush1.msra.mxu0 0.0
    %1996 = vmatprep.subr.mxu0 0.0
    %1997 = vmatpush1.msra.mxu0 0.0
    %1998 = vmatprep.subr.mxu0 0.0
    %1999 = vmatpush1.msra.mxu0 0.0
    %2000 = vmatprep.subr.mxu0 0.0
    %2001 = vmatpush1.msra.mxu0 0.0
    %2002 = vmatprep.subr.mxu0 0.0
    %2003 = vmatpush1.msra.mxu0 0.0
    %2004 = vmatprep.subr.mxu0 0.0
    %2005 = vmatpush1.msra.mxu0 0.0
    %2006 = vmatprep.subr.mxu0 0.0
    %2007 = vmatpush1.msra.mxu0 0.0
    %2008 = vmatprep.subr.mxu0 0.0
    %2009 = vmatpush1.msra.mxu0 0.0
    %2010 = vmatprep.subr.mxu0 0.0
    %2011 = vmatpush1.msra.mxu0 0.0
    %2012 = vmatprep.subr.mxu0 0.0
    %2013 = vmatpush1.msra.mxu0 0.0
    %2014 = vmatprep.subr.mxu0 0.0
    %2015 = vmatpush1.msra.mxu0 0.0
    %2016 = vmatprep.subr.mxu0 0.0
    %2017 = vmatpush1.msra.mxu0 0.0
    %2018 = vmatprep.subr.mxu0 0.0
    %2019 = vmatpush1.msra.mxu0 0.0
    %2020 = vmatprep.subr.mxu0 0.0
    %2021 = vmatpush1.msra.mxu0 0.0
    %2022 = vmatprep.subr.mxu0 0.0
    %2023 = vmatpush1.msra.mxu0 0.0
    %2024 = vmatprep.subr.mxu0 0.0
    %2025 = vmatpush1.msra.mxu0 0.0
    %2026 = vmatprep.subr.mxu0 0.0
    %2027 = vmatpush1.msra.mxu0 0.0
    %2028 = vmatprep.subr.mxu0 0.0
    %2029 = vmatpush1.msra.mxu0 0.0
    %2030 = vmatprep.subr.mxu0 0.0
    %2031 = vmatpush1.msra.mxu0 0.0
    %2032 = vmatprep.subr.mxu0 0.0
    %2033 = vmatpush1.msra.mxu0 0.0
    %2034 = vmatprep.subr.mxu0 0.0
    %2035 = vmatpush1.msra.mxu0 0.0
    %2036 = vmatprep.subr.mxu0 0.0
    %2037 = vmatpush1.msra.mxu0 0.0
    %2038 = vmatprep.subr.mxu0 0.0
    %2039 = vmatpush1.msra.mxu0 0.0
    %2040 = vmatprep.mubr.f32.mxu0 0.0
    %2041 = vmatmul.mubr.f32.gmra.mrb[0].mxu0 %v1974
    %v2042 = vpop.f32.mrb[0].mxu0
    %v2043 = vadd.f32 0.0, %v2042
    %v2044 = vpop.f32.mrb[0].mxu0
    %v2045 = vadd.f32 0.0, %v2044
    %2046 = vdwg.mxu0
    %v2047 = vadd.f32 %v1958, %v2043
    %v2048 = vadd.f32 %v1959, %v2045
    %s2049 = scalar_lea.vmem %s7, 32
    %v2050 = vld [vmem:[%s2049] sm:$0xff]
    %v2052 = vsel %vm104, %v2050, 0
    %2054 = vmatprep.subr.mxu0 %v1695
    %2055 = vmatpush1.msra.mxu0 %v1694
    %2056 = vmatprep.subr.mxu0 0.0
    %2057 = vmatpush1.msra.mxu0 0.0
    %2058 = vmatprep.subr.mxu0 0.0
    %2059 = vmatpush1.msra.mxu0 0.0
    %2060 = vmatprep.subr.mxu0 0.0
    %2061 = vmatpush1.msra.mxu0 0.0
    %2062 = vmatprep.subr.mxu0 0.0
    %2063 = vmatpush1.msra.mxu0 0.0
    %2064 = vmatprep.subr.mxu0 0.0
    %2065 = vmatpush1.msra.mxu0 0.0
    %2066 = vmatprep.subr.mxu0 0.0
    %2067 = vmatpush1.msra.mxu0 0.0
    %2068 = vmatprep.subr.mxu0 0.0
    %2069 = vmatpush1.msra.mxu0 0.0
    %2070 = vmatprep.subr.mxu0 0.0
    %2071 = vmatpush1.msra.mxu0 0.0
    %2072 = vmatprep.subr.mxu0 0.0
    %2073 = vmatpush1.msra.mxu0 0.0
    %2074 = vmatprep.subr.mxu0 0.0
    %2075 = vmatpush1.msra.mxu0 0.0
    %2076 = vmatprep.subr.mxu0 0.0
    %2077 = vmatpush1.msra.mxu0 0.0
    %2078 = vmatprep.subr.mxu0 0.0
    %2079 = vmatpush1.msra.mxu0 0.0
    %2080 = vmatprep.subr.mxu0 0.0
    %2081 = vmatpush1.msra.mxu0 0.0
    %2082 = vmatprep.subr.mxu0 0.0
    %2083 = vmatpush1.msra.mxu0 0.0
    %2084 = vmatprep.subr.mxu0 0.0
    %2085 = vmatpush1.msra.mxu0 0.0
    %2086 = vmatprep.subr.mxu0 0.0
    %2087 = vmatpush1.msra.mxu0 0.0
    %2088 = vmatprep.subr.mxu0 0.0
    %2089 = vmatpush1.msra.mxu0 0.0
    %2090 = vmatprep.subr.mxu0 0.0
    %2091 = vmatpush1.msra.mxu0 0.0
    %2092 = vmatprep.subr.mxu0 0.0
    %2093 = vmatpush1.msra.mxu0 0.0
    %2094 = vmatprep.subr.mxu0 0.0
    %2095 = vmatpush1.msra.mxu0 0.0
    %2096 = vmatprep.subr.mxu0 0.0
    %2097 = vmatpush1.msra.mxu0 0.0
    %2098 = vmatprep.subr.mxu0 0.0
    %2099 = vmatpush1.msra.mxu0 0.0
    %2100 = vmatprep.subr.mxu0 0.0
    %2101 = vmatpush1.msra.mxu0 0.0
    %2102 = vmatprep.subr.mxu0 0.0
    %2103 = vmatpush1.msra.mxu0 0.0
    %2104 = vmatprep.subr.mxu0 0.0
    %2105 = vmatpush1.msra.mxu0 0.0
    %2106 = vmatprep.subr.mxu0 0.0
    %2107 = vmatpush1.msra.mxu0 0.0
    %2108 = vmatprep.subr.mxu0 0.0
    %2109 = vmatpush1.msra.mxu0 0.0
    %2110 = vmatprep.subr.mxu0 0.0
    %2111 = vmatpush1.msra.mxu0 0.0
    %2112 = vmatprep.subr.mxu0 0.0
    %2113 = vmatpush1.msra.mxu0 0.0
    %2114 = vmatprep.subr.mxu0 0.0
    %2115 = vmatpush1.msra.mxu0 0.0
    %2116 = vmatprep.subr.mxu0 0.0
    %2117 = vmatpush1.msra.mxu0 0.0
    %2118 = vmatprep.mubr.f32.mxu0 0.0
    %2119 = vmatmul.mubr.f32.gmra.mrb[0].mxu0 %v2052
    %v2120 = vpop.f32.mrb[0].mxu0
    %v2121 = vadd.f32 0.0, %v2120
    %v2122 = vpop.f32.mrb[0].mxu0
    %v2123 = vadd.f32 0.0, %v2122
    %2124 = vdwg.mxu0
    %v2125 = vadd.f32 %v2047, %v2121
    %v2126 = vadd.f32 %v2048, %v2123
    %2127 = vrot.lane.b32.xlu0 %v1694, 127
    %v2128 = vpop.permute.xlu0 %2127
    %2129 = vrot.lane.b32.xlu0 %v1695, 127
    %v2130 = vpop.permute.xlu0 %2129
    %v2131 = vsel %vm521, %v2128, %v2130
    %v2135 = vsel %vm521, %v2130, %v2128
    %v2136 = vmul.f32 %v2131, %v528
    %v2137 = vmul.f32 %v2135, %v529
    %s2138 = scalar_lea.vmem %s7, 40
    %v2139 = vld [vmem:[%s2138] sm:$0xff]
    %v2141 = vsel %vm104, %v2139, 0
    %2143 = vmatprep.subr.mxu0 %v2137
    %2144 = vmatpush1.msra.mxu0 %v2136
    %2145 = vmatprep.subr.mxu0 0.0
    %2146 = vmatpush1.msra.mxu0 0.0
    %2147 = vmatprep.subr.mxu0 0.0
    %2148 = vmatpush1.msra.mxu0 0.0
    %2149 = vmatprep.subr.mxu0 0.0
    %2150 = vmatpush1.msra.mxu0 0.0
    %2151 = vmatprep.subr.mxu0 0.0
    %2152 = vmatpush1.msra.mxu0 0.0
    %2153 = vmatprep.subr.mxu0 0.0
    %2154 = vmatpush1.msra.mxu0 0.0
    %2155 = vmatprep.subr.mxu0 0.0
    %2156 = vmatpush1.msra.mxu0 0.0
    %2157 = vmatprep.subr.mxu0 0.0
    %2158 = vmatpush1.msra.mxu0 0.0
    %2159 = vmatprep.subr.mxu0 0.0
    %2160 = vmatpush1.msra.mxu0 0.0
    %2161 = vmatprep.subr.mxu0 0.0
    %2162 = vmatpush1.msra.mxu0 0.0
    %2163 = vmatprep.subr.mxu0 0.0
    %2164 = vmatpush1.msra.mxu0 0.0
    %2165 = vmatprep.subr.mxu0 0.0
    %2166 = vmatpush1.msra.mxu0 0.0
    %2167 = vmatprep.subr.mxu0 0.0
    %2168 = vmatpush1.msra.mxu0 0.0
    %2169 = vmatprep.subr.mxu0 0.0
    %2170 = vmatpush1.msra.mxu0 0.0
    %2171 = vmatprep.subr.mxu0 0.0
    %2172 = vmatpush1.msra.mxu0 0.0
    %2173 = vmatprep.subr.mxu0 0.0
    %2174 = vmatpush1.msra.mxu0 0.0
    %2175 = vmatprep.subr.mxu0 0.0
    %2176 = vmatpush1.msra.mxu0 0.0
    %2177 = vmatprep.subr.mxu0 0.0
    %2178 = vmatpush1.msra.mxu0 0.0
    %2179 = vmatprep.subr.mxu0 0.0
    %2180 = vmatpush1.msra.mxu0 0.0
    %2181 = vmatprep.subr.mxu0 0.0
    %2182 = vmatpush1.msra.mxu0 0.0
    %2183 = vmatprep.subr.mxu0 0.0
    %2184 = vmatpush1.msra.mxu0 0.0
    %2185 = vmatprep.subr.mxu0 0.0
    %2186 = vmatpush1.msra.mxu0 0.0
    %2187 = vmatprep.subr.mxu0 0.0
    %2188 = vmatpush1.msra.mxu0 0.0
    %2189 = vmatprep.subr.mxu0 0.0
    %2190 = vmatpush1.msra.mxu0 0.0
    %2191 = vmatprep.subr.mxu0 0.0
    %2192 = vmatpush1.msra.mxu0 0.0
    %2193 = vmatprep.subr.mxu0 0.0
    %2194 = vmatpush1.msra.mxu0 0.0
    %2195 = vmatprep.subr.mxu0 0.0
    %2196 = vmatpush1.msra.mxu0 0.0
    %2197 = vmatprep.subr.mxu0 0.0
    %2198 = vmatpush1.msra.mxu0 0.0
    %2199 = vmatprep.subr.mxu0 0.0
    %2200 = vmatpush1.msra.mxu0 0.0
    %2201 = vmatprep.subr.mxu0 0.0
    %2202 = vmatpush1.msra.mxu0 0.0
    %2203 = vmatprep.subr.mxu0 0.0
    %2204 = vmatpush1.msra.mxu0 0.0
    %2205 = vmatprep.subr.mxu0 0.0
    %2206 = vmatpush1.msra.mxu0 0.0
    %2207 = vmatprep.mubr.f32.mxu0 0.0
    %2208 = vmatmul.mubr.f32.gmra.mrb[0].mxu0 %v2141
    %v2209 = vpop.f32.mrb[0].mxu0
    %v2210 = vadd.f32 0.0, %v2209
    %v2211 = vpop.f32.mrb[0].mxu0
    %v2212 = vadd.f32 0.0, %v2211
    %2213 = vdwg.mxu0
    %v2214 = vadd.f32 %v2125, %v2210
    %v2215 = vadd.f32 %v2126, %v2212
    %2216 = vrot.lane.b32.xlu0 %v1694, 113
    %v2217 = vpop.permute.xlu0 %2216
    %2218 = vrot.lane.b32.xlu0 %v1695, 113
    %v2219 = vpop.permute.xlu0 %2218
    %v2220 = vsel %vm614, %v2217, %v2219
    %v2224 = vsel %vm614, %v2219, %v2217
    %v2225 = vmul.f32 %v2220, %v621
    %v2226 = vmul.f32 %v2224, %v622
    %s2227 = scalar_lea.vmem %s7, 48
    %v2228 = vld [vmem:[%s2227] sm:$0xff]
    %v2230 = vsel %vm104, %v2228, 0
    %2232 = vmatprep.subr.mxu0 %v2226
    %2233 = vmatpush1.msra.mxu0 %v2225
    %2234 = vmatprep.subr.mxu0 0.0
    %2235 = vmatpush1.msra.mxu0 0.0
    %2236 = vmatprep.subr.mxu0 0.0
    %2237 = vmatpush1.msra.mxu0 0.0
    %2238 = vmatprep.subr.mxu0 0.0
    %2239 = vmatpush1.msra.mxu0 0.0
    %2240 = vmatprep.subr.mxu0 0.0
    %2241 = vmatpush1.msra.mxu0 0.0
    %2242 = vmatprep.subr.mxu0 0.0
    %2243 = vmatpush1.msra.mxu0 0.0
    %2244 = vmatprep.subr.mxu0 0.0
    %2245 = vmatpush1.msra.mxu0 0.0
    %2246 = vmatprep.subr.mxu0 0.0
    %2247 = vmatpush1.msra.mxu0 0.0
    %2248 = vmatprep.subr.mxu0 0.0
    %2249 = vmatpush1.msra.mxu0 0.0
    %2250 = vmatprep.subr.mxu0 0.0
    %2251 = vmatpush1.msra.mxu0 0.0
    %2252 = vmatprep.subr.mxu0 0.0
    %2253 = vmatpush1.msra.mxu0 0.0
    %2254 = vmatprep.subr.mxu0 0.0
    %2255 = vmatpush1.msra.mxu0 0.0
    %2256 = vmatprep.subr.mxu0 0.0
    %2257 = vmatpush1.msra.mxu0 0.0
    %2258 = vmatprep.subr.mxu0 0.0
    %2259 = vmatpush1.msra.mxu0 0.0
    %2260 = vmatprep.subr.mxu0 0.0
    %2261 = vmatpush1.msra.mxu0 0.0
    %2262 = vmatprep.subr.mxu0 0.0
    %2263 = vmatpush1.msra.mxu0 0.0
    %2264 = vmatprep.subr.mxu0 0.0
    %2265 = vmatpush1.msra.mxu0 0.0
    %2266 = vmatprep.subr.mxu0 0.0
    %2267 = vmatpush1.msra.mxu0 0.0
    %2268 = vmatprep.subr.mxu0 0.0
    %2269 = vmatpush1.msra.mxu0 0.0
    %2270 = vmatprep.subr.mxu0 0.0
    %2271 = vmatpush1.msra.mxu0 0.0
    %2272 = vmatprep.subr.mxu0 0.0
    %2273 = vmatpush1.msra.mxu0 0.0
    %2274 = vmatprep.subr.mxu0 0.0
    %2275 = vmatpush1.msra.mxu0 0.0
    %2276 = vmatprep.subr.mxu0 0.0
    %2277 = vmatpush1.msra.mxu0 0.0
    %2278 = vmatprep.subr.mxu0 0.0
    %2279 = vmatpush1.msra.mxu0 0.0
    %2280 = vmatprep.subr.mxu0 0.0
    %2281 = vmatpush1.msra.mxu0 0.0
    %2282 = vmatprep.subr.mxu0 0.0
    %2283 = vmatpush1.msra.mxu0 0.0
    %2284 = vmatprep.subr.mxu0 0.0
    %2285 = vmatpush1.msra.mxu0 0.0
    %2286 = vmatprep.subr.mxu0 0.0
    %2287 = vmatpush1.msra.mxu0 0.0
    %2288 = vmatprep.subr.mxu0 0.0
    %2289 = vmatpush1.msra.mxu0 0.0
    %2290 = vmatprep.subr.mxu0 0.0
    %2291 = vmatpush1.msra.mxu0 0.0
    %2292 = vmatprep.subr.mxu0 0.0
    %2293 = vmatpush1.msra.mxu0 0.0
    %2294 = vmatprep.subr.mxu0 0.0
    %2295 = vmatpush1.msra.mxu0 0.0
    %2296 = vmatprep.mubr.f32.mxu0 0.0
    %2297 = vmatmul.mubr.f32.gmra.mrb[0].mxu0 %v2230
    %v2298 = vpop.f32.mrb[0].mxu0
    %v2299 = vadd.f32 0.0, %v2298
    %v2300 = vpop.f32.mrb[0].mxu0
    %v2301 = vadd.f32 0.0, %v2300
    %2302 = vdwg.mxu0
    %v2303 = vadd.f32 %v2214, %v2299
    %v2304 = vadd.f32 %v2215, %v2301
    %2305 = vrot.lane.b32.xlu0 %v1694, 112
    %v2306 = vpop.permute.xlu0 %2305
    %2307 = vrot.lane.b32.xlu0 %v1695, 112
    %v2308 = vpop.permute.xlu0 %2307
    %v2309 = vsel %vm707, %v2306, %v2308
    %v2313 = vsel %vm707, %v2308, %v2306
    %v2314 = vmul.f32 %v2309, %v714
    %v2315 = vmul.f32 %v2313, %v715
    %s2316 = scalar_lea.vmem %s7, 56
    %v2317 = vld [vmem:[%s2316] sm:$0xff]
    %v2319 = vsel %vm104, %v2317, 0
    %2321 = vmatprep.subr.mxu0 %v2315
    %2322 = vmatpush1.msra.mxu0 %v2314
    %2323 = vmatprep.subr.mxu0 0.0
    %2324 = vmatpush1.msra.mxu0 0.0
    %2325 = vmatprep.subr.mxu0 0.0
    %2326 = vmatpush1.msra.mxu0 0.0
    %2327 = vmatprep.subr.mxu0 0.0
    %2328 = vmatpush1.msra.mxu0 0.0
    %2329 = vmatprep.subr.mxu0 0.0
    %2330 = vmatpush1.msra.mxu0 0.0
    %2331 = vmatprep.subr.mxu0 0.0
    %2332 = vmatpush1.msra.mxu0 0.0
    %2333 = vmatprep.subr.mxu0 0.0
    %2334 = vmatpush1.msra.mxu0 0.0
    %2335 = vmatprep.subr.mxu0 0.0
    %2336 = vmatpush1.msra.mxu0 0.0
    %2337 = vmatprep.subr.mxu0 0.0
    %2338 = vmatpush1.msra.mxu0 0.0
    %2339 = vmatprep.subr.mxu0 0.0
    %2340 = vmatpush1.msra.mxu0 0.0
    %2341 = vmatprep.subr.mxu0 0.0
    %2342 = vmatpush1.msra.mxu0 0.0
    %2343 = vmatprep.subr.mxu0 0.0
    %2344 = vmatpush1.msra.mxu0 0.0
    %2345 = vmatprep.subr.mxu0 0.0
    %2346 = vmatpush1.msra.mxu0 0.0
    %2347 = vmatprep.subr.mxu0 0.0
    %2348 = vmatpush1.msra.mxu0 0.0
    %2349 = vmatprep.subr.mxu0 0.0
    %2350 = vmatpush1.msra.mxu0 0.0
    %2351 = vmatprep.subr.mxu0 0.0
    %2352 = vmatpush1.msra.mxu0 0.0
    %2353 = vmatprep.subr.mxu0 0.0
    %2354 = vmatpush1.msra.mxu0 0.0
    %2355 = vmatprep.subr.mxu0 0.0
    %2356 = vmatpush1.msra.mxu0 0.0
    %2357 = vmatprep.subr.mxu0 0.0
    %2358 = vmatpush1.msra.mxu0 0.0
    %2359 = vmatprep.subr.mxu0 0.0
    %2360 = vmatpush1.msra.mxu0 0.0
    %2361 = vmatprep.subr.mxu0 0.0
    %2362 = vmatpush1.msra.mxu0 0.0
    %2363 = vmatprep.subr.mxu0 0.0
    %2364 = vmatpush1.msra.mxu0 0.0
    %2365 = vmatprep.subr.mxu0 0.0
    %2366 = vmatpush1.msra.mxu0 0.0
    %2367 = vmatprep.subr.mxu0 0.0
    %2368 = vmatpush1.msra.mxu0 0.0
    %2369 = vmatprep.subr.mxu0 0.0
    %2370 = vmatpush1.msra.mxu0 0.0
    %2371 = vmatprep.subr.mxu0 0.0
    %2372 = vmatpush1.msra.mxu0 0.0
    %2373 = vmatprep.subr.mxu0 0.0
    %2374 = vmatpush1.msra.mxu0 0.0
    %2375 = vmatprep.subr.mxu0 0.0
    %2376 = vmatpush1.msra.mxu0 0.0
    %2377 = vmatprep.subr.mxu0 0.0
    %2378 = vmatpush1.msra.mxu0 0.0
    %2379 = vmatprep.subr.mxu0 0.0
    %2380 = vmatpush1.msra.mxu0 0.0
    %2381 = vmatprep.subr.mxu0 0.0
    %2382 = vmatpush1.msra.mxu0 0.0
    %2383 = vmatprep.subr.mxu0 0.0
    %2384 = vmatpush1.msra.mxu0 0.0
    %2385 = vmatprep.mubr.f32.mxu0 0.0
    %2386 = vmatmul.mubr.f32.gmra.mrb[0].mxu0 %v2319
    %v2387 = vpop.f32.mrb[0].mxu0
    %v2388 = vadd.f32 0.0, %v2387
    %v2389 = vpop.f32.mrb[0].mxu0
    %v2390 = vadd.f32 0.0, %v2389
    %2391 = vdwg.mxu0
    %v2392 = vadd.f32 %v2303, %v2388
    %v2393 = vadd.f32 %v2304, %v2390
    %2394 = vrot.lane.b32.xlu0 %v1694, 111
    %v2395 = vpop.permute.xlu0 %2394
    %2396 = vrot.lane.b32.xlu0 %v1695, 111
    %v2397 = vpop.permute.xlu0 %2396
    %v2398 = vsel %vm800, %v2395, %v2397
    %v2402 = vsel %vm800, %v2397, %v2395
    %v2403 = vmul.f32 %v2398, %v807
    %v2404 = vmul.f32 %v2402, %v808
    %s2405 = scalar_lea.vmem %s7, 64
    %v2406 = vld [vmem:[%s2405] sm:$0xff]
    %v2408 = vsel %vm104, %v2406, 0
    %2410 = vmatprep.subr.mxu0 %v2404
    %2411 = vmatpush1.msra.mxu0 %v2403
    %2412 = vmatprep.subr.mxu0 0.0
    %2413 = vmatpush1.msra.mxu0 0.0
    %2414 = vmatprep.subr.mxu0 0.0
    %2415 = vmatpush1.msra.mxu0 0.0
    %2416 = vmatprep.subr.mxu0 0.0
    %2417 = vmatpush1.msra.mxu0 0.0
    %2418 = vmatprep.subr.mxu0 0.0
    %2419 = vmatpush1.msra.mxu0 0.0
    %2420 = vmatprep.subr.mxu0 0.0
    %2421 = vmatpush1.msra.mxu0 0.0
    %2422 = vmatprep.subr.mxu0 0.0
    %2423 = vmatpush1.msra.mxu0 0.0
    %2424 = vmatprep.subr.mxu0 0.0
    %2425 = vmatpush1.msra.mxu0 0.0
    %2426 = vmatprep.subr.mxu0 0.0
    %2427 = vmatpush1.msra.mxu0 0.0
    %2428 = vmatprep.subr.mxu0 0.0
    %2429 = vmatpush1.msra.mxu0 0.0
    %2430 = vmatprep.subr.mxu0 0.0
    %2431 = vmatpush1.msra.mxu0 0.0
    %2432 = vmatprep.subr.mxu0 0.0
    %2433 = vmatpush1.msra.mxu0 0.0
    %2434 = vmatprep.subr.mxu0 0.0
    %2435 = vmatpush1.msra.mxu0 0.0
    %2436 = vmatprep.subr.mxu0 0.0
    %2437 = vmatpush1.msra.mxu0 0.0
    %2438 = vmatprep.subr.mxu0 0.0
    %2439 = vmatpush1.msra.mxu0 0.0
    %2440 = vmatprep.subr.mxu0 0.0
    %2441 = vmatpush1.msra.mxu0 0.0
    %2442 = vmatprep.subr.mxu0 0.0
    %2443 = vmatpush1.msra.mxu0 0.0
    %2444 = vmatprep.subr.mxu0 0.0
    %2445 = vmatpush1.msra.mxu0 0.0
    %2446 = vmatprep.subr.mxu0 0.0
    %2447 = vmatpush1.msra.mxu0 0.0
    %2448 = vmatprep.subr.mxu0 0.0
    %2449 = vmatpush1.msra.mxu0 0.0
    %2450 = vmatprep.subr.mxu0 0.0
    %2451 = vmatpush1.msra.mxu0 0.0
    %2452 = vmatprep.subr.mxu0 0.0
    %2453 = vmatpush1.msra.mxu0 0.0
    %2454 = vmatprep.subr.mxu0 0.0
    %2455 = vmatpush1.msra.mxu0 0.0
    %2456 = vmatprep.subr.mxu0 0.0
    %2457 = vmatpush1.msra.mxu0 0.0
    %2458 = vmatprep.subr.mxu0 0.0
    %2459 = vmatpush1.msra.mxu0 0.0
    %2460 = vmatprep.subr.mxu0 0.0
    %2461 = vmatpush1.msra.mxu0 0.0
    %2462 = vmatprep.subr.mxu0 0.0
    %2463 = vmatpush1.msra.mxu0 0.0
    %2464 = vmatprep.subr.mxu0 0.0
    %2465 = vmatpush1.msra.mxu0 0.0
    %2466 = vmatprep.subr.mxu0 0.0
    %2467 = vmatpush1.msra.mxu0 0.0
    %2468 = vmatprep.subr.mxu0 0.0
    %2469 = vmatpush1.msra.mxu0 0.0
    %2470 = vmatprep.subr.mxu0 0.0
    %2471 = vmatpush1.msra.mxu0 0.0
    %2472 = vmatprep.subr.mxu0 0.0
    %2473 = vmatpush1.msra.mxu0 0.0
    %2474 = vmatprep.mubr.f32.mxu0 0.0
    %2475 = vmatmul.mubr.f32.gmra.mrb[0].mxu0 %v2408
    %v2476 = vpop.f32.mrb[0].mxu0
    %v2477 = vadd.f32 0.0, %v2476
    %v2478 = vpop.f32.mrb[0].mxu0
    %v2479 = vadd.f32 0.0, %v2478
    %2480 = vdwg.mxu0
    %v2481 = vadd.f32 %v2392, %v2477
    %v2482 = vadd.f32 %v2393, %v2479
    %v2483 = vld [vmem:[%s8] sm:$0xff]
    %2485 = vset.pattern.permute.xlu0 0
    %2486 = vperm.xlu0 %2485, %v2483
    %v2487 = vpop.permute.xlu0 %2486
    %v2489 = vadd.f32 %v2481, %v2487
    %v2490 = vadd.f32 %v2482, %v2487
    %v2491 = vmax.f32 %v2489, 0.0
    %v2492 = vmax.f32 %v2490, 0.0
    %2493 = vst [vmem:[#allocation2] sm:$0xff] %v2491
    %2494 = vst [vmem:[#allocation2 + $0x8] sm:$0xff] %v2492
    %2497 = vrot.lane.b32.xlu0 %v2491, 127
    %v2498 = vpop.permute.xlu0 %2497
    %2499 = vrot.lane.b32.xlu0 %v2492, 127
    %v2500 = vpop.permute.xlu0 %2499
    %v2501 = vsel %vm521, %v2498, %v2500
    %v2505 = vsel %vm521, %v2500, %v2498
    %v2506 = vmax.f32 %v2491, %v2501
    %v2507 = vmax.f32 %v2492, %v2505
    %2510 = vrot.lane.b32.xlu0 %v2506, 112
    %v2511 = vpop.permute.xlu0 %2510
    %2512 = vrot.lane.b32.xlu0 %v2507, 112
    %v2513 = vpop.permute.xlu0 %2512
    %v2514 = vsel %vm707, %v2511, %v2513
    %v2518 = vsel %vm707, %v2513, %v2511
    %v2519 = vmax.f32 %v2506, %v2514
    %v2520 = vmax.f32 %v2507, %v2518
    %2521 = vmatprep.subr.mxu0 0.0
    %2522 = vmatpush1.msra.mxu0 %v36
    %2523 = vmatprep.subr.mxu0 0.0
    %2524 = vmatpush1.msra.mxu0 %v37
    %2525 = vmatprep.subr.mxu0 0.0
    %2526 = vmatpush1.msra.mxu0 %v38
    %2527 = vmatprep.subr.mxu0 0.0
    %2528 = vmatpush1.msra.mxu0 %v39
    %2529 = vmatprep.subr.mxu0 0.0
    %2530 = vmatpush1.msra.mxu0 %v40
    %2531 = vmatprep.subr.mxu0 0.0
    %2532 = vmatpush1.msra.mxu0 %v41
    %2533 = vmatprep.subr.mxu0 0.0
    %2534 = vmatpush1.msra.mxu0 %v42
    %2535 = vmatprep.subr.mxu0 0.0
    %2536 = vmatpush1.msra.mxu0 %v43
    %2537 = vmatprep.subr.mxu0 0.0
    %2538 = vmatpush1.msra.mxu0 %v44
    %2539 = vmatprep.subr.mxu0 0.0
    %2540 = vmatpush1.msra.mxu0 %v45
    %2541 = vmatprep.subr.mxu0 0.0
    %2542 = vmatpush1.msra.mxu0 %v46
    %2543 = vmatprep.subr.mxu0 0.0
    %2544 = vmatpush1.msra.mxu0 %v47
    %2545 = vmatprep.subr.mxu0 0.0
    %2546 = vmatpush1.msra.mxu0 %v48
    %2547 = vmatprep.subr.mxu0 0.0
    %2548 = vmatpush1.msra.mxu0 %v49
    %2549 = vmatprep.subr.mxu0 0.0
    %2550 = vmatpush1.msra.mxu0 %v50
    %2551 = vmatprep.subr.mxu0 0.0
    %2552 = vmatpush1.msra.mxu0 %v51
    %2553 = vmatprep.subr.mxu0 0.0
    %2554 = vmatpush1.msra.mxu0 %v52
    %2555 = vmatprep.subr.mxu0 0.0
    %2556 = vmatpush1.msra.mxu0 %v53
    %2557 = vmatprep.subr.mxu0 0.0
    %2558 = vmatpush1.msra.mxu0 %v54
    %2559 = vmatprep.subr.mxu0 0.0
    %2560 = vmatpush1.msra.mxu0 %v55
    %2561 = vmatprep.subr.mxu0 0.0
    %2562 = vmatpush1.msra.mxu0 %v56
    %2563 = vmatprep.subr.mxu0 0.0
    %2564 = vmatpush1.msra.mxu0 %v57
    %2565 = vmatprep.subr.mxu0 0.0
    %2566 = vmatpush1.msra.mxu0 %v58
    %2567 = vmatprep.subr.mxu0 0.0
    %2568 = vmatpush1.msra.mxu0 %v59
    %2569 = vmatprep.subr.mxu0 0.0
    %2570 = vmatpush1.msra.mxu0 %v60
    %2571 = vmatprep.subr.mxu0 0.0
    %2572 = vmatpush1.msra.mxu0 %v61
    %2573 = vmatprep.subr.mxu0 0.0
    %2574 = vmatpush1.msra.mxu0 %v62
    %2575 = vmatprep.subr.mxu0 0.0
    %2576 = vmatpush1.msra.mxu0 %v63
    %2577 = vmatprep.subr.mxu0 0.0
    %2578 = vmatpush1.msra.mxu0 %v64
    %2579 = vmatprep.subr.mxu0 0.0
    %2580 = vmatpush1.msra.mxu0 %v65
    %2581 = vmatprep.subr.mxu0 0.0
    %2582 = vmatpush1.msra.mxu0 %v66
    %2583 = vmatprep.subr.mxu0 0.0
    %2584 = vmatpush1.msra.mxu0 %v67
    %2585 = vmatprep.mubr.f32.mxu0 %v2520
    %2586 = vmatmul.mubr.f32.gmra.mrb[0].mxu0 %v2519
    %v2587 = vpop.f32.mrb[0].mxu0
    %v2588 = vadd.f32 0.0, %v2587
    %v2589 = vpop.f32.mrb[0].mxu0
    %2590 = vdwg.mxu0
    %vm2591 = vcmask 523264
    %2592 = vst.msk [vmem:[#allocation4] sm:$0xff] %vm2591, %v2588
    %s2593 = scalar_lea.vmem %s2, 16
    %v2594 = vld [vmem:[%s2593] sm:$0xff]
    %v2595 = vld [vmem:[%s2593 + $0x8] sm:$0xff]
    %2597 = vrot.lane.b32.xlu0 %v2595, 17
    %v2598 = vpop.permute.xlu0 %2597
    %2601 = vrot.lane.b32.xlu0 %v2594, 17
    %v2602 = vpop.permute.xlu0 %2601
    %v2603 = vsel %vm77, %v2602, %v2598
    %v2606 = vsel %vm77, %v2598, %v2602
    %v2607 = vld [vmem:[%s0] sm:$0xff]
    %v2608 = vld [vmem:[%s0 + $0x8] sm:$0xff]
    %v2609 = vmul.f32 %v2606, %v2607
    %v2610 = vmul.f32 %v2603, %v2608
    %v2611 = vld [vmem:[%s3] sm:$0xff]
    %2612 = vrot.lane.b32.xlu0 %v2595, 16
    %v2613 = vpop.permute.xlu0 %2612
    %2615 = vrot.lane.b32.xlu0 %v2594, 16
    %v2616 = vpop.permute.xlu0 %2615
    %v2617 = vsel %vm92, %v2616, %v2613
    %v2620 = vsel %vm92, %v2613, %v2616
    %v2621 = vld [vmem:[%s97] sm:$0xff]
    %v2622 = vld [vmem:[%s97 + $0x8] sm:$0xff]
    %v2623 = vmul.f32 %v2620, %v2621
    %v2624 = vmul.f32 %v2617, %v2622
    %v2625 = vld [vmem:[%s102] sm:$0xff]
    %v2627 = vsel %vm104, %v2625, 0
    %2629 = vmatprep.subr.mxu0 %v2624
    %2630 = vmatpush1.msra.mxu0 %v2623
    %2631 = vmatprep.subr.mxu0 0.0
    %2632 = vmatpush1.msra.mxu0 0.0
    %2633 = vmatprep.subr.mxu0 0.0
    %2634 = vmatpush1.msra.mxu0 0.0
    %2635 = vmatprep.subr.mxu0 0.0
    %2636 = vmatpush1.msra.mxu0 0.0
    %2637 = vmatprep.subr.mxu0 0.0
    %2638 = vmatpush1.msra.mxu0 0.0
    %2639 = vmatprep.subr.mxu0 0.0
    %2640 = vmatpush1.msra.mxu0 0.0
    %2641 = vmatprep.subr.mxu0 0.0
    %2642 = vmatpush1.msra.mxu0 0.0
    %2643 = vmatprep.subr.mxu0 0.0
    %2644 = vmatpush1.msra.mxu0 0.0
    %2645 = vmatprep.subr.mxu0 0.0
    %2646 = vmatpush1.msra.mxu0 0.0
    %2647 = vmatprep.subr.mxu0 0.0
    %2648 = vmatpush1.msra.mxu0 0.0
    %2649 = vmatprep.subr.mxu0 0.0
    %2650 = vmatpush1.msra.mxu0 0.0
    %2651 = vmatprep.subr.mxu0 0.0
    %2652 = vmatpush1.msra.mxu0 0.0
    %2653 = vmatprep.subr.mxu0 0.0
    %2654 = vmatpush1.msra.mxu0 0.0
    %2655 = vmatprep.subr.mxu0 0.0
    %2656 = vmatpush1.msra.mxu0 0.0
    %2657 = vmatprep.subr.mxu0 0.0
    %2658 = vmatpush1.msra.mxu0 0.0
    %2659 = vmatprep.subr.mxu0 0.0
    %2660 = vmatpush1.msra.mxu0 0.0
    %2661 = vmatprep.subr.mxu0 0.0
    %2662 = vmatpush1.msra.mxu0 0.0
    %2663 = vmatprep.subr.mxu0 0.0
    %2664 = vmatpush1.msra.mxu0 0.0
    %2665 = vmatprep.subr.mxu0 0.0
    %2666 = vmatpush1.msra.mxu0 0.0
    %2667 = vmatprep.subr.mxu0 0.0
    %2668 = vmatpush1.msra.mxu0 0.0
    %2669 = vmatprep.subr.mxu0 0.0
    %2670 = vmatpush1.msra.mxu0 0.0
    %2671 = vmatprep.subr.mxu0 0.0
    %2672 = vmatpush1.msra.mxu0 0.0
    %2673 = vmatprep.subr.mxu0 0.0
    %2674 = vmatpush1.msra.mxu0 0.0
    %2675 = vmatprep.subr.mxu0 0.0
    %2676 = vmatpush1.msra.mxu0 0.0
    %2677 = vmatprep.subr.mxu0 0.0
    %2678 = vmatpush1.msra.mxu0 0.0
    %2679 = vmatprep.subr.mxu0 0.0
    %2680 = vmatpush1.msra.mxu0 0.0
    %2681 = vmatprep.subr.mxu0 0.0
    %2682 = vmatpush1.msra.mxu0 0.0
    %2683 = vmatprep.subr.mxu0 0.0
    %2684 = vmatpush1.msra.mxu0 0.0
    %2685 = vmatprep.subr.mxu0 0.0
    %2686 = vmatpush1.msra.mxu0 0.0
    %2687 = vmatprep.subr.mxu0 0.0
    %2688 = vmatpush1.msra.mxu0 0.0
    %2689 = vmatprep.subr.mxu0 0.0
    %2690 = vmatpush1.msra.mxu0 0.0
    %2691 = vmatprep.subr.mxu0 0.0
    %2692 = vmatpush1.msra.mxu0 0.0
    %2693 = vmatprep.mubr.f32.mxu0 0.0
    %2694 = vmatmul.mubr.f32.gmra.mrb[0].mxu0 %v2627
    %v2695 = vpop.f32.mrb[0].mxu0
    %v2696 = vadd.f32 0.0, %v2695
    %v2697 = vpop.f32.mrb[0].mxu0
    %v2698 = vadd.f32 0.0, %v2697
    %2699 = vdwg.mxu0
    %v2701 = vsel %vm104, %v2611, 0
    %2703 = vmatprep.subr.mxu0 %v2610
    %2704 = vmatpush1.msra.mxu0 %v2609
    %2705 = vmatprep.subr.mxu0 0.0
    %2706 = vmatpush1.msra.mxu0 0.0
    %2707 = vmatprep.subr.mxu0 0.0
    %2708 = vmatpush1.msra.mxu0 0.0
    %2709 = vmatprep.subr.mxu0 0.0
    %2710 = vmatpush1.msra.mxu0 0.0
    %2711 = vmatprep.subr.mxu0 0.0
    %2712 = vmatpush1.msra.mxu0 0.0
    %2713 = vmatprep.subr.mxu0 0.0
    %2714 = vmatpush1.msra.mxu0 0.0
    %2715 = vmatprep.subr.mxu0 0.0
    %2716 = vmatpush1.msra.mxu0 0.0
    %2717 = vmatprep.subr.mxu0 0.0
    %2718 = vmatpush1.msra.mxu0 0.0
    %2719 = vmatprep.subr.mxu0 0.0
    %2720 = vmatpush1.msra.mxu0 0.0
    %2721 = vmatprep.subr.mxu0 0.0
    %2722 = vmatpush1.msra.mxu0 0.0
    %2723 = vmatprep.subr.mxu0 0.0
    %2724 = vmatpush1.msra.mxu0 0.0
    %2725 = vmatprep.subr.mxu0 0.0
    %2726 = vmatpush1.msra.mxu0 0.0
    %2727 = vmatprep.subr.mxu0 0.0
    %2728 = vmatpush1.msra.mxu0 0.0
    %2729 = vmatprep.subr.mxu0 0.0
    %2730 = vmatpush1.msra.mxu0 0.0
    %2731 = vmatprep.subr.mxu0 0.0
    %2732 = vmatpush1.msra.mxu0 0.0
    %2733 = vmatprep.subr.mxu0 0.0
    %2734 = vmatpush1.msra.mxu0 0.0
    %2735 = vmatprep.subr.mxu0 0.0
    %2736 = vmatpush1.msra.mxu0 0.0
    %2737 = vmatprep.subr.mxu0 0.0
    %2738 = vmatpush1.msra.mxu0 0.0
    %2739 = vmatprep.subr.mxu0 0.0
    %2740 = vmatpush1.msra.mxu0 0.0
    %2741 = vmatprep.subr.mxu0 0.0
    %2742 = vmatpush1.msra.mxu0 0.0
    %2743 = vmatprep.subr.mxu0 0.0
    %2744 = vmatpush1.msra.mxu0 0.0
    %2745 = vmatprep.subr.mxu0 0.0
    %2746 = vmatpush1.msra.mxu0 0.0
    %2747 = vmatprep.subr.mxu0 0.0
    %2748 = vmatpush1.msra.mxu0 0.0
    %2749 = vmatprep.subr.mxu0 0.0
    %2750 = vmatpush1.msra.mxu0 0.0
    %2751 = vmatprep.subr.mxu0 0.0
    %2752 = vmatpush1.msra.mxu0 0.0
    %2753 = vmatprep.subr.mxu0 0.0
    %2754 = vmatpush1.msra.mxu0 0.0
    %2755 = vmatprep.subr.mxu0 0.0
    %2756 = vmatpush1.msra.mxu0 0.0
    %2757 = vmatprep.subr.mxu0 0.0
    %2758 = vmatpush1.msra.mxu0 0.0
    %2759 = vmatprep.subr.mxu0 0.0
    %2760 = vmatpush1.msra.mxu0 0.0
    %2761 = vmatprep.subr.mxu0 0.0
    %2762 = vmatpush1.msra.mxu0 0.0
    %2763 = vmatprep.subr.mxu0 0.0
    %2764 = vmatpush1.msra.mxu0 0.0
    %2765 = vmatprep.subr.mxu0 0.0
    %2766 = vmatpush1.msra.mxu0 0.0
    %2767 = vmatprep.mubr.f32.mxu0 0.0
    %2768 = vmatmul.mubr.f32.gmra.mrb[0].mxu0 %v2701
    %v2769 = vpop.f32.mrb[0].mxu0
    %v2770 = vadd.f32 %v2696, %v2769
    %v2771 = vpop.f32.mrb[0].mxu0
    %v2772 = vadd.f32 %v2698, %v2771
    %2773 = vdwg.mxu0
    %2774 = vrot.lane.b32.xlu0 %v2595, 15
    %v2775 = vpop.permute.xlu0 %2774
    %2777 = vrot.lane.b32.xlu0 %v2594, 15
    %v2778 = vpop.permute.xlu0 %2777
    %v2779 = vsel %vm258, %v2778, %v2775
    %v2782 = vsel %vm258, %v2775, %v2778
    %v2783 = vld [vmem:[%s263] sm:$0xff]
    %v2784 = vld [vmem:[%s263 + $0x8] sm:$0xff]
    %v2785 = vmul.f32 %v2782, %v2783
    %v2786 = vmul.f32 %v2779, %v2784
    %v2787 = vld [vmem:[%s268] sm:$0xff]
    %v2789 = vsel %vm104, %v2787, 0
    %2791 = vmatprep.subr.mxu0 %v2786
    %2792 = vmatpush1.msra.mxu0 %v2785
    %2793 = vmatprep.subr.mxu0 0.0
    %2794 = vmatpush1.msra.mxu0 0.0
    %2795 = vmatprep.subr.mxu0 0.0
    %2796 = vmatpush1.msra.mxu0 0.0
    %2797 = vmatprep.subr.mxu0 0.0
    %2798 = vmatpush1.msra.mxu0 0.0
    %2799 = vmatprep.subr.mxu0 0.0
    %2800 = vmatpush1.msra.mxu0 0.0
    %2801 = vmatprep.subr.mxu0 0.0
    %2802 = vmatpush1.msra.mxu0 0.0
    %2803 = vmatprep.subr.mxu0 0.0
    %2804 = vmatpush1.msra.mxu0 0.0
    %2805 = vmatprep.subr.mxu0 0.0
    %2806 = vmatpush1.msra.mxu0 0.0
    %2807 = vmatprep.subr.mxu0 0.0
    %2808 = vmatpush1.msra.mxu0 0.0
    %2809 = vmatprep.subr.mxu0 0.0
    %2810 = vmatpush1.msra.mxu0 0.0
    %2811 = vmatprep.subr.mxu0 0.0
    %2812 = vmatpush1.msra.mxu0 0.0
    %2813 = vmatprep.subr.mxu0 0.0
    %2814 = vmatpush1.msra.mxu0 0.0
    %2815 = vmatprep.subr.mxu0 0.0
    %2816 = vmatpush1.msra.mxu0 0.0
    %2817 = vmatprep.subr.mxu0 0.0
    %2818 = vmatpush1.msra.mxu0 0.0
    %2819 = vmatprep.subr.mxu0 0.0
    %2820 = vmatpush1.msra.mxu0 0.0
    %2821 = vmatprep.subr.mxu0 0.0
    %2822 = vmatpush1.msra.mxu0 0.0
    %2823 = vmatprep.subr.mxu0 0.0
    %2824 = vmatpush1.msra.mxu0 0.0
    %2825 = vmatprep.subr.mxu0 0.0
    %2826 = vmatpush1.msra.mxu0 0.0
    %2827 = vmatprep.subr.mxu0 0.0
    %2828 = vmatpush1.msra.mxu0 0.0
    %2829 = vmatprep.subr.mxu0 0.0
    %2830 = vmatpush1.msra.mxu0 0.0
    %2831 = vmatprep.subr.mxu0 0.0
    %2832 = vmatpush1.msra.mxu0 0.0
    %2833 = vmatprep.subr.mxu0 0.0
    %2834 = vmatpush1.msra.mxu0 0.0
    %2835 = vmatprep.subr.mxu0 0.0
    %2836 = vmatpush1.msra.mxu0 0.0
    %2837 = vmatprep.subr.mxu0 0.0
    %2838 = vmatpush1.msra.mxu0 0.0
    %2839 = vmatprep.subr.mxu0 0.0
    %2840 = vmatpush1.msra.mxu0 0.0
    %2841 = vmatprep.subr.mxu0 0.0
    %2842 = vmatpush1.msra.mxu0 0.0
    %2843 = vmatprep.subr.mxu0 0.0
    %2844 = vmatpush1.msra.mxu0 0.0
    %2845 = vmatprep.subr.mxu0 0.0
    %2846 = vmatpush1.msra.mxu0 0.0
    %2847 = vmatprep.subr.mxu0 0.0
    %2848 = vmatpush1.msra.mxu0 0.0
    %2849 = vmatprep.subr.mxu0 0.0
    %2850 = vmatpush1.msra.mxu0 0.0
    %2851 = vmatprep.subr.mxu0 0.0
    %2852 = vmatpush1.msra.mxu0 0.0
    %2853 = vmatprep.subr.mxu0 0.0
    %2854 = vmatpush1.msra.mxu0 0.0
    %2855 = vmatprep.mubr.f32.mxu0 0.0
    %2856 = vmatmul.mubr.f32.gmra.mrb[0].mxu0 %v2789
    %v2857 = vpop.f32.mrb[0].mxu0
    %v2858 = vadd.f32 0.0, %v2857
    %v2859 = vpop.f32.mrb[0].mxu0
    %v2860 = vadd.f32 0.0, %v2859
    %2861 = vdwg.mxu0
    %v2862 = vadd.f32 %v2770, %v2858
    %v2863 = vadd.f32 %v2772, %v2860
    %2864 = vrot.lane.b32.xlu0 %v2595, 1
    %v2865 = vpop.permute.xlu0 %2864
    %2867 = vrot.lane.b32.xlu0 %v2594, 1
    %v2868 = vpop.permute.xlu0 %2867
    %v2869 = vsel %vm351, %v2868, %v2865
    %v2872 = vsel %vm351, %v2865, %v2868
    %v2873 = vld [vmem:[%s356] sm:$0xff]
    %v2874 = vld [vmem:[%s356 + $0x8] sm:$0xff]
    %v2875 = vmul.f32 %v2872, %v2873
    %v2876 = vmul.f32 %v2869, %v2874
    %v2877 = vld [vmem:[%s361] sm:$0xff]
    %v2879 = vsel %vm104, %v2877, 0
    %2881 = vmatprep.subr.mxu0 %v2876
    %2882 = vmatpush1.msra.mxu0 %v2875
    %2883 = vmatprep.subr.mxu0 0.0
    %2884 = vmatpush1.msra.mxu0 0.0
    %2885 = vmatprep.subr.mxu0 0.0
    %2886 = vmatpush1.msra.mxu0 0.0
    %2887 = vmatprep.subr.mxu0 0.0
    %2888 = vmatpush1.msra.mxu0 0.0
    %2889 = vmatprep.subr.mxu0 0.0
    %2890 = vmatpush1.msra.mxu0 0.0
    %2891 = vmatprep.subr.mxu0 0.0
    %2892 = vmatpush1.msra.mxu0 0.0
    %2893 = vmatprep.subr.mxu0 0.0
    %2894 = vmatpush1.msra.mxu0 0.0
    %2895 = vmatprep.subr.mxu0 0.0
    %2896 = vmatpush1.msra.mxu0 0.0
    %2897 = vmatprep.subr.mxu0 0.0
    %2898 = vmatpush1.msra.mxu0 0.0
    %2899 = vmatprep.subr.mxu0 0.0
    %2900 = vmatpush1.msra.mxu0 0.0
    %2901 = vmatprep.subr.mxu0 0.0
    %2902 = vmatpush1.msra.mxu0 0.0
    %2903 = vmatprep.subr.mxu0 0.0
    %2904 = vmatpush1.msra.mxu0 0.0
    %2905 = vmatprep.subr.mxu0 0.0
    %2906 = vmatpush1.msra.mxu0 0.0
    %2907 = vmatprep.subr.mxu0 0.0
    %2908 = vmatpush1.msra.mxu0 0.0
    %2909 = vmatprep.subr.mxu0 0.0
    %2910 = vmatpush1.msra.mxu0 0.0
    %2911 = vmatprep.subr.mxu0 0.0
    %2912 = vmatpush1.msra.mxu0 0.0
    %2913 = vmatprep.subr.mxu0 0.0
    %2914 = vmatpush1.msra.mxu0 0.0
    %2915 = vmatprep.subr.mxu0 0.0
    %2916 = vmatpush1.msra.mxu0 0.0
    %2917 = vmatprep.subr.mxu0 0.0
    %2918 = vmatpush1.msra.mxu0 0.0
    %2919 = vmatprep.subr.mxu0 0.0
    %2920 = vmatpush1.msra.mxu0 0.0
    %2921 = vmatprep.subr.mxu0 0.0
    %2922 = vmatpush1.msra.mxu0 0.0
    %2923 = vmatprep.subr.mxu0 0.0
    %2924 = vmatpush1.msra.mxu0 0.0
    %2925 = vmatprep.subr.mxu0 0.0
    %2926 = vmatpush1.msra.mxu0 0.0
    %2927 = vmatprep.subr.mxu0 0.0
    %2928 = vmatpush1.msra.mxu0 0.0
    %2929 = vmatprep.subr.mxu0 0.0
    %2930 = vmatpush1.msra.mxu0 0.0
    %2931 = vmatprep.subr.mxu0 0.0
    %2932 = vmatpush1.msra.mxu0 0.0
    %2933 = vmatprep.subr.mxu0 0.0
    %2934 = vmatpush1.msra.mxu0 0.0
    %2935 = vmatprep.subr.mxu0 0.0
    %2936 = vmatpush1.msra.mxu0 0.0
    %2937 = vmatprep.subr.mxu0 0.0
    %2938 = vmatpush1.msra.mxu0 0.0
    %2939 = vmatprep.subr.mxu0 0.0
    %2940 = vmatpush1.msra.mxu0 0.0
    %2941 = vmatprep.subr.mxu0 0.0
    %2942 = vmatpush1.msra.mxu0 0.0
    %2943 = vmatprep.subr.mxu0 0.0
    %2944 = vmatpush1.msra.mxu0 0.0
    %2945 = vmatprep.mubr.f32.mxu0 0.0
    %2946 = vmatmul.mubr.f32.gmra.mrb[0].mxu0 %v2879
    %v2947 = vpop.f32.mrb[0].mxu0
    %v2948 = vadd.f32 0.0, %v2947
    %v2949 = vpop.f32.mrb[0].mxu0
    %v2950 = vadd.f32 0.0, %v2949
    %2951 = vdwg.mxu0
    %v2952 = vadd.f32 %v2862, %v2948
    %v2953 = vadd.f32 %v2863, %v2950
    %v2954 = vld [vmem:[%s439] sm:$0xff]
    %v2956 = vsel %vm104, %v2954, 0
    %2958 = vmatprep.subr.mxu0 %v2595
    %2959 = vmatpush1.msra.mxu0 %v2594
    %2960 = vmatprep.subr.mxu0 0.0
    %2961 = vmatpush1.msra.mxu0 0.0
    %2962 = vmatprep.subr.mxu0 0.0
    %2963 = vmatpush1.msra.mxu0 0.0
    %2964 = vmatprep.subr.mxu0 0.0
    %2965 = vmatpush1.msra.mxu0 0.0
    %2966 = vmatprep.subr.mxu0 0.0
    %2967 = vmatpush1.msra.mxu0 0.0
    %2968 = vmatprep.subr.mxu0 0.0
    %2969 = vmatpush1.msra.mxu0 0.0
    %2970 = vmatprep.subr.mxu0 0.0
    %2971 = vmatpush1.msra.mxu0 0.0
    %2972 = vmatprep.subr.mxu0 0.0
    %2973 = vmatpush1.msra.mxu0 0.0
    %2974 = vmatprep.subr.mxu0 0.0
    %2975 = vmatpush1.msra.mxu0 0.0
    %2976 = vmatprep.subr.mxu0 0.0
    %2977 = vmatpush1.msra.mxu0 0.0
    %2978 = vmatprep.subr.mxu0 0.0
    %2979 = vmatpush1.msra.mxu0 0.0
    %2980 = vmatprep.subr.mxu0 0.0
    %2981 = vmatpush1.msra.mxu0 0.0
    %2982 = vmatprep.subr.mxu0 0.0
    %2983 = vmatpush1.msra.mxu0 0.0
    %2984 = vmatprep.subr.mxu0 0.0
    %2985 = vmatpush1.msra.mxu0 0.0
    %2986 = vmatprep.subr.mxu0 0.0
    %2987 = vmatpush1.msra.mxu0 0.0
    %2988 = vmatprep.subr.mxu0 0.0
    %2989 = vmatpush1.msra.mxu0 0.0
    %2990 = vmatprep.subr.mxu0 0.0
    %2991 = vmatpush1.msra.mxu0 0.0
    %2992 = vmatprep.subr.mxu0 0.0
    %2993 = vmatpush1.msra.mxu0 0.0
    %2994 = vmatprep.subr.mxu0 0.0
    %2995 = vmatpush1.msra.mxu0 0.0
    %2996 = vmatprep.subr.mxu0 0.0
    %2997 = vmatpush1.msra.mxu0 0.0
    %2998 = vmatprep.subr.mxu0 0.0
    %2999 = vmatpush1.msra.mxu0 0.0
    %3000 = vmatprep.subr.mxu0 0.0
    %3001 = vmatpush1.msra.mxu0 0.0
    %3002 = vmatprep.subr.mxu0 0.0
    %3003 = vmatpush1.msra.mxu0 0.0
    %3004 = vmatprep.subr.mxu0 0.0
    %3005 = vmatpush1.msra.mxu0 0.0
    %3006 = vmatprep.subr.mxu0 0.0
    %3007 = vmatpush1.msra.mxu0 0.0
    %3008 = vmatprep.subr.mxu0 0.0
    %3009 = vmatpush1.msra.mxu0 0.0
    %3010 = vmatprep.subr.mxu0 0.0
    %3011 = vmatpush1.msra.mxu0 0.0
    %3012 = vmatprep.subr.mxu0 0.0
    %3013 = vmatpush1.msra.mxu0 0.0
    %3014 = vmatprep.subr.mxu0 0.0
    %3015 = vmatpush1.msra.mxu0 0.0
    %3016 = vmatprep.subr.mxu0 0.0
    %3017 = vmatpush1.msra.mxu0 0.0
    %3018 = vmatprep.subr.mxu0 0.0
    %3019 = vmatpush1.msra.mxu0 0.0
    %3020 = vmatprep.subr.mxu0 0.0
    %3021 = vmatpush1.msra.mxu0 0.0
    %3022 = vmatprep.mubr.f32.mxu0 0.0
    %3023 = vmatmul.mubr.f32.gmra.mrb[0].mxu0 %v2956
    %v3024 = vpop.f32.mrb[0].mxu0
    %v3025 = vadd.f32 0.0, %v3024
    %v3026 = vpop.f32.mrb[0].mxu0
    %v3027 = vadd.f32 0.0, %v3026
    %3028 = vdwg.mxu0
    %v3029 = vadd.f32 %v2952, %v3025
    %v3030 = vadd.f32 %v2953, %v3027
    %3031 = vrot.lane.b32.xlu0 %v2594, 127
    %v3032 = vpop.permute.xlu0 %3031
    %3033 = vrot.lane.b32.xlu0 %v2595, 127
    %v3034 = vpop.permute.xlu0 %3033
    %v3035 = vsel %vm521, %v3032, %v3034
    %v3039 = vsel %vm521, %v3034, %v3032
    %v3040 = vld [vmem:[%s527] sm:$0xff]
    %v3041 = vld [vmem:[%s527 + $0x8] sm:$0xff]
    %v3042 = vmul.f32 %v3035, %v3040
    %v3043 = vmul.f32 %v3039, %v3041
    %v3044 = vld [vmem:[%s532] sm:$0xff]
    %v3046 = vsel %vm104, %v3044, 0
    %3048 = vmatprep.subr.mxu0 %v3043
    %3049 = vmatpush1.msra.mxu0 %v3042
    %3050 = vmatprep.subr.mxu0 0.0
    %3051 = vmatpush1.msra.mxu0 0.0
    %3052 = vmatprep.subr.mxu0 0.0
    %3053 = vmatpush1.msra.mxu0 0.0
    %3054 = vmatprep.subr.mxu0 0.0
    %3055 = vmatpush1.msra.mxu0 0.0
    %3056 = vmatprep.subr.mxu0 0.0
    %3057 = vmatpush1.msra.mxu0 0.0
    %3058 = vmatprep.subr.mxu0 0.0
    %3059 = vmatpush1.msra.mxu0 0.0
    %3060 = vmatprep.subr.mxu0 0.0
    %3061 = vmatpush1.msra.mxu0 0.0
    %3062 = vmatprep.subr.mxu0 0.0
    %3063 = vmatpush1.msra.mxu0 0.0
    %3064 = vmatprep.subr.mxu0 0.0
    %3065 = vmatpush1.msra.mxu0 0.0
    %3066 = vmatprep.subr.mxu0 0.0
    %3067 = vmatpush1.msra.mxu0 0.0
    %3068 = vmatprep.subr.mxu0 0.0
    %3069 = vmatpush1.msra.mxu0 0.0
    %3070 = vmatprep.subr.mxu0 0.0
    %3071 = vmatpush1.msra.mxu0 0.0
    %3072 = vmatprep.subr.mxu0 0.0
    %3073 = vmatpush1.msra.mxu0 0.0
    %3074 = vmatprep.subr.mxu0 0.0
    %3075 = vmatpush1.msra.mxu0 0.0
    %3076 = vmatprep.subr.mxu0 0.0
    %3077 = vmatpush1.msra.mxu0 0.0
    %3078 = vmatprep.subr.mxu0 0.0
    %3079 = vmatpush1.msra.mxu0 0.0
    %3080 = vmatprep.subr.mxu0 0.0
    %3081 = vmatpush1.msra.mxu0 0.0
    %3082 = vmatprep.subr.mxu0 0.0
    %3083 = vmatpush1.msra.mxu0 0.0
    %3084 = vmatprep.subr.mxu0 0.0
    %3085 = vmatpush1.msra.mxu0 0.0
    %3086 = vmatprep.subr.mxu0 0.0
    %3087 = vmatpush1.msra.mxu0 0.0
    %3088 = vmatprep.subr.mxu0 0.0
    %3089 = vmatpush1.msra.mxu0 0.0
    %3090 = vmatprep.subr.mxu0 0.0
    %3091 = vmatpush1.msra.mxu0 0.0
    %3092 = vmatprep.subr.mxu0 0.0
    %3093 = vmatpush1.msra.mxu0 0.0
    %3094 = vmatprep.subr.mxu0 0.0
    %3095 = vmatpush1.msra.mxu0 0.0
    %3096 = vmatprep.subr.mxu0 0.0
    %3097 = vmatpush1.msra.mxu0 0.0
    %3098 = vmatprep.subr.mxu0 0.0
    %3099 = vmatpush1.msra.mxu0 0.0
    %3100 = vmatprep.subr.mxu0 0.0
    %3101 = vmatpush1.msra.mxu0 0.0
    %3102 = vmatprep.subr.mxu0 0.0
    %3103 = vmatpush1.msra.mxu0 0.0
    %3104 = vmatprep.subr.mxu0 0.0
    %3105 = vmatpush1.msra.mxu0 0.0
    %3106 = vmatprep.subr.mxu0 0.0
    %3107 = vmatpush1.msra.mxu0 0.0
    %3108 = vmatprep.subr.mxu0 0.0
    %3109 = vmatpush1.msra.mxu0 0.0
    %3110 = vmatprep.subr.mxu0 0.0
    %3111 = vmatpush1.msra.mxu0 0.0
    %3112 = vmatprep.mubr.f32.mxu0 0.0
    %3113 = vmatmul.mubr.f32.gmra.mrb[0].mxu0 %v3046
    %v3114 = vpop.f32.mrb[0].mxu0
    %v3115 = vadd.f32 0.0, %v3114
    %v3116 = vpop.f32.mrb[0].mxu0
    %v3117 = vadd.f32 0.0, %v3116
    %3118 = vdwg.mxu0
    %v3119 = vadd.f32 %v3029, %v3115
    %v3120 = vadd.f32 %v3030, %v3117
    %3121 = vrot.lane.b32.xlu0 %v2594, 113
    %v3122 = vpop.permute.xlu0 %3121
    %3123 = vrot.lane.b32.xlu0 %v2595, 113
    %v3124 = vpop.permute.xlu0 %3123
    %v3125 = vsel %vm614, %v3122, %v3124
    %v3129 = vsel %vm614, %v3124, %v3122
    %v3130 = vld [vmem:[%s620] sm:$0xff]
    %v3131 = vld [vmem:[%s620 + $0x8] sm:$0xff]
    %v3132 = vmul.f32 %v3125, %v3130
    %v3133 = vmul.f32 %v3129, %v3131
    %v3134 = vld [vmem:[%s625] sm:$0xff]
    %v3136 = vsel %vm104, %v3134, 0
    %3138 = vmatprep.subr.mxu0 %v3133
    %3139 = vmatpush1.msra.mxu0 %v3132
    %3140 = vmatprep.subr.mxu0 0.0
    %3141 = vmatpush1.msra.mxu0 0.0
    %3142 = vmatprep.subr.mxu0 0.0
    %3143 = vmatpush1.msra.mxu0 0.0
    %3144 = vmatprep.subr.mxu0 0.0
    %3145 = vmatpush1.msra.mxu0 0.0
    %3146 = vmatprep.subr.mxu0 0.0
    %3147 = vmatpush1.msra.mxu0 0.0
    %3148 = vmatprep.subr.mxu0 0.0
    %3149 = vmatpush1.msra.mxu0 0.0
    %3150 = vmatprep.subr.mxu0 0.0
    %3151 = vmatpush1.msra.mxu0 0.0
    %3152 = vmatprep.subr.mxu0 0.0
    %3153 = vmatpush1.msra.mxu0 0.0
    %3154 = vmatprep.subr.mxu0 0.0
    %3155 = vmatpush1.msra.mxu0 0.0
    %3156 = vmatprep.subr.mxu0 0.0
    %3157 = vmatpush1.msra.mxu0 0.0
    %3158 = vmatprep.subr.mxu0 0.0
    %3159 = vmatpush1.msra.mxu0 0.0
    %3160 = vmatprep.subr.mxu0 0.0
    %3161 = vmatpush1.msra.mxu0 0.0
    %3162 = vmatprep.subr.mxu0 0.0
    %3163 = vmatpush1.msra.mxu0 0.0
    %3164 = vmatprep.subr.mxu0 0.0
    %3165 = vmatpush1.msra.mxu0 0.0
    %3166 = vmatprep.subr.mxu0 0.0
    %3167 = vmatpush1.msra.mxu0 0.0
    %3168 = vmatprep.subr.mxu0 0.0
    %3169 = vmatpush1.msra.mxu0 0.0
    %3170 = vmatprep.subr.mxu0 0.0
    %3171 = vmatpush1.msra.mxu0 0.0
    %3172 = vmatprep.subr.mxu0 0.0
    %3173 = vmatpush1.msra.mxu0 0.0
    %3174 = vmatprep.subr.mxu0 0.0
    %3175 = vmatpush1.msra.mxu0 0.0
    %3176 = vmatprep.subr.mxu0 0.0
    %3177 = vmatpush1.msra.mxu0 0.0
    %3178 = vmatprep.subr.mxu0 0.0
    %3179 = vmatpush1.msra.mxu0 0.0
    %3180 = vmatprep.subr.mxu0 0.0
    %3181 = vmatpush1.msra.mxu0 0.0
    %3182 = vmatprep.subr.mxu0 0.0
    %3183 = vmatpush1.msra.mxu0 0.0
    %3184 = vmatprep.subr.mxu0 0.0
    %3185 = vmatpush1.msra.mxu0 0.0
    %3186 = vmatprep.subr.mxu0 0.0
    %3187 = vmatpush1.msra.mxu0 0.0
    %3188 = vmatprep.subr.mxu0 0.0
    %3189 = vmatpush1.msra.mxu0 0.0
    %3190 = vmatprep.subr.mxu0 0.0
    %3191 = vmatpush1.msra.mxu0 0.0
    %3192 = vmatprep.subr.mxu0 0.0
    %3193 = vmatpush1.msra.mxu0 0.0
    %3194 = vmatprep.subr.mxu0 0.0
    %3195 = vmatpush1.msra.mxu0 0.0
    %3196 = vmatprep.subr.mxu0 0.0
    %3197 = vmatpush1.msra.mxu0 0.0
    %3198 = vmatprep.subr.mxu0 0.0
    %3199 = vmatpush1.msra.mxu0 0.0
    %3200 = vmatprep.subr.mxu0 0.0
    %3201 = vmatpush1.msra.mxu0 0.0
    %3202 = vmatprep.mubr.f32.mxu0 0.0
    %3203 = vmatmul.mubr.f32.gmra.mrb[0].mxu0 %v3136
    %v3204 = vpop.f32.mrb[0].mxu0
    %v3205 = vadd.f32 0.0, %v3204
    %v3206 = vpop.f32.mrb[0].mxu0
    %v3207 = vadd.f32 0.0, %v3206
    %3208 = vdwg.mxu0
    %v3209 = vadd.f32 %v3119, %v3205
    %v3210 = vadd.f32 %v3120, %v3207
    %3211 = vrot.lane.b32.xlu0 %v2594, 112
    %v3212 = vpop.permute.xlu0 %3211
    %3213 = vrot.lane.b32.xlu0 %v2595, 112
    %v3214 = vpop.permute.xlu0 %3213
    %v3215 = vsel %vm707, %v3212, %v3214
    %v3219 = vsel %vm707, %v3214, %v3212
    %v3220 = vld [vmem:[%s713] sm:$0xff]
    %v3221 = vld [vmem:[%s713 + $0x8] sm:$0xff]
    %v3222 = vmul.f32 %v3215, %v3220
    %v3223 = vmul.f32 %v3219, %v3221
    %v3224 = vld [vmem:[%s718] sm:$0xff]
    %v3226 = vsel %vm104, %v3224, 0
    %3228 = vmatprep.subr.mxu0 %v3223
    %3229 = vmatpush1.msra.mxu0 %v3222
    %3230 = vmatprep.subr.mxu0 0.0
    %3231 = vmatpush1.msra.mxu0 0.0
    %3232 = vmatprep.subr.mxu0 0.0
    %3233 = vmatpush1.msra.mxu0 0.0
    %3234 = vmatprep.subr.mxu0 0.0
    %3235 = vmatpush1.msra.mxu0 0.0
    %3236 = vmatprep.subr.mxu0 0.0
    %3237 = vmatpush1.msra.mxu0 0.0
    %3238 = vmatprep.subr.mxu0 0.0
    %3239 = vmatpush1.msra.mxu0 0.0
    %3240 = vmatprep.subr.mxu0 0.0
    %3241 = vmatpush1.msra.mxu0 0.0
    %3242 = vmatprep.subr.mxu0 0.0
    %3243 = vmatpush1.msra.mxu0 0.0
    %3244 = vmatprep.subr.mxu0 0.0
    %3245 = vmatpush1.msra.mxu0 0.0
    %3246 = vmatprep.subr.mxu0 0.0
    %3247 = vmatpush1.msra.mxu0 0.0
    %3248 = vmatprep.subr.mxu0 0.0
    %3249 = vmatpush1.msra.mxu0 0.0
    %3250 = vmatprep.subr.mxu0 0.0
    %3251 = vmatpush1.msra.mxu0 0.0
    %3252 = vmatprep.subr.mxu0 0.0
    %3253 = vmatpush1.msra.mxu0 0.0
    %3254 = vmatprep.subr.mxu0 0.0
    %3255 = vmatpush1.msra.mxu0 0.0
    %3256 = vmatprep.subr.mxu0 0.0
    %3257 = vmatpush1.msra.mxu0 0.0
    %3258 = vmatprep.subr.mxu0 0.0
    %3259 = vmatpush1.msra.mxu0 0.0
    %3260 = vmatprep.subr.mxu0 0.0
    %3261 = vmatpush1.msra.mxu0 0.0
    %3262 = vmatprep.subr.mxu0 0.0
    %3263 = vmatpush1.msra.mxu0 0.0
    %3264 = vmatprep.subr.mxu0 0.0
    %3265 = vmatpush1.msra.mxu0 0.0
    %3266 = vmatprep.subr.mxu0 0.0
    %3267 = vmatpush1.msra.mxu0 0.0
    %3268 = vmatprep.subr.mxu0 0.0
    %3269 = vmatpush1.msra.mxu0 0.0
    %3270 = vmatprep.subr.mxu0 0.0
    %3271 = vmatpush1.msra.mxu0 0.0
    %3272 = vmatprep.subr.mxu0 0.0
    %3273 = vmatpush1.msra.mxu0 0.0
    %3274 = vmatprep.subr.mxu0 0.0
    %3275 = vmatpush1.msra.mxu0 0.0
    %3276 = vmatprep.subr.mxu0 0.0
    %3277 = vmatpush1.msra.mxu0 0.0
    %3278 = vmatprep.subr.mxu0 0.0
    %3279 = vmatpush1.msra.mxu0 0.0
    %3280 = vmatprep.subr.mxu0 0.0
    %3281 = vmatpush1.msra.mxu0 0.0
    %3282 = vmatprep.subr.mxu0 0.0
    %3283 = vmatpush1.msra.mxu0 0.0
    %3284 = vmatprep.subr.mxu0 0.0
    %3285 = vmatpush1.msra.mxu0 0.0
    %3286 = vmatprep.subr.mxu0 0.0
    %3287 = vmatpush1.msra.mxu0 0.0
    %3288 = vmatprep.subr.mxu0 0.0
    %3289 = vmatpush1.msra.mxu0 0.0
    %3290 = vmatprep.subr.mxu0 0.0
    %3291 = vmatpush1.msra.mxu0 0.0
    %3292 = vmatprep.mubr.f32.mxu0 0.0
    %3293 = vmatmul.mubr.f32.gmra.mrb[0].mxu0 %v3226
    %v3294 = vpop.f32.mrb[0].mxu0
    %v3295 = vadd.f32 0.0, %v3294
    %v3296 = vpop.f32.mrb[0].mxu0
    %v3297 = vadd.f32 0.0, %v3296
    %3298 = vdwg.mxu0
    %v3299 = vadd.f32 %v3209, %v3295
    %v3300 = vadd.f32 %v3210, %v3297
    %3301 = vrot.lane.b32.xlu0 %v2594, 111
    %v3302 = vpop.permute.xlu0 %3301
    %3303 = vrot.lane.b32.xlu0 %v2595, 111
    %v3304 = vpop.permute.xlu0 %3303
    %v3305 = vsel %vm800, %v3302, %v3304
    %v3309 = vsel %vm800, %v3304, %v3302
    %v3310 = vld [vmem:[%s806] sm:$0xff]
    %v3311 = vld [vmem:[%s806 + $0x8] sm:$0xff]
    %v3312 = vmul.f32 %v3305, %v3310
    %v3313 = vmul.f32 %v3309, %v3311
    %v3314 = vld [vmem:[%s811] sm:$0xff]
    %v3316 = vsel %vm104, %v3314, 0
    %3318 = vmatprep.subr.mxu0 %v3313
    %3319 = vmatpush1.msra.mxu0 %v3312
    %3320 = vmatprep.subr.mxu0 0.0
    %3321 = vmatpush1.msra.mxu0 0.0
    %3322 = vmatprep.subr.mxu0 0.0
    %3323 = vmatpush1.msra.mxu0 0.0
    %3324 = vmatprep.subr.mxu0 0.0
    %3325 = vmatpush1.msra.mxu0 0.0
    %3326 = vmatprep.subr.mxu0 0.0
    %3327 = vmatpush1.msra.mxu0 0.0
    %3328 = vmatprep.subr.mxu0 0.0
    %3329 = vmatpush1.msra.mxu0 0.0
    %3330 = vmatprep.subr.mxu0 0.0
    %3331 = vmatpush1.msra.mxu0 0.0
    %3332 = vmatprep.subr.mxu0 0.0
    %3333 = vmatpush1.msra.mxu0 0.0
    %3334 = vmatprep.subr.mxu0 0.0
    %3335 = vmatpush1.msra.mxu0 0.0
    %3336 = vmatprep.subr.mxu0 0.0
    %3337 = vmatpush1.msra.mxu0 0.0
    %3338 = vmatprep.subr.mxu0 0.0
    %3339 = vmatpush1.msra.mxu0 0.0
    %3340 = vmatprep.subr.mxu0 0.0
    %3341 = vmatpush1.msra.mxu0 0.0
    %3342 = vmatprep.subr.mxu0 0.0
    %3343 = vmatpush1.msra.mxu0 0.0
    %3344 = vmatprep.subr.mxu0 0.0
    %3345 = vmatpush1.msra.mxu0 0.0
    %3346 = vmatprep.subr.mxu0 0.0
    %3347 = vmatpush1.msra.mxu0 0.0
    %3348 = vmatprep.subr.mxu0 0.0
    %3349 = vmatpush1.msra.mxu0 0.0
    %3350 = vmatprep.subr.mxu0 0.0
    %3351 = vmatpush1.msra.mxu0 0.0
    %3352 = vmatprep.subr.mxu0 0.0
    %3353 = vmatpush1.msra.mxu0 0.0
    %3354 = vmatprep.subr.mxu0 0.0
    %3355 = vmatpush1.msra.mxu0 0.0
    %3356 = vmatprep.subr.mxu0 0.0
    %3357 = vmatpush1.msra.mxu0 0.0
    %3358 = vmatprep.subr.mxu0 0.0
    %3359 = vmatpush1.msra.mxu0 0.0
    %3360 = vmatprep.subr.mxu0 0.0
    %3361 = vmatpush1.msra.mxu0 0.0
    %3362 = vmatprep.subr.mxu0 0.0
    %3363 = vmatpush1.msra.mxu0 0.0
    %3364 = vmatprep.subr.mxu0 0.0
    %3365 = vmatpush1.msra.mxu0 0.0
    %3366 = vmatprep.subr.mxu0 0.0
    %3367 = vmatpush1.msra.mxu0 0.0
    %3368 = vmatprep.subr.mxu0 0.0
    %3369 = vmatpush1.msra.mxu0 0.0
    %3370 = vmatprep.subr.mxu0 0.0
    %3371 = vmatpush1.msra.mxu0 0.0
    %3372 = vmatprep.subr.mxu0 0.0
    %3373 = vmatpush1.msra.mxu0 0.0
    %3374 = vmatprep.subr.mxu0 0.0
    %3375 = vmatpush1.msra.mxu0 0.0
    %3376 = vmatprep.subr.mxu0 0.0
    %3377 = vmatpush1.msra.mxu0 0.0
    %3378 = vmatprep.subr.mxu0 0.0
    %3379 = vmatpush1.msra.mxu0 0.0
    %3380 = vmatprep.subr.mxu0 0.0
    %3381 = vmatpush1.msra.mxu0 0.0
    %3382 = vmatprep.mubr.f32.mxu0 0.0
    %3383 = vmatmul.mubr.f32.gmra.mrb[0].mxu0 %v3316
    %v3384 = vpop.f32.mrb[0].mxu0
    %v3385 = vadd.f32 0.0, %v3384
    %v3386 = vpop.f32.mrb[0].mxu0
    %v3387 = vadd.f32 0.0, %v3386
    %3388 = vdwg.mxu0
    %v3389 = vadd.f32 %v3299, %v3385
    %v3390 = vadd.f32 %v3300, %v3387
    %v3391 = vld [vmem:[%s4] sm:$0xff]
    %3393 = vset.pattern.permute.xlu0 0
    %3394 = vperm.xlu0 %3393, %v3391
    %v3395 = vpop.permute.xlu0 %3394
    %v3397 = vadd.f32 %v3389, %v3395
    %v3398 = vadd.f32 %v3390, %v3395
    %v3399 = vmax.f32 %v3397, 0.0
    %v3400 = vmax.f32 %v3398, 0.0
    %3402 = vrot.lane.b32.xlu0 %v3400, 17
    %v3403 = vpop.permute.xlu0 %3402
    %3406 = vrot.lane.b32.xlu0 %v3399, 17
    %v3407 = vpop.permute.xlu0 %3406
    %v3408 = vsel %vm77, %v3407, %v3403
    %v3411 = vsel %vm77, %v3403, %v3407
    %v3412 = vmul.f32 %v3411, %v2607
    %v3413 = vmul.f32 %v3408, %v2608
    %v3414 = vld [vmem:[%s5] sm:$0xff]
    %3415 = vrot.lane.b32.xlu0 %v3400, 16
    %v3416 = vpop.permute.xlu0 %3415
    %3418 = vrot.lane.b32.xlu0 %v3399, 16
    %v3419 = vpop.permute.xlu0 %3418
    %v3420 = vsel %vm92, %v3419, %v3416
    %v3423 = vsel %vm92, %v3416, %v3419
    %v3424 = vmul.f32 %v3423, %v2621
    %v3425 = vmul.f32 %v3420, %v2622
    %v3426 = vld [vmem:[%s924] sm:$0xff]
    %v3428 = vsel %vm104, %v3426, 0
    %3430 = vmatprep.subr.mxu0 %v3425
    %3431 = vmatpush1.msra.mxu0 %v3424
    %3432 = vmatprep.subr.mxu0 0.0
    %3433 = vmatpush1.msra.mxu0 0.0
    %3434 = vmatprep.subr.mxu0 0.0
    %3435 = vmatpush1.msra.mxu0 0.0
    %3436 = vmatprep.subr.mxu0 0.0
    %3437 = vmatpush1.msra.mxu0 0.0
    %3438 = vmatprep.subr.mxu0 0.0
    %3439 = vmatpush1.msra.mxu0 0.0
    %3440 = vmatprep.subr.mxu0 0.0
    %3441 = vmatpush1.msra.mxu0 0.0
    %3442 = vmatprep.subr.mxu0 0.0
    %3443 = vmatpush1.msra.mxu0 0.0
    %3444 = vmatprep.subr.mxu0 0.0
    %3445 = vmatpush1.msra.mxu0 0.0
    %3446 = vmatprep.subr.mxu0 0.0
    %3447 = vmatpush1.msra.mxu0 0.0
    %3448 = vmatprep.subr.mxu0 0.0
    %3449 = vmatpush1.msra.mxu0 0.0
    %3450 = vmatprep.subr.mxu0 0.0
    %3451 = vmatpush1.msra.mxu0 0.0
    %3452 = vmatprep.subr.mxu0 0.0
    %3453 = vmatpush1.msra.mxu0 0.0
    %3454 = vmatprep.subr.mxu0 0.0
    %3455 = vmatpush1.msra.mxu0 0.0
    %3456 = vmatprep.subr.mxu0 0.0
    %3457 = vmatpush1.msra.mxu0 0.0
    %3458 = vmatprep.subr.mxu0 0.0
    %3459 = vmatpush1.msra.mxu0 0.0
    %3460 = vmatprep.subr.mxu0 0.0
    %3461 = vmatpush1.msra.mxu0 0.0
    %3462 = vmatprep.subr.mxu0 0.0
    %3463 = vmatpush1.msra.mxu0 0.0
    %3464 = vmatprep.subr.mxu0 0.0
    %3465 = vmatpush1.msra.mxu0 0.0
    %3466 = vmatprep.subr.mxu0 0.0
    %3467 = vmatpush1.msra.mxu0 0.0
    %3468 = vmatprep.subr.mxu0 0.0
    %3469 = vmatpush1.msra.mxu0 0.0
    %3470 = vmatprep.subr.mxu0 0.0
    %3471 = vmatpush1.msra.mxu0 0.0
    %3472 = vmatprep.subr.mxu0 0.0
    %3473 = vmatpush1.msra.mxu0 0.0
    %3474 = vmatprep.subr.mxu0 0.0
    %3475 = vmatpush1.msra.mxu0 0.0
    %3476 = vmatprep.subr.mxu0 0.0
    %3477 = vmatpush1.msra.mxu0 0.0
    %3478 = vmatprep.subr.mxu0 0.0
    %3479 = vmatpush1.msra.mxu0 0.0
    %3480 = vmatprep.subr.mxu0 0.0
    %3481 = vmatpush1.msra.mxu0 0.0
    %3482 = vmatprep.subr.mxu0 0.0
    %3483 = vmatpush1.msra.mxu0 0.0
    %3484 = vmatprep.subr.mxu0 0.0
    %3485 = vmatpush1.msra.mxu0 0.0
    %3486 = vmatprep.subr.mxu0 0.0
    %3487 = vmatpush1.msra.mxu0 0.0
    %3488 = vmatprep.subr.mxu0 0.0
    %3489 = vmatpush1.msra.mxu0 0.0
    %3490 = vmatprep.subr.mxu0 0.0
    %3491 = vmatpush1.msra.mxu0 0.0
    %3492 = vmatprep.subr.mxu0 0.0
    %3493 = vmatpush1.msra.mxu0 0.0
    %3494 = vmatprep.mubr.f32.mxu0 0.0
    %3495 = vmatmul.mubr.f32.gmra.mrb[0].mxu0 %v3428
    %v3496 = vpop.f32.mrb[0].mxu0
    %v3497 = vadd.f32 0.0, %v3496
    %v3498 = vpop.f32.mrb[0].mxu0
    %v3499 = vadd.f32 0.0, %v3498
    %3500 = vdwg.mxu0
    %v3502 = vsel %vm104, %v3414, 0
    %3504 = vmatprep.subr.mxu0 %v3413
    %3505 = vmatpush1.msra.mxu0 %v3412
    %3506 = vmatprep.subr.mxu0 0.0
    %3507 = vmatpush1.msra.mxu0 0.0
    %3508 = vmatprep.subr.mxu0 0.0
    %3509 = vmatpush1.msra.mxu0 0.0
    %3510 = vmatprep.subr.mxu0 0.0
    %3511 = vmatpush1.msra.mxu0 0.0
    %3512 = vmatprep.subr.mxu0 0.0
    %3513 = vmatpush1.msra.mxu0 0.0
    %3514 = vmatprep.subr.mxu0 0.0
    %3515 = vmatpush1.msra.mxu0 0.0
    %3516 = vmatprep.subr.mxu0 0.0
    %3517 = vmatpush1.msra.mxu0 0.0
    %3518 = vmatprep.subr.mxu0 0.0
    %3519 = vmatpush1.msra.mxu0 0.0
    %3520 = vmatprep.subr.mxu0 0.0
    %3521 = vmatpush1.msra.mxu0 0.0
    %3522 = vmatprep.subr.mxu0 0.0
    %3523 = vmatpush1.msra.mxu0 0.0
    %3524 = vmatprep.subr.mxu0 0.0
    %3525 = vmatpush1.msra.mxu0 0.0
    %3526 = vmatprep.subr.mxu0 0.0
    %3527 = vmatpush1.msra.mxu0 0.0
    %3528 = vmatprep.subr.mxu0 0.0
    %3529 = vmatpush1.msra.mxu0 0.0
    %3530 = vmatprep.subr.mxu0 0.0
    %3531 = vmatpush1.msra.mxu0 0.0
    %3532 = vmatprep.subr.mxu0 0.0
    %3533 = vmatpush1.msra.mxu0 0.0
    %3534 = vmatprep.subr.mxu0 0.0
    %3535 = vmatpush1.msra.mxu0 0.0
    %3536 = vmatprep.subr.mxu0 0.0
    %3537 = vmatpush1.msra.mxu0 0.0
    %3538 = vmatprep.subr.mxu0 0.0
    %3539 = vmatpush1.msra.mxu0 0.0
    %3540 = vmatprep.subr.mxu0 0.0
    %3541 = vmatpush1.msra.mxu0 0.0
    %3542 = vmatprep.subr.mxu0 0.0
    %3543 = vmatpush1.msra.mxu0 0.0
    %3544 = vmatprep.subr.mxu0 0.0
    %3545 = vmatpush1.msra.mxu0 0.0
    %3546 = vmatprep.subr.mxu0 0.0
    %3547 = vmatpush1.msra.mxu0 0.0
    %3548 = vmatprep.subr.mxu0 0.0
    %3549 = vmatpush1.msra.mxu0 0.0
    %3550 = vmatprep.subr.mxu0 0.0
    %3551 = vmatpush1.msra.mxu0 0.0
    %3552 = vmatprep.subr.mxu0 0.0
    %3553 = vmatpush1.msra.mxu0 0.0
    %3554 = vmatprep.subr.mxu0 0.0
    %3555 = vmatpush1.msra.mxu0 0.0
    %3556 = vmatprep.subr.mxu0 0.0
    %3557 = vmatpush1.msra.mxu0 0.0
    %3558 = vmatprep.subr.mxu0 0.0
    %3559 = vmatpush1.msra.mxu0 0.0
    %3560 = vmatprep.subr.mxu0 0.0
    %3561 = vmatpush1.msra.mxu0 0.0
    %3562 = vmatprep.subr.mxu0 0.0
    %3563 = vmatpush1.msra.mxu0 0.0
    %3564 = vmatprep.subr.mxu0 0.0
    %3565 = vmatpush1.msra.mxu0 0.0
    %3566 = vmatprep.subr.mxu0 0.0
    %3567 = vmatpush1.msra.mxu0 0.0
    %3568 = vmatprep.mubr.f32.mxu0 0.0
    %3569 = vmatmul.mubr.f32.gmra.mrb[0].mxu0 %v3502
    %v3570 = vpop.f32.mrb[0].mxu0
    %v3571 = vadd.f32 %v3497, %v3570
    %v3572 = vpop.f32.mrb[0].mxu0
    %v3573 = vadd.f32 %v3499, %v3572
    %3574 = vdwg.mxu0
    %3575 = vrot.lane.b32.xlu0 %v3400, 15
    %v3576 = vpop.permute.xlu0 %3575
    %3578 = vrot.lane.b32.xlu0 %v3399, 15
    %v3579 = vpop.permute.xlu0 %3578
    %v3580 = vsel %vm258, %v3579, %v3576
    %v3583 = vsel %vm258, %v3576, %v3579
    %v3584 = vmul.f32 %v3583, %v2783
    %v3585 = vmul.f32 %v3580, %v2784
    %v3586 = vld [vmem:[%s1085] sm:$0xff]
    %v3588 = vsel %vm104, %v3586, 0
    %3590 = vmatprep.subr.mxu0 %v3585
    %3591 = vmatpush1.msra.mxu0 %v3584
    %3592 = vmatprep.subr.mxu0 0.0
    %3593 = vmatpush1.msra.mxu0 0.0
    %3594 = vmatprep.subr.mxu0 0.0
    %3595 = vmatpush1.msra.mxu0 0.0
    %3596 = vmatprep.subr.mxu0 0.0
    %3597 = vmatpush1.msra.mxu0 0.0
    %3598 = vmatprep.subr.mxu0 0.0
    %3599 = vmatpush1.msra.mxu0 0.0
    %3600 = vmatprep.subr.mxu0 0.0
    %3601 = vmatpush1.msra.mxu0 0.0
    %3602 = vmatprep.subr.mxu0 0.0
    %3603 = vmatpush1.msra.mxu0 0.0
    %3604 = vmatprep.subr.mxu0 0.0
    %3605 = vmatpush1.msra.mxu0 0.0
    %3606 = vmatprep.subr.mxu0 0.0
    %3607 = vmatpush1.msra.mxu0 0.0
    %3608 = vmatprep.subr.mxu0 0.0
    %3609 = vmatpush1.msra.mxu0 0.0
    %3610 = vmatprep.subr.mxu0 0.0
    %3611 = vmatpush1.msra.mxu0 0.0
    %3612 = vmatprep.subr.mxu0 0.0
    %3613 = vmatpush1.msra.mxu0 0.0
    %3614 = vmatprep.subr.mxu0 0.0
    %3615 = vmatpush1.msra.mxu0 0.0
    %3616 = vmatprep.subr.mxu0 0.0
    %3617 = vmatpush1.msra.mxu0 0.0
    %3618 = vmatprep.subr.mxu0 0.0
    %3619 = vmatpush1.msra.mxu0 0.0
    %3620 = vmatprep.subr.mxu0 0.0
    %3621 = vmatpush1.msra.mxu0 0.0
    %3622 = vmatprep.subr.mxu0 0.0
    %3623 = vmatpush1.msra.mxu0 0.0
    %3624 = vmatprep.subr.mxu0 0.0
    %3625 = vmatpush1.msra.mxu0 0.0
    %3626 = vmatprep.subr.mxu0 0.0
    %3627 = vmatpush1.msra.mxu0 0.0
    %3628 = vmatprep.subr.mxu0 0.0
    %3629 = vmatpush1.msra.mxu0 0.0
    %3630 = vmatprep.subr.mxu0 0.0
    %3631 = vmatpush1.msra.mxu0 0.0
    %3632 = vmatprep.subr.mxu0 0.0
    %3633 = vmatpush1.msra.mxu0 0.0
    %3634 = vmatprep.subr.mxu0 0.0
    %3635 = vmatpush1.msra.mxu0 0.0
    %3636 = vmatprep.subr.mxu0 0.0
    %3637 = vmatpush1.msra.mxu0 0.0
    %3638 = vmatprep.subr.mxu0 0.0
    %3639 = vmatpush1.msra.mxu0 0.0
    %3640 = vmatprep.subr.mxu0 0.0
    %3641 = vmatpush1.msra.mxu0 0.0
    %3642 = vmatprep.subr.mxu0 0.0
    %3643 = vmatpush1.msra.mxu0 0.0
    %3644 = vmatprep.subr.mxu0 0.0
    %3645 = vmatpush1.msra.mxu0 0.0
    %3646 = vmatprep.subr.mxu0 0.0
    %3647 = vmatpush1.msra.mxu0 0.0
    %3648 = vmatprep.subr.mxu0 0.0
    %3649 = vmatpush1.msra.mxu0 0.0
    %3650 = vmatprep.subr.mxu0 0.0
    %3651 = vmatpush1.msra.mxu0 0.0
    %3652 = vmatprep.subr.mxu0 0.0
    %3653 = vmatpush1.msra.mxu0 0.0
    %3654 = vmatprep.mubr.f32.mxu0 0.0
    %3655 = vmatmul.mubr.f32.gmra.mrb[0].mxu0 %v3588
    %v3656 = vpop.f32.mrb[0].mxu0
    %v3657 = vadd.f32 0.0, %v3656
    %v3658 = vpop.f32.mrb[0].mxu0
    %v3659 = vadd.f32 0.0, %v3658
    %3660 = vdwg.mxu0
    %v3661 = vadd.f32 %v3571, %v3657
    %v3662 = vadd.f32 %v3573, %v3659
    %3663 = vrot.lane.b32.xlu0 %v3400, 1
    %v3664 = vpop.permute.xlu0 %3663
    %3666 = vrot.lane.b32.xlu0 %v3399, 1
    %v3667 = vpop.permute.xlu0 %3666
    %v3668 = vsel %vm351, %v3667, %v3664
    %v3671 = vsel %vm351, %v3664, %v3667
    %v3672 = vmul.f32 %v3671, %v2873
    %v3673 = vmul.f32 %v3668, %v2874
    %v3674 = vld [vmem:[%s1174] sm:$0xff]
    %v3676 = vsel %vm104, %v3674, 0
    %3678 = vmatprep.subr.mxu0 %v3673
    %3679 = vmatpush1.msra.mxu0 %v3672
    %3680 = vmatprep.subr.mxu0 0.0
    %3681 = vmatpush1.msra.mxu0 0.0
    %3682 = vmatprep.subr.mxu0 0.0
    %3683 = vmatpush1.msra.mxu0 0.0
    %3684 = vmatprep.subr.mxu0 0.0
    %3685 = vmatpush1.msra.mxu0 0.0
    %3686 = vmatprep.subr.mxu0 0.0
    %3687 = vmatpush1.msra.mxu0 0.0
    %3688 = vmatprep.subr.mxu0 0.0
    %3689 = vmatpush1.msra.mxu0 0.0
    %3690 = vmatprep.subr.mxu0 0.0
    %3691 = vmatpush1.msra.mxu0 0.0
    %3692 = vmatprep.subr.mxu0 0.0
    %3693 = vmatpush1.msra.mxu0 0.0
    %3694 = vmatprep.subr.mxu0 0.0
    %3695 = vmatpush1.msra.mxu0 0.0
    %3696 = vmatprep.subr.mxu0 0.0
    %3697 = vmatpush1.msra.mxu0 0.0
    %3698 = vmatprep.subr.mxu0 0.0
    %3699 = vmatpush1.msra.mxu0 0.0
    %3700 = vmatprep.subr.mxu0 0.0
    %3701 = vmatpush1.msra.mxu0 0.0
    %3702 = vmatprep.subr.mxu0 0.0
    %3703 = vmatpush1.msra.mxu0 0.0
    %3704 = vmatprep.subr.mxu0 0.0
    %3705 = vmatpush1.msra.mxu0 0.0
    %3706 = vmatprep.subr.mxu0 0.0
    %3707 = vmatpush1.msra.mxu0 0.0
    %3708 = vmatprep.subr.mxu0 0.0
    %3709 = vmatpush1.msra.mxu0 0.0
    %3710 = vmatprep.subr.mxu0 0.0
    %3711 = vmatpush1.msra.mxu0 0.0
    %3712 = vmatprep.subr.mxu0 0.0
    %3713 = vmatpush1.msra.mxu0 0.0
    %3714 = vmatprep.subr.mxu0 0.0
    %3715 = vmatpush1.msra.mxu0 0.0
    %3716 = vmatprep.subr.mxu0 0.0
    %3717 = vmatpush1.msra.mxu0 0.0
    %3718 = vmatprep.subr.mxu0 0.0
    %3719 = vmatpush1.msra.mxu0 0.0
    %3720 = vmatprep.subr.mxu0 0.0
    %3721 = vmatpush1.msra.mxu0 0.0
    %3722 = vmatprep.subr.mxu0 0.0
    %3723 = vmatpush1.msra.mxu0 0.0
    %3724 = vmatprep.subr.mxu0 0.0
    %3725 = vmatpush1.msra.mxu0 0.0
    %3726 = vmatprep.subr.mxu0 0.0
    %3727 = vmatpush1.msra.mxu0 0.0
    %3728 = vmatprep.subr.mxu0 0.0
    %3729 = vmatpush1.msra.mxu0 0.0
    %3730 = vmatprep.subr.mxu0 0.0
    %3731 = vmatpush1.msra.mxu0 0.0
    %3732 = vmatprep.subr.mxu0 0.0
    %3733 = vmatpush1.msra.mxu0 0.0
    %3734 = vmatprep.subr.mxu0 0.0
    %3735 = vmatpush1.msra.mxu0 0.0
    %3736 = vmatprep.subr.mxu0 0.0
    %3737 = vmatpush1.msra.mxu0 0.0
    %3738 = vmatprep.subr.mxu0 0.0
    %3739 = vmatpush1.msra.mxu0 0.0
    %3740 = vmatprep.subr.mxu0 0.0
    %3741 = vmatpush1.msra.mxu0 0.0
    %3742 = vmatprep.mubr.f32.mxu0 0.0
    %3743 = vmatmul.mubr.f32.gmra.mrb[0].mxu0 %v3676
    %v3744 = vpop.f32.mrb[0].mxu0
    %v3745 = vadd.f32 0.0, %v3744
    %v3746 = vpop.f32.mrb[0].mxu0
    %v3747 = vadd.f32 0.0, %v3746
    %3748 = vdwg.mxu0
    %v3749 = vadd.f32 %v3661, %v3745
    %v3750 = vadd.f32 %v3662, %v3747
    %v3751 = vld [vmem:[%s1252] sm:$0xff]
    %v3753 = vsel %vm104, %v3751, 0
    %3755 = vmatprep.subr.mxu0 %v3400
    %3756 = vmatpush1.msra.mxu0 %v3399
    %3757 = vmatprep.subr.mxu0 0.0
    %3758 = vmatpush1.msra.mxu0 0.0
    %3759 = vmatprep.subr.mxu0 0.0
    %3760 = vmatpush1.msra.mxu0 0.0
    %3761 = vmatprep.subr.mxu0 0.0
    %3762 = vmatpush1.msra.mxu0 0.0
    %3763 = vmatprep.subr.mxu0 0.0
    %3764 = vmatpush1.msra.mxu0 0.0
    %3765 = vmatprep.subr.mxu0 0.0
    %3766 = vmatpush1.msra.mxu0 0.0
    %3767 = vmatprep.subr.mxu0 0.0
    %3768 = vmatpush1.msra.mxu0 0.0
    %3769 = vmatprep.subr.mxu0 0.0
    %3770 = vmatpush1.msra.mxu0 0.0
    %3771 = vmatprep.subr.mxu0 0.0
    %3772 = vmatpush1.msra.mxu0 0.0
    %3773 = vmatprep.subr.mxu0 0.0
    %3774 = vmatpush1.msra.mxu0 0.0
    %3775 = vmatprep.subr.mxu0 0.0
    %3776 = vmatpush1.msra.mxu0 0.0
    %3777 = vmatprep.subr.mxu0 0.0
    %3778 = vmatpush1.msra.mxu0 0.0
    %3779 = vmatprep.subr.mxu0 0.0
    %3780 = vmatpush1.msra.mxu0 0.0
    %3781 = vmatprep.subr.mxu0 0.0
    %3782 = vmatpush1.msra.mxu0 0.0
    %3783 = vmatprep.subr.mxu0 0.0
    %3784 = vmatpush1.msra.mxu0 0.0
    %3785 = vmatprep.subr.mxu0 0.0
    %3786 = vmatpush1.msra.mxu0 0.0
    %3787 = vmatprep.subr.mxu0 0.0
    %3788 = vmatpush1.msra.mxu0 0.0
    %3789 = vmatprep.subr.mxu0 0.0
    %3790 = vmatpush1.msra.mxu0 0.0
    %3791 = vmatprep.subr.mxu0 0.0
    %3792 = vmatpush1.msra.mxu0 0.0
    %3793 = vmatprep.subr.mxu0 0.0
    %3794 = vmatpush1.msra.mxu0 0.0
    %3795 = vmatprep.subr.mxu0 0.0
    %3796 = vmatpush1.msra.mxu0 0.0
    %3797 = vmatprep.subr.mxu0 0.0
    %3798 = vmatpush1.msra.mxu0 0.0
    %3799 = vmatprep.subr.mxu0 0.0
    %3800 = vmatpush1.msra.mxu0 0.0
    %3801 = vmatprep.subr.mxu0 0.0
    %3802 = vmatpush1.msra.mxu0 0.0
    %3803 = vmatprep.subr.mxu0 0.0
    %3804 = vmatpush1.msra.mxu0 0.0
    %3805 = vmatprep.subr.mxu0 0.0
    %3806 = vmatpush1.msra.mxu0 0.0
    %3807 = vmatprep.subr.mxu0 0.0
    %3808 = vmatpush1.msra.mxu0 0.0
    %3809 = vmatprep.subr.mxu0 0.0
    %3810 = vmatpush1.msra.mxu0 0.0
    %3811 = vmatprep.subr.mxu0 0.0
    %3812 = vmatpush1.msra.mxu0 0.0
    %3813 = vmatprep.subr.mxu0 0.0
    %3814 = vmatpush1.msra.mxu0 0.0
    %3815 = vmatprep.subr.mxu0 0.0
    %3816 = vmatpush1.msra.mxu0 0.0
    %3817 = vmatprep.subr.mxu0 0.0
    %3818 = vmatpush1.msra.mxu0 0.0
    %3819 = vmatprep.mubr.f32.mxu0 0.0
    %3820 = vmatmul.mubr.f32.gmra.mrb[0].mxu0 %v3753
    %v3821 = vpop.f32.mrb[0].mxu0
    %v3822 = vadd.f32 0.0, %v3821
    %v3823 = vpop.f32.mrb[0].mxu0
    %v3824 = vadd.f32 0.0, %v3823
    %3825 = vdwg.mxu0
    %v3826 = vadd.f32 %v3749, %v3822
    %v3827 = vadd.f32 %v3750, %v3824
    %3828 = vrot.lane.b32.xlu0 %v3399, 127
    %v3829 = vpop.permute.xlu0 %3828
    %3830 = vrot.lane.b32.xlu0 %v3400, 127
    %v3831 = vpop.permute.xlu0 %3830
    %v3832 = vsel %vm521, %v3829, %v3831
    %v3836 = vsel %vm521, %v3831, %v3829
    %v3837 = vmul.f32 %v3832, %v3040
    %v3838 = vmul.f32 %v3836, %v3041
    %v3839 = vld [vmem:[%s1341] sm:$0xff]
    %v3841 = vsel %vm104, %v3839, 0
    %3843 = vmatprep.subr.mxu0 %v3838
    %3844 = vmatpush1.msra.mxu0 %v3837
    %3845 = vmatprep.subr.mxu0 0.0
    %3846 = vmatpush1.msra.mxu0 0.0
    %3847 = vmatprep.subr.mxu0 0.0
    %3848 = vmatpush1.msra.mxu0 0.0
    %3849 = vmatprep.subr.mxu0 0.0
    %3850 = vmatpush1.msra.mxu0 0.0
    %3851 = vmatprep.subr.mxu0 0.0
    %3852 = vmatpush1.msra.mxu0 0.0
    %3853 = vmatprep.subr.mxu0 0.0
    %3854 = vmatpush1.msra.mxu0 0.0
    %3855 = vmatprep.subr.mxu0 0.0
    %3856 = vmatpush1.msra.mxu0 0.0
    %3857 = vmatprep.subr.mxu0 0.0
    %3858 = vmatpush1.msra.mxu0 0.0
    %3859 = vmatprep.subr.mxu0 0.0
    %3860 = vmatpush1.msra.mxu0 0.0
    %3861 = vmatprep.subr.mxu0 0.0
    %3862 = vmatpush1.msra.mxu0 0.0
    %3863 = vmatprep.subr.mxu0 0.0
    %3864 = vmatpush1.msra.mxu0 0.0
    %3865 = vmatprep.subr.mxu0 0.0
    %3866 = vmatpush1.msra.mxu0 0.0
    %3867 = vmatprep.subr.mxu0 0.0
    %3868 = vmatpush1.msra.mxu0 0.0
    %3869 = vmatprep.subr.mxu0 0.0
    %3870 = vmatpush1.msra.mxu0 0.0
    %3871 = vmatprep.subr.mxu0 0.0
    %3872 = vmatpush1.msra.mxu0 0.0
    %3873 = vmatprep.subr.mxu0 0.0
    %3874 = vmatpush1.msra.mxu0 0.0
    %3875 = vmatprep.subr.mxu0 0.0
    %3876 = vmatpush1.msra.mxu0 0.0
    %3877 = vmatprep.subr.mxu0 0.0
    %3878 = vmatpush1.msra.mxu0 0.0
    %3879 = vmatprep.subr.mxu0 0.0
    %3880 = vmatpush1.msra.mxu0 0.0
    %3881 = vmatprep.subr.mxu0 0.0
    %3882 = vmatpush1.msra.mxu0 0.0
    %3883 = vmatprep.subr.mxu0 0.0
    %3884 = vmatpush1.msra.mxu0 0.0
    %3885 = vmatprep.subr.mxu0 0.0
    %3886 = vmatpush1.msra.mxu0 0.0
    %3887 = vmatprep.subr.mxu0 0.0
    %3888 = vmatpush1.msra.mxu0 0.0
    %3889 = vmatprep.subr.mxu0 0.0
    %3890 = vmatpush1.msra.mxu0 0.0
    %3891 = vmatprep.subr.mxu0 0.0
    %3892 = vmatpush1.msra.mxu0 0.0
    %3893 = vmatprep.subr.mxu0 0.0
    %3894 = vmatpush1.msra.mxu0 0.0
    %3895 = vmatprep.subr.mxu0 0.0
    %3896 = vmatpush1.msra.mxu0 0.0
    %3897 = vmatprep.subr.mxu0 0.0
    %3898 = vmatpush1.msra.mxu0 0.0
    %3899 = vmatprep.subr.mxu0 0.0
    %3900 = vmatpush1.msra.mxu0 0.0
    %3901 = vmatprep.subr.mxu0 0.0
    %3902 = vmatpush1.msra.mxu0 0.0
    %3903 = vmatprep.subr.mxu0 0.0
    %3904 = vmatpush1.msra.mxu0 0.0
    %3905 = vmatprep.subr.mxu0 0.0
    %3906 = vmatpush1.msra.mxu0 0.0
    %3907 = vmatprep.mubr.f32.mxu0 0.0
    %3908 = vmatmul.mubr.f32.gmra.mrb[0].mxu0 %v3841
    %v3909 = vpop.f32.mrb[0].mxu0
    %v3910 = vadd.f32 0.0, %v3909
    %v3911 = vpop.f32.mrb[0].mxu0
    %v3912 = vadd.f32 0.0, %v3911
    %3913 = vdwg.mxu0
    %v3914 = vadd.f32 %v3826, %v3910
    %v3915 = vadd.f32 %v3827, %v3912
    %3916 = vrot.lane.b32.xlu0 %v3399, 113
    %v3917 = vpop.permute.xlu0 %3916
    %3918 = vrot.lane.b32.xlu0 %v3400, 113
    %v3919 = vpop.permute.xlu0 %3918
    %v3920 = vsel %vm614, %v3917, %v3919
    %v3924 = vsel %vm614, %v3919, %v3917
    %v3925 = vmul.f32 %v3920, %v3130
    %v3926 = vmul.f32 %v3924, %v3131
    %v3927 = vld [vmem:[%s1430] sm:$0xff]
    %v3929 = vsel %vm104, %v3927, 0
    %3931 = vmatprep.subr.mxu0 %v3926
    %3932 = vmatpush1.msra.mxu0 %v3925
    %3933 = vmatprep.subr.mxu0 0.0
    %3934 = vmatpush1.msra.mxu0 0.0
    %3935 = vmatprep.subr.mxu0 0.0
    %3936 = vmatpush1.msra.mxu0 0.0
    %3937 = vmatprep.subr.mxu0 0.0
    %3938 = vmatpush1.msra.mxu0 0.0
    %3939 = vmatprep.subr.mxu0 0.0
    %3940 = vmatpush1.msra.mxu0 0.0
    %3941 = vmatprep.subr.mxu0 0.0
    %3942 = vmatpush1.msra.mxu0 0.0
    %3943 = vmatprep.subr.mxu0 0.0
    %3944 = vmatpush1.msra.mxu0 0.0
    %3945 = vmatprep.subr.mxu0 0.0
    %3946 = vmatpush1.msra.mxu0 0.0
    %3947 = vmatprep.subr.mxu0 0.0
    %3948 = vmatpush1.msra.mxu0 0.0
    %3949 = vmatprep.subr.mxu0 0.0
    %3950 = vmatpush1.msra.mxu0 0.0
    %3951 = vmatprep.subr.mxu0 0.0
    %3952 = vmatpush1.msra.mxu0 0.0
    %3953 = vmatprep.subr.mxu0 0.0
    %3954 = vmatpush1.msra.mxu0 0.0
    %3955 = vmatprep.subr.mxu0 0.0
    %3956 = vmatpush1.msra.mxu0 0.0
    %3957 = vmatprep.subr.mxu0 0.0
    %3958 = vmatpush1.msra.mxu0 0.0
    %3959 = vmatprep.subr.mxu0 0.0
    %3960 = vmatpush1.msra.mxu0 0.0
    %3961 = vmatprep.subr.mxu0 0.0
    %3962 = vmatpush1.msra.mxu0 0.0
    %3963 = vmatprep.subr.mxu0 0.0
    %3964 = vmatpush1.msra.mxu0 0.0
    %3965 = vmatprep.subr.mxu0 0.0
    %3966 = vmatpush1.msra.mxu0 0.0
    %3967 = vmatprep.subr.mxu0 0.0
    %3968 = vmatpush1.msra.mxu0 0.0
    %3969 = vmatprep.subr.mxu0 0.0
    %3970 = vmatpush1.msra.mxu0 0.0
    %3971 = vmatprep.subr.mxu0 0.0
    %3972 = vmatpush1.msra.mxu0 0.0
    %3973 = vmatprep.subr.mxu0 0.0
    %3974 = vmatpush1.msra.mxu0 0.0
    %3975 = vmatprep.subr.mxu0 0.0
    %3976 = vmatpush1.msra.mxu0 0.0
    %3977 = vmatprep.subr.mxu0 0.0
    %3978 = vmatpush1.msra.mxu0 0.0
    %3979 = vmatprep.subr.mxu0 0.0
    %3980 = vmatpush1.msra.mxu0 0.0
    %3981 = vmatprep.subr.mxu0 0.0
    %3982 = vmatpush1.msra.mxu0 0.0
    %3983 = vmatprep.subr.mxu0 0.0
    %3984 = vmatpush1.msra.mxu0 0.0
    %3985 = vmatprep.subr.mxu0 0.0
    %3986 = vmatpush1.msra.mxu0 0.0
    %3987 = vmatprep.subr.mxu0 0.0
    %3988 = vmatpush1.msra.mxu0 0.0
    %3989 = vmatprep.subr.mxu0 0.0
    %3990 = vmatpush1.msra.mxu0 0.0
    %3991 = vmatprep.subr.mxu0 0.0
    %3992 = vmatpush1.msra.mxu0 0.0
    %3993 = vmatprep.subr.mxu0 0.0
    %3994 = vmatpush1.msra.mxu0 0.0
    %3995 = vmatprep.mubr.f32.mxu0 0.0
    %3996 = vmatmul.mubr.f32.gmra.mrb[0].mxu0 %v3929
    %v3997 = vpop.f32.mrb[0].mxu0
    %v3998 = vadd.f32 0.0, %v3997
    %v3999 = vpop.f32.mrb[0].mxu0
    %v4000 = vadd.f32 0.0, %v3999
    %4001 = vdwg.mxu0
    %v4002 = vadd.f32 %v3914, %v3998
    %v4003 = vadd.f32 %v3915, %v4000
    %4004 = vrot.lane.b32.xlu0 %v3399, 112
    %v4005 = vpop.permute.xlu0 %4004
    %4006 = vrot.lane.b32.xlu0 %v3400, 112
    %v4007 = vpop.permute.xlu0 %4006
    %v4008 = vsel %vm707, %v4005, %v4007
    %v4012 = vsel %vm707, %v4007, %v4005
    %v4013 = vmul.f32 %v4008, %v3220
    %v4014 = vmul.f32 %v4012, %v3221
    %v4015 = vld [vmem:[%s1519] sm:$0xff]
    %v4017 = vsel %vm104, %v4015, 0
    %4019 = vmatprep.subr.mxu0 %v4014
    %4020 = vmatpush1.msra.mxu0 %v4013
    %4021 = vmatprep.subr.mxu0 0.0
    %4022 = vmatpush1.msra.mxu0 0.0
    %4023 = vmatprep.subr.mxu0 0.0
    %4024 = vmatpush1.msra.mxu0 0.0
    %4025 = vmatprep.subr.mxu0 0.0
    %4026 = vmatpush1.msra.mxu0 0.0
    %4027 = vmatprep.subr.mxu0 0.0
    %4028 = vmatpush1.msra.mxu0 0.0
    %4029 = vmatprep.subr.mxu0 0.0
    %4030 = vmatpush1.msra.mxu0 0.0
    %4031 = vmatprep.subr.mxu0 0.0
    %4032 = vmatpush1.msra.mxu0 0.0
    %4033 = vmatprep.subr.mxu0 0.0
    %4034 = vmatpush1.msra.mxu0 0.0
    %4035 = vmatprep.subr.mxu0 0.0
    %4036 = vmatpush1.msra.mxu0 0.0
    %4037 = vmatprep.subr.mxu0 0.0
    %4038 = vmatpush1.msra.mxu0 0.0
    %4039 = vmatprep.subr.mxu0 0.0
    %4040 = vmatpush1.msra.mxu0 0.0
    %4041 = vmatprep.subr.mxu0 0.0
    %4042 = vmatpush1.msra.mxu0 0.0
    %4043 = vmatprep.subr.mxu0 0.0
    %4044 = vmatpush1.msra.mxu0 0.0
    %4045 = vmatprep.subr.mxu0 0.0
    %4046 = vmatpush1.msra.mxu0 0.0
    %4047 = vmatprep.subr.mxu0 0.0
    %4048 = vmatpush1.msra.mxu0 0.0
    %4049 = vmatprep.subr.mxu0 0.0
    %4050 = vmatpush1.msra.mxu0 0.0
    %4051 = vmatprep.subr.mxu0 0.0
    %4052 = vmatpush1.msra.mxu0 0.0
    %4053 = vmatprep.subr.mxu0 0.0
    %4054 = vmatpush1.msra.mxu0 0.0
    %4055 = vmatprep.subr.mxu0 0.0
    %4056 = vmatpush1.msra.mxu0 0.0
    %4057 = vmatprep.subr.mxu0 0.0
    %4058 = vmatpush1.msra.mxu0 0.0
    %4059 = vmatprep.subr.mxu0 0.0
    %4060 = vmatpush1.msra.mxu0 0.0
    %4061 = vmatprep.subr.mxu0 0.0
    %4062 = vmatpush1.msra.mxu0 0.0
    %4063 = vmatprep.subr.mxu0 0.0
    %4064 = vmatpush1.msra.mxu0 0.0
    %4065 = vmatprep.subr.mxu0 0.0
    %4066 = vmatpush1.msra.mxu0 0.0
    %4067 = vmatprep.subr.mxu0 0.0
    %4068 = vmatpush1.msra.mxu0 0.0
    %4069 = vmatprep.subr.mxu0 0.0
    %4070 = vmatpush1.msra.mxu0 0.0
    %4071 = vmatprep.subr.mxu0 0.0
    %4072 = vmatpush1.msra.mxu0 0.0
    %4073 = vmatprep.subr.mxu0 0.0
    %4074 = vmatpush1.msra.mxu0 0.0
    %4075 = vmatprep.subr.mxu0 0.0
    %4076 = vmatpush1.msra.mxu0 0.0
    %4077 = vmatprep.subr.mxu0 0.0
    %4078 = vmatpush1.msra.mxu0 0.0
    %4079 = vmatprep.subr.mxu0 0.0
    %4080 = vmatpush1.msra.mxu0 0.0
    %4081 = vmatprep.subr.mxu0 0.0
    %4082 = vmatpush1.msra.mxu0 0.0
    %4083 = vmatprep.mubr.f32.mxu0 0.0
    %4084 = vmatmul.mubr.f32.gmra.mrb[0].mxu0 %v4017
    %v4085 = vpop.f32.mrb[0].mxu0
    %v4086 = vadd.f32 0.0, %v4085
    %v4087 = vpop.f32.mrb[0].mxu0
    %v4088 = vadd.f32 0.0, %v4087
    %4089 = vdwg.mxu0
    %v4090 = vadd.f32 %v4002, %v4086
    %v4091 = vadd.f32 %v4003, %v4088
    %4092 = vrot.lane.b32.xlu0 %v3399, 111
    %v4093 = vpop.permute.xlu0 %4092
    %4094 = vrot.lane.b32.xlu0 %v3400, 111
    %v4095 = vpop.permute.xlu0 %4094
    %v4096 = vsel %vm800, %v4093, %v4095
    %v4100 = vsel %vm800, %v4095, %v4093
    %v4101 = vmul.f32 %v4096, %v3310
    %v4102 = vmul.f32 %v4100, %v3311
    %v4103 = vld [vmem:[%s1608] sm:$0xff]
    %v4105 = vsel %vm104, %v4103, 0
    %4107 = vmatprep.subr.mxu0 %v4102
    %4108 = vmatpush1.msra.mxu0 %v4101
    %4109 = vmatprep.subr.mxu0 0.0
    %4110 = vmatpush1.msra.mxu0 0.0
    %4111 = vmatprep.subr.mxu0 0.0
    %4112 = vmatpush1.msra.mxu0 0.0
    %4113 = vmatprep.subr.mxu0 0.0
    %4114 = vmatpush1.msra.mxu0 0.0
    %4115 = vmatprep.subr.mxu0 0.0
    %4116 = vmatpush1.msra.mxu0 0.0
    %4117 = vmatprep.subr.mxu0 0.0
    %4118 = vmatpush1.msra.mxu0 0.0
    %4119 = vmatprep.subr.mxu0 0.0
    %4120 = vmatpush1.msra.mxu0 0.0
    %4121 = vmatprep.subr.mxu0 0.0
    %4122 = vmatpush1.msra.mxu0 0.0
    %4123 = vmatprep.subr.mxu0 0.0
    %4124 = vmatpush1.msra.mxu0 0.0
    %4125 = vmatprep.subr.mxu0 0.0
    %4126 = vmatpush1.msra.mxu0 0.0
    %4127 = vmatprep.subr.mxu0 0.0
    %4128 = vmatpush1.msra.mxu0 0.0
    %4129 = vmatprep.subr.mxu0 0.0
    %4130 = vmatpush1.msra.mxu0 0.0
    %4131 = vmatprep.subr.mxu0 0.0
    %4132 = vmatpush1.msra.mxu0 0.0
    %4133 = vmatprep.subr.mxu0 0.0
    %4134 = vmatpush1.msra.mxu0 0.0
    %4135 = vmatprep.subr.mxu0 0.0
    %4136 = vmatpush1.msra.mxu0 0.0
    %4137 = vmatprep.subr.mxu0 0.0
    %4138 = vmatpush1.msra.mxu0 0.0
    %4139 = vmatprep.subr.mxu0 0.0
    %4140 = vmatpush1.msra.mxu0 0.0
    %4141 = vmatprep.subr.mxu0 0.0
    %4142 = vmatpush1.msra.mxu0 0.0
    %4143 = vmatprep.subr.mxu0 0.0
    %4144 = vmatpush1.msra.mxu0 0.0
    %4145 = vmatprep.subr.mxu0 0.0
    %4146 = vmatpush1.msra.mxu0 0.0
    %4147 = vmatprep.subr.mxu0 0.0
    %4148 = vmatpush1.msra.mxu0 0.0
    %4149 = vmatprep.subr.mxu0 0.0
    %4150 = vmatpush1.msra.mxu0 0.0
    %4151 = vmatprep.subr.mxu0 0.0
    %4152 = vmatpush1.msra.mxu0 0.0
    %4153 = vmatprep.subr.mxu0 0.0
    %4154 = vmatpush1.msra.mxu0 0.0
    %4155 = vmatprep.subr.mxu0 0.0
    %4156 = vmatpush1.msra.mxu0 0.0
    %4157 = vmatprep.subr.mxu0 0.0
    %4158 = vmatpush1.msra.mxu0 0.0
    %4159 = vmatprep.subr.mxu0 0.0
    %4160 = vmatpush1.msra.mxu0 0.0
    %4161 = vmatprep.subr.mxu0 0.0
    %4162 = vmatpush1.msra.mxu0 0.0
    %4163 = vmatprep.subr.mxu0 0.0
    %4164 = vmatpush1.msra.mxu0 0.0
    %4165 = vmatprep.subr.mxu0 0.0
    %4166 = vmatpush1.msra.mxu0 0.0
    %4167 = vmatprep.subr.mxu0 0.0
    %4168 = vmatpush1.msra.mxu0 0.0
    %4169 = vmatprep.subr.mxu0 0.0
    %4170 = vmatpush1.msra.mxu0 0.0
    %4171 = vmatprep.mubr.f32.mxu0 0.0
    %4172 = vmatmul.mubr.f32.gmra.mrb[0].mxu0 %v4105
    %v4173 = vpop.f32.mrb[0].mxu0
    %v4174 = vadd.f32 0.0, %v4173
    %v4175 = vpop.f32.mrb[0].mxu0
    %v4176 = vadd.f32 0.0, %v4175
    %4177 = vdwg.mxu0
    %v4178 = vadd.f32 %v4090, %v4174
    %v4179 = vadd.f32 %v4091, %v4176
    %v4180 = vld [vmem:[%s6] sm:$0xff]
    %4182 = vset.pattern.permute.xlu0 0
    %4183 = vperm.xlu0 %4182, %v4180
    %v4184 = vpop.permute.xlu0 %4183
    %v4186 = vadd.f32 %v4178, %v4184
    %v4187 = vadd.f32 %v4179, %v4184
    %v4188 = vmax.f32 %v4186, 0.0
    %v4189 = vmax.f32 %v4187, 0.0
    %4191 = vrot.lane.b32.xlu0 %v4189, 17
    %v4192 = vpop.permute.xlu0 %4191
    %4195 = vrot.lane.b32.xlu0 %v4188, 17
    %v4196 = vpop.permute.xlu0 %4195
    %v4197 = vsel %vm77, %v4196, %v4192
    %v4200 = vsel %vm77, %v4192, %v4196
    %v4201 = vmul.f32 %v4200, %v2607
    %v4202 = vmul.f32 %v4197, %v2608
    %v4203 = vld [vmem:[%s7] sm:$0xff]
    %4204 = vrot.lane.b32.xlu0 %v4189, 16
    %v4205 = vpop.permute.xlu0 %4204
    %4207 = vrot.lane.b32.xlu0 %v4188, 16
    %v4208 = vpop.permute.xlu0 %4207
    %v4209 = vsel %vm92, %v4208, %v4205
    %v4212 = vsel %vm92, %v4205, %v4208
    %v4213 = vmul.f32 %v4212, %v2621
    %v4214 = vmul.f32 %v4209, %v2622
    %v4215 = vld [vmem:[%s1721] sm:$0xff]
    %v4217 = vsel %vm104, %v4215, 0
    %4219 = vmatprep.subr.mxu0 %v4214
    %4220 = vmatpush1.msra.mxu0 %v4213
    %4221 = vmatprep.subr.mxu0 0.0
    %4222 = vmatpush1.msra.mxu0 0.0
    %4223 = vmatprep.subr.mxu0 0.0
    %4224 = vmatpush1.msra.mxu0 0.0
    %4225 = vmatprep.subr.mxu0 0.0
    %4226 = vmatpush1.msra.mxu0 0.0
    %4227 = vmatprep.subr.mxu0 0.0
    %4228 = vmatpush1.msra.mxu0 0.0
    %4229 = vmatprep.subr.mxu0 0.0
    %4230 = vmatpush1.msra.mxu0 0.0
    %4231 = vmatprep.subr.mxu0 0.0
    %4232 = vmatpush1.msra.mxu0 0.0
    %4233 = vmatprep.subr.mxu0 0.0
    %4234 = vmatpush1.msra.mxu0 0.0
    %4235 = vmatprep.subr.mxu0 0.0
    %4236 = vmatpush1.msra.mxu0 0.0
    %4237 = vmatprep.subr.mxu0 0.0
    %4238 = vmatpush1.msra.mxu0 0.0
    %4239 = vmatprep.subr.mxu0 0.0
    %4240 = vmatpush1.msra.mxu0 0.0
    %4241 = vmatprep.subr.mxu0 0.0
    %4242 = vmatpush1.msra.mxu0 0.0
    %4243 = vmatprep.subr.mxu0 0.0
    %4244 = vmatpush1.msra.mxu0 0.0
    %4245 = vmatprep.subr.mxu0 0.0
    %4246 = vmatpush1.msra.mxu0 0.0
    %4247 = vmatprep.subr.mxu0 0.0
    %4248 = vmatpush1.msra.mxu0 0.0
    %4249 = vmatprep.subr.mxu0 0.0
    %4250 = vmatpush1.msra.mxu0 0.0
    %4251 = vmatprep.subr.mxu0 0.0
    %4252 = vmatpush1.msra.mxu0 0.0
    %4253 = vmatprep.subr.mxu0 0.0
    %4254 = vmatpush1.msra.mxu0 0.0
    %4255 = vmatprep.subr.mxu0 0.0
    %4256 = vmatpush1.msra.mxu0 0.0
    %4257 = vmatprep.subr.mxu0 0.0
    %4258 = vmatpush1.msra.mxu0 0.0
    %4259 = vmatprep.subr.mxu0 0.0
    %4260 = vmatpush1.msra.mxu0 0.0
    %4261 = vmatprep.subr.mxu0 0.0
    %4262 = vmatpush1.msra.mxu0 0.0
    %4263 = vmatprep.subr.mxu0 0.0
    %4264 = vmatpush1.msra.mxu0 0.0
    %4265 = vmatprep.subr.mxu0 0.0
    %4266 = vmatpush1.msra.mxu0 0.0
    %4267 = vmatprep.subr.mxu0 0.0
    %4268 = vmatpush1.msra.mxu0 0.0
    %4269 = vmatprep.subr.mxu0 0.0
    %4270 = vmatpush1.msra.mxu0 0.0
    %4271 = vmatprep.subr.mxu0 0.0
    %4272 = vmatpush1.msra.mxu0 0.0
    %4273 = vmatprep.subr.mxu0 0.0
    %4274 = vmatpush1.msra.mxu0 0.0
    %4275 = vmatprep.subr.mxu0 0.0
    %4276 = vmatpush1.msra.mxu0 0.0
    %4277 = vmatprep.subr.mxu0 0.0
    %4278 = vmatpush1.msra.mxu0 0.0
    %4279 = vmatprep.subr.mxu0 0.0
    %4280 = vmatpush1.msra.mxu0 0.0
    %4281 = vmatprep.subr.mxu0 0.0
    %4282 = vmatpush1.msra.mxu0 0.0
    %4283 = vmatprep.mubr.f32.mxu0 0.0
    %4284 = vmatmul.mubr.f32.gmra.mrb[0].mxu0 %v4217
    %v4285 = vpop.f32.mrb[0].mxu0
    %v4286 = vadd.f32 0.0, %v4285
    %v4287 = vpop.f32.mrb[0].mxu0
    %v4288 = vadd.f32 0.0, %v4287
    %4289 = vdwg.mxu0
    %v4291 = vsel %vm104, %v4203, 0
    %4293 = vmatprep.subr.mxu0 %v4202
    %4294 = vmatpush1.msra.mxu0 %v4201
    %4295 = vmatprep.subr.mxu0 0.0
    %4296 = vmatpush1.msra.mxu0 0.0
    %4297 = vmatprep.subr.mxu0 0.0
    %4298 = vmatpush1.msra.mxu0 0.0
    %4299 = vmatprep.subr.mxu0 0.0
    %4300 = vmatpush1.msra.mxu0 0.0
    %4301 = vmatprep.subr.mxu0 0.0
    %4302 = vmatpush1.msra.mxu0 0.0
    %4303 = vmatprep.subr.mxu0 0.0
    %4304 = vmatpush1.msra.mxu0 0.0
    %4305 = vmatprep.subr.mxu0 0.0
    %4306 = vmatpush1.msra.mxu0 0.0
    %4307 = vmatprep.subr.mxu0 0.0
    %4308 = vmatpush1.msra.mxu0 0.0
    %4309 = vmatprep.subr.mxu0 0.0
    %4310 = vmatpush1.msra.mxu0 0.0
    %4311 = vmatprep.subr.mxu0 0.0
    %4312 = vmatpush1.msra.mxu0 0.0
    %4313 = vmatprep.subr.mxu0 0.0
    %4314 = vmatpush1.msra.mxu0 0.0
    %4315 = vmatprep.subr.mxu0 0.0
    %4316 = vmatpush1.msra.mxu0 0.0
    %4317 = vmatprep.subr.mxu0 0.0
    %4318 = vmatpush1.msra.mxu0 0.0
    %4319 = vmatprep.subr.mxu0 0.0
    %4320 = vmatpush1.msra.mxu0 0.0
    %4321 = vmatprep.subr.mxu0 0.0
    %4322 = vmatpush1.msra.mxu0 0.0
    %4323 = vmatprep.subr.mxu0 0.0
    %4324 = vmatpush1.msra.mxu0 0.0
    %4325 = vmatprep.subr.mxu0 0.0
    %4326 = vmatpush1.msra.mxu0 0.0
    %4327 = vmatprep.subr.mxu0 0.0
    %4328 = vmatpush1.msra.mxu0 0.0
    %4329 = vmatprep.subr.mxu0 0.0
    %4330 = vmatpush1.msra.mxu0 0.0
    %4331 = vmatprep.subr.mxu0 0.0
    %4332 = vmatpush1.msra.mxu0 0.0
    %4333 = vmatprep.subr.mxu0 0.0
    %4334 = vmatpush1.msra.mxu0 0.0
    %4335 = vmatprep.subr.mxu0 0.0
    %4336 = vmatpush1.msra.mxu0 0.0
    %4337 = vmatprep.subr.mxu0 0.0
    %4338 = vmatpush1.msra.mxu0 0.0
    %4339 = vmatprep.subr.mxu0 0.0
    %4340 = vmatpush1.msra.mxu0 0.0
    %4341 = vmatprep.subr.mxu0 0.0
    %4342 = vmatpush1.msra.mxu0 0.0
    %4343 = vmatprep.subr.mxu0 0.0
    %4344 = vmatpush1.msra.mxu0 0.0
    %4345 = vmatprep.subr.mxu0 0.0
    %4346 = vmatpush1.msra.mxu0 0.0
    %4347 = vmatprep.subr.mxu0 0.0
    %4348 = vmatpush1.msra.mxu0 0.0
    %4349 = vmatprep.subr.mxu0 0.0
    %4350 = vmatpush1.msra.mxu0 0.0
    %4351 = vmatprep.subr.mxu0 0.0
    %4352 = vmatpush1.msra.mxu0 0.0
    %4353 = vmatprep.subr.mxu0 0.0
    %4354 = vmatpush1.msra.mxu0 0.0
    %4355 = vmatprep.subr.mxu0 0.0
    %4356 = vmatpush1.msra.mxu0 0.0
    %4357 = vmatprep.mubr.f32.mxu0 0.0
    %4358 = vmatmul.mubr.f32.gmra.mrb[0].mxu0 %v4291
    %v4359 = vpop.f32.mrb[0].mxu0
    %v4360 = vadd.f32 %v4286, %v4359
    %v4361 = vpop.f32.mrb[0].mxu0
    %v4362 = vadd.f32 %v4288, %v4361
    %4363 = vdwg.mxu0
    %4364 = vrot.lane.b32.xlu0 %v4189, 15
    %v4365 = vpop.permute.xlu0 %4364
    %4367 = vrot.lane.b32.xlu0 %v4188, 15
    %v4368 = vpop.permute.xlu0 %4367
    %v4369 = vsel %vm258, %v4368, %v4365
    %v4372 = vsel %vm258, %v4365, %v4368
    %v4373 = vmul.f32 %v4372, %v2783
    %v4374 = vmul.f32 %v4369, %v2784
    %v4375 = vld [vmem:[%s1882] sm:$0xff]
    %v4377 = vsel %vm104, %v4375, 0
    %4379 = vmatprep.subr.mxu0 %v4374
    %4380 = vmatpush1.msra.mxu0 %v4373
    %4381 = vmatprep.subr.mxu0 0.0
    %4382 = vmatpush1.msra.mxu0 0.0
    %4383 = vmatprep.subr.mxu0 0.0
    %4384 = vmatpush1.msra.mxu0 0.0
    %4385 = vmatprep.subr.mxu0 0.0
    %4386 = vmatpush1.msra.mxu0 0.0
    %4387 = vmatprep.subr.mxu0 0.0
    %4388 = vmatpush1.msra.mxu0 0.0
    %4389 = vmatprep.subr.mxu0 0.0
    %4390 = vmatpush1.msra.mxu0 0.0
    %4391 = vmatprep.subr.mxu0 0.0
    %4392 = vmatpush1.msra.mxu0 0.0
    %4393 = vmatprep.subr.mxu0 0.0
    %4394 = vmatpush1.msra.mxu0 0.0
    %4395 = vmatprep.subr.mxu0 0.0
    %4396 = vmatpush1.msra.mxu0 0.0
    %4397 = vmatprep.subr.mxu0 0.0
    %4398 = vmatpush1.msra.mxu0 0.0
    %4399 = vmatprep.subr.mxu0 0.0
    %4400 = vmatpush1.msra.mxu0 0.0
    %4401 = vmatprep.subr.mxu0 0.0
    %4402 = vmatpush1.msra.mxu0 0.0
    %4403 = vmatprep.subr.mxu0 0.0
    %4404 = vmatpush1.msra.mxu0 0.0
    %4405 = vmatprep.subr.mxu0 0.0
    %4406 = vmatpush1.msra.mxu0 0.0
    %4407 = vmatprep.subr.mxu0 0.0
    %4408 = vmatpush1.msra.mxu0 0.0
    %4409 = vmatprep.subr.mxu0 0.0
    %4410 = vmatpush1.msra.mxu0 0.0
    %4411 = vmatprep.subr.mxu0 0.0
    %4412 = vmatpush1.msra.mxu0 0.0
    %4413 = vmatprep.subr.mxu0 0.0
    %4414 = vmatpush1.msra.mxu0 0.0
    %4415 = vmatprep.subr.mxu0 0.0
    %4416 = vmatpush1.msra.mxu0 0.0
    %4417 = vmatprep.subr.mxu0 0.0
    %4418 = vmatpush1.msra.mxu0 0.0
    %4419 = vmatprep.subr.mxu0 0.0
    %4420 = vmatpush1.msra.mxu0 0.0
    %4421 = vmatprep.subr.mxu0 0.0
    %4422 = vmatpush1.msra.mxu0 0.0
    %4423 = vmatprep.subr.mxu0 0.0
    %4424 = vmatpush1.msra.mxu0 0.0
    %4425 = vmatprep.subr.mxu0 0.0
    %4426 = vmatpush1.msra.mxu0 0.0
    %4427 = vmatprep.subr.mxu0 0.0
    %4428 = vmatpush1.msra.mxu0 0.0
    %4429 = vmatprep.subr.mxu0 0.0
    %4430 = vmatpush1.msra.mxu0 0.0
    %4431 = vmatprep.subr.mxu0 0.0
    %4432 = vmatpush1.msra.mxu0 0.0
    %4433 = vmatprep.subr.mxu0 0.0
    %4434 = vmatpush1.msra.mxu0 0.0
    %4435 = vmatprep.subr.mxu0 0.0
    %4436 = vmatpush1.msra.mxu0 0.0
    %4437 = vmatprep.subr.mxu0 0.0
    %4438 = vmatpush1.msra.mxu0 0.0
    %4439 = vmatprep.subr.mxu0 0.0
    %4440 = vmatpush1.msra.mxu0 0.0
    %4441 = vmatprep.subr.mxu0 0.0
    %4442 = vmatpush1.msra.mxu0 0.0
    %4443 = vmatprep.mubr.f32.mxu0 0.0
    %4444 = vmatmul.mubr.f32.gmra.mrb[0].mxu0 %v4377
    %v4445 = vpop.f32.mrb[0].mxu0
    %v4446 = vadd.f32 0.0, %v4445
    %v4447 = vpop.f32.mrb[0].mxu0
    %v4448 = vadd.f32 0.0, %v4447
    %4449 = vdwg.mxu0
    %v4450 = vadd.f32 %v4360, %v4446
    %v4451 = vadd.f32 %v4362, %v4448
    %4452 = vrot.lane.b32.xlu0 %v4189, 1
    %v4453 = vpop.permute.xlu0 %4452
    %4455 = vrot.lane.b32.xlu0 %v4188, 1
    %v4456 = vpop.permute.xlu0 %4455
    %v4457 = vsel %vm351, %v4456, %v4453
    %v4460 = vsel %vm351, %v4453, %v4456
    %v4461 = vmul.f32 %v4460, %v2873
    %v4462 = vmul.f32 %v4457, %v2874
    %v4463 = vld [vmem:[%s1971] sm:$0xff]
    %v4465 = vsel %vm104, %v4463, 0
    %4467 = vmatprep.subr.mxu0 %v4462
    %4468 = vmatpush1.msra.mxu0 %v4461
    %4469 = vmatprep.subr.mxu0 0.0
    %4470 = vmatpush1.msra.mxu0 0.0
    %4471 = vmatprep.subr.mxu0 0.0
    %4472 = vmatpush1.msra.mxu0 0.0
    %4473 = vmatprep.subr.mxu0 0.0
    %4474 = vmatpush1.msra.mxu0 0.0
    %4475 = vmatprep.subr.mxu0 0.0
    %4476 = vmatpush1.msra.mxu0 0.0
    %4477 = vmatprep.subr.mxu0 0.0
    %4478 = vmatpush1.msra.mxu0 0.0
    %4479 = vmatprep.subr.mxu0 0.0
    %4480 = vmatpush1.msra.mxu0 0.0
    %4481 = vmatprep.subr.mxu0 0.0
    %4482 = vmatpush1.msra.mxu0 0.0
    %4483 = vmatprep.subr.mxu0 0.0
    %4484 = vmatpush1.msra.mxu0 0.0
    %4485 = vmatprep.subr.mxu0 0.0
    %4486 = vmatpush1.msra.mxu0 0.0
    %4487 = vmatprep.subr.mxu0 0.0
    %4488 = vmatpush1.msra.mxu0 0.0
    %4489 = vmatprep.subr.mxu0 0.0
    %4490 = vmatpush1.msra.mxu0 0.0
    %4491 = vmatprep.subr.mxu0 0.0
    %4492 = vmatpush1.msra.mxu0 0.0
    %4493 = vmatprep.subr.mxu0 0.0
    %4494 = vmatpush1.msra.mxu0 0.0
    %4495 = vmatprep.subr.mxu0 0.0
    %4496 = vmatpush1.msra.mxu0 0.0
    %4497 = vmatprep.subr.mxu0 0.0
    %4498 = vmatpush1.msra.mxu0 0.0
    %4499 = vmatprep.subr.mxu0 0.0
    %4500 = vmatpush1.msra.mxu0 0.0
    %4501 = vmatprep.subr.mxu0 0.0
    %4502 = vmatpush1.msra.mxu0 0.0
    %4503 = vmatprep.subr.mxu0 0.0
    %4504 = vmatpush1.msra.mxu0 0.0
    %4505 = vmatprep.subr.mxu0 0.0
    %4506 = vmatpush1.msra.mxu0 0.0
    %4507 = vmatprep.subr.mxu0 0.0
    %4508 = vmatpush1.msra.mxu0 0.0
    %4509 = vmatprep.subr.mxu0 0.0
    %4510 = vmatpush1.msra.mxu0 0.0
    %4511 = vmatprep.subr.mxu0 0.0
    %4512 = vmatpush1.msra.mxu0 0.0
    %4513 = vmatprep.subr.mxu0 0.0
    %4514 = vmatpush1.msra.mxu0 0.0
    %4515 = vmatprep.subr.mxu0 0.0
    %4516 = vmatpush1.msra.mxu0 0.0
    %4517 = vmatprep.subr.mxu0 0.0
    %4518 = vmatpush1.msra.mxu0 0.0
    %4519 = vmatprep.subr.mxu0 0.0
    %4520 = vmatpush1.msra.mxu0 0.0
    %4521 = vmatprep.subr.mxu0 0.0
    %4522 = vmatpush1.msra.mxu0 0.0
    %4523 = vmatprep.subr.mxu0 0.0
    %4524 = vmatpush1.msra.mxu0 0.0
    %4525 = vmatprep.subr.mxu0 0.0
    %4526 = vmatpush1.msra.mxu0 0.0
    %4527 = vmatprep.subr.mxu0 0.0
    %4528 = vmatpush1.msra.mxu0 0.0
    %4529 = vmatprep.subr.mxu0 0.0
    %4530 = vmatpush1.msra.mxu0 0.0
    %4531 = vmatprep.mubr.f32.mxu0 0.0
    %4532 = vmatmul.mubr.f32.gmra.mrb[0].mxu0 %v4465
    %v4533 = vpop.f32.mrb[0].mxu0
    %v4534 = vadd.f32 0.0, %v4533
    %v4535 = vpop.f32.mrb[0].mxu0
    %v4536 = vadd.f32 0.0, %v4535
    %4537 = vdwg.mxu0
    %v4538 = vadd.f32 %v4450, %v4534
    %v4539 = vadd.f32 %v4451, %v4536
    %v4540 = vld [vmem:[%s2049] sm:$0xff]
    %v4542 = vsel %vm104, %v4540, 0
    %4544 = vmatprep.subr.mxu0 %v4189
    %4545 = vmatpush1.msra.mxu0 %v4188
    %4546 = vmatprep.subr.mxu0 0.0
    %4547 = vmatpush1.msra.mxu0 0.0
    %4548 = vmatprep.subr.mxu0 0.0
    %4549 = vmatpush1.msra.mxu0 0.0
    %4550 = vmatprep.subr.mxu0 0.0
    %4551 = vmatpush1.msra.mxu0 0.0
    %4552 = vmatprep.subr.mxu0 0.0
    %4553 = vmatpush1.msra.mxu0 0.0
    %4554 = vmatprep.subr.mxu0 0.0
    %4555 = vmatpush1.msra.mxu0 0.0
    %4556 = vmatprep.subr.mxu0 0.0
    %4557 = vmatpush1.msra.mxu0 0.0
    %4558 = vmatprep.subr.mxu0 0.0
    %4559 = vmatpush1.msra.mxu0 0.0
    %4560 = vmatprep.subr.mxu0 0.0
    %4561 = vmatpush1.msra.mxu0 0.0
    %4562 = vmatprep.subr.mxu0 0.0
    %4563 = vmatpush1.msra.mxu0 0.0
    %4564 = vmatprep.subr.mxu0 0.0
    %4565 = vmatpush1.msra.mxu0 0.0
    %4566 = vmatprep.subr.mxu0 0.0
    %4567 = vmatpush1.msra.mxu0 0.0
    %4568 = vmatprep.subr.mxu0 0.0
    %4569 = vmatpush1.msra.mxu0 0.0
    %4570 = vmatprep.subr.mxu0 0.0
    %4571 = vmatpush1.msra.mxu0 0.0
    %4572 = vmatprep.subr.mxu0 0.0
    %4573 = vmatpush1.msra.mxu0 0.0
    %4574 = vmatprep.subr.mxu0 0.0
    %4575 = vmatpush1.msra.mxu0 0.0
    %4576 = vmatprep.subr.mxu0 0.0
    %4577 = vmatpush1.msra.mxu0 0.0
    %4578 = vmatprep.subr.mxu0 0.0
    %4579 = vmatpush1.msra.mxu0 0.0
    %4580 = vmatprep.subr.mxu0 0.0
    %4581 = vmatpush1.msra.mxu0 0.0
    %4582 = vmatprep.subr.mxu0 0.0
    %4583 = vmatpush1.msra.mxu0 0.0
    %4584 = vmatprep.subr.mxu0 0.0
    %4585 = vmatpush1.msra.mxu0 0.0
    %4586 = vmatprep.subr.mxu0 0.0
    %4587 = vmatpush1.msra.mxu0 0.0
    %4588 = vmatprep.subr.mxu0 0.0
    %4589 = vmatpush1.msra.mxu0 0.0
    %4590 = vmatprep.subr.mxu0 0.0
    %4591 = vmatpush1.msra.mxu0 0.0
    %4592 = vmatprep.subr.mxu0 0.0
    %4593 = vmatpush1.msra.mxu0 0.0
    %4594 = vmatprep.subr.mxu0 0.0
    %4595 = vmatpush1.msra.mxu0 0.0
    %4596 = vmatprep.subr.mxu0 0.0
    %4597 = vmatpush1.msra.mxu0 0.0
    %4598 = vmatprep.subr.mxu0 0.0
    %4599 = vmatpush1.msra.mxu0 0.0
    %4600 = vmatprep.subr.mxu0 0.0
    %4601 = vmatpush1.msra.mxu0 0.0
    %4602 = vmatprep.subr.mxu0 0.0
    %4603 = vmatpush1.msra.mxu0 0.0
    %4604 = vmatprep.subr.mxu0 0.0
    %4605 = vmatpush1.msra.mxu0 0.0
    %4606 = vmatprep.subr.mxu0 0.0
    %4607 = vmatpush1.msra.mxu0 0.0
    %4608 = vmatprep.mubr.f32.mxu0 0.0
    %4609 = vmatmul.mubr.f32.gmra.mrb[0].mxu0 %v4542
    %v4610 = vpop.f32.mrb[0].mxu0
    %v4611 = vadd.f32 0.0, %v4610
    %v4612 = vpop.f32.mrb[0].mxu0
    %v4613 = vadd.f32 0.0, %v4612
    %4614 = vdwg.mxu0
    %v4615 = vadd.f32 %v4538, %v4611
    %v4616 = vadd.f32 %v4539, %v4613
    %4617 = vrot.lane.b32.xlu0 %v4188, 127
    %v4618 = vpop.permute.xlu0 %4617
    %4619 = vrot.lane.b32.xlu0 %v4189, 127
    %v4620 = vpop.permute.xlu0 %4619
    %v4621 = vsel %vm521, %v4618, %v4620
    %v4625 = vsel %vm521, %v4620, %v4618
    %v4626 = vmul.f32 %v4621, %v3040
    %v4627 = vmul.f32 %v4625, %v3041
    %v4628 = vld [vmem:[%s2138] sm:$0xff]
    %v4630 = vsel %vm104, %v4628, 0
    %4632 = vmatprep.subr.mxu0 %v4627
    %4633 = vmatpush1.msra.mxu0 %v4626
    %4634 = vmatprep.subr.mxu0 0.0
    %4635 = vmatpush1.msra.mxu0 0.0
    %4636 = vmatprep.subr.mxu0 0.0
    %4637 = vmatpush1.msra.mxu0 0.0
    %4638 = vmatprep.subr.mxu0 0.0
    %4639 = vmatpush1.msra.mxu0 0.0
    %4640 = vmatprep.subr.mxu0 0.0
    %4641 = vmatpush1.msra.mxu0 0.0
    %4642 = vmatprep.subr.mxu0 0.0
    %4643 = vmatpush1.msra.mxu0 0.0
    %4644 = vmatprep.subr.mxu0 0.0
    %4645 = vmatpush1.msra.mxu0 0.0
    %4646 = vmatprep.subr.mxu0 0.0
    %4647 = vmatpush1.msra.mxu0 0.0
    %4648 = vmatprep.subr.mxu0 0.0
    %4649 = vmatpush1.msra.mxu0 0.0
    %4650 = vmatprep.subr.mxu0 0.0
    %4651 = vmatpush1.msra.mxu0 0.0
    %4652 = vmatprep.subr.mxu0 0.0
    %4653 = vmatpush1.msra.mxu0 0.0
    %4654 = vmatprep.subr.mxu0 0.0
    %4655 = vmatpush1.msra.mxu0 0.0
    %4656 = vmatprep.subr.mxu0 0.0
    %4657 = vmatpush1.msra.mxu0 0.0
    %4658 = vmatprep.subr.mxu0 0.0
    %4659 = vmatpush1.msra.mxu0 0.0
    %4660 = vmatprep.subr.mxu0 0.0
    %4661 = vmatpush1.msra.mxu0 0.0
    %4662 = vmatprep.subr.mxu0 0.0
    %4663 = vmatpush1.msra.mxu0 0.0
    %4664 = vmatprep.subr.mxu0 0.0
    %4665 = vmatpush1.msra.mxu0 0.0
    %4666 = vmatprep.subr.mxu0 0.0
    %4667 = vmatpush1.msra.mxu0 0.0
    %4668 = vmatprep.subr.mxu0 0.0
    %4669 = vmatpush1.msra.mxu0 0.0
    %4670 = vmatprep.subr.mxu0 0.0
    %4671 = vmatpush1.msra.mxu0 0.0
    %4672 = vmatprep.subr.mxu0 0.0
    %4673 = vmatpush1.msra.mxu0 0.0
    %4674 = vmatprep.subr.mxu0 0.0
    %4675 = vmatpush1.msra.mxu0 0.0
    %4676 = vmatprep.subr.mxu0 0.0
    %4677 = vmatpush1.msra.mxu0 0.0
    %4678 = vmatprep.subr.mxu0 0.0
    %4679 = vmatpush1.msra.mxu0 0.0
    %4680 = vmatprep.subr.mxu0 0.0
    %4681 = vmatpush1.msra.mxu0 0.0
    %4682 = vmatprep.subr.mxu0 0.0
    %4683 = vmatpush1.msra.mxu0 0.0
    %4684 = vmatprep.subr.mxu0 0.0
    %4685 = vmatpush1.msra.mxu0 0.0
    %4686 = vmatprep.subr.mxu0 0.0
    %4687 = vmatpush1.msra.mxu0 0.0
    %4688 = vmatprep.subr.mxu0 0.0
    %4689 = vmatpush1.msra.mxu0 0.0
    %4690 = vmatprep.subr.mxu0 0.0
    %4691 = vmatpush1.msra.mxu0 0.0
    %4692 = vmatprep.subr.mxu0 0.0
    %4693 = vmatpush1.msra.mxu0 0.0
    %4694 = vmatprep.subr.mxu0 0.0
    %4695 = vmatpush1.msra.mxu0 0.0
    %4696 = vmatprep.mubr.f32.mxu0 0.0
    %4697 = vmatmul.mubr.f32.gmra.mrb[0].mxu0 %v4630
    %v4698 = vpop.f32.mrb[0].mxu0
    %v4699 = vadd.f32 0.0, %v4698
    %v4700 = vpop.f32.mrb[0].mxu0
    %v4701 = vadd.f32 0.0, %v4700
    %4702 = vdwg.mxu0
    %v4703 = vadd.f32 %v4615, %v4699
    %v4704 = vadd.f32 %v4616, %v4701
    %4705 = vrot.lane.b32.xlu0 %v4188, 113
    %v4706 = vpop.permute.xlu0 %4705
    %4707 = vrot.lane.b32.xlu0 %v4189, 113
    %v4708 = vpop.permute.xlu0 %4707
    %v4709 = vsel %vm614, %v4706, %v4708
    %v4713 = vsel %vm614, %v4708, %v4706
    %v4714 = vmul.f32 %v4709, %v3130
    %v4715 = vmul.f32 %v4713, %v3131
    %v4716 = vld [vmem:[%s2227] sm:$0xff]
    %v4718 = vsel %vm104, %v4716, 0
    %4720 = vmatprep.subr.mxu0 %v4715
    %4721 = vmatpush1.msra.mxu0 %v4714
    %4722 = vmatprep.subr.mxu0 0.0
    %4723 = vmatpush1.msra.mxu0 0.0
    %4724 = vmatprep.subr.mxu0 0.0
    %4725 = vmatpush1.msra.mxu0 0.0
    %4726 = vmatprep.subr.mxu0 0.0
    %4727 = vmatpush1.msra.mxu0 0.0
    %4728 = vmatprep.subr.mxu0 0.0
    %4729 = vmatpush1.msra.mxu0 0.0
    %4730 = vmatprep.subr.mxu0 0.0
    %4731 = vmatpush1.msra.mxu0 0.0
    %4732 = vmatprep.subr.mxu0 0.0
    %4733 = vmatpush1.msra.mxu0 0.0
    %4734 = vmatprep.subr.mxu0 0.0
    %4735 = vmatpush1.msra.mxu0 0.0
    %4736 = vmatprep.subr.mxu0 0.0
    %4737 = vmatpush1.msra.mxu0 0.0
    %4738 = vmatprep.subr.mxu0 0.0
    %4739 = vmatpush1.msra.mxu0 0.0
    %4740 = vmatprep.subr.mxu0 0.0
    %4741 = vmatpush1.msra.mxu0 0.0
    %4742 = vmatprep.subr.mxu0 0.0
    %4743 = vmatpush1.msra.mxu0 0.0
    %4744 = vmatprep.subr.mxu0 0.0
    %4745 = vmatpush1.msra.mxu0 0.0
    %4746 = vmatprep.subr.mxu0 0.0
    %4747 = vmatpush1.msra.mxu0 0.0
    %4748 = vmatprep.subr.mxu0 0.0
    %4749 = vmatpush1.msra.mxu0 0.0
    %4750 = vmatprep.subr.mxu0 0.0
    %4751 = vmatpush1.msra.mxu0 0.0
    %4752 = vmatprep.subr.mxu0 0.0
    %4753 = vmatpush1.msra.mxu0 0.0
    %4754 = vmatprep.subr.mxu0 0.0
    %4755 = vmatpush1.msra.mxu0 0.0
    %4756 = vmatprep.subr.mxu0 0.0
    %4757 = vmatpush1.msra.mxu0 0.0
    %4758 = vmatprep.subr.mxu0 0.0
    %4759 = vmatpush1.msra.mxu0 0.0
    %4760 = vmatprep.subr.mxu0 0.0
    %4761 = vmatpush1.msra.mxu0 0.0
    %4762 = vmatprep.subr.mxu0 0.0
    %4763 = vmatpush1.msra.mxu0 0.0
    %4764 = vmatprep.subr.mxu0 0.0
    %4765 = vmatpush1.msra.mxu0 0.0
    %4766 = vmatprep.subr.mxu0 0.0
    %4767 = vmatpush1.msra.mxu0 0.0
    %4768 = vmatprep.subr.mxu0 0.0
    %4769 = vmatpush1.msra.mxu0 0.0
    %4770 = vmatprep.subr.mxu0 0.0
    %4771 = vmatpush1.msra.mxu0 0.0
    %4772 = vmatprep.subr.mxu0 0.0
    %4773 = vmatpush1.msra.mxu0 0.0
    %4774 = vmatprep.subr.mxu0 0.0
    %4775 = vmatpush1.msra.mxu0 0.0
    %4776 = vmatprep.subr.mxu0 0.0
    %4777 = vmatpush1.msra.mxu0 0.0
    %4778 = vmatprep.subr.mxu0 0.0
    %4779 = vmatpush1.msra.mxu0 0.0
    %4780 = vmatprep.subr.mxu0 0.0
    %4781 = vmatpush1.msra.mxu0 0.0
    %4782 = vmatprep.subr.mxu0 0.0
    %4783 = vmatpush1.msra.mxu0 0.0
    %4784 = vmatprep.mubr.f32.mxu0 0.0
    %4785 = vmatmul.mubr.f32.gmra.mrb[0].mxu0 %v4718
    %v4786 = vpop.f32.mrb[0].mxu0
    %v4787 = vadd.f32 0.0, %v4786
    %v4788 = vpop.f32.mrb[0].mxu0
    %v4789 = vadd.f32 0.0, %v4788
    %4790 = vdwg.mxu0
    %v4791 = vadd.f32 %v4703, %v4787
    %v4792 = vadd.f32 %v4704, %v4789
    %4793 = vrot.lane.b32.xlu0 %v4188, 112
    %v4794 = vpop.permute.xlu0 %4793
    %4795 = vrot.lane.b32.xlu0 %v4189, 112
    %v4796 = vpop.permute.xlu0 %4795
    %v4797 = vsel %vm707, %v4794, %v4796
    %v4801 = vsel %vm707, %v4796, %v4794
    %v4802 = vmul.f32 %v4797, %v3220
    %v4803 = vmul.f32 %v4801, %v3221
    %v4804 = vld [vmem:[%s2316] sm:$0xff]
    %v4806 = vsel %vm104, %v4804, 0
    %4808 = vmatprep.subr.mxu0 %v4803
    %4809 = vmatpush1.msra.mxu0 %v4802
    %4810 = vmatprep.subr.mxu0 0.0
    %4811 = vmatpush1.msra.mxu0 0.0
    %4812 = vmatprep.subr.mxu0 0.0
    %4813 = vmatpush1.msra.mxu0 0.0
    %4814 = vmatprep.subr.mxu0 0.0
    %4815 = vmatpush1.msra.mxu0 0.0
    %4816 = vmatprep.subr.mxu0 0.0
    %4817 = vmatpush1.msra.mxu0 0.0
    %4818 = vmatprep.subr.mxu0 0.0
    %4819 = vmatpush1.msra.mxu0 0.0
    %4820 = vmatprep.subr.mxu0 0.0
    %4821 = vmatpush1.msra.mxu0 0.0
    %4822 = vmatprep.subr.mxu0 0.0
    %4823 = vmatpush1.msra.mxu0 0.0
    %4824 = vmatprep.subr.mxu0 0.0
    %4825 = vmatpush1.msra.mxu0 0.0
    %4826 = vmatprep.subr.mxu0 0.0
    %4827 = vmatpush1.msra.mxu0 0.0
    %4828 = vmatprep.subr.mxu0 0.0
    %4829 = vmatpush1.msra.mxu0 0.0
    %4830 = vmatprep.subr.mxu0 0.0
    %4831 = vmatpush1.msra.mxu0 0.0
    %4832 = vmatprep.subr.mxu0 0.0
    %4833 = vmatpush1.msra.mxu0 0.0
    %4834 = vmatprep.subr.mxu0 0.0
    %4835 = vmatpush1.msra.mxu0 0.0
    %4836 = vmatprep.subr.mxu0 0.0
    %4837 = vmatpush1.msra.mxu0 0.0
    %4838 = vmatprep.subr.mxu0 0.0
    %4839 = vmatpush1.msra.mxu0 0.0
    %4840 = vmatprep.subr.mxu0 0.0
    %4841 = vmatpush1.msra.mxu0 0.0
    %4842 = vmatprep.subr.mxu0 0.0
    %4843 = vmatpush1.msra.mxu0 0.0
    %4844 = vmatprep.subr.mxu0 0.0
    %4845 = vmatpush1.msra.mxu0 0.0
    %4846 = vmatprep.subr.mxu0 0.0
    %4847 = vmatpush1.msra.mxu0 0.0
    %4848 = vmatprep.subr.mxu0 0.0
    %4849 = vmatpush1.msra.mxu0 0.0
    %4850 = vmatprep.subr.mxu0 0.0
    %4851 = vmatpush1.msra.mxu0 0.0
    %4852 = vmatprep.subr.mxu0 0.0
    %4853 = vmatpush1.msra.mxu0 0.0
    %4854 = vmatprep.subr.mxu0 0.0
    %4855 = vmatpush1.msra.mxu0 0.0
    %4856 = vmatprep.subr.mxu0 0.0
    %4857 = vmatpush1.msra.mxu0 0.0
    %4858 = vmatprep.subr.mxu0 0.0
    %4859 = vmatpush1.msra.mxu0 0.0
    %4860 = vmatprep.subr.mxu0 0.0
    %4861 = vmatpush1.msra.mxu0 0.0
    %4862 = vmatprep.subr.mxu0 0.0
    %4863 = vmatpush1.msra.mxu0 0.0
    %4864 = vmatprep.subr.mxu0 0.0
    %4865 = vmatpush1.msra.mxu0 0.0
    %4866 = vmatprep.subr.mxu0 0.0
    %4867 = vmatpush1.msra.mxu0 0.0
    %4868 = vmatprep.subr.mxu0 0.0
    %4869 = vmatpush1.msra.mxu0 0.0
    %4870 = vmatprep.subr.mxu0 0.0
    %4871 = vmatpush1.msra.mxu0 0.0
    %4872 = vmatprep.mubr.f32.mxu0 0.0
    %4873 = vmatmul.mubr.f32.gmra.mrb[0].mxu0 %v4806
    %v4874 = vpop.f32.mrb[0].mxu0
    %v4875 = vadd.f32 0.0, %v4874
    %v4876 = vpop.f32.mrb[0].mxu0
    %v4877 = vadd.f32 0.0, %v4876
    %4878 = vdwg.mxu0
    %v4879 = vadd.f32 %v4791, %v4875
    %v4880 = vadd.f32 %v4792, %v4877
    %4881 = vrot.lane.b32.xlu0 %v4188, 111
    %v4882 = vpop.permute.xlu0 %4881
    %4883 = vrot.lane.b32.xlu0 %v4189, 111
    %v4884 = vpop.permute.xlu0 %4883
    %v4885 = vsel %vm800, %v4882, %v4884
    %v4889 = vsel %vm800, %v4884, %v4882
    %v4890 = vmul.f32 %v4885, %v3310
    %v4891 = vmul.f32 %v4889, %v3311
    %v4892 = vld [vmem:[%s2405] sm:$0xff]
    %v4894 = vsel %vm104, %v4892, 0
    %4896 = vmatprep.subr.mxu0 %v4891
    %4897 = vmatpush1.msra.mxu0 %v4890
    %4898 = vmatprep.subr.mxu0 0.0
    %4899 = vmatpush1.msra.mxu0 0.0
    %4900 = vmatprep.subr.mxu0 0.0
    %4901 = vmatpush1.msra.mxu0 0.0
    %4902 = vmatprep.subr.mxu0 0.0
    %4903 = vmatpush1.msra.mxu0 0.0
    %4904 = vmatprep.subr.mxu0 0.0
    %4905 = vmatpush1.msra.mxu0 0.0
    %4906 = vmatprep.subr.mxu0 0.0
    %4907 = vmatpush1.msra.mxu0 0.0
    %4908 = vmatprep.subr.mxu0 0.0
    %4909 = vmatpush1.msra.mxu0 0.0
    %4910 = vmatprep.subr.mxu0 0.0
    %4911 = vmatpush1.msra.mxu0 0.0
    %4912 = vmatprep.subr.mxu0 0.0
    %4913 = vmatpush1.msra.mxu0 0.0
    %4914 = vmatprep.subr.mxu0 0.0
    %4915 = vmatpush1.msra.mxu0 0.0
    %4916 = vmatprep.subr.mxu0 0.0
    %4917 = vmatpush1.msra.mxu0 0.0
    %4918 = vmatprep.subr.mxu0 0.0
    %4919 = vmatpush1.msra.mxu0 0.0
    %4920 = vmatprep.subr.mxu0 0.0
    %4921 = vmatpush1.msra.mxu0 0.0
    %4922 = vmatprep.subr.mxu0 0.0
    %4923 = vmatpush1.msra.mxu0 0.0
    %4924 = vmatprep.subr.mxu0 0.0
    %4925 = vmatpush1.msra.mxu0 0.0
    %4926 = vmatprep.subr.mxu0 0.0
    %4927 = vmatpush1.msra.mxu0 0.0
    %4928 = vmatprep.subr.mxu0 0.0
    %4929 = vmatpush1.msra.mxu0 0.0
    %4930 = vmatprep.subr.mxu0 0.0
    %4931 = vmatpush1.msra.mxu0 0.0
    %4932 = vmatprep.subr.mxu0 0.0
    %4933 = vmatpush1.msra.mxu0 0.0
    %4934 = vmatprep.subr.mxu0 0.0
    %4935 = vmatpush1.msra.mxu0 0.0
    %4936 = vmatprep.subr.mxu0 0.0
    %4937 = vmatpush1.msra.mxu0 0.0
    %4938 = vmatprep.subr.mxu0 0.0
    %4939 = vmatpush1.msra.mxu0 0.0
    %4940 = vmatprep.subr.mxu0 0.0
    %4941 = vmatpush1.msra.mxu0 0.0
    %4942 = vmatprep.subr.mxu0 0.0
    %4943 = vmatpush1.msra.mxu0 0.0
    %4944 = vmatprep.subr.mxu0 0.0
    %4945 = vmatpush1.msra.mxu0 0.0
    %4946 = vmatprep.subr.mxu0 0.0
    %4947 = vmatpush1.msra.mxu0 0.0
    %4948 = vmatprep.subr.mxu0 0.0
    %4949 = vmatpush1.msra.mxu0 0.0
    %4950 = vmatprep.subr.mxu0 0.0
    %4951 = vmatpush1.msra.mxu0 0.0
    %4952 = vmatprep.subr.mxu0 0.0
    %4953 = vmatpush1.msra.mxu0 0.0
    %4954 = vmatprep.subr.mxu0 0.0
    %4955 = vmatpush1.msra.mxu0 0.0
    %4956 = vmatprep.subr.mxu0 0.0
    %4957 = vmatpush1.msra.mxu0 0.0
    %4958 = vmatprep.subr.mxu0 0.0
    %4959 = vmatpush1.msra.mxu0 0.0
    %4960 = vmatprep.mubr.f32.mxu0 0.0
    %4961 = vmatmul.mubr.f32.gmra.mrb[0].mxu0 %v4894
    %v4962 = vpop.f32.mrb[0].mxu0
    %v4963 = vadd.f32 0.0, %v4962
    %v4964 = vpop.f32.mrb[0].mxu0
    %v4965 = vadd.f32 0.0, %v4964
    %4966 = vdwg.mxu0
    %v4967 = vadd.f32 %v4879, %v4963
    %v4968 = vadd.f32 %v4880, %v4965
    %v4969 = vld [vmem:[%s8] sm:$0xff]
    %4971 = vset.pattern.permute.xlu0 0
    %4972 = vperm.xlu0 %4971, %v4969
    %v4973 = vpop.permute.xlu0 %4972
    %v4975 = vadd.f32 %v4967, %v4973
    %v4976 = vadd.f32 %v4968, %v4973
    %v4977 = vmax.f32 %v4975, 0.0
    %v4978 = vmax.f32 %v4976, 0.0
    %s4979 = scalar_lea.vmem [#allocation2], 16
    %4980 = vst [vmem:[%s4979] sm:$0xff] %v4977
    %4981 = vst [vmem:[%s4979 + $0x8] sm:$0xff] %v4978
    %4984 = vrot.lane.b32.xlu0 %v4977, 127
    %v4985 = vpop.permute.xlu0 %4984
    %4986 = vrot.lane.b32.xlu0 %v4978, 127
    %v4987 = vpop.permute.xlu0 %4986
    %v4988 = vsel %vm521, %v4985, %v4987
    %v4992 = vsel %vm521, %v4987, %v4985
    %v4993 = vmax.f32 %v4977, %v4988
    %v4994 = vmax.f32 %v4978, %v4992
    %4997 = vrot.lane.b32.xlu0 %v4993, 112
    %v4998 = vpop.permute.xlu0 %4997
    %4999 = vrot.lane.b32.xlu0 %v4994, 112
    %v5000 = vpop.permute.xlu0 %4999
    %v5001 = vsel %vm707, %v4998, %v5000
    %v5005 = vsel %vm707, %v5000, %v4998
    %v5006 = vmax.f32 %v4993, %v5001
    %v5007 = vmax.f32 %v4994, %v5005
    %5008 = vmatprep.subr.mxu0 0.0
    %5009 = vmatpush1.msra.mxu0 %v36
    %5010 = vmatprep.subr.mxu0 0.0
    %5011 = vmatpush1.msra.mxu0 %v37
    %5012 = vmatprep.subr.mxu0 0.0
    %5013 = vmatpush1.msra.mxu0 %v38
    %5014 = vmatprep.subr.mxu0 0.0
    %5015 = vmatpush1.msra.mxu0 %v39
    %5016 = vmatprep.subr.mxu0 0.0
    %5017 = vmatpush1.msra.mxu0 %v40
    %5018 = vmatprep.subr.mxu0 0.0
    %5019 = vmatpush1.msra.mxu0 %v41
    %5020 = vmatprep.subr.mxu0 0.0
    %5021 = vmatpush1.msra.mxu0 %v42
    %5022 = vmatprep.subr.mxu0 0.0
    %5023 = vmatpush1.msra.mxu0 %v43
    %5024 = vmatprep.subr.mxu0 0.0
    %5025 = vmatpush1.msra.mxu0 %v44
    %5026 = vmatprep.subr.mxu0 0.0
    %5027 = vmatpush1.msra.mxu0 %v45
    %5028 = vmatprep.subr.mxu0 0.0
    %5029 = vmatpush1.msra.mxu0 %v46
    %5030 = vmatprep.subr.mxu0 0.0
    %5031 = vmatpush1.msra.mxu0 %v47
    %5032 = vmatprep.subr.mxu0 0.0
    %5033 = vmatpush1.msra.mxu0 %v48
    %5034 = vmatprep.subr.mxu0 0.0
    %5035 = vmatpush1.msra.mxu0 %v49
    %5036 = vmatprep.subr.mxu0 0.0
    %5037 = vmatpush1.msra.mxu0 %v50
    %5038 = vmatprep.subr.mxu0 0.0
    %5039 = vmatpush1.msra.mxu0 %v51
    %5040 = vmatprep.subr.mxu0 0.0
    %5041 = vmatpush1.msra.mxu0 %v52
    %5042 = vmatprep.subr.mxu0 0.0
    %5043 = vmatpush1.msra.mxu0 %v53
    %5044 = vmatprep.subr.mxu0 0.0
    %5045 = vmatpush1.msra.mxu0 %v54
    %5046 = vmatprep.subr.mxu0 0.0
    %5047 = vmatpush1.msra.mxu0 %v55
    %5048 = vmatprep.subr.mxu0 0.0
    %5049 = vmatpush1.msra.mxu0 %v56
    %5050 = vmatprep.subr.mxu0 0.0
    %5051 = vmatpush1.msra.mxu0 %v57
    %5052 = vmatprep.subr.mxu0 0.0
    %5053 = vmatpush1.msra.mxu0 %v58
    %5054 = vmatprep.subr.mxu0 0.0
    %5055 = vmatpush1.msra.mxu0 %v59
    %5056 = vmatprep.subr.mxu0 0.0
    %5057 = vmatpush1.msra.mxu0 %v60
    %5058 = vmatprep.subr.mxu0 0.0
    %5059 = vmatpush1.msra.mxu0 %v61
    %5060 = vmatprep.subr.mxu0 0.0
    %5061 = vmatpush1.msra.mxu0 %v62
    %5062 = vmatprep.subr.mxu0 0.0
    %5063 = vmatpush1.msra.mxu0 %v63
    %5064 = vmatprep.subr.mxu0 0.0
    %5065 = vmatpush1.msra.mxu0 %v64
    %5066 = vmatprep.subr.mxu0 0.0
    %5067 = vmatpush1.msra.mxu0 %v65
    %5068 = vmatprep.subr.mxu0 0.0
    %5069 = vmatpush1.msra.mxu0 %v66
    %5070 = vmatprep.subr.mxu0 0.0
    %5071 = vmatpush1.msra.mxu0 %v67
    %5072 = vmatprep.mubr.f32.mxu0 %v5007
    %5073 = vmatmul.mubr.f32.gmra.mrb[0].mxu0 %v5006
    %v5074 = vpop.f32.mrb[0].mxu0
    %v5075 = vadd.f32 0.0, %v5074
    %v5076 = vpop.f32.mrb[0].mxu0
    %5077 = vdwg.mxu0
    %s5078 = scalar_lea.vmem [#allocation4], 8
    %5079 = vst.msk [vmem:[%s5078] sm:$0xff] %vm2591, %v5075
    // Predicated region
    $region38: #{tpu_custom_call.1} parent=1 // pred_check
      _
    $region39: #{tpu_custom_call.1} parent=1 // pred_check_branch
      %5081 = sbr.rel (0) target = $region41
    $region40: #{tpu_custom_call.1} parent=1 // pred_region
      %s5083 = ssub.s32 512, 512
      %5084 = vsyncadd [#allocation3], %s5083
      %s5085 = sshll.u32 [#allocation2], 4
      %s5086 = int_to_ptr.vmem [resolvable:$true] %s5085
      %5091 = dma.vmem_to_hbm [thread:$0]  %s5086, 512, %s9, [#allocation3], 256, 256, 16
    $region41: #{tpu_custom_call.1} parent=1 // pred_fallthru
      _
    // Predicated region
    $region42: #{tpu_custom_call.1} parent=1 // pred_check
      _
    $region43: #{tpu_custom_call.1} parent=1 // pred_check_branch
      %5093 = sbr.rel (0) target = $region45
    $region44: #{tpu_custom_call.1} parent=1 // pred_region
      %s5095 = ssub.s32 256, 256
      %5096 = vsyncadd [#allocation5], %s5095
      %s5097 = sshll.u32 [#allocation4], 4
      %s5098 = int_to_ptr.vmem [resolvable:$true] %s5097
      %5103 = dma.vmem_to_hbm [thread:$0]  %s5098, 256, %s10, [#allocation5], 128, 128, 8
    $region45: #{tpu_custom_call.1} parent=1 // pred_fallthru
      _
    // Predicated region
    $region46: #{tpu_custom_call.1} parent=1 // pred_check
      _
    $region47: #{tpu_custom_call.1} parent=1 // pred_check_branch
      %5105 = sbr.rel (0) target = $region49
    $region48: #{tpu_custom_call.1} parent=1 // pred_region
      %5106 = dma.done [#allocation3], 512
    $region49: #{tpu_custom_call.1} parent=1 // pred_fallthru
      _
    // Predicated region
    $region50: #{tpu_custom_call.1} parent=1 // pred_check
      _
    $region51: #{tpu_custom_call.1} parent=1 // pred_check_branch
      %5108 = sbr.rel (0) target = $region53
    $region52: #{tpu_custom_call.1} parent=1 // pred_region
      %5109 = dma.done [#allocation5], 256
    $region53: #{tpu_custom_call.1} parent=1 // pred_fallthru
      _
    %5110 = vsyncpa [#allocation3], 1
    %5111 = vsyncpa [#allocation5], 1

</llo_original>
